<compile_context>
chip_gen: v6e
topology: v6e:2x2x1
jax: 0.10.0
libtpu: 0.0.40
codegen_flags: <defaults>
</compile_context>

<pallas_src>
import numpy as np
import jax
import jax.numpy as jnp
from jax.experimental import pallas as pl
from jax.experimental.pallas import tpu as pltpu

# ---- small config consistent with make_mtl_block(...) structure ----
NUM_TASKS = 3          # num_tasks
N_LAYERS = 5           # n_layers
FE_LAYERS = 3          # fe_layers
DIM = 8                # dim
FC_DIM = 32            # fc_dim
KSIZE = 3              # kernel_size
LRELU_SLOPE = 0.01     # nn.LeakyReLU default
IN_EPS = 1e-5          # nn.InstanceNorm2d default eps


def _lrelu(v):
    return jnp.where(v >= 0, v, LRELU_SLOPE * v)


# ----------------------------------------------------------------------------
# The single fused kernel.
#   p1   : (N*P1, K*K*Cin)  im2col patches of (att * x), all N = T*bs samples
#   w1   : (K*K*Cin, C1)    conv1 weight;  g1/b1: (1, C1) IN affine
#   sel  : (K*K, P2, P1)    0/1 tap-selection matrices for the stride-2 conv2
#   w2   : (K*K, C1, C2)    conv2 weight per tap;  g2/b2: (1, C2)
#   fcw  : (C2, FC), fcb: (1, FC)   fc_base
#   wo   : (N, FC), bo: (N, 1)      per-sample (= per-task) output head
#   out  : (N, 1)
# ----------------------------------------------------------------------------
def _fused_mtl_kernel(p1_ref, w1_ref, g1_ref, b1_ref,
                      sel_ref, w2_ref, g2_ref, b2_ref,
                      fcw_ref, fcb_ref, wo_ref, bo_ref, out_ref):
    N = wo_ref.shape[0]
    KK, P2, P1 = sel_ref.shape
    C1 = w1_ref.shape[1]
    C2 = w2_ref.shape[2]

    # --- layer 1: one big matmul over all samples, then per-sample InstanceNorm ---
    y1 = jnp.dot(p1_ref[...], w1_ref[...], preferred_element_type=jnp.float32)  # (N*P1, C1)
    y1 = y1.reshape(N, P1, C1)                                   # free leading-dim split
    m1 = jnp.mean(y1, axis=1, keepdims=True)
    v1 = jnp.mean(jnp.square(y1 - m1), axis=1, keepdims=True)    # biased, like PyTorch IN
    h1 = (y1 - m1) * jax.lax.rsqrt(v1 + IN_EPS)
    h1 = _lrelu(h1 * g1_ref[...] + b1_ref[...])                  # (N, P1, C1)

    # --- layer 2: stride-2/pad-1 conv built in-kernel via per-tap selection matmuls ---
    h1f = h1.reshape(N * P1, C1)
    y2 = jnp.zeros((N, P2, C2), jnp.float32)
    for k in range(KK):                                          # static unroll (9 taps)
        zk = jnp.dot(h1f, w2_ref[k], preferred_element_type=jnp.float32)   # (N*P1, C2)
        zk = zk.reshape(N, P1, C2)
        sk = jnp.broadcast_to(sel_ref[k], (N, P2, P1))
        y2 = y2 + jnp.einsum('nqp,npc->nqc', sk, zk,
                             preferred_element_type=jnp.float32)
    m2 = jnp.mean(y2, axis=1, keepdims=True)
    v2 = jnp.mean(jnp.square(y2 - m2), axis=1, keepdims=True)
    h2 = (y2 - m2) * jax.lax.rsqrt(v2 + IN_EPS)
    h2 = _lrelu(h2 * g2_ref[...] + b2_ref[...])                  # (N, P2, C2)

    # --- head: AdaptiveAvgPool2d((1,1)) + fc_base(Linear+LeakyReLU) + per-task Linear ---
    pooled = jnp.mean(h2, axis=1)                                # (N, C2)
    z = jnp.dot(pooled, fcw_ref[...], preferred_element_type=jnp.float32) + fcb_ref[...]
    z = _lrelu(z)                                                # (N, FC)
    out_ref[...] = jnp.sum(z * wo_ref[...], axis=-1, keepdims=True) + bo_ref[...]


# ----------------------------------------------------------------------------
# Plain-JAX / numpy glue (runs in XLA or at trace time, not inside the kernel)
# ----------------------------------------------------------------------------
def _im2col(x, k, stride, pad):
    # x: (N, H, W, C) -> patches (N, OH*OW, k*k*C); feature order (kh, kw, c)
    N, H, W, C = x.shape
    OH = (H + 2 * pad - k) // stride + 1
    OW = (W + 2 * pad - k) // stride + 1
    xp = jnp.pad(x, ((0, 0), (pad, pad), (pad, pad), (0, 0)))
    cols = []
    for kh in range(k):
        for kw in range(k):
            cols.append(xp[:, kh:kh + stride * (OH - 1) + 1:stride,
                           kw:kw + stride * (OW - 1) + 1:stride, :])
    patches = jnp.stack(cols, axis=3)                            # (N, OH, OW, k*k, C)
    return patches.reshape(N, OH * OW, k * k * C), OH, OW


def _select_matrices(OH1, OW1, k, stride, pad):
    # 0/1 matrices S[t, q, p]: output pixel q of a k x k stride/pad conv reads input
    # pixel p for tap t = kh*k + kw (zero row where the tap lands in the padding).
    OH2 = (OH1 + 2 * pad - k) // stride + 1
    OW2 = (OW1 + 2 * pad - k) // stride + 1
    S = np.zeros((k * k, OH2 * OW2, OH1 * OW1), np.float32)
    for kh in range(k):
        for kw in range(k):
            t = kh * k + kw
            for oh in range(OH2):
                for ow in range(OW2):
                    ih = oh * stride + kh - pad
                    iw = ow * stride + kw - pad
                    if 0 <= ih < OH1 and 0 <= iw < OW1:
                        S[t, oh * OW2 + ow, ih * OW1 + iw] = 1.0
    return jnp.asarray(S), OH2, OW2


# ----------------------------------------------------------------------------
# Full forward pass (matches make_mtl_block.forward)
# ----------------------------------------------------------------------------
def make_mtl_block_forward(params, x, att_elem):
    # x: (bs, Cin, H, W) NCHW (PyTorch);  att_elem: (bs, T, H, W)
    bs, Cin, H, W = x.shape
    T = att_elem.shape[1]
    N = T * bs

    # NOTE: the fused kernel assumes exactly two share_conv layers, which is the
    # module's structure for n_layers=5, fe_layers=3.
    (w1, g1, b1), (w2, g2, b2) = params["convs"]
    ks = w1.shape[0]
    C1, C2 = w1.shape[-1], w2.shape[-1]
    FC = params["fc_w"].shape[1]

    # attention multiply folded into the im2col glue (no dedicated Pallas kernel)
    x_nhwc = jnp.transpose(x, (0, 2, 3, 1))                      # (bs, H, W, Cin)
    att_r = jnp.transpose(att_elem, (1, 0, 2, 3))                # (T, bs, H, W)
    masked = (att_r[..., None] * x_nhwc[None]).reshape(N, H, W, Cin)

    patches1, OH1, OW1 = _im2col(masked, ks, 2, 1)               # (N, P1, ks*ks*Cin)
    P1 = OH1 * OW1
    KKC1 = ks * ks * Cin
    sel, OH2, OW2 = _select_matrices(OH1, OW1, ks, 2, 1)         # (ks*ks, P2, P1)
    P2 = OH2 * OW2

    w1m = w1.reshape(KKC1, C1)
    w2m = w2.reshape(ks * ks, C1, C2)
    wo = jnp.repeat(params["out_w"], bs, axis=0)                 # (N, FC): row n -> task n // bs
    bo = jnp.repeat(params["out_b"], bs)[:, None]                # (N, 1)

    def full_spec(shape):
        nd = len(shape)
        return pl.BlockSpec(shape, lambda i: (0,) * nd)

    out = pl.pallas_call(
        _fused_mtl_kernel,
        out_shape=jax.ShapeDtypeStruct((N, 1), jnp.float32),
        grid=(1,),
        in_specs=[
            full_spec((N * P1, KKC1)),       # patches of att*x
            full_spec((KKC1, C1)),           # conv1 weight
            full_spec((1, C1)),              # IN1 gamma
            full_spec((1, C1)),              # IN1 beta
            full_spec((ks * ks, P2, P1)),    # conv2 tap-selection matrices
            full_spec((ks * ks, C1, C2)),    # conv2 weight per tap
            full_spec((1, C2)),              # IN2 gamma
            full_spec((1, C2)),              # IN2 beta
            full_spec((C2, FC)),             # fc_base weight
            full_spec((1, FC)),              # fc_base bias
            full_spec((N, FC)),              # per-sample task-head weights
            full_spec((N, 1)),               # per-sample task-head bias
        ],
        out_specs=full_spec((N, 1)),
        compiler_params=pltpu.CompilerParams(dimension_semantics=("arbitrary",)),
    )(patches1.reshape(N * P1, KKC1), w1m,
      g1.reshape(1, C1), b1.reshape(1, C1),
      sel, w2m, g2.reshape(1, C2), b2.reshape(1, C2),
      params["fc_w"], params["fc_b"].reshape(1, FC), wo, bo)

    pred = jnp.transpose(out.reshape(T, bs), (1, 0))             # (bs, T) == torch.cat(pred, dim=1)
    return pred[:, :, None, None]                                # .unsqueeze(2).unsqueeze(3)


# ----------------------------------------------------------------------------
# Deterministic parameter init (same shapes as the PyTorch __init__)
# ----------------------------------------------------------------------------
def init_params(key):
    n_in = min(DIM * 2 ** (FE_LAYERS - 1), FC_DIM)
    convs = []
    for i in range(FE_LAYERS, N_LAYERS):
        n_out = min(DIM * 2 ** i, FC_DIM)
        key, wk = jax.random.split(key)
        fan_in = n_in * KSIZE * KSIZE
        w = jax.random.normal(wk, (KSIZE, KSIZE, n_in, n_out), jnp.float32) / jnp.sqrt(fan_in)
        gamma = jnp.ones((n_out,), jnp.float32)     # InstanceNorm2d affine init
        beta = jnp.zeros((n_out,), jnp.float32)
        convs.append((w, gamma, beta))
        n_in = n_out
    key, k1, k2, k3, k4 = jax.random.split(key, 5)
    fc_w = jax.random.normal(k1, (FC_DIM, FC_DIM), jnp.float32) / jnp.sqrt(FC_DIM)
    fc_b = jax.random.normal(k2, (FC_DIM,), jnp.float32) * 0.01
    out_w = jax.random.normal(k3, (NUM_TASKS, FC_DIM), jnp.float32) / jnp.sqrt(FC_DIM)
    out_b = jax.random.normal(k4, (NUM_TASKS,), jnp.float32) * 0.01
    return {"convs": convs, "fc_w": fc_w, "fc_b": fc_b, "out_w": out_w, "out_b": out_b}


# ----------------------------------------------------------------------------
# Pure-JAX reference (mirrors the PyTorch forward exactly) for validation
# ----------------------------------------------------------------------------
def reference_forward(params, x, att_elem):
    T = att_elem.shape[1]
    preds = []
    for t in range(T):
        sh = att_elem[:, t][:, None] * x                          # (bs, Cin, H, W)
        h = jnp.transpose(sh, (0, 2, 3, 1))
        for (w, g, b) in params["convs"]:
            h = jax.lax.conv_general_dilated(
                h, w, (2, 2), [(1, 1), (1, 1)],
                dimension_numbers=("NHWC", "HWIO", "NHWC"))
            mean = jnp.mean(h, axis=(1, 2), keepdims=True)
            var = jnp.mean(jnp.square(h - mean), axis=(1, 2), keepdims=True)
            h = (h - mean) * jax.lax.rsqrt(var + IN_EPS)
            h = h * g + b
            h = jnp.where(h >= 0, h, LRELU_SLOPE * h)
        pooled = jnp.mean(h, axis=(1, 2))
        z = pooled @ params["fc_w"] + params["fc_b"]
        z = jnp.where(z >= 0, z, LRELU_SLOPE * z)
        o = z @ params["out_w"][t] + params["out_b"][t]
        preds.append(o[:, None])
    return jnp.concatenate(preds, axis=1)[:, :, None, None]


if __name__ == "__main__":
    key = jax.random.PRNGKey(0)
    kx, ka, kp = jax.random.split(key, 3)
    bs, H, W = 2, 16, 16
    Cin = min(DIM * 2 ** (FE_LAYERS - 1), FC_DIM)        # input channels expected by share_conv
    x = jax.random.normal(kx, (bs, Cin, H, W), jnp.float32)
    att_elem = jax.random.uniform(ka, (bs, NUM_TASKS, H, W), jnp.float32)
    params = init_params(kp)

    out = jax.jit(make_mtl_block_forward)(params, x, att_elem)
    out = jax.block_until_ready(out)

    ref = reference_forward(params, x, att_elem)
    assert out.shape == (bs, NUM_TASKS, 1, 1), out.shape
    assert jnp.allclose(out, ref, atol=2e-3, rtol=2e-3), (out, ref)
    print("KERNEL_OK")
</pallas_src>

<mosaic_0001>
module attributes {stable_mosaic.version = 11 : i64} {
  func.func @_fused_mtl_kernel(%arg0: i32, %arg1: memref<384x288xf32, #tpu.memory_space<vmem>>, %arg2: memref<288x32xf32, #tpu.memory_space<vmem>>, %arg3: memref<1x32xf32, #tpu.memory_space<vmem>>, %arg4: memref<1x32xf32, #tpu.memory_space<vmem>>, %arg5: memref<9x16x64xf32, #tpu.memory_space<vmem>>, %arg6: memref<9x32x32xf32, #tpu.memory_space<vmem>>, %arg7: memref<1x32xf32, #tpu.memory_space<vmem>>, %arg8: memref<1x32xf32, #tpu.memory_space<vmem>>, %arg9: memref<32x32xf32, #tpu.memory_space<vmem>>, %arg10: memref<1x32xf32, #tpu.memory_space<vmem>>, %arg11: memref<6x32xf32, #tpu.memory_space<vmem>>, %arg12: memref<6x1xf32, #tpu.memory_space<vmem>>, %arg13: memref<6x1xf32, #tpu.memory_space<vmem>>) attributes {dimension_semantics = [#tpu.dimension_semantics<arbitrary>], iteration_bounds = array<i64: 1>, scalar_prefetch = 0 : i64, scratch_operands = 0 : i64, tpu.core_type = #tpu.core_type<tc>, window_params = [{pipeline_mode = #tpu.pipeline_mode<synchronous>, transform_indices = @transform_0, window_bounds = array<i64: 384, 288>}, {pipeline_mode = #tpu.pipeline_mode<synchronous>, transform_indices = @transform_1, window_bounds = array<i64: 288, 32>}, {pipeline_mode = #tpu.pipeline_mode<synchronous>, transform_indices = @transform_2, window_bounds = array<i64: 1, 32>}, {pipeline_mode = #tpu.pipeline_mode<synchronous>, transform_indices = @transform_3, window_bounds = array<i64: 1, 32>}, {pipeline_mode = #tpu.pipeline_mode<synchronous>, transform_indices = @transform_4, window_bounds = array<i64: 9, 16, 64>}, {pipeline_mode = #tpu.pipeline_mode<synchronous>, transform_indices = @transform_5, window_bounds = array<i64: 9, 32, 32>}, {pipeline_mode = #tpu.pipeline_mode<synchronous>, transform_indices = @transform_6, window_bounds = array<i64: 1, 32>}, {pipeline_mode = #tpu.pipeline_mode<synchronous>, transform_indices = @transform_7, window_bounds = array<i64: 1, 32>}, {pipeline_mode = #tpu.pipeline_mode<synchronous>, transform_indices = @transform_8, window_bounds = array<i64: 32, 32>}, {pipeline_mode = #tpu.pipeline_mode<synchronous>, transform_indices = @transform_9, window_bounds = array<i64: 1, 32>}, {pipeline_mode = #tpu.pipeline_mode<synchronous>, transform_indices = @transform_10, window_bounds = array<i64: 6, 32>}, {pipeline_mode = #tpu.pipeline_mode<synchronous>, transform_indices = @transform_11, window_bounds = array<i64: 6, 1>}, {pipeline_mode = #tpu.pipeline_mode<synchronous>, transform_indices = @transform_12, window_bounds = array<i64: 6, 1>}]} {
    %c0 = arith.constant 0 : index
    %c0_0 = arith.constant 0 : index
    %0 = vector.load %arg1[%c0, %c0_0] : memref<384x288xf32, #tpu.memory_space<vmem>>, vector<384x288xf32>
    %c0_1 = arith.constant 0 : index
    %c0_2 = arith.constant 0 : index
    %1 = vector.load %arg2[%c0_1, %c0_2] : memref<288x32xf32, #tpu.memory_space<vmem>>, vector<288x32xf32>
    %cst = arith.constant dense<0.000000e+00> : vector<384x32xf32>
    %2 = tpu.matmul %0, %1, %cst {dimension_numbers = #tpu.dot_dimension_numbers<[1], [0], [0], [1], [0, 0, 1, 1], [], []>} : vector<384x288xf32>, vector<288x32xf32>, vector<384x32xf32> -> vector<384x32xf32>
    %3 = vector.shape_cast %2 : vector<384x32xf32> to vector<6x64x32xf32>
    %cst_3 = arith.constant dense<0.000000e+00> : vector<6x32xf32>
    %4 = vector.multi_reduction <add>, %3, %cst_3 [1] : vector<6x64x32xf32> to vector<6x32xf32>
    %5 = vector.shape_cast %4 : vector<6x32xf32> to vector<6x1x32xf32>
    %cst_4 = arith.constant 6.400000e+01 : f32
    %6 = vector.broadcast %cst_4 : f32 to vector<6x1x32xf32>
    %7 = arith.divf %5, %6 : vector<6x1x32xf32>
    %8 = vector.broadcast %7 : vector<6x1x32xf32> to vector<6x64x32xf32>
    %9 = arith.subf %3, %8 : vector<6x64x32xf32>
    %10 = arith.mulf %9, %9 : vector<6x64x32xf32>
    %cst_5 = arith.constant dense<0.000000e+00> : vector<6x32xf32>
    %11 = vector.multi_reduction <add>, %10, %cst_5 [1] : vector<6x64x32xf32> to vector<6x32xf32>
    %12 = vector.shape_cast %11 : vector<6x32xf32> to vector<6x1x32xf32>
    %cst_6 = arith.constant 6.400000e+01 : f32
    %13 = vector.broadcast %cst_6 : f32 to vector<6x1x32xf32>
    %14 = arith.divf %12, %13 : vector<6x1x32xf32>
    %15 = vector.broadcast %7 : vector<6x1x32xf32> to vector<6x64x32xf32>
    %16 = arith.subf %3, %15 : vector<6x64x32xf32>
    %cst_7 = arith.constant 9.99999974E-6 : f32
    %17 = vector.broadcast %cst_7 : f32 to vector<6x1x32xf32>
    %18 = arith.addf %14, %17 : vector<6x1x32xf32>
    %19 = math.rsqrt %18 : vector<6x1x32xf32>
    %20 = vector.broadcast %19 : vector<6x1x32xf32> to vector<6x64x32xf32>
    %21 = arith.mulf %16, %20 : vector<6x64x32xf32>
    %c0_8 = arith.constant 0 : index
    %c0_9 = arith.constant 0 : index
    %22 = vector.load %arg3[%c0_8, %c0_9] : memref<1x32xf32, #tpu.memory_space<vmem>>, vector<1x32xf32>
    %23 = vector.shape_cast %22 : vector<1x32xf32> to vector<1x1x32xf32>
    %24 = vector.broadcast %23 : vector<1x1x32xf32> to vector<6x64x32xf32>
    %25 = arith.mulf %21, %24 : vector<6x64x32xf32>
    %c0_10 = arith.constant 0 : index
    %c0_11 = arith.constant 0 : index
    %26 = vector.load %arg4[%c0_10, %c0_11] : memref<1x32xf32, #tpu.memory_space<vmem>>, vector<1x32xf32>
    %27 = vector.shape_cast %26 : vector<1x32xf32> to vector<1x1x32xf32>
    %28 = vector.broadcast %27 : vector<1x1x32xf32> to vector<6x64x32xf32>
    %29 = arith.addf %25, %28 : vector<6x64x32xf32>
    %cst_12 = arith.constant 0.000000e+00 : f32
    %30 = vector.broadcast %cst_12 : f32 to vector<6x64x32xf32>
    %31 = arith.cmpf oge, %29, %30 : vector<6x64x32xf32>
    %cst_13 = arith.constant 0.00999999977 : f32
    %32 = vector.broadcast %cst_13 : f32 to vector<6x64x32xf32>
    %33 = arith.mulf %32, %29 : vector<6x64x32xf32>
    %34 = arith.select %31, %29, %33 : vector<6x64x32xi1>, vector<6x64x32xf32>
    %35 = vector.shape_cast %34 : vector<6x64x32xf32> to vector<384x32xf32>
    %cst_14 = arith.constant 0.000000e+00 : f32
    %36 = vector.broadcast %cst_14 : f32 to vector<6x16x32xf32>
    %c0_15 = arith.constant 0 : index
    %c0_16 = arith.constant 0 : index
    %c0_17 = arith.constant 0 : index
    %37 = vector.load %arg6[%c0_15, %c0_16, %c0_17] : memref<9x32x32xf32, #tpu.memory_space<vmem>>, vector<1x32x32xf32>
    %38 = vector.shape_cast %37 : vector<1x32x32xf32> to vector<32x32xf32>
    %cst_18 = arith.constant dense<0.000000e+00> : vector<384x32xf32>
    %39 = tpu.matmul %35, %38, %cst_18 {dimension_numbers = #tpu.dot_dimension_numbers<[1], [0], [0], [1], [0, 0, 1, 1], [], []>} : vector<384x32xf32>, vector<32x32xf32>, vector<384x32xf32> -> vector<384x32xf32>
    %40 = vector.shape_cast %39 : vector<384x32xf32> to vector<6x64x32xf32>
    %c0_19 = arith.constant 0 : index
    %c0_20 = arith.constant 0 : index
    %c0_21 = arith.constant 0 : index
    %41 = vector.load %arg5[%c0_19, %c0_20, %c0_21] : memref<9x16x64xf32, #tpu.memory_space<vmem>>, vector<1x16x64xf32>
    %42 = vector.shape_cast %41 : vector<1x16x64xf32> to vector<16x64xf32>
    %43 = vector.shape_cast %42 : vector<16x64xf32> to vector<1x16x64xf32>
    %44 = vector.broadcast %43 : vector<1x16x64xf32> to vector<6x16x64xf32>
    "tpu.trace_start"() <{level = 10 : i32, message = "nqp,npc->nqc"}> : () -> ()
    %cst_22 = arith.constant dense<0.000000e+00> : vector<6x16x32xf32>
    %45 = tpu.matmul %44, %40, %cst_22 {dimension_numbers = #tpu.dot_dimension_numbers<[2], [1], [1], [2], [0, 0, 0, 1, 1, 2], [0], [0]>} : vector<6x16x64xf32>, vector<6x64x32xf32>, vector<6x16x32xf32> -> vector<6x16x32xf32>
    "tpu.trace_stop"() : () -> ()
    %46 = arith.addf %36, %45 : vector<6x16x32xf32>
    %c1 = arith.constant 1 : index
    %c0_23 = arith.constant 0 : index
    %c0_24 = arith.constant 0 : index
    %47 = vector.load %arg6[%c1, %c0_23, %c0_24] : memref<9x32x32xf32, #tpu.memory_space<vmem>>, vector<1x32x32xf32>
    %48 = vector.shape_cast %47 : vector<1x32x32xf32> to vector<32x32xf32>
    %cst_25 = arith.constant dense<0.000000e+00> : vector<384x32xf32>
    %49 = tpu.matmul %35, %48, %cst_25 {dimension_numbers = #tpu.dot_dimension_numbers<[1], [0], [0], [1], [0, 0, 1, 1], [], []>} : vector<384x32xf32>, vector<32x32xf32>, vector<384x32xf32> -> vector<384x32xf32>
    %50 = vector.shape_cast %49 : vector<384x32xf32> to vector<6x64x32xf32>
    %c1_26 = arith.constant 1 : index
    %c0_27 = arith.constant 0 : index
    %c0_28 = arith.constant 0 : index
    %51 = vector.load %arg5[%c1_26, %c0_27, %c0_28] : memref<9x16x64xf32, #tpu.memory_space<vmem>>, vector<1x16x64xf32>
    %52 = vector.shape_cast %51 : vector<1x16x64xf32> to vector<16x64xf32>
    %53 = vector.shape_cast %52 : vector<16x64xf32> to vector<1x16x64xf32>
    %54 = vector.broadcast %53 : vector<1x16x64xf32> to vector<6x16x64xf32>
    "tpu.trace_start"() <{level = 10 : i32, message = "nqp,npc->nqc"}> : () -> ()
    %cst_29 = arith.constant dense<0.000000e+00> : vector<6x16x32xf32>
    %55 = tpu.matmul %54, %50, %cst_29 {dimension_numbers = #tpu.dot_dimension_numbers<[2], [1], [1], [2], [0, 0, 0, 1, 1, 2], [0], [0]>} : vector<6x16x64xf32>, vector<6x64x32xf32>, vector<6x16x32xf32> -> vector<6x16x32xf32>
    "tpu.trace_stop"() : () -> ()
    %56 = arith.addf %46, %55 : vector<6x16x32xf32>
    %c2 = arith.constant 2 : index
    %c0_30 = arith.constant 0 : index
    %c0_31 = arith.constant 0 : index
    %57 = vector.load %arg6[%c2, %c0_30, %c0_31] : memref<9x32x32xf32, #tpu.memory_space<vmem>>, vector<1x32x32xf32>
    %58 = vector.shape_cast %57 : vector<1x32x32xf32> to vector<32x32xf32>
    %cst_32 = arith.constant dense<0.000000e+00> : vector<384x32xf32>
    %59 = tpu.matmul %35, %58, %cst_32 {dimension_numbers = #tpu.dot_dimension_numbers<[1], [0], [0], [1], [0, 0, 1, 1], [], []>} : vector<384x32xf32>, vector<32x32xf32>, vector<384x32xf32> -> vector<384x32xf32>
    %60 = vector.shape_cast %59 : vector<384x32xf32> to vector<6x64x32xf32>
    %c2_33 = arith.constant 2 : index
    %c0_34 = arith.constant 0 : index
    %c0_35 = arith.constant 0 : index
    %61 = vector.load %arg5[%c2_33, %c0_34, %c0_35] : memref<9x16x64xf32, #tpu.memory_space<vmem>>, vector<1x16x64xf32>
    %62 = vector.shape_cast %61 : vector<1x16x64xf32> to vector<16x64xf32>
    %63 = vector.shape_cast %62 : vector<16x64xf32> to vector<1x16x64xf32>
    %64 = vector.broadcast %63 : vector<1x16x64xf32> to vector<6x16x64xf32>
    "tpu.trace_start"() <{level = 10 : i32, message = "nqp,npc->nqc"}> : () -> ()
    %cst_36 = arith.constant dense<0.000000e+00> : vector<6x16x32xf32>
    %65 = tpu.matmul %64, %60, %cst_36 {dimension_numbers = #tpu.dot_dimension_numbers<[2], [1], [1], [2], [0, 0, 0, 1, 1, 2], [0], [0]>} : vector<6x16x64xf32>, vector<6x64x32xf32>, vector<6x16x32xf32> -> vector<6x16x32xf32>
    "tpu.trace_stop"() : () -> ()
    %66 = arith.addf %56, %65 : vector<6x16x32xf32>
    %c3 = arith.constant 3 : index
    %c0_37 = arith.constant 0 : index
    %c0_38 = arith.constant 0 : index
    %67 = vector.load %arg6[%c3, %c0_37, %c0_38] : memref<9x32x32xf32, #tpu.memory_space<vmem>>, vector<1x32x32xf32>
    %68 = vector.shape_cast %67 : vector<1x32x32xf32> to vector<32x32xf32>
    %cst_39 = arith.constant dense<0.000000e+00> : vector<384x32xf32>
    %69 = tpu.matmul %35, %68, %cst_39 {dimension_numbers = #tpu.dot_dimension_numbers<[1], [0], [0], [1], [0, 0, 1, 1], [], []>} : vector<384x32xf32>, vector<32x32xf32>, vector<384x32xf32> -> vector<384x32xf32>
    %70 = vector.shape_cast %69 : vector<384x32xf32> to vector<6x64x32xf32>
    %c3_40 = arith.constant 3 : index
    %c0_41 = arith.constant 0 : index
    %c0_42 = arith.constant 0 : index
    %71 = vector.load %arg5[%c3_40, %c0_41, %c0_42] : memref<9x16x64xf32, #tpu.memory_space<vmem>>, vector<1x16x64xf32>
    %72 = vector.shape_cast %71 : vector<1x16x64xf32> to vector<16x64xf32>
    %73 = vector.shape_cast %72 : vector<16x64xf32> to vector<1x16x64xf32>
    %74 = vector.broadcast %73 : vector<1x16x64xf32> to vector<6x16x64xf32>
    "tpu.trace_start"() <{level = 10 : i32, message = "nqp,npc->nqc"}> : () -> ()
    %cst_43 = arith.constant dense<0.000000e+00> : vector<6x16x32xf32>
    %75 = tpu.matmul %74, %70, %cst_43 {dimension_numbers = #tpu.dot_dimension_numbers<[2], [1], [1], [2], [0, 0, 0, 1, 1, 2], [0], [0]>} : vector<6x16x64xf32>, vector<6x64x32xf32>, vector<6x16x32xf32> -> vector<6x16x32xf32>
    "tpu.trace_stop"() : () -> ()
    %76 = arith.addf %66, %75 : vector<6x16x32xf32>
    %c4 = arith.constant 4 : index
    %c0_44 = arith.constant 0 : index
    %c0_45 = arith.constant 0 : index
    %77 = vector.load %arg6[%c4, %c0_44, %c0_45] : memref<9x32x32xf32, #tpu.memory_space<vmem>>, vector<1x32x32xf32>
    %78 = vector.shape_cast %77 : vector<1x32x32xf32> to vector<32x32xf32>
    %cst_46 = arith.constant dense<0.000000e+00> : vector<384x32xf32>
    %79 = tpu.matmul %35, %78, %cst_46 {dimension_numbers = #tpu.dot_dimension_numbers<[1], [0], [0], [1], [0, 0, 1, 1], [], []>} : vector<384x32xf32>, vector<32x32xf32>, vector<384x32xf32> -> vector<384x32xf32>
    %80 = vector.shape_cast %79 : vector<384x32xf32> to vector<6x64x32xf32>
    %c4_47 = arith.constant 4 : index
    %c0_48 = arith.constant 0 : index
    %c0_49 = arith.constant 0 : index
    %81 = vector.load %arg5[%c4_47, %c0_48, %c0_49] : memref<9x16x64xf32, #tpu.memory_space<vmem>>, vector<1x16x64xf32>
    %82 = vector.shape_cast %81 : vector<1x16x64xf32> to vector<16x64xf32>
    %83 = vector.shape_cast %82 : vector<16x64xf32> to vector<1x16x64xf32>
    %84 = vector.broadcast %83 : vector<1x16x64xf32> to vector<6x16x64xf32>
    "tpu.trace_start"() <{level = 10 : i32, message = "nqp,npc->nqc"}> : () -> ()
    %cst_50 = arith.constant dense<0.000000e+00> : vector<6x16x32xf32>
    %85 = tpu.matmul %84, %80, %cst_50 {dimension_numbers = #tpu.dot_dimension_numbers<[2], [1], [1], [2], [0, 0, 0, 1, 1, 2], [0], [0]>} : vector<6x16x64xf32>, vector<6x64x32xf32>, vector<6x16x32xf32> -> vector<6x16x32xf32>
    "tpu.trace_stop"() : () -> ()
    %86 = arith.addf %76, %85 : vector<6x16x32xf32>
    %c5 = arith.constant 5 : index
    %c0_51 = arith.constant 0 : index
    %c0_52 = arith.constant 0 : index
    %87 = vector.load %arg6[%c5, %c0_51, %c0_52] : memref<9x32x32xf32, #tpu.memory_space<vmem>>, vector<1x32x32xf32>
    %88 = vector.shape_cast %87 : vector<1x32x32xf32> to vector<32x32xf32>
    %cst_53 = arith.constant dense<0.000000e+00> : vector<384x32xf32>
    %89 = tpu.matmul %35, %88, %cst_53 {dimension_numbers = #tpu.dot_dimension_numbers<[1], [0], [0], [1], [0, 0, 1, 1], [], []>} : vector<384x32xf32>, vector<32x32xf32>, vector<384x32xf32> -> vector<384x32xf32>
    %90 = vector.shape_cast %89 : vector<384x32xf32> to vector<6x64x32xf32>
    %c5_54 = arith.constant 5 : index
    %c0_55 = arith.constant 0 : index
    %c0_56 = arith.constant 0 : index
    %91 = vector.load %arg5[%c5_54, %c0_55, %c0_56] : memref<9x16x64xf32, #tpu.memory_space<vmem>>, vector<1x16x64xf32>
    %92 = vector.shape_cast %91 : vector<1x16x64xf32> to vector<16x64xf32>
    %93 = vector.shape_cast %92 : vector<16x64xf32> to vector<1x16x64xf32>
    %94 = vector.broadcast %93 : vector<1x16x64xf32> to vector<6x16x64xf32>
    "tpu.trace_start"() <{level = 10 : i32, message = "nqp,npc->nqc"}> : () -> ()
    %cst_57 = arith.constant dense<0.000000e+00> : vector<6x16x32xf32>
    %95 = tpu.matmul %94, %90, %cst_57 {dimension_numbers = #tpu.dot_dimension_numbers<[2], [1], [1], [2], [0, 0, 0, 1, 1, 2], [0], [0]>} : vector<6x16x64xf32>, vector<6x64x32xf32>, vector<6x16x32xf32> -> vector<6x16x32xf32>
    "tpu.trace_stop"() : () -> ()
    %96 = arith.addf %86, %95 : vector<6x16x32xf32>
    %c6 = arith.constant 6 : index
    %c0_58 = arith.constant 0 : index
    %c0_59 = arith.constant 0 : index
    %97 = vector.load %arg6[%c6, %c0_58, %c0_59] : memref<9x32x32xf32, #tpu.memory_space<vmem>>, vector<1x32x32xf32>
    %98 = vector.shape_cast %97 : vector<1x32x32xf32> to vector<32x32xf32>
    %cst_60 = arith.constant dense<0.000000e+00> : vector<384x32xf32>
    %99 = tpu.matmul %35, %98, %cst_60 {dimension_numbers = #tpu.dot_dimension_numbers<[1], [0], [0], [1], [0, 0, 1, 1], [], []>} : vector<384x32xf32>, vector<32x32xf32>, vector<384x32xf32> -> vector<384x32xf32>
    %100 = vector.shape_cast %99 : vector<384x32xf32> to vector<6x64x32xf32>
    %c6_61 = arith.constant 6 : index
    %c0_62 = arith.constant 0 : index
    %c0_63 = arith.constant 0 : index
    %101 = vector.load %arg5[%c6_61, %c0_62, %c0_63] : memref<9x16x64xf32, #tpu.memory_space<vmem>>, vector<1x16x64xf32>
    %102 = vector.shape_cast %101 : vector<1x16x64xf32> to vector<16x64xf32>
    %103 = vector.shape_cast %102 : vector<16x64xf32> to vector<1x16x64xf32>
    %104 = vector.broadcast %103 : vector<1x16x64xf32> to vector<6x16x64xf32>
    "tpu.trace_start"() <{level = 10 : i32, message = "nqp,npc->nqc"}> : () -> ()
    %cst_64 = arith.constant dense<0.000000e+00> : vector<6x16x32xf32>
    %105 = tpu.matmul %104, %100, %cst_64 {dimension_numbers = #tpu.dot_dimension_numbers<[2], [1], [1], [2], [0, 0, 0, 1, 1, 2], [0], [0]>} : vector<6x16x64xf32>, vector<6x64x32xf32>, vector<6x16x32xf32> -> vector<6x16x32xf32>
    "tpu.trace_stop"() : () -> ()
    %106 = arith.addf %96, %105 : vector<6x16x32xf32>
    %c7 = arith.constant 7 : index
    %c0_65 = arith.constant 0 : index
    %c0_66 = arith.constant 0 : index
    %107 = vector.load %arg6[%c7, %c0_65, %c0_66] : memref<9x32x32xf32, #tpu.memory_space<vmem>>, vector<1x32x32xf32>
    %108 = vector.shape_cast %107 : vector<1x32x32xf32> to vector<32x32xf32>
    %cst_67 = arith.constant dense<0.000000e+00> : vector<384x32xf32>
    %109 = tpu.matmul %35, %108, %cst_67 {dimension_numbers = #tpu.dot_dimension_numbers<[1], [0], [0], [1], [0, 0, 1, 1], [], []>} : vector<384x32xf32>, vector<32x32xf32>, vector<384x32xf32> -> vector<384x32xf32>
    %110 = vector.shape_cast %109 : vector<384x32xf32> to vector<6x64x32xf32>
    %c7_68 = arith.constant 7 : index
    %c0_69 = arith.constant 0 : index
    %c0_70 = arith.constant 0 : index
    %111 = vector.load %arg5[%c7_68, %c0_69, %c0_70] : memref<9x16x64xf32, #tpu.memory_space<vmem>>, vector<1x16x64xf32>
    %112 = vector.shape_cast %111 : vector<1x16x64xf32> to vector<16x64xf32>
    %113 = vector.shape_cast %112 : vector<16x64xf32> to vector<1x16x64xf32>
    %114 = vector.broadcast %113 : vector<1x16x64xf32> to vector<6x16x64xf32>
    "tpu.trace_start"() <{level = 10 : i32, message = "nqp,npc->nqc"}> : () -> ()
    %cst_71 = arith.constant dense<0.000000e+00> : vector<6x16x32xf32>
    %115 = tpu.matmul %114, %110, %cst_71 {dimension_numbers = #tpu.dot_dimension_numbers<[2], [1], [1], [2], [0, 0, 0, 1, 1, 2], [0], [0]>} : vector<6x16x64xf32>, vector<6x64x32xf32>, vector<6x16x32xf32> -> vector<6x16x32xf32>
    "tpu.trace_stop"() : () -> ()
    %116 = arith.addf %106, %115 : vector<6x16x32xf32>
    %c8 = arith.constant 8 : index
    %c0_72 = arith.constant 0 : index
    %c0_73 = arith.constant 0 : index
    %117 = vector.load %arg6[%c8, %c0_72, %c0_73] : memref<9x32x32xf32, #tpu.memory_space<vmem>>, vector<1x32x32xf32>
    %118 = vector.shape_cast %117 : vector<1x32x32xf32> to vector<32x32xf32>
    %cst_74 = arith.constant dense<0.000000e+00> : vector<384x32xf32>
    %119 = tpu.matmul %35, %118, %cst_74 {dimension_numbers = #tpu.dot_dimension_numbers<[1], [0], [0], [1], [0, 0, 1, 1], [], []>} : vector<384x32xf32>, vector<32x32xf32>, vector<384x32xf32> -> vector<384x32xf32>
    %120 = vector.shape_cast %119 : vector<384x32xf32> to vector<6x64x32xf32>
    %c8_75 = arith.constant 8 : index
    %c0_76 = arith.constant 0 : index
    %c0_77 = arith.constant 0 : index
    %121 = vector.load %arg5[%c8_75, %c0_76, %c0_77] : memref<9x16x64xf32, #tpu.memory_space<vmem>>, vector<1x16x64xf32>
    %122 = vector.shape_cast %121 : vector<1x16x64xf32> to vector<16x64xf32>
    %123 = vector.shape_cast %122 : vector<16x64xf32> to vector<1x16x64xf32>
    %124 = vector.broadcast %123 : vector<1x16x64xf32> to vector<6x16x64xf32>
    "tpu.trace_start"() <{level = 10 : i32, message = "nqp,npc->nqc"}> : () -> ()
    %cst_78 = arith.constant dense<0.000000e+00> : vector<6x16x32xf32>
    %125 = tpu.matmul %124, %120, %cst_78 {dimension_numbers = #tpu.dot_dimension_numbers<[2], [1], [1], [2], [0, 0, 0, 1, 1, 2], [0], [0]>} : vector<6x16x64xf32>, vector<6x64x32xf32>, vector<6x16x32xf32> -> vector<6x16x32xf32>
    "tpu.trace_stop"() : () -> ()
    %126 = arith.addf %116, %125 : vector<6x16x32xf32>
    %cst_79 = arith.constant dense<0.000000e+00> : vector<6x32xf32>
    %127 = vector.multi_reduction <add>, %126, %cst_79 [1] : vector<6x16x32xf32> to vector<6x32xf32>
    %128 = vector.shape_cast %127 : vector<6x32xf32> to vector<6x1x32xf32>
    %cst_80 = arith.constant 1.600000e+01 : f32
    %129 = vector.broadcast %cst_80 : f32 to vector<6x1x32xf32>
    %130 = arith.divf %128, %129 : vector<6x1x32xf32>
    %131 = vector.broadcast %130 : vector<6x1x32xf32> to vector<6x16x32xf32>
    %132 = arith.subf %126, %131 : vector<6x16x32xf32>
    %133 = arith.mulf %132, %132 : vector<6x16x32xf32>
    %cst_81 = arith.constant dense<0.000000e+00> : vector<6x32xf32>
    %134 = vector.multi_reduction <add>, %133, %cst_81 [1] : vector<6x16x32xf32> to vector<6x32xf32>
    %135 = vector.shape_cast %134 : vector<6x32xf32> to vector<6x1x32xf32>
    %cst_82 = arith.constant 1.600000e+01 : f32
    %136 = vector.broadcast %cst_82 : f32 to vector<6x1x32xf32>
    %137 = arith.divf %135, %136 : vector<6x1x32xf32>
    %138 = vector.broadcast %130 : vector<6x1x32xf32> to vector<6x16x32xf32>
    %139 = arith.subf %126, %138 : vector<6x16x32xf32>
    %cst_83 = arith.constant 9.99999974E-6 : f32
    %140 = vector.broadcast %cst_83 : f32 to vector<6x1x32xf32>
    %141 = arith.addf %137, %140 : vector<6x1x32xf32>
    %142 = math.rsqrt %141 : vector<6x1x32xf32>
    %143 = vector.broadcast %142 : vector<6x1x32xf32> to vector<6x16x32xf32>
    %144 = arith.mulf %139, %143 : vector<6x16x32xf32>
    %c0_84 = arith.constant 0 : index
    %c0_85 = arith.constant 0 : index
    %145 = vector.load %arg7[%c0_84, %c0_85] : memref<1x32xf32, #tpu.memory_space<vmem>>, vector<1x32xf32>
    %146 = vector.shape_cast %145 : vector<1x32xf32> to vector<1x1x32xf32>
    %147 = vector.broadcast %146 : vector<1x1x32xf32> to vector<6x16x32xf32>
    %148 = arith.mulf %144, %147 : vector<6x16x32xf32>
    %c0_86 = arith.constant 0 : index
    %c0_87 = arith.constant 0 : index
    %149 = vector.load %arg8[%c0_86, %c0_87] : memref<1x32xf32, #tpu.memory_space<vmem>>, vector<1x32xf32>
    %150 = vector.shape_cast %149 : vector<1x32xf32> to vector<1x1x32xf32>
    %151 = vector.broadcast %150 : vector<1x1x32xf32> to vector<6x16x32xf32>
    %152 = arith.addf %148, %151 : vector<6x16x32xf32>
    %cst_88 = arith.constant 0.000000e+00 : f32
    %153 = vector.broadcast %cst_88 : f32 to vector<6x16x32xf32>
    %154 = arith.cmpf oge, %152, %153 : vector<6x16x32xf32>
    %cst_89 = arith.constant 0.00999999977 : f32
    %155 = vector.broadcast %cst_89 : f32 to vector<6x16x32xf32>
    %156 = arith.mulf %155, %152 : vector<6x16x32xf32>
    %157 = arith.select %154, %152, %156 : vector<6x16x32xi1>, vector<6x16x32xf32>
    %cst_90 = arith.constant dense<0.000000e+00> : vector<6x32xf32>
    %158 = vector.multi_reduction <add>, %157, %cst_90 [1] : vector<6x16x32xf32> to vector<6x32xf32>
    %cst_91 = arith.constant 1.600000e+01 : f32
    %159 = vector.broadcast %cst_91 : f32 to vector<6x32xf32>
    %160 = arith.divf %158, %159 : vector<6x32xf32>
    %c0_92 = arith.constant 0 : index
    %c0_93 = arith.constant 0 : index
    %161 = vector.load %arg9[%c0_92, %c0_93] : memref<32x32xf32, #tpu.memory_space<vmem>>, vector<32x32xf32>
    %cst_94 = arith.constant dense<0.000000e+00> : vector<6x32xf32>
    %162 = tpu.matmul %160, %161, %cst_94 {dimension_numbers = #tpu.dot_dimension_numbers<[1], [0], [0], [1], [0, 0, 1, 1], [], []>} : vector<6x32xf32>, vector<32x32xf32>, vector<6x32xf32> -> vector<6x32xf32>
    %c0_95 = arith.constant 0 : index
    %c0_96 = arith.constant 0 : index
    %163 = vector.load %arg10[%c0_95, %c0_96] : memref<1x32xf32, #tpu.memory_space<vmem>>, vector<1x32xf32>
    %164 = vector.broadcast %163 : vector<1x32xf32> to vector<6x32xf32>
    %165 = arith.addf %162, %164 : vector<6x32xf32>
    %cst_97 = arith.constant 0.000000e+00 : f32
    %166 = vector.broadcast %cst_97 : f32 to vector<6x32xf32>
    %167 = arith.cmpf oge, %165, %166 : vector<6x32xf32>
    %cst_98 = arith.constant 0.00999999977 : f32
    %168 = vector.broadcast %cst_98 : f32 to vector<6x32xf32>
    %169 = arith.mulf %168, %165 : vector<6x32xf32>
    %170 = arith.select %167, %165, %169 : vector<6x32xi1>, vector<6x32xf32>
    %c0_99 = arith.constant 0 : index
    %c0_100 = arith.constant 0 : index
    %171 = vector.load %arg11[%c0_99, %c0_100] : memref<6x32xf32, #tpu.memory_space<vmem>>, vector<6x32xf32>
    %172 = arith.mulf %170, %171 : vector<6x32xf32>
    %cst_101 = arith.constant dense<0.000000e+00> : vector<6xf32>
    %173 = vector.multi_reduction <add>, %172, %cst_101 [1] : vector<6x32xf32> to vector<6xf32>
    %174 = vector.shape_cast %173 : vector<6xf32> to vector<6x1xf32>
    %c0_102 = arith.constant 0 : index
    %c0_103 = arith.constant 0 : index
    %175 = vector.load %arg12[%c0_102, %c0_103] : memref<6x1xf32, #tpu.memory_space<vmem>>, vector<6x1xf32>
    %176 = arith.addf %174, %175 : vector<6x1xf32>
    %c0_104 = arith.constant 0 : index
    %c0_105 = arith.constant 0 : index
    %177 = vector.load %arg13[%c0_104, %c0_105] : memref<6x1xf32, #tpu.memory_space<vmem>>, vector<6x1xf32>
    tpu.vector_store %arg13[%c0_104, %c0_105], %176 {strides = array<i32>} : memref<6x1xf32, #tpu.memory_space<vmem>>, vector<6x1xf32>,
    return
  }
  func.func @transform_0(%arg0: i32) -> (i32, i32) {
    %c0_i32 = arith.constant 0 : i32
    %c0_i32_0 = arith.constant 0 : i32
    %c0_i32_1 = arith.constant 0 : i32
    return %c0_i32, %c0_i32_0 : i32, i32
  }
  func.func @transform_1(%arg0: i32) -> (i32, i32) {
    %c0_i32 = arith.constant 0 : i32
    %c0_i32_0 = arith.constant 0 : i32
    %c0_i32_1 = arith.constant 0 : i32
    return %c0_i32, %c0_i32_0 : i32, i32
  }
  func.func @transform_2(%arg0: i32) -> (i32, i32) {
    %c0_i32 = arith.constant 0 : i32
    %c0_i32_0 = arith.constant 0 : i32
    %c0_i32_1 = arith.constant 0 : i32
    return %c0_i32, %c0_i32_0 : i32, i32
  }
  func.func @transform_3(%arg0: i32) -> (i32, i32) {
    %c0_i32 = arith.constant 0 : i32
    %c0_i32_0 = arith.constant 0 : i32
    %c0_i32_1 = arith.constant 0 : i32
    return %c0_i32, %c0_i32_0 : i32, i32
  }
  func.func @transform_4(%arg0: i32) -> (i32, i32, i32) {
    %c0_i32 = arith.constant 0 : i32
    %c0_i32_0 = arith.constant 0 : i32
    %c0_i32_1 = arith.constant 0 : i32
    %c0_i32_2 = arith.constant 0 : i32
    return %c0_i32, %c0_i32_0, %c0_i32_1 : i32, i32, i32
  }
  func.func @transform_5(%arg0: i32) -> (i32, i32, i32) {
    %c0_i32 = arith.constant 0 : i32
    %c0_i32_0 = arith.constant 0 : i32
    %c0_i32_1 = arith.constant 0 : i32
    %c0_i32_2 = arith.constant 0 : i32
    return %c0_i32, %c0_i32_0, %c0_i32_1 : i32, i32, i32
  }
  func.func @transform_6(%arg0: i32) -> (i32, i32) {
    %c0_i32 = arith.constant 0 : i32
    %c0_i32_0 = arith.constant 0 : i32
    %c0_i32_1 = arith.constant 0 : i32
    return %c0_i32, %c0_i32_0 : i32, i32
  }
  func.func @transform_7(%arg0: i32) -> (i32, i32) {
    %c0_i32 = arith.constant 0 : i32
    %c0_i32_0 = arith.constant 0 : i32
    %c0_i32_1 = arith.constant 0 : i32
    return %c0_i32, %c0_i32_0 : i32, i32
  }
  func.func @transform_8(%arg0: i32) -> (i32, i32) {
    %c0_i32 = arith.constant 0 : i32
    %c0_i32_0 = arith.constant 0 : i32
    %c0_i32_1 = arith.constant 0 : i32
    return %c0_i32, %c0_i32_0 : i32, i32
  }
  func.func @transform_9(%arg0: i32) -> (i32, i32) {
    %c0_i32 = arith.constant 0 : i32
    %c0_i32_0 = arith.constant 0 : i32
    %c0_i32_1 = arith.constant 0 : i32
    return %c0_i32, %c0_i32_0 : i32, i32
  }
  func.func @transform_10(%arg0: i32) -> (i32, i32) {
    %c0_i32 = arith.constant 0 : i32
    %c0_i32_0 = arith.constant 0 : i32
    %c0_i32_1 = arith.constant 0 : i32
    return %c0_i32, %c0_i32_0 : i32, i32
  }
  func.func @transform_11(%arg0: i32) -> (i32, i32) {
    %c0_i32 = arith.constant 0 : i32
    %c0_i32_0 = arith.constant 0 : i32
    %c0_i32_1 = arith.constant 0 : i32
    return %c0_i32, %c0_i32_0 : i32, i32
  }
  func.func @transform_12(%arg0: i32) -> (i32, i32) {
    %c0_i32 = arith.constant 0 : i32
    %c0_i32_0 = arith.constant 0 : i32
    %c0_i32_1 = arith.constant 0 : i32
    return %c0_i32, %c0_i32_0 : i32, i32
  }
}

</mosaic_0001>

<llo_original>
// kernel: make_mtl_block_forward.1
$region0: #{make_mtl_block_forward.1}
  #allocation0 [shape = 'u32[]', space=smem, size = 0x4, offset = 0x4, fixed_abs, tag = 'smem constant byte address 0x4 - core index']
  #allocation1 [shape = 'u32[144,128]{1,0:T(1,128)}', space=vmem, size = 0x12000, scoped, tag = 'internal scratch']
  %s0 = inlined_call_operand.vmem [shape: f32[384,288], index: 0, kind: input, shape index: {}]
  %s1 = inlined_call_operand.vmem [shape: f32[288,32], index: 1, kind: input, shape index: {}]
  %s2 = inlined_call_operand.vmem [shape: f32[1,32], index: 2, kind: input, shape index: {}]
  %s3 = inlined_call_operand.vmem [shape: f32[1,32], index: 3, kind: input, shape index: {}]
  %s4 = inlined_call_operand.vmem [shape: f32[9,16,64], index: 4, kind: input, shape index: {}]
  %s5 = inlined_call_operand.vmem [shape: f32[9,32,32], index: 5, kind: input, shape index: {}]
  %s6 = inlined_call_operand.vmem [shape: f32[1,32], index: 6, kind: input, shape index: {}]
  %s7 = inlined_call_operand.vmem [shape: f32[1,32], index: 7, kind: input, shape index: {}]
  %s8 = inlined_call_operand.vmem [shape: f32[32,32], index: 8, kind: input, shape index: {}]
  %s9 = inlined_call_operand.vmem [shape: f32[1,32], index: 9, kind: input, shape index: {}]
  %s10 = inlined_call_operand.vmem [shape: f32[6,32], index: 10, kind: input, shape index: {}]
  %s11 = inlined_call_operand.vmem [shape: f32[6,1], index: 11, kind: input, shape index: {}]
  %s12 = inlined_call_operand.vmem [shape: f32[6,1], index: 12, kind: output, shape index: {}]
  %s13 = sld [smem:[#allocation0]]
  $region58: #{make_mtl_block_forward.1} parent=0
    _
  %s15 = ssub.s32 1, %s13
  %s16 = scalar_select 0, %s15, %s13
  // Predicated region
  $region2: #{make_mtl_block_forward.1} parent=0 // pred_check
    _
  $region3: #{make_mtl_block_forward.1} parent=0 // pred_check_branch
    %18 = sbr.rel (0) target = $region5
  $region4: #{make_mtl_block_forward.1} parent=0 // pred_region
    _
  $region5: #{make_mtl_block_forward.1} parent=0 // pred_fallthru
    _
  // Predicated region
  $region6: #{make_mtl_block_forward.1} parent=0 // pred_check
    _
  $region7: #{make_mtl_block_forward.1} parent=0 // pred_check_branch
    %20 = sbr.rel (0) target = $region9
  $region8: #{make_mtl_block_forward.1} parent=0 // pred_region
    _
  $region9: #{make_mtl_block_forward.1} parent=0 // pred_fallthru
    _
  // Predicated region
  $region10: #{make_mtl_block_forward.1} parent=0 // pred_check
    _
  $region11: #{make_mtl_block_forward.1} parent=0 // pred_check_branch
    %22 = sbr.rel (0) target = $region13
  $region12: #{make_mtl_block_forward.1} parent=0 // pred_region
    _
  $region13: #{make_mtl_block_forward.1} parent=0 // pred_fallthru
    _
  // Predicated region
  $region14: #{make_mtl_block_forward.1} parent=0 // pred_check
    _
  $region15: #{make_mtl_block_forward.1} parent=0 // pred_check_branch
    %24 = sbr.rel (0) target = $region17
  $region16: #{make_mtl_block_forward.1} parent=0 // pred_region
    _
  $region17: #{make_mtl_block_forward.1} parent=0 // pred_fallthru
    _
  // Predicated region
  $region18: #{make_mtl_block_forward.1} parent=0 // pred_check
    _
  $region19: #{make_mtl_block_forward.1} parent=0 // pred_check_branch
    %26 = sbr.rel (0) target = $region21
  $region20: #{make_mtl_block_forward.1} parent=0 // pred_region
    _
  $region21: #{make_mtl_block_forward.1} parent=0 // pred_fallthru
    _
  // Predicated region
  $region22: #{make_mtl_block_forward.1} parent=0 // pred_check
    _
  $region23: #{make_mtl_block_forward.1} parent=0 // pred_check_branch
    %28 = sbr.rel (0) target = $region25
  $region24: #{make_mtl_block_forward.1} parent=0 // pred_region
    _
  $region25: #{make_mtl_block_forward.1} parent=0 // pred_fallthru
    _
  // Predicated region
  $region26: #{make_mtl_block_forward.1} parent=0 // pred_check
    _
  $region27: #{make_mtl_block_forward.1} parent=0 // pred_check_branch
    %30 = sbr.rel (0) target = $region29
  $region28: #{make_mtl_block_forward.1} parent=0 // pred_region
    _
  $region29: #{make_mtl_block_forward.1} parent=0 // pred_fallthru
    _
  // Predicated region
  $region30: #{make_mtl_block_forward.1} parent=0 // pred_check
    _
  $region31: #{make_mtl_block_forward.1} parent=0 // pred_check_branch
    %32 = sbr.rel (0) target = $region33
  $region32: #{make_mtl_block_forward.1} parent=0 // pred_region
    _
  $region33: #{make_mtl_block_forward.1} parent=0 // pred_fallthru
    _
  // Predicated region
  $region34: #{make_mtl_block_forward.1} parent=0 // pred_check
    _
  $region35: #{make_mtl_block_forward.1} parent=0 // pred_check_branch
    %34 = sbr.rel (0) target = $region37
  $region36: #{make_mtl_block_forward.1} parent=0 // pred_region
    _
  $region37: #{make_mtl_block_forward.1} parent=0 // pred_fallthru
    _
  // Predicated region
  $region38: #{make_mtl_block_forward.1} parent=0 // pred_check
    _
  $region39: #{make_mtl_block_forward.1} parent=0 // pred_check_branch
    %36 = sbr.rel (0) target = $region41
  $region40: #{make_mtl_block_forward.1} parent=0 // pred_region
    _
  $region41: #{make_mtl_block_forward.1} parent=0 // pred_fallthru
    _
  // Predicated region
  $region42: #{make_mtl_block_forward.1} parent=0 // pred_check
    _
  $region43: #{make_mtl_block_forward.1} parent=0 // pred_check_branch
    %38 = sbr.rel (0) target = $region45
  $region44: #{make_mtl_block_forward.1} parent=0 // pred_region
    _
  $region45: #{make_mtl_block_forward.1} parent=0 // pred_fallthru
    _
  // Predicated region
  $region46: #{make_mtl_block_forward.1} parent=0 // pred_check
    _
  $region47: #{make_mtl_block_forward.1} parent=0 // pred_check_branch
    %40 = sbr.rel (0) target = $region49
  $region48: #{make_mtl_block_forward.1} parent=0 // pred_region
    _
  $region49: #{make_mtl_block_forward.1} parent=0 // pred_fallthru
    _
  %v41 = vld [vmem:[%s0] sm:$0xff]
  %v42 = vld [vmem:[%s0 + $0x8] sm:$0xff]
  %v43 = vld [vmem:[%s0 + $0x10] sm:$0xff]
  %v44 = vld [vmem:[%s0 + $0x18] sm:$0xff]
  %v45 = vld [vmem:[%s0 + $0x20] sm:$0xff]
  %v46 = vld [vmem:[%s0 + $0x28] sm:$0xff]
  %v47 = vld [vmem:[%s0 + $0x30] sm:$0xff]
  %v48 = vld [vmem:[%s0 + $0x38] sm:$0xff]
  %v49 = vld [vmem:[%s0 + $0x40] sm:$0xff]
  %v50 = vld [vmem:[%s0 + $0x48] sm:$0xff]
  %v51 = vld [vmem:[%s0 + $0x50] sm:$0xff]
  %v52 = vld [vmem:[%s0 + $0x58] sm:$0xff]
  %v53 = vld [vmem:[%s0 + $0x60] sm:$0xff]
  %v54 = vld [vmem:[%s0 + $0x68] sm:$0xff]
  %v55 = vld [vmem:[%s0 + $0x70] sm:$0xff]
  %v56 = vld [vmem:[%s0 + $0x78] sm:$0xff]
  %v57 = vld [vmem:[%s0 + $0x80] sm:$0xff]
  %v58 = vld [vmem:[%s0 + $0x88] sm:$0xff]
  %v59 = vld [vmem:[%s0 + $0x90] sm:$0xff]
  %v60 = vld [vmem:[%s0 + $0x98] sm:$0xff]
  %v61 = vld [vmem:[%s0 + $0xa0] sm:$0xff]
  %v62 = vld [vmem:[%s0 + $0xa8] sm:$0xff]
  %v63 = vld [vmem:[%s0 + $0xb0] sm:$0xff]
  %v64 = vld [vmem:[%s0 + $0xb8] sm:$0xff]
  %v65 = vld [vmem:[%s0 + $0xc0] sm:$0xff]
  %v66 = vld [vmem:[%s0 + $0xc8] sm:$0xff]
  %v67 = vld [vmem:[%s0 + $0xd0] sm:$0xff]
  %v68 = vld [vmem:[%s0 + $0xd8] sm:$0xff]
  %v69 = vld [vmem:[%s0 + $0xe0] sm:$0xff]
  %v70 = vld [vmem:[%s0 + $0xe8] sm:$0xff]
  %v71 = vld [vmem:[%s0 + $0xf0] sm:$0xff]
  %v72 = vld [vmem:[%s0 + $0xf8] sm:$0xff]
  %v73 = vld [vmem:[%s0 + $0x100] sm:$0xff]
  %v74 = vld [vmem:[%s0 + $0x108] sm:$0xff]
  %v75 = vld [vmem:[%s0 + $0x110] sm:$0xff]
  %v76 = vld [vmem:[%s0 + $0x118] sm:$0xff]
  %v77 = vld [vmem:[%s0 + $0x120] sm:$0xff]
  %v78 = vld [vmem:[%s0 + $0x128] sm:$0xff]
  %v79 = vld [vmem:[%s0 + $0x130] sm:$0xff]
  %v80 = vld [vmem:[%s0 + $0x138] sm:$0xff]
  %v81 = vld [vmem:[%s0 + $0x140] sm:$0xff]
  %v82 = vld [vmem:[%s0 + $0x148] sm:$0xff]
  %v83 = vld [vmem:[%s0 + $0x150] sm:$0xff]
  %v84 = vld [vmem:[%s0 + $0x158] sm:$0xff]
  %v85 = vld [vmem:[%s0 + $0x160] sm:$0xff]
  %v86 = vld [vmem:[%s0 + $0x168] sm:$0xff]
  %v87 = vld [vmem:[%s0 + $0x170] sm:$0xff]
  %v88 = vld [vmem:[%s0 + $0x178] sm:$0xff]
  %v89 = vld [vmem:[%s0 + $0x180] sm:$0xff]
  %v90 = vld [vmem:[%s0 + $0x188] sm:$0xff]
  %v91 = vld [vmem:[%s0 + $0x190] sm:$0xff]
  %v92 = vld [vmem:[%s0 + $0x198] sm:$0xff]
  %v93 = vld [vmem:[%s0 + $0x1a0] sm:$0xff]
  %v94 = vld [vmem:[%s0 + $0x1a8] sm:$0xff]
  %v95 = vld [vmem:[%s0 + $0x1b0] sm:$0xff]
  %v96 = vld [vmem:[%s0 + $0x1b8] sm:$0xff]
  %v97 = vld [vmem:[%s0 + $0x1c0] sm:$0xff]
  %v98 = vld [vmem:[%s0 + $0x1c8] sm:$0xff]
  %v99 = vld [vmem:[%s0 + $0x1d0] sm:$0xff]
  %v100 = vld [vmem:[%s0 + $0x1d8] sm:$0xff]
  %v101 = vld [vmem:[%s0 + $0x1e0] sm:$0xff]
  %v102 = vld [vmem:[%s0 + $0x1e8] sm:$0xff]
  %v103 = vld [vmem:[%s0 + $0x1f0] sm:$0xff]
  %v104 = vld [vmem:[%s0 + $0x1f8] sm:$0xff]
  %v105 = vld [vmem:[%s0 + $0x200] sm:$0xff]
  %v106 = vld [vmem:[%s0 + $0x208] sm:$0xff]
  %v107 = vld [vmem:[%s0 + $0x210] sm:$0xff]
  %v108 = vld [vmem:[%s0 + $0x218] sm:$0xff]
  %v109 = vld [vmem:[%s0 + $0x220] sm:$0xff]
  %v110 = vld [vmem:[%s0 + $0x228] sm:$0xff]
  %v111 = vld [vmem:[%s0 + $0x230] sm:$0xff]
  %v112 = vld [vmem:[%s0 + $0x238] sm:$0xff]
  %v113 = vld [vmem:[%s0 + $0x240] sm:$0xff]
  %v114 = vld [vmem:[%s0 + $0x248] sm:$0xff]
  %v115 = vld [vmem:[%s0 + $0x250] sm:$0xff]
  %v116 = vld [vmem:[%s0 + $0x258] sm:$0xff]
  %v117 = vld [vmem:[%s0 + $0x260] sm:$0xff]
  %v118 = vld [vmem:[%s0 + $0x268] sm:$0xff]
  %v119 = vld [vmem:[%s0 + $0x270] sm:$0xff]
  %v120 = vld [vmem:[%s0 + $0x278] sm:$0xff]
  %v121 = vld [vmem:[%s0 + $0x280] sm:$0xff]
  %v122 = vld [vmem:[%s0 + $0x288] sm:$0xff]
  %v123 = vld [vmem:[%s0 + $0x290] sm:$0xff]
  %v124 = vld [vmem:[%s0 + $0x298] sm:$0xff]
  %v125 = vld [vmem:[%s0 + $0x2a0] sm:$0xff]
  %v126 = vld [vmem:[%s0 + $0x2a8] sm:$0xff]
  %v127 = vld [vmem:[%s0 + $0x2b0] sm:$0xff]
  %v128 = vld [vmem:[%s0 + $0x2b8] sm:$0xff]
  %v129 = vld [vmem:[%s0 + $0x2c0] sm:$0xff]
  %v130 = vld [vmem:[%s0 + $0x2c8] sm:$0xff]
  %v131 = vld [vmem:[%s0 + $0x2d0] sm:$0xff]
  %v132 = vld [vmem:[%s0 + $0x2d8] sm:$0xff]
  %v133 = vld [vmem:[%s0 + $0x2e0] sm:$0xff]
  %v134 = vld [vmem:[%s0 + $0x2e8] sm:$0xff]
  %v135 = vld [vmem:[%s0 + $0x2f0] sm:$0xff]
  %v136 = vld [vmem:[%s0 + $0x2f8] sm:$0xff]
  %v137 = vld [vmem:[%s0 + $0x300] sm:$0xff]
  %v138 = vld [vmem:[%s0 + $0x308] sm:$0xff]
  %v139 = vld [vmem:[%s0 + $0x310] sm:$0xff]
  %v140 = vld [vmem:[%s0 + $0x318] sm:$0xff]
  %v141 = vld [vmem:[%s0 + $0x320] sm:$0xff]
  %v142 = vld [vmem:[%s0 + $0x328] sm:$0xff]
  %v143 = vld [vmem:[%s0 + $0x330] sm:$0xff]
  %v144 = vld [vmem:[%s0 + $0x338] sm:$0xff]
  %v145 = vld [vmem:[%s0 + $0x340] sm:$0xff]
  %v146 = vld [vmem:[%s0 + $0x348] sm:$0xff]
  %v147 = vld [vmem:[%s0 + $0x350] sm:$0xff]
  %v148 = vld [vmem:[%s0 + $0x358] sm:$0xff]
  %v149 = vld [vmem:[%s0 + $0x360] sm:$0xff]
  %v150 = vld [vmem:[%s0 + $0x368] sm:$0xff]
  %v151 = vld [vmem:[%s0 + $0x370] sm:$0xff]
  %v152 = vld [vmem:[%s0 + $0x378] sm:$0xff]
  %v153 = vld [vmem:[%s0 + $0x380] sm:$0xff]
  %v154 = vld [vmem:[%s0 + $0x388] sm:$0xff]
  %v155 = vld [vmem:[%s0 + $0x390] sm:$0xff]
  %v156 = vld [vmem:[%s0 + $0x398] sm:$0xff]
  %v157 = vld [vmem:[%s0 + $0x3a0] sm:$0xff]
  %v158 = vld [vmem:[%s0 + $0x3a8] sm:$0xff]
  %v159 = vld [vmem:[%s0 + $0x3b0] sm:$0xff]
  %v160 = vld [vmem:[%s0 + $0x3b8] sm:$0xff]
  %v161 = vld [vmem:[%s0 + $0x3c0] sm:$0xff]
  %v162 = vld [vmem:[%s0 + $0x3c8] sm:$0xff]
  %v163 = vld [vmem:[%s0 + $0x3d0] sm:$0xff]
  %v164 = vld [vmem:[%s0 + $0x3d8] sm:$0xff]
  %v165 = vld [vmem:[%s0 + $0x3e0] sm:$0xff]
  %v166 = vld [vmem:[%s0 + $0x3e8] sm:$0xff]
  %v167 = vld [vmem:[%s0 + $0x3f0] sm:$0xff]
  %v168 = vld [vmem:[%s0 + $0x3f8] sm:$0xff]
  %v169 = vld [vmem:[%s0 + $0x400] sm:$0xff]
  %v170 = vld [vmem:[%s0 + $0x408] sm:$0xff]
  %v171 = vld [vmem:[%s0 + $0x410] sm:$0xff]
  %v172 = vld [vmem:[%s0 + $0x418] sm:$0xff]
  %v173 = vld [vmem:[%s0 + $0x420] sm:$0xff]
  %v174 = vld [vmem:[%s0 + $0x428] sm:$0xff]
  %v175 = vld [vmem:[%s0 + $0x430] sm:$0xff]
  %v176 = vld [vmem:[%s0 + $0x438] sm:$0xff]
  %v177 = vld [vmem:[%s0 + $0x440] sm:$0xff]
  %v178 = vld [vmem:[%s0 + $0x448] sm:$0xff]
  %v179 = vld [vmem:[%s0 + $0x450] sm:$0xff]
  %v180 = vld [vmem:[%s0 + $0x458] sm:$0xff]
  %v181 = vld [vmem:[%s0 + $0x460] sm:$0xff]
  %v182 = vld [vmem:[%s0 + $0x468] sm:$0xff]
  %v183 = vld [vmem:[%s0 + $0x470] sm:$0xff]
  %v184 = vld [vmem:[%s0 + $0x478] sm:$0xff]
  %v185 = vld [vmem:[%s1] sm:$0xff]
  %v186 = vld [vmem:[%s1 + $0x8] sm:$0xff]
  %v187 = vld [vmem:[%s1 + $0x10] sm:$0xff]
  %v188 = vld [vmem:[%s1 + $0x18] sm:$0xff]
  %v189 = vld [vmem:[%s1 + $0x20] sm:$0xff]
  %v190 = vld [vmem:[%s1 + $0x28] sm:$0xff]
  %v191 = vld [vmem:[%s1 + $0x30] sm:$0xff]
  %v192 = vld [vmem:[%s1 + $0x38] sm:$0xff]
  %v193 = vld [vmem:[%s1 + $0x40] sm:$0xff]
  %v194 = vld [vmem:[%s1 + $0x48] sm:$0xff]
  %v195 = vld [vmem:[%s1 + $0x50] sm:$0xff]
  %v196 = vld [vmem:[%s1 + $0x58] sm:$0xff]
  %v197 = vld [vmem:[%s1 + $0x60] sm:$0xff]
  %v198 = vld [vmem:[%s1 + $0x68] sm:$0xff]
  %v199 = vld [vmem:[%s1 + $0x70] sm:$0xff]
  %v200 = vld [vmem:[%s1 + $0x78] sm:$0xff]
  %v201 = vld [vmem:[%s1 + $0x80] sm:$0xff]
  %v202 = vld [vmem:[%s1 + $0x88] sm:$0xff]
  %v203 = vld [vmem:[%s1 + $0x90] sm:$0xff]
  %v204 = vld [vmem:[%s1 + $0x98] sm:$0xff]
  %v205 = vld [vmem:[%s1 + $0xa0] sm:$0xff]
  %v206 = vld [vmem:[%s1 + $0xa8] sm:$0xff]
  %v207 = vld [vmem:[%s1 + $0xb0] sm:$0xff]
  %v208 = vld [vmem:[%s1 + $0xb8] sm:$0xff]
  %v209 = vld [vmem:[%s1 + $0xc0] sm:$0xff]
  %v210 = vld [vmem:[%s1 + $0xc8] sm:$0xff]
  %v211 = vld [vmem:[%s1 + $0xd0] sm:$0xff]
  %v212 = vld [vmem:[%s1 + $0xd8] sm:$0xff]
  %v213 = vld [vmem:[%s1 + $0xe0] sm:$0xff]
  %v214 = vld [vmem:[%s1 + $0xe8] sm:$0xff]
  %v215 = vld [vmem:[%s1 + $0xf0] sm:$0xff]
  %v216 = vld [vmem:[%s1 + $0xf8] sm:$0xff]
  %v217 = vld [vmem:[%s1 + $0x100] sm:$0xff]
  %v218 = vld [vmem:[%s1 + $0x108] sm:$0xff]
  %v219 = vld [vmem:[%s1 + $0x110] sm:$0xff]
  %v220 = vld [vmem:[%s1 + $0x118] sm:$0xff]
  %vm221 = vcmask 261120
  %v223 = vsel %vm221, %v43, 0
  %v226 = vsel %vm221, %v46, 0
  %v229 = vsel %vm221, %v49, 0
  %v232 = vsel %vm221, %v52, 0
  %v235 = vsel %vm221, %v55, 0
  %v238 = vsel %vm221, %v58, 0
  %v241 = vsel %vm221, %v61, 0
  %v244 = vsel %vm221, %v64, 0
  %v247 = vsel %vm221, %v67, 0
  %v250 = vsel %vm221, %v70, 0
  %v253 = vsel %vm221, %v73, 0
  %v256 = vsel %vm221, %v76, 0
  %v259 = vsel %vm221, %v79, 0
  %v262 = vsel %vm221, %v82, 0
  %v265 = vsel %vm221, %v85, 0
  %v268 = vsel %vm221, %v88, 0
  %v271 = vsel %vm221, %v91, 0
  %v274 = vsel %vm221, %v94, 0
  %v277 = vsel %vm221, %v97, 0
  %v280 = vsel %vm221, %v100, 0
  %v283 = vsel %vm221, %v103, 0
  %v286 = vsel %vm221, %v106, 0
  %v289 = vsel %vm221, %v109, 0
  %v292 = vsel %vm221, %v112, 0
  %v295 = vsel %vm221, %v115, 0
  %v298 = vsel %vm221, %v118, 0
  %v301 = vsel %vm221, %v121, 0
  %v304 = vsel %vm221, %v124, 0
  %v307 = vsel %vm221, %v127, 0
  %v310 = vsel %vm221, %v130, 0
  %v313 = vsel %vm221, %v133, 0
  %v316 = vsel %vm221, %v136, 0
  %v319 = vsel %vm221, %v139, 0
  %v322 = vsel %vm221, %v142, 0
  %v325 = vsel %vm221, %v145, 0
  %v328 = vsel %vm221, %v148, 0
  %v331 = vsel %vm221, %v151, 0
  %v334 = vsel %vm221, %v154, 0
  %v337 = vsel %vm221, %v157, 0
  %v340 = vsel %vm221, %v160, 0
  %v343 = vsel %vm221, %v163, 0
  %v346 = vsel %vm221, %v166, 0
  %v349 = vsel %vm221, %v169, 0
  %v352 = vsel %vm221, %v172, 0
  %v355 = vsel %vm221, %v175, 0
  %v358 = vsel %vm221, %v178, 0
  %v361 = vsel %vm221, %v181, 0
  %v364 = vsel %vm221, %v184, 0
  %366 = vmatprep.subr.mxu0 0.0
  %367 = vmatpush1.msra.mxu0 %v200
  %368 = vmatprep.subr.mxu0 0.0
  %369 = vmatpush1.msra.mxu0 %v199
  %370 = vmatprep.subr.mxu0 0.0
  %371 = vmatpush1.msra.mxu0 %v198
  %372 = vmatprep.subr.mxu0 0.0
  %373 = vmatpush1.msra.mxu0 %v197
  %374 = vmatprep.subr.mxu0 0.0
  %375 = vmatpush1.msra.mxu0 %v196
  %376 = vmatprep.subr.mxu0 0.0
  %377 = vmatpush1.msra.mxu0 %v195
  %378 = vmatprep.subr.mxu0 0.0
  %379 = vmatpush1.msra.mxu0 %v194
  %380 = vmatprep.subr.mxu0 0.0
  %381 = vmatpush1.msra.mxu0 %v193
  %382 = vmatprep.subr.mxu0 0.0
  %383 = vmatpush1.msra.mxu0 %v192
  %384 = vmatprep.subr.mxu0 0.0
  %385 = vmatpush1.msra.mxu0 %v191
  %386 = vmatprep.subr.mxu0 0.0
  %387 = vmatpush1.msra.mxu0 %v190
  %388 = vmatprep.subr.mxu0 0.0
  %389 = vmatpush1.msra.mxu0 %v189
  %390 = vmatprep.subr.mxu0 0.0
  %391 = vmatpush1.msra.mxu0 %v188
  %392 = vmatprep.subr.mxu0 0.0
  %393 = vmatpush1.msra.mxu0 %v187
  %394 = vmatprep.subr.mxu0 0.0
  %395 = vmatpush1.msra.mxu0 %v186
  %396 = vmatprep.subr.mxu0 0.0
  %397 = vmatpush1.msra.mxu0 %v185
  %398 = vmatprep.subr.mxu0 0.0
  %399 = vmatpush2.msra.mxu0 %v216
  %400 = vmatprep.subr.mxu0 0.0
  %401 = vmatpush2.msra.mxu0 %v215
  %402 = vmatprep.subr.mxu0 0.0
  %403 = vmatpush2.msra.mxu0 %v214
  %404 = vmatprep.subr.mxu0 0.0
  %405 = vmatpush2.msra.mxu0 %v213
  %406 = vmatprep.subr.mxu0 0.0
  %407 = vmatpush2.msra.mxu0 %v212
  %408 = vmatprep.subr.mxu0 0.0
  %409 = vmatpush2.msra.mxu0 %v211
  %410 = vmatprep.subr.mxu0 0.0
  %411 = vmatpush2.msra.mxu0 %v210
  %412 = vmatprep.subr.mxu0 0.0
  %413 = vmatpush2.msra.mxu0 %v209
  %414 = vmatprep.subr.mxu0 0.0
  %415 = vmatpush2.msra.mxu0 %v208
  %416 = vmatprep.subr.mxu0 0.0
  %417 = vmatpush2.msra.mxu0 %v207
  %418 = vmatprep.subr.mxu0 0.0
  %419 = vmatpush2.msra.mxu0 %v206
  %420 = vmatprep.subr.mxu0 0.0
  %421 = vmatpush2.msra.mxu0 %v205
  %422 = vmatprep.subr.mxu0 0.0
  %423 = vmatpush2.msra.mxu0 %v204
  %424 = vmatprep.subr.mxu0 0.0
  %425 = vmatpush2.msra.mxu0 %v203
  %426 = vmatprep.subr.mxu0 0.0
  %427 = vmatpush2.msra.mxu0 %v202
  %428 = vmatprep.subr.mxu0 0.0
  %429 = vmatpush2.msra.mxu0 %v201
  %430 = vmatprep.mubr.f32.mxu0 %v42
  %431 = vmatmul.mubr.f32.gmra.mxu0 %v41
  %v432 = vpop.f32.mrf.mxu0
  %v433 = vadd.f32 0.0, %v432
  %v434 = vpop.f32.mrf.mxu0
  %435 = vmatprep.mubr.f32.mxu0 %v45
  %436 = vmatmul.mubr.f32.gmra.mxu0 %v44
  %v437 = vpop.f32.mrf.mxu0
  %v438 = vadd.f32 0.0, %v437
  %v439 = vpop.f32.mrf.mxu0
  %440 = vmatprep.mubr.f32.mxu0 %v48
  %441 = vmatmul.mubr.f32.gmra.mxu0 %v47
  %v442 = vpop.f32.mrf.mxu0
  %v443 = vadd.f32 0.0, %v442
  %v444 = vpop.f32.mrf.mxu0
  %445 = vmatprep.mubr.f32.mxu0 %v51
  %446 = vmatmul.mubr.f32.gmra.mxu0 %v50
  %v447 = vpop.f32.mrf.mxu0
  %v448 = vadd.f32 0.0, %v447
  %v449 = vpop.f32.mrf.mxu0
  %450 = vmatprep.mubr.f32.mxu0 %v54
  %451 = vmatmul.mubr.f32.gmra.mxu0 %v53
  %v452 = vpop.f32.mrf.mxu0
  %v453 = vadd.f32 0.0, %v452
  %v454 = vpop.f32.mrf.mxu0
  %455 = vmatprep.mubr.f32.mxu0 %v57
  %456 = vmatmul.mubr.f32.gmra.mxu0 %v56
  %v457 = vpop.f32.mrf.mxu0
  %v458 = vadd.f32 0.0, %v457
  %v459 = vpop.f32.mrf.mxu0
  %460 = vmatprep.mubr.f32.mxu0 %v60
  %461 = vmatmul.mubr.f32.gmra.mxu0 %v59
  %v462 = vpop.f32.mrf.mxu0
  %v463 = vadd.f32 0.0, %v462
  %v464 = vpop.f32.mrf.mxu0
  %465 = vmatprep.mubr.f32.mxu0 %v63
  %466 = vmatmul.mubr.f32.gmra.mxu0 %v62
  %v467 = vpop.f32.mrf.mxu0
  %v468 = vadd.f32 0.0, %v467
  %v469 = vpop.f32.mrf.mxu0
  %470 = vmatprep.mubr.f32.mxu0 %v66
  %471 = vmatmul.mubr.f32.gmra.mxu0 %v65
  %v472 = vpop.f32.mrf.mxu0
  %v473 = vadd.f32 0.0, %v472
  %v474 = vpop.f32.mrf.mxu0
  %475 = vmatprep.mubr.f32.mxu0 %v69
  %476 = vmatmul.mubr.f32.gmra.mxu0 %v68
  %v477 = vpop.f32.mrf.mxu0
  %v478 = vadd.f32 0.0, %v477
  %v479 = vpop.f32.mrf.mxu0
  %480 = vmatprep.mubr.f32.mxu0 %v72
  %481 = vmatmul.mubr.f32.gmra.mxu0 %v71
  %v482 = vpop.f32.mrf.mxu0
  %v483 = vadd.f32 0.0, %v482
  %v484 = vpop.f32.mrf.mxu0
  %485 = vmatprep.mubr.f32.mxu0 %v75
  %486 = vmatmul.mubr.f32.gmra.mxu0 %v74
  %v487 = vpop.f32.mrf.mxu0
  %v488 = vadd.f32 0.0, %v487
  %v489 = vpop.f32.mrf.mxu0
  %490 = vmatprep.mubr.f32.mxu0 %v78
  %491 = vmatmul.mubr.f32.gmra.mxu0 %v77
  %v492 = vpop.f32.mrf.mxu0
  %v493 = vadd.f32 0.0, %v492
  %v494 = vpop.f32.mrf.mxu0
  %495 = vmatprep.mubr.f32.mxu0 %v81
  %496 = vmatmul.mubr.f32.gmra.mxu0 %v80
  %v497 = vpop.f32.mrf.mxu0
  %v498 = vadd.f32 0.0, %v497
  %v499 = vpop.f32.mrf.mxu0
  %500 = vmatprep.mubr.f32.mxu0 %v84
  %501 = vmatmul.mubr.f32.gmra.mxu0 %v83
  %v502 = vpop.f32.mrf.mxu0
  %v503 = vadd.f32 0.0, %v502
  %v504 = vpop.f32.mrf.mxu0
  %505 = vmatprep.mubr.f32.mxu0 %v87
  %506 = vmatmul.mubr.f32.gmra.mxu0 %v86
  %v507 = vpop.f32.mrf.mxu0
  %v508 = vadd.f32 0.0, %v507
  %v509 = vpop.f32.mrf.mxu0
  %510 = vmatprep.mubr.f32.mxu0 %v90
  %511 = vmatmul.mubr.f32.gmra.mxu0 %v89
  %v512 = vpop.f32.mrf.mxu0
  %v513 = vadd.f32 0.0, %v512
  %v514 = vpop.f32.mrf.mxu0
  %515 = vmatprep.mubr.f32.mxu0 %v93
  %516 = vmatmul.mubr.f32.gmra.mxu0 %v92
  %v517 = vpop.f32.mrf.mxu0
  %v518 = vadd.f32 0.0, %v517
  %v519 = vpop.f32.mrf.mxu0
  %520 = vmatprep.mubr.f32.mxu0 %v96
  %521 = vmatmul.mubr.f32.gmra.mxu0 %v95
  %v522 = vpop.f32.mrf.mxu0
  %v523 = vadd.f32 0.0, %v522
  %v524 = vpop.f32.mrf.mxu0
  %525 = vmatprep.mubr.f32.mxu0 %v99
  %526 = vmatmul.mubr.f32.gmra.mxu0 %v98
  %v527 = vpop.f32.mrf.mxu0
  %v528 = vadd.f32 0.0, %v527
  %v529 = vpop.f32.mrf.mxu0
  %530 = vmatprep.mubr.f32.mxu0 %v102
  %531 = vmatmul.mubr.f32.gmra.mxu0 %v101
  %v532 = vpop.f32.mrf.mxu0
  %v533 = vadd.f32 0.0, %v532
  %v534 = vpop.f32.mrf.mxu0
  %535 = vmatprep.mubr.f32.mxu0 %v105
  %536 = vmatmul.mubr.f32.gmra.mxu0 %v104
  %v537 = vpop.f32.mrf.mxu0
  %v538 = vadd.f32 0.0, %v537
  %v539 = vpop.f32.mrf.mxu0
  %540 = vmatprep.mubr.f32.mxu0 %v108
  %541 = vmatmul.mubr.f32.gmra.mxu0 %v107
  %v542 = vpop.f32.mrf.mxu0
  %v543 = vadd.f32 0.0, %v542
  %v544 = vpop.f32.mrf.mxu0
  %545 = vmatprep.mubr.f32.mxu0 %v111
  %546 = vmatmul.mubr.f32.gmra.mxu0 %v110
  %v547 = vpop.f32.mrf.mxu0
  %v548 = vadd.f32 0.0, %v547
  %v549 = vpop.f32.mrf.mxu0
  %550 = vmatprep.mubr.f32.mxu0 %v114
  %551 = vmatmul.mubr.f32.gmra.mxu0 %v113
  %v552 = vpop.f32.mrf.mxu0
  %v553 = vadd.f32 0.0, %v552
  %v554 = vpop.f32.mrf.mxu0
  %555 = vmatprep.mubr.f32.mxu0 %v117
  %556 = vmatmul.mubr.f32.gmra.mxu0 %v116
  %v557 = vpop.f32.mrf.mxu0
  %v558 = vadd.f32 0.0, %v557
  %v559 = vpop.f32.mrf.mxu0
  %560 = vmatprep.mubr.f32.mxu0 %v120
  %561 = vmatmul.mubr.f32.gmra.mxu0 %v119
  %v562 = vpop.f32.mrf.mxu0
  %v563 = vadd.f32 0.0, %v562
  %v564 = vpop.f32.mrf.mxu0
  %565 = vmatprep.mubr.f32.mxu0 %v123
  %566 = vmatmul.mubr.f32.gmra.mxu0 %v122
  %v567 = vpop.f32.mrf.mxu0
  %v568 = vadd.f32 0.0, %v567
  %v569 = vpop.f32.mrf.mxu0
  %570 = vmatprep.mubr.f32.mxu0 %v126
  %571 = vmatmul.mubr.f32.gmra.mxu0 %v125
  %v572 = vpop.f32.mrf.mxu0
  %v573 = vadd.f32 0.0, %v572
  %v574 = vpop.f32.mrf.mxu0
  %575 = vmatprep.mubr.f32.mxu0 %v129
  %576 = vmatmul.mubr.f32.gmra.mxu0 %v128
  %v577 = vpop.f32.mrf.mxu0
  %v578 = vadd.f32 0.0, %v577
  %v579 = vpop.f32.mrf.mxu0
  %580 = vmatprep.mubr.f32.mxu0 %v132
  %581 = vmatmul.mubr.f32.gmra.mxu0 %v131
  %v582 = vpop.f32.mrf.mxu0
  %v583 = vadd.f32 0.0, %v582
  %v584 = vpop.f32.mrf.mxu0
  %585 = vmatprep.mubr.f32.mxu0 %v135
  %586 = vmatmul.mubr.f32.gmra.mxu0 %v134
  %v587 = vpop.f32.mrf.mxu0
  %v588 = vadd.f32 0.0, %v587
  %v589 = vpop.f32.mrf.mxu0
  %590 = vmatprep.mubr.f32.mxu0 %v138
  %591 = vmatmul.mubr.f32.gmra.mxu0 %v137
  %v592 = vpop.f32.mrf.mxu0
  %v593 = vadd.f32 0.0, %v592
  %v594 = vpop.f32.mrf.mxu0
  %595 = vmatprep.mubr.f32.mxu0 %v141
  %596 = vmatmul.mubr.f32.gmra.mxu0 %v140
  %v597 = vpop.f32.mrf.mxu0
  %v598 = vadd.f32 0.0, %v597
  %v599 = vpop.f32.mrf.mxu0
  %600 = vmatprep.mubr.f32.mxu0 %v144
  %601 = vmatmul.mubr.f32.gmra.mxu0 %v143
  %v602 = vpop.f32.mrf.mxu0
  %v603 = vadd.f32 0.0, %v602
  %v604 = vpop.f32.mrf.mxu0
  %605 = vmatprep.mubr.f32.mxu0 %v147
  %606 = vmatmul.mubr.f32.gmra.mxu0 %v146
  %v607 = vpop.f32.mrf.mxu0
  %v608 = vadd.f32 0.0, %v607
  %v609 = vpop.f32.mrf.mxu0
  %610 = vmatprep.mubr.f32.mxu0 %v150
  %611 = vmatmul.mubr.f32.gmra.mxu0 %v149
  %v612 = vpop.f32.mrf.mxu0
  %v613 = vadd.f32 0.0, %v612
  %v614 = vpop.f32.mrf.mxu0
  %615 = vmatprep.mubr.f32.mxu0 %v153
  %616 = vmatmul.mubr.f32.gmra.mxu0 %v152
  %v617 = vpop.f32.mrf.mxu0
  %v618 = vadd.f32 0.0, %v617
  %v619 = vpop.f32.mrf.mxu0
  %620 = vmatprep.mubr.f32.mxu0 %v156
  %621 = vmatmul.mubr.f32.gmra.mxu0 %v155
  %v622 = vpop.f32.mrf.mxu0
  %v623 = vadd.f32 0.0, %v622
  %v624 = vpop.f32.mrf.mxu0
  %625 = vmatprep.mubr.f32.mxu0 %v159
  %626 = vmatmul.mubr.f32.gmra.mxu0 %v158
  %v627 = vpop.f32.mrf.mxu0
  %v628 = vadd.f32 0.0, %v627
  %v629 = vpop.f32.mrf.mxu0
  %630 = vmatprep.mubr.f32.mxu0 %v162
  %631 = vmatmul.mubr.f32.gmra.mxu0 %v161
  %v632 = vpop.f32.mrf.mxu0
  %v633 = vadd.f32 0.0, %v632
  %v634 = vpop.f32.mrf.mxu0
  %635 = vmatprep.mubr.f32.mxu0 %v165
  %636 = vmatmul.mubr.f32.gmra.mxu0 %v164
  %v637 = vpop.f32.mrf.mxu0
  %v638 = vadd.f32 0.0, %v637
  %v639 = vpop.f32.mrf.mxu0
  %640 = vmatprep.mubr.f32.mxu0 %v168
  %641 = vmatmul.mubr.f32.gmra.mxu0 %v167
  %v642 = vpop.f32.mrf.mxu0
  %v643 = vadd.f32 0.0, %v642
  %v644 = vpop.f32.mrf.mxu0
  %645 = vmatprep.mubr.f32.mxu0 %v171
  %646 = vmatmul.mubr.f32.gmra.mxu0 %v170
  %v647 = vpop.f32.mrf.mxu0
  %v648 = vadd.f32 0.0, %v647
  %v649 = vpop.f32.mrf.mxu0
  %650 = vmatprep.mubr.f32.mxu0 %v174
  %651 = vmatmul.mubr.f32.gmra.mxu0 %v173
  %v652 = vpop.f32.mrf.mxu0
  %v653 = vadd.f32 0.0, %v652
  %v654 = vpop.f32.mrf.mxu0
  %655 = vmatprep.mubr.f32.mxu0 %v177
  %656 = vmatmul.mubr.f32.gmra.mxu0 %v176
  %v657 = vpop.f32.mrf.mxu0
  %v658 = vadd.f32 0.0, %v657
  %v659 = vpop.f32.mrf.mxu0
  %660 = vmatprep.mubr.f32.mxu0 %v180
  %661 = vmatmul.mubr.f32.gmra.mxu0 %v179
  %v662 = vpop.f32.mrf.mxu0
  %v663 = vadd.f32 0.0, %v662
  %v664 = vpop.f32.mrf.mxu0
  %665 = vmatprep.mubr.f32.mxu0 %v183
  %666 = vmatmul.mubr.f32.gmra.mxu0 %v182
  %v667 = vpop.f32.mrf.mxu0
  %v668 = vadd.f32 0.0, %v667
  %v669 = vpop.f32.mrf.mxu0
  %670 = vdwg.mxu0
  %671 = vmatprep.subr.mxu0 0.0
  %672 = vmatpush1.msra.mxu0 0.0
  %673 = vmatprep.subr.mxu0 0.0
  %674 = vmatpush1.msra.mxu0 0.0
  %675 = vmatprep.subr.mxu0 0.0
  %676 = vmatpush1.msra.mxu0 0.0
  %677 = vmatprep.subr.mxu0 0.0
  %678 = vmatpush1.msra.mxu0 0.0
  %679 = vmatprep.subr.mxu0 0.0
  %680 = vmatpush1.msra.mxu0 0.0
  %681 = vmatprep.subr.mxu0 0.0
  %682 = vmatpush1.msra.mxu0 0.0
  %683 = vmatprep.subr.mxu0 0.0
  %684 = vmatpush1.msra.mxu0 0.0
  %685 = vmatprep.subr.mxu0 0.0
  %686 = vmatpush1.msra.mxu0 0.0
  %687 = vmatprep.subr.mxu0 0.0
  %688 = vmatpush1.msra.mxu0 0.0
  %689 = vmatprep.subr.mxu0 0.0
  %690 = vmatpush1.msra.mxu0 0.0
  %691 = vmatprep.subr.mxu0 0.0
  %692 = vmatpush1.msra.mxu0 0.0
  %693 = vmatprep.subr.mxu0 0.0
  %694 = vmatpush1.msra.mxu0 0.0
  %695 = vmatprep.subr.mxu0 0.0
  %696 = vmatpush1.msra.mxu0 %v220
  %697 = vmatprep.subr.mxu0 0.0
  %698 = vmatpush1.msra.mxu0 %v219
  %699 = vmatprep.subr.mxu0 0.0
  %700 = vmatpush1.msra.mxu0 %v218
  %701 = vmatprep.subr.mxu0 0.0
  %702 = vmatpush1.msra.mxu0 %v217
  %703 = vmatprep.subr.mxu0 0.0
  %704 = vmatpush2.msra.mxu0 0.0
  %705 = vmatprep.subr.mxu0 0.0
  %706 = vmatpush2.msra.mxu0 0.0
  %707 = vmatprep.subr.mxu0 0.0
  %708 = vmatpush2.msra.mxu0 0.0
  %709 = vmatprep.subr.mxu0 0.0
  %710 = vmatpush2.msra.mxu0 0.0
  %711 = vmatprep.subr.mxu0 0.0
  %712 = vmatpush2.msra.mxu0 0.0
  %713 = vmatprep.subr.mxu0 0.0
  %714 = vmatpush2.msra.mxu0 0.0
  %715 = vmatprep.subr.mxu0 0.0
  %716 = vmatpush2.msra.mxu0 0.0
  %717 = vmatprep.subr.mxu0 0.0
  %718 = vmatpush2.msra.mxu0 0.0
  %719 = vmatprep.subr.mxu0 0.0
  %720 = vmatpush2.msra.mxu0 0.0
  %721 = vmatprep.subr.mxu0 0.0
  %722 = vmatpush2.msra.mxu0 0.0
  %723 = vmatprep.subr.mxu0 0.0
  %724 = vmatpush2.msra.mxu0 0.0
  %725 = vmatprep.subr.mxu0 0.0
  %726 = vmatpush2.msra.mxu0 0.0
  %727 = vmatprep.subr.mxu0 0.0
  %728 = vmatpush2.msra.mxu0 0.0
  %729 = vmatprep.subr.mxu0 0.0
  %730 = vmatpush2.msra.mxu0 0.0
  %731 = vmatprep.subr.mxu0 0.0
  %732 = vmatpush2.msra.mxu0 0.0
  %733 = vmatprep.subr.mxu0 0.0
  %734 = vmatpush2.msra.mxu0 0.0
  %735 = vmatprep.mubr.f32.mxu0 0.0
  %736 = vmatmul.mubr.f32.gmra.mxu0 %v223
  %v737 = vpop.f32.mrf.mxu0
  %v738 = vadd.f32 %v433, %v737
  %v739 = vpop.f32.mrf.mxu0
  %740 = vmatprep.mubr.f32.mxu0 0.0
  %741 = vmatmul.mubr.f32.gmra.mxu0 %v226
  %v742 = vpop.f32.mrf.mxu0
  %v743 = vadd.f32 %v438, %v742
  %v744 = vpop.f32.mrf.mxu0
  %745 = vmatprep.mubr.f32.mxu0 0.0
  %746 = vmatmul.mubr.f32.gmra.mxu0 %v229
  %v747 = vpop.f32.mrf.mxu0
  %v748 = vadd.f32 %v443, %v747
  %v749 = vpop.f32.mrf.mxu0
  %750 = vmatprep.mubr.f32.mxu0 0.0
  %751 = vmatmul.mubr.f32.gmra.mxu0 %v232
  %v752 = vpop.f32.mrf.mxu0
  %v753 = vadd.f32 %v448, %v752
  %v754 = vpop.f32.mrf.mxu0
  %755 = vmatprep.mubr.f32.mxu0 0.0
  %756 = vmatmul.mubr.f32.gmra.mxu0 %v235
  %v757 = vpop.f32.mrf.mxu0
  %v758 = vadd.f32 %v453, %v757
  %v759 = vpop.f32.mrf.mxu0
  %760 = vmatprep.mubr.f32.mxu0 0.0
  %761 = vmatmul.mubr.f32.gmra.mxu0 %v238
  %v762 = vpop.f32.mrf.mxu0
  %v763 = vadd.f32 %v458, %v762
  %v764 = vpop.f32.mrf.mxu0
  %765 = vmatprep.mubr.f32.mxu0 0.0
  %766 = vmatmul.mubr.f32.gmra.mxu0 %v241
  %v767 = vpop.f32.mrf.mxu0
  %v768 = vadd.f32 %v463, %v767
  %v769 = vpop.f32.mrf.mxu0
  %770 = vmatprep.mubr.f32.mxu0 0.0
  %771 = vmatmul.mubr.f32.gmra.mxu0 %v244
  %v772 = vpop.f32.mrf.mxu0
  %v773 = vadd.f32 %v468, %v772
  %v774 = vpop.f32.mrf.mxu0
  %775 = vmatprep.mubr.f32.mxu0 0.0
  %776 = vmatmul.mubr.f32.gmra.mxu0 %v247
  %v777 = vpop.f32.mrf.mxu0
  %v778 = vadd.f32 %v473, %v777
  %v779 = vpop.f32.mrf.mxu0
  %780 = vmatprep.mubr.f32.mxu0 0.0
  %781 = vmatmul.mubr.f32.gmra.mxu0 %v250
  %v782 = vpop.f32.mrf.mxu0
  %v783 = vadd.f32 %v478, %v782
  %v784 = vpop.f32.mrf.mxu0
  %785 = vmatprep.mubr.f32.mxu0 0.0
  %786 = vmatmul.mubr.f32.gmra.mxu0 %v253
  %v787 = vpop.f32.mrf.mxu0
  %v788 = vadd.f32 %v483, %v787
  %v789 = vpop.f32.mrf.mxu0
  %790 = vmatprep.mubr.f32.mxu0 0.0
  %791 = vmatmul.mubr.f32.gmra.mxu0 %v256
  %v792 = vpop.f32.mrf.mxu0
  %v793 = vadd.f32 %v488, %v792
  %v794 = vpop.f32.mrf.mxu0
  %795 = vmatprep.mubr.f32.mxu0 0.0
  %796 = vmatmul.mubr.f32.gmra.mxu0 %v259
  %v797 = vpop.f32.mrf.mxu0
  %v798 = vadd.f32 %v493, %v797
  %v799 = vpop.f32.mrf.mxu0
  %800 = vmatprep.mubr.f32.mxu0 0.0
  %801 = vmatmul.mubr.f32.gmra.mxu0 %v262
  %v802 = vpop.f32.mrf.mxu0
  %v803 = vadd.f32 %v498, %v802
  %v804 = vpop.f32.mrf.mxu0
  %805 = vmatprep.mubr.f32.mxu0 0.0
  %806 = vmatmul.mubr.f32.gmra.mxu0 %v265
  %v807 = vpop.f32.mrf.mxu0
  %v808 = vadd.f32 %v503, %v807
  %v809 = vpop.f32.mrf.mxu0
  %810 = vmatprep.mubr.f32.mxu0 0.0
  %811 = vmatmul.mubr.f32.gmra.mxu0 %v268
  %v812 = vpop.f32.mrf.mxu0
  %v813 = vadd.f32 %v508, %v812
  %v814 = vpop.f32.mrf.mxu0
  %815 = vmatprep.mubr.f32.mxu0 0.0
  %816 = vmatmul.mubr.f32.gmra.mxu0 %v271
  %v817 = vpop.f32.mrf.mxu0
  %v818 = vadd.f32 %v513, %v817
  %v819 = vpop.f32.mrf.mxu0
  %820 = vmatprep.mubr.f32.mxu0 0.0
  %821 = vmatmul.mubr.f32.gmra.mxu0 %v274
  %v822 = vpop.f32.mrf.mxu0
  %v823 = vadd.f32 %v518, %v822
  %v824 = vpop.f32.mrf.mxu0
  %825 = vmatprep.mubr.f32.mxu0 0.0
  %826 = vmatmul.mubr.f32.gmra.mxu0 %v277
  %v827 = vpop.f32.mrf.mxu0
  %v828 = vadd.f32 %v523, %v827
  %v829 = vpop.f32.mrf.mxu0
  %830 = vmatprep.mubr.f32.mxu0 0.0
  %831 = vmatmul.mubr.f32.gmra.mxu0 %v280
  %v832 = vpop.f32.mrf.mxu0
  %v833 = vadd.f32 %v528, %v832
  %v834 = vpop.f32.mrf.mxu0
  %835 = vmatprep.mubr.f32.mxu0 0.0
  %836 = vmatmul.mubr.f32.gmra.mxu0 %v283
  %v837 = vpop.f32.mrf.mxu0
  %v838 = vadd.f32 %v533, %v837
  %v839 = vpop.f32.mrf.mxu0
  %840 = vmatprep.mubr.f32.mxu0 0.0
  %841 = vmatmul.mubr.f32.gmra.mxu0 %v286
  %v842 = vpop.f32.mrf.mxu0
  %v843 = vadd.f32 %v538, %v842
  %v844 = vpop.f32.mrf.mxu0
  %845 = vmatprep.mubr.f32.mxu0 0.0
  %846 = vmatmul.mubr.f32.gmra.mxu0 %v289
  %v847 = vpop.f32.mrf.mxu0
  %v848 = vadd.f32 %v543, %v847
  %v849 = vpop.f32.mrf.mxu0
  %850 = vmatprep.mubr.f32.mxu0 0.0
  %851 = vmatmul.mubr.f32.gmra.mxu0 %v292
  %v852 = vpop.f32.mrf.mxu0
  %v853 = vadd.f32 %v548, %v852
  %v854 = vpop.f32.mrf.mxu0
  %855 = vmatprep.mubr.f32.mxu0 0.0
  %856 = vmatmul.mubr.f32.gmra.mxu0 %v295
  %v857 = vpop.f32.mrf.mxu0
  %v858 = vadd.f32 %v553, %v857
  %v859 = vpop.f32.mrf.mxu0
  %860 = vmatprep.mubr.f32.mxu0 0.0
  %861 = vmatmul.mubr.f32.gmra.mxu0 %v298
  %v862 = vpop.f32.mrf.mxu0
  %v863 = vadd.f32 %v558, %v862
  %v864 = vpop.f32.mrf.mxu0
  %865 = vmatprep.mubr.f32.mxu0 0.0
  %866 = vmatmul.mubr.f32.gmra.mxu0 %v301
  %v867 = vpop.f32.mrf.mxu0
  %v868 = vadd.f32 %v563, %v867
  %v869 = vpop.f32.mrf.mxu0
  %870 = vmatprep.mubr.f32.mxu0 0.0
  %871 = vmatmul.mubr.f32.gmra.mxu0 %v304
  %v872 = vpop.f32.mrf.mxu0
  %v873 = vadd.f32 %v568, %v872
  %v874 = vpop.f32.mrf.mxu0
  %875 = vmatprep.mubr.f32.mxu0 0.0
  %876 = vmatmul.mubr.f32.gmra.mxu0 %v307
  %v877 = vpop.f32.mrf.mxu0
  %v878 = vadd.f32 %v573, %v877
  %v879 = vpop.f32.mrf.mxu0
  %880 = vmatprep.mubr.f32.mxu0 0.0
  %881 = vmatmul.mubr.f32.gmra.mxu0 %v310
  %v882 = vpop.f32.mrf.mxu0
  %v883 = vadd.f32 %v578, %v882
  %v884 = vpop.f32.mrf.mxu0
  %885 = vmatprep.mubr.f32.mxu0 0.0
  %886 = vmatmul.mubr.f32.gmra.mxu0 %v313
  %v887 = vpop.f32.mrf.mxu0
  %v888 = vadd.f32 %v583, %v887
  %v889 = vpop.f32.mrf.mxu0
  %890 = vmatprep.mubr.f32.mxu0 0.0
  %891 = vmatmul.mubr.f32.gmra.mxu0 %v316
  %v892 = vpop.f32.mrf.mxu0
  %v893 = vadd.f32 %v588, %v892
  %v894 = vpop.f32.mrf.mxu0
  %895 = vmatprep.mubr.f32.mxu0 0.0
  %896 = vmatmul.mubr.f32.gmra.mxu0 %v319
  %v897 = vpop.f32.mrf.mxu0
  %v898 = vadd.f32 %v593, %v897
  %v899 = vpop.f32.mrf.mxu0
  %900 = vmatprep.mubr.f32.mxu0 0.0
  %901 = vmatmul.mubr.f32.gmra.mxu0 %v322
  %v902 = vpop.f32.mrf.mxu0
  %v903 = vadd.f32 %v598, %v902
  %v904 = vpop.f32.mrf.mxu0
  %905 = vmatprep.mubr.f32.mxu0 0.0
  %906 = vmatmul.mubr.f32.gmra.mxu0 %v325
  %v907 = vpop.f32.mrf.mxu0
  %v908 = vadd.f32 %v603, %v907
  %v909 = vpop.f32.mrf.mxu0
  %910 = vmatprep.mubr.f32.mxu0 0.0
  %911 = vmatmul.mubr.f32.gmra.mxu0 %v328
  %v912 = vpop.f32.mrf.mxu0
  %v913 = vadd.f32 %v608, %v912
  %v914 = vpop.f32.mrf.mxu0
  %915 = vmatprep.mubr.f32.mxu0 0.0
  %916 = vmatmul.mubr.f32.gmra.mxu0 %v331
  %v917 = vpop.f32.mrf.mxu0
  %v918 = vadd.f32 %v613, %v917
  %v919 = vpop.f32.mrf.mxu0
  %920 = vmatprep.mubr.f32.mxu0 0.0
  %921 = vmatmul.mubr.f32.gmra.mxu0 %v334
  %v922 = vpop.f32.mrf.mxu0
  %v923 = vadd.f32 %v618, %v922
  %v924 = vpop.f32.mrf.mxu0
  %925 = vmatprep.mubr.f32.mxu0 0.0
  %926 = vmatmul.mubr.f32.gmra.mxu0 %v337
  %v927 = vpop.f32.mrf.mxu0
  %v928 = vadd.f32 %v623, %v927
  %v929 = vpop.f32.mrf.mxu0
  %930 = vmatprep.mubr.f32.mxu0 0.0
  %931 = vmatmul.mubr.f32.gmra.mxu0 %v340
  %v932 = vpop.f32.mrf.mxu0
  %v933 = vadd.f32 %v628, %v932
  %v934 = vpop.f32.mrf.mxu0
  %935 = vmatprep.mubr.f32.mxu0 0.0
  %936 = vmatmul.mubr.f32.gmra.mxu0 %v343
  %v937 = vpop.f32.mrf.mxu0
  %v938 = vadd.f32 %v633, %v937
  %v939 = vpop.f32.mrf.mxu0
  %940 = vmatprep.mubr.f32.mxu0 0.0
  %941 = vmatmul.mubr.f32.gmra.mxu0 %v346
  %v942 = vpop.f32.mrf.mxu0
  %v943 = vadd.f32 %v638, %v942
  %v944 = vpop.f32.mrf.mxu0
  %945 = vmatprep.mubr.f32.mxu0 0.0
  %946 = vmatmul.mubr.f32.gmra.mxu0 %v349
  %v947 = vpop.f32.mrf.mxu0
  %v948 = vadd.f32 %v643, %v947
  %v949 = vpop.f32.mrf.mxu0
  %950 = vmatprep.mubr.f32.mxu0 0.0
  %951 = vmatmul.mubr.f32.gmra.mxu0 %v352
  %v952 = vpop.f32.mrf.mxu0
  %v953 = vadd.f32 %v648, %v952
  %v954 = vpop.f32.mrf.mxu0
  %955 = vmatprep.mubr.f32.mxu0 0.0
  %956 = vmatmul.mubr.f32.gmra.mxu0 %v355
  %v957 = vpop.f32.mrf.mxu0
  %v958 = vadd.f32 %v653, %v957
  %v959 = vpop.f32.mrf.mxu0
  %960 = vmatprep.mubr.f32.mxu0 0.0
  %961 = vmatmul.mubr.f32.gmra.mxu0 %v358
  %v962 = vpop.f32.mrf.mxu0
  %v963 = vadd.f32 %v658, %v962
  %v964 = vpop.f32.mrf.mxu0
  %965 = vmatprep.mubr.f32.mxu0 0.0
  %966 = vmatmul.mubr.f32.gmra.mxu0 %v361
  %v967 = vpop.f32.mrf.mxu0
  %v968 = vadd.f32 %v663, %v967
  %v969 = vpop.f32.mrf.mxu0
  %970 = vmatprep.mubr.f32.mxu0 0.0
  %971 = vmatmul.mubr.f32.gmra.mxu0 %v364
  %v972 = vpop.f32.mrf.mxu0
  %v973 = vadd.f32 %v668, %v972
  %v974 = vpop.f32.mrf.mxu0
  %975 = vdwg.mxu0
  %v976 = vsel %vm221, %v738, 0.0
  %v977 = vsel %vm221, %v743, 0.0
  %v978 = vadd.f32 %v976, %v977
  %v979 = vsel %vm221, %v748, 0.0
  %v980 = vadd.f32 %v978, %v979
  %v981 = vsel %vm221, %v753, 0.0
  %v982 = vadd.f32 %v980, %v981
  %v983 = vsel %vm221, %v758, 0.0
  %v984 = vadd.f32 %v982, %v983
  %v985 = vsel %vm221, %v763, 0.0
  %v986 = vadd.f32 %v984, %v985
  %v987 = vsel %vm221, %v768, 0.0
  %v988 = vadd.f32 %v986, %v987
  %v989 = vsel %vm221, %v773, 0.0
  %v990 = vadd.f32 %v988, %v989
  %v991 = vrot.slane %v990, 4
  %v992 = vadd.f32 %v990, %v991
  %v993 = vrot.slane %v992, 2
  %v994 = vadd.f32 %v992, %v993
  %v995 = vrot.slane %v994, 1
  %v996 = vadd.f32 %v994, %v995
  %v997 = vsel %vm221, %v778, 0.0
  %v998 = vsel %vm221, %v783, 0.0
  %v999 = vadd.f32 %v997, %v998
  %v1000 = vsel %vm221, %v788, 0.0
  %v1001 = vadd.f32 %v999, %v1000
  %v1002 = vsel %vm221, %v793, 0.0
  %v1003 = vadd.f32 %v1001, %v1002
  %v1004 = vsel %vm221, %v798, 0.0
  %v1005 = vadd.f32 %v1003, %v1004
  %v1006 = vsel %vm221, %v803, 0.0
  %v1007 = vadd.f32 %v1005, %v1006
  %v1008 = vsel %vm221, %v808, 0.0
  %v1009 = vadd.f32 %v1007, %v1008
  %v1010 = vsel %vm221, %v813, 0.0
  %v1011 = vadd.f32 %v1009, %v1010
  %v1012 = vrot.slane %v1011, 4
  %v1013 = vadd.f32 %v1011, %v1012
  %v1014 = vrot.slane %v1013, 2
  %v1015 = vadd.f32 %v1013, %v1014
  %v1016 = vrot.slane %v1015, 1
  %v1017 = vadd.f32 %v1015, %v1016
  %v1018 = vsel %vm221, %v818, 0.0
  %v1019 = vsel %vm221, %v823, 0.0
  %v1020 = vadd.f32 %v1018, %v1019
  %v1021 = vsel %vm221, %v828, 0.0
  %v1022 = vadd.f32 %v1020, %v1021
  %v1023 = vsel %vm221, %v833, 0.0
  %v1024 = vadd.f32 %v1022, %v1023
  %v1025 = vsel %vm221, %v838, 0.0
  %v1026 = vadd.f32 %v1024, %v1025
  %v1027 = vsel %vm221, %v843, 0.0
  %v1028 = vadd.f32 %v1026, %v1027
  %v1029 = vsel %vm221, %v848, 0.0
  %v1030 = vadd.f32 %v1028, %v1029
  %v1031 = vsel %vm221, %v853, 0.0
  %v1032 = vadd.f32 %v1030, %v1031
  %v1033 = vrot.slane %v1032, 4
  %v1034 = vadd.f32 %v1032, %v1033
  %v1035 = vrot.slane %v1034, 2
  %v1036 = vadd.f32 %v1034, %v1035
  %v1037 = vrot.slane %v1036, 1
  %v1038 = vadd.f32 %v1036, %v1037
  %v1039 = vsel %vm221, %v858, 0.0
  %v1040 = vsel %vm221, %v863, 0.0
  %v1041 = vadd.f32 %v1039, %v1040
  %v1042 = vsel %vm221, %v868, 0.0
  %v1043 = vadd.f32 %v1041, %v1042
  %v1044 = vsel %vm221, %v873, 0.0
  %v1045 = vadd.f32 %v1043, %v1044
  %v1046 = vsel %vm221, %v878, 0.0
  %v1047 = vadd.f32 %v1045, %v1046
  %v1048 = vsel %vm221, %v883, 0.0
  %v1049 = vadd.f32 %v1047, %v1048
  %v1050 = vsel %vm221, %v888, 0.0
  %v1051 = vadd.f32 %v1049, %v1050
  %v1052 = vsel %vm221, %v893, 0.0
  %v1053 = vadd.f32 %v1051, %v1052
  %v1054 = vrot.slane %v1053, 4
  %v1055 = vadd.f32 %v1053, %v1054
  %v1056 = vrot.slane %v1055, 2
  %v1057 = vadd.f32 %v1055, %v1056
  %v1058 = vrot.slane %v1057, 1
  %v1059 = vadd.f32 %v1057, %v1058
  %v1060 = vsel %vm221, %v898, 0.0
  %v1061 = vsel %vm221, %v903, 0.0
  %v1062 = vadd.f32 %v1060, %v1061
  %v1063 = vsel %vm221, %v908, 0.0
  %v1064 = vadd.f32 %v1062, %v1063
  %v1065 = vsel %vm221, %v913, 0.0
  %v1066 = vadd.f32 %v1064, %v1065
  %v1067 = vsel %vm221, %v918, 0.0
  %v1068 = vadd.f32 %v1066, %v1067
  %v1069 = vsel %vm221, %v923, 0.0
  %v1070 = vadd.f32 %v1068, %v1069
  %v1071 = vsel %vm221, %v928, 0.0
  %v1072 = vadd.f32 %v1070, %v1071
  %v1073 = vsel %vm221, %v933, 0.0
  %v1074 = vadd.f32 %v1072, %v1073
  %v1075 = vrot.slane %v1074, 4
  %v1076 = vadd.f32 %v1074, %v1075
  %v1077 = vrot.slane %v1076, 2
  %v1078 = vadd.f32 %v1076, %v1077
  %v1079 = vrot.slane %v1078, 1
  %v1080 = vadd.f32 %v1078, %v1079
  %v1081 = vsel %vm221, %v938, 0.0
  %v1082 = vsel %vm221, %v943, 0.0
  %v1083 = vadd.f32 %v1081, %v1082
  %v1084 = vsel %vm221, %v948, 0.0
  %v1085 = vadd.f32 %v1083, %v1084
  %v1086 = vsel %vm221, %v953, 0.0
  %v1087 = vadd.f32 %v1085, %v1086
  %v1088 = vsel %vm221, %v958, 0.0
  %v1089 = vadd.f32 %v1087, %v1088
  %v1090 = vsel %vm221, %v963, 0.0
  %v1091 = vadd.f32 %v1089, %v1090
  %v1092 = vsel %vm221, %v968, 0.0
  %v1093 = vadd.f32 %v1091, %v1092
  %v1094 = vsel %vm221, %v973, 0.0
  %v1095 = vadd.f32 %v1093, %v1094
  %v1096 = vrot.slane %v1095, 4
  %v1097 = vadd.f32 %v1095, %v1096
  %v1098 = vrot.slane %v1097, 2
  %v1099 = vadd.f32 %v1097, %v1098
  %v1100 = vrot.slane %v1099, 1
  %v1101 = vadd.f32 %v1099, %v1100
  %v1102 = vrcp.pop 64.0
  %v1103 = vmul.f32 %v996, %v1102
  %v1104 = vmul.f32 %v1017, %v1102
  %v1105 = vmul.f32 %v1038, %v1102
  %v1106 = vmul.f32 %v1059, %v1102
  %v1107 = vmul.f32 %v1080, %v1102
  %v1108 = vmul.f32 %v1101, %v1102
  %v1109 = vsub.f32 %v738, %v1103
  %v1110 = vsub.f32 %v743, %v1103
  %v1111 = vsub.f32 %v748, %v1103
  %v1112 = vsub.f32 %v753, %v1103
  %v1113 = vsub.f32 %v758, %v1103
  %v1114 = vsub.f32 %v763, %v1103
  %v1115 = vsub.f32 %v768, %v1103
  %v1116 = vsub.f32 %v773, %v1103
  %v1117 = vsub.f32 %v778, %v1104
  %v1118 = vsub.f32 %v783, %v1104
  %v1119 = vsub.f32 %v788, %v1104
  %v1120 = vsub.f32 %v793, %v1104
  %v1121 = vsub.f32 %v798, %v1104
  %v1122 = vsub.f32 %v803, %v1104
  %v1123 = vsub.f32 %v808, %v1104
  %v1124 = vsub.f32 %v813, %v1104
  %v1125 = vsub.f32 %v818, %v1105
  %v1126 = vsub.f32 %v823, %v1105
  %v1127 = vsub.f32 %v828, %v1105
  %v1128 = vsub.f32 %v833, %v1105
  %v1129 = vsub.f32 %v838, %v1105
  %v1130 = vsub.f32 %v843, %v1105
  %v1131 = vsub.f32 %v848, %v1105
  %v1132 = vsub.f32 %v853, %v1105
  %v1133 = vsub.f32 %v858, %v1106
  %v1134 = vsub.f32 %v863, %v1106
  %v1135 = vsub.f32 %v868, %v1106
  %v1136 = vsub.f32 %v873, %v1106
  %v1137 = vsub.f32 %v878, %v1106
  %v1138 = vsub.f32 %v883, %v1106
  %v1139 = vsub.f32 %v888, %v1106
  %v1140 = vsub.f32 %v893, %v1106
  %v1141 = vsub.f32 %v898, %v1107
  %v1142 = vsub.f32 %v903, %v1107
  %v1143 = vsub.f32 %v908, %v1107
  %v1144 = vsub.f32 %v913, %v1107
  %v1145 = vsub.f32 %v918, %v1107
  %v1146 = vsub.f32 %v923, %v1107
  %v1147 = vsub.f32 %v928, %v1107
  %v1148 = vsub.f32 %v933, %v1107
  %v1149 = vsub.f32 %v938, %v1108
  %v1150 = vsub.f32 %v943, %v1108
  %v1151 = vsub.f32 %v948, %v1108
  %v1152 = vsub.f32 %v953, %v1108
  %v1153 = vsub.f32 %v958, %v1108
  %v1154 = vsub.f32 %v963, %v1108
  %v1155 = vsub.f32 %v968, %v1108
  %v1156 = vsub.f32 %v973, %v1108
  %v1157 = vmul.f32 %v1109, %v1109
  %v1158 = vmul.f32 %v1110, %v1110
  %v1159 = vmul.f32 %v1111, %v1111
  %v1160 = vmul.f32 %v1112, %v1112
  %v1161 = vmul.f32 %v1113, %v1113
  %v1162 = vmul.f32 %v1114, %v1114
  %v1163 = vmul.f32 %v1115, %v1115
  %v1164 = vmul.f32 %v1116, %v1116
  %v1165 = vmul.f32 %v1117, %v1117
  %v1166 = vmul.f32 %v1118, %v1118
  %v1167 = vmul.f32 %v1119, %v1119
  %v1168 = vmul.f32 %v1120, %v1120
  %v1169 = vmul.f32 %v1121, %v1121
  %v1170 = vmul.f32 %v1122, %v1122
  %v1171 = vmul.f32 %v1123, %v1123
  %v1172 = vmul.f32 %v1124, %v1124
  %v1173 = vmul.f32 %v1125, %v1125
  %v1174 = vmul.f32 %v1126, %v1126
  %v1175 = vmul.f32 %v1127, %v1127
  %v1176 = vmul.f32 %v1128, %v1128
  %v1177 = vmul.f32 %v1129, %v1129
  %v1178 = vmul.f32 %v1130, %v1130
  %v1179 = vmul.f32 %v1131, %v1131
  %v1180 = vmul.f32 %v1132, %v1132
  %v1181 = vmul.f32 %v1133, %v1133
  %v1182 = vmul.f32 %v1134, %v1134
  %v1183 = vmul.f32 %v1135, %v1135
  %v1184 = vmul.f32 %v1136, %v1136
  %v1185 = vmul.f32 %v1137, %v1137
  %v1186 = vmul.f32 %v1138, %v1138
  %v1187 = vmul.f32 %v1139, %v1139
  %v1188 = vmul.f32 %v1140, %v1140
  %v1189 = vmul.f32 %v1141, %v1141
  %v1190 = vmul.f32 %v1142, %v1142
  %v1191 = vmul.f32 %v1143, %v1143
  %v1192 = vmul.f32 %v1144, %v1144
  %v1193 = vmul.f32 %v1145, %v1145
  %v1194 = vmul.f32 %v1146, %v1146
  %v1195 = vmul.f32 %v1147, %v1147
  %v1196 = vmul.f32 %v1148, %v1148
  %v1197 = vmul.f32 %v1149, %v1149
  %v1198 = vmul.f32 %v1150, %v1150
  %v1199 = vmul.f32 %v1151, %v1151
  %v1200 = vmul.f32 %v1152, %v1152
  %v1201 = vmul.f32 %v1153, %v1153
  %v1202 = vmul.f32 %v1154, %v1154
  %v1203 = vmul.f32 %v1155, %v1155
  %v1204 = vmul.f32 %v1156, %v1156
  %v1205 = vsel %vm221, %v1157, 0.0
  %v1206 = vsel %vm221, %v1158, 0.0
  %v1207 = vadd.f32 %v1205, %v1206
  %v1208 = vsel %vm221, %v1159, 0.0
  %v1209 = vadd.f32 %v1207, %v1208
  %v1210 = vsel %vm221, %v1160, 0.0
  %v1211 = vadd.f32 %v1209, %v1210
  %v1212 = vsel %vm221, %v1161, 0.0
  %v1213 = vadd.f32 %v1211, %v1212
  %v1214 = vsel %vm221, %v1162, 0.0
  %v1215 = vadd.f32 %v1213, %v1214
  %v1216 = vsel %vm221, %v1163, 0.0
  %v1217 = vadd.f32 %v1215, %v1216
  %v1218 = vsel %vm221, %v1164, 0.0
  %v1219 = vadd.f32 %v1217, %v1218
  %v1220 = vrot.slane %v1219, 4
  %v1221 = vadd.f32 %v1219, %v1220
  %v1222 = vrot.slane %v1221, 2
  %v1223 = vadd.f32 %v1221, %v1222
  %v1224 = vrot.slane %v1223, 1
  %v1225 = vadd.f32 %v1223, %v1224
  %v1226 = vsel %vm221, %v1165, 0.0
  %v1227 = vsel %vm221, %v1166, 0.0
  %v1228 = vadd.f32 %v1226, %v1227
  %v1229 = vsel %vm221, %v1167, 0.0
  %v1230 = vadd.f32 %v1228, %v1229
  %v1231 = vsel %vm221, %v1168, 0.0
  %v1232 = vadd.f32 %v1230, %v1231
  %v1233 = vsel %vm221, %v1169, 0.0
  %v1234 = vadd.f32 %v1232, %v1233
  %v1235 = vsel %vm221, %v1170, 0.0
  %v1236 = vadd.f32 %v1234, %v1235
  %v1237 = vsel %vm221, %v1171, 0.0
  %v1238 = vadd.f32 %v1236, %v1237
  %v1239 = vsel %vm221, %v1172, 0.0
  %v1240 = vadd.f32 %v1238, %v1239
  %v1241 = vrot.slane %v1240, 4
  %v1242 = vadd.f32 %v1240, %v1241
  %v1243 = vrot.slane %v1242, 2
  %v1244 = vadd.f32 %v1242, %v1243
  %v1245 = vrot.slane %v1244, 1
  %v1246 = vadd.f32 %v1244, %v1245
  %v1247 = vsel %vm221, %v1173, 0.0
  %v1248 = vsel %vm221, %v1174, 0.0
  %v1249 = vadd.f32 %v1247, %v1248
  %v1250 = vsel %vm221, %v1175, 0.0
  %v1251 = vadd.f32 %v1249, %v1250
  %v1252 = vsel %vm221, %v1176, 0.0
  %v1253 = vadd.f32 %v1251, %v1252
  %v1254 = vsel %vm221, %v1177, 0.0
  %v1255 = vadd.f32 %v1253, %v1254
  %v1256 = vsel %vm221, %v1178, 0.0
  %v1257 = vadd.f32 %v1255, %v1256
  %v1258 = vsel %vm221, %v1179, 0.0
  %v1259 = vadd.f32 %v1257, %v1258
  %v1260 = vsel %vm221, %v1180, 0.0
  %v1261 = vadd.f32 %v1259, %v1260
  %v1262 = vrot.slane %v1261, 4
  %v1263 = vadd.f32 %v1261, %v1262
  %v1264 = vrot.slane %v1263, 2
  %v1265 = vadd.f32 %v1263, %v1264
  %v1266 = vrot.slane %v1265, 1
  %v1267 = vadd.f32 %v1265, %v1266
  %v1268 = vsel %vm221, %v1181, 0.0
  %v1269 = vsel %vm221, %v1182, 0.0
  %v1270 = vadd.f32 %v1268, %v1269
  %v1271 = vsel %vm221, %v1183, 0.0
  %v1272 = vadd.f32 %v1270, %v1271
  %v1273 = vsel %vm221, %v1184, 0.0
  %v1274 = vadd.f32 %v1272, %v1273
  %v1275 = vsel %vm221, %v1185, 0.0
  %v1276 = vadd.f32 %v1274, %v1275
  %v1277 = vsel %vm221, %v1186, 0.0
  %v1278 = vadd.f32 %v1276, %v1277
  %v1279 = vsel %vm221, %v1187, 0.0
  %v1280 = vadd.f32 %v1278, %v1279
  %v1281 = vsel %vm221, %v1188, 0.0
  %v1282 = vadd.f32 %v1280, %v1281
  %v1283 = vrot.slane %v1282, 4
  %v1284 = vadd.f32 %v1282, %v1283
  %v1285 = vrot.slane %v1284, 2
  %v1286 = vadd.f32 %v1284, %v1285
  %v1287 = vrot.slane %v1286, 1
  %v1288 = vadd.f32 %v1286, %v1287
  %v1289 = vsel %vm221, %v1189, 0.0
  %v1290 = vsel %vm221, %v1190, 0.0
  %v1291 = vadd.f32 %v1289, %v1290
  %v1292 = vsel %vm221, %v1191, 0.0
  %v1293 = vadd.f32 %v1291, %v1292
  %v1294 = vsel %vm221, %v1192, 0.0
  %v1295 = vadd.f32 %v1293, %v1294
  %v1296 = vsel %vm221, %v1193, 0.0
  %v1297 = vadd.f32 %v1295, %v1296
  %v1298 = vsel %vm221, %v1194, 0.0
  %v1299 = vadd.f32 %v1297, %v1298
  %v1300 = vsel %vm221, %v1195, 0.0
  %v1301 = vadd.f32 %v1299, %v1300
  %v1302 = vsel %vm221, %v1196, 0.0
  %v1303 = vadd.f32 %v1301, %v1302
  %v1304 = vrot.slane %v1303, 4
  %v1305 = vadd.f32 %v1303, %v1304
  %v1306 = vrot.slane %v1305, 2
  %v1307 = vadd.f32 %v1305, %v1306
  %v1308 = vrot.slane %v1307, 1
  %v1309 = vadd.f32 %v1307, %v1308
  %v1310 = vsel %vm221, %v1197, 0.0
  %v1311 = vsel %vm221, %v1198, 0.0
  %v1312 = vadd.f32 %v1310, %v1311
  %v1313 = vsel %vm221, %v1199, 0.0
  %v1314 = vadd.f32 %v1312, %v1313
  %v1315 = vsel %vm221, %v1200, 0.0
  %v1316 = vadd.f32 %v1314, %v1315
  %v1317 = vsel %vm221, %v1201, 0.0
  %v1318 = vadd.f32 %v1316, %v1317
  %v1319 = vsel %vm221, %v1202, 0.0
  %v1320 = vadd.f32 %v1318, %v1319
  %v1321 = vsel %vm221, %v1203, 0.0
  %v1322 = vadd.f32 %v1320, %v1321
  %v1323 = vsel %vm221, %v1204, 0.0
  %v1324 = vadd.f32 %v1322, %v1323
  %v1325 = vrot.slane %v1324, 4
  %v1326 = vadd.f32 %v1324, %v1325
  %v1327 = vrot.slane %v1326, 2
  %v1328 = vadd.f32 %v1326, %v1327
  %v1329 = vrot.slane %v1328, 1
  %v1330 = vadd.f32 %v1328, %v1329
  %v1331 = vmul.f32 %v1225, %v1102
  %v1332 = vmul.f32 %v1246, %v1102
  %v1333 = vmul.f32 %v1267, %v1102
  %v1334 = vmul.f32 %v1288, %v1102
  %v1335 = vmul.f32 %v1309, %v1102
  %v1336 = vmul.f32 %v1330, %v1102
  %v1337 = vadd.f32 %v1331, 1e-05
  %v1338 = vadd.f32 %v1332, 1e-05
  %v1339 = vadd.f32 %v1333, 1e-05
  %v1340 = vadd.f32 %v1334, 1e-05
  %v1341 = vadd.f32 %v1335, 1e-05
  %v1342 = vadd.f32 %v1336, 1e-05
  %v1343 = vrsqrt.pop %v1337
  %v1344 = vrsqrt.pop %v1338
  %v1345 = vrsqrt.pop %v1339
  %v1346 = vrsqrt.pop %v1340
  %v1347 = vrsqrt.pop %v1341
  %v1348 = vrsqrt.pop %v1342
  %v1349 = vmul.f32 %v1109, %v1343
  %v1350 = vmul.f32 %v1110, %v1343
  %v1351 = vmul.f32 %v1111, %v1343
  %v1352 = vmul.f32 %v1112, %v1343
  %v1353 = vmul.f32 %v1113, %v1343
  %v1354 = vmul.f32 %v1114, %v1343
  %v1355 = vmul.f32 %v1115, %v1343
  %v1356 = vmul.f32 %v1116, %v1343
  %v1357 = vmul.f32 %v1117, %v1344
  %v1358 = vmul.f32 %v1118, %v1344
  %v1359 = vmul.f32 %v1119, %v1344
  %v1360 = vmul.f32 %v1120, %v1344
  %v1361 = vmul.f32 %v1121, %v1344
  %v1362 = vmul.f32 %v1122, %v1344
  %v1363 = vmul.f32 %v1123, %v1344
  %v1364 = vmul.f32 %v1124, %v1344
  %v1365 = vmul.f32 %v1125, %v1345
  %v1366 = vmul.f32 %v1126, %v1345
  %v1367 = vmul.f32 %v1127, %v1345
  %v1368 = vmul.f32 %v1128, %v1345
  %v1369 = vmul.f32 %v1129, %v1345
  %v1370 = vmul.f32 %v1130, %v1345
  %v1371 = vmul.f32 %v1131, %v1345
  %v1372 = vmul.f32 %v1132, %v1345
  %v1373 = vmul.f32 %v1133, %v1346
  %v1374 = vmul.f32 %v1134, %v1346
  %v1375 = vmul.f32 %v1135, %v1346
  %v1376 = vmul.f32 %v1136, %v1346
  %v1377 = vmul.f32 %v1137, %v1346
  %v1378 = vmul.f32 %v1138, %v1346
  %v1379 = vmul.f32 %v1139, %v1346
  %v1380 = vmul.f32 %v1140, %v1346
  %v1381 = vmul.f32 %v1141, %v1347
  %v1382 = vmul.f32 %v1142, %v1347
  %v1383 = vmul.f32 %v1143, %v1347
  %v1384 = vmul.f32 %v1144, %v1347
  %v1385 = vmul.f32 %v1145, %v1347
  %v1386 = vmul.f32 %v1146, %v1347
  %v1387 = vmul.f32 %v1147, %v1347
  %v1388 = vmul.f32 %v1148, %v1347
  %v1389 = vmul.f32 %v1149, %v1348
  %v1390 = vmul.f32 %v1150, %v1348
  %v1391 = vmul.f32 %v1151, %v1348
  %v1392 = vmul.f32 %v1152, %v1348
  %v1393 = vmul.f32 %v1153, %v1348
  %v1394 = vmul.f32 %v1154, %v1348
  %v1395 = vmul.f32 %v1155, %v1348
  %v1396 = vmul.f32 %v1156, %v1348
  %v1397 = vld [vmem:[%s2] sm:$0x1]
  %v1399 = vlaneseq
  %v1400 = vshrl.u32 %v1399, 7
  %v1401 = vsub.s32 0, %v1400
  %v1402 = vrot.slane %v1397, %v1401
  %v1404 = vmul.f32 %v1349, %v1402
  %v1405 = vmul.f32 %v1350, %v1402
  %v1406 = vmul.f32 %v1351, %v1402
  %v1407 = vmul.f32 %v1352, %v1402
  %v1408 = vmul.f32 %v1353, %v1402
  %v1409 = vmul.f32 %v1354, %v1402
  %v1410 = vmul.f32 %v1355, %v1402
  %v1411 = vmul.f32 %v1356, %v1402
  %v1412 = vmul.f32 %v1357, %v1402
  %v1413 = vmul.f32 %v1358, %v1402
  %v1414 = vmul.f32 %v1359, %v1402
  %v1415 = vmul.f32 %v1360, %v1402
  %v1416 = vmul.f32 %v1361, %v1402
  %v1417 = vmul.f32 %v1362, %v1402
  %v1418 = vmul.f32 %v1363, %v1402
  %v1419 = vmul.f32 %v1364, %v1402
  %v1420 = vmul.f32 %v1365, %v1402
  %v1421 = vmul.f32 %v1366, %v1402
  %v1422 = vmul.f32 %v1367, %v1402
  %v1423 = vmul.f32 %v1368, %v1402
  %v1424 = vmul.f32 %v1369, %v1402
  %v1425 = vmul.f32 %v1370, %v1402
  %v1426 = vmul.f32 %v1371, %v1402
  %v1427 = vmul.f32 %v1372, %v1402
  %v1428 = vmul.f32 %v1373, %v1402
  %v1429 = vmul.f32 %v1374, %v1402
  %v1430 = vmul.f32 %v1375, %v1402
  %v1431 = vmul.f32 %v1376, %v1402
  %v1432 = vmul.f32 %v1377, %v1402
  %v1433 = vmul.f32 %v1378, %v1402
  %v1434 = vmul.f32 %v1379, %v1402
  %v1435 = vmul.f32 %v1380, %v1402
  %v1436 = vmul.f32 %v1381, %v1402
  %v1437 = vmul.f32 %v1382, %v1402
  %v1438 = vmul.f32 %v1383, %v1402
  %v1439 = vmul.f32 %v1384, %v1402
  %v1440 = vmul.f32 %v1385, %v1402
  %v1441 = vmul.f32 %v1386, %v1402
  %v1442 = vmul.f32 %v1387, %v1402
  %v1443 = vmul.f32 %v1388, %v1402
  %v1444 = vmul.f32 %v1389, %v1402
  %v1445 = vmul.f32 %v1390, %v1402
  %v1446 = vmul.f32 %v1391, %v1402
  %v1447 = vmul.f32 %v1392, %v1402
  %v1448 = vmul.f32 %v1393, %v1402
  %v1449 = vmul.f32 %v1394, %v1402
  %v1450 = vmul.f32 %v1395, %v1402
  %v1451 = vmul.f32 %v1396, %v1402
  %v1452 = vld [vmem:[%s3] sm:$0x1]
  %v1454 = vlaneseq
  %v1455 = vshrl.u32 %v1454, 7
  %v1456 = vsub.s32 0, %v1455
  %v1457 = vrot.slane %v1452, %v1456
  %v1459 = vadd.f32 %v1404, %v1457
  %v1460 = vadd.f32 %v1405, %v1457
  %v1461 = vadd.f32 %v1406, %v1457
  %v1462 = vadd.f32 %v1407, %v1457
  %v1463 = vadd.f32 %v1408, %v1457
  %v1464 = vadd.f32 %v1409, %v1457
  %v1465 = vadd.f32 %v1410, %v1457
  %v1466 = vadd.f32 %v1411, %v1457
  %v1467 = vadd.f32 %v1412, %v1457
  %v1468 = vadd.f32 %v1413, %v1457
  %v1469 = vadd.f32 %v1414, %v1457
  %v1470 = vadd.f32 %v1415, %v1457
  %v1471 = vadd.f32 %v1416, %v1457
  %v1472 = vadd.f32 %v1417, %v1457
  %v1473 = vadd.f32 %v1418, %v1457
  %v1474 = vadd.f32 %v1419, %v1457
  %v1475 = vadd.f32 %v1420, %v1457
  %v1476 = vadd.f32 %v1421, %v1457
  %v1477 = vadd.f32 %v1422, %v1457
  %v1478 = vadd.f32 %v1423, %v1457
  %v1479 = vadd.f32 %v1424, %v1457
  %v1480 = vadd.f32 %v1425, %v1457
  %v1481 = vadd.f32 %v1426, %v1457
  %v1482 = vadd.f32 %v1427, %v1457
  %v1483 = vadd.f32 %v1428, %v1457
  %v1484 = vadd.f32 %v1429, %v1457
  %v1485 = vadd.f32 %v1430, %v1457
  %v1486 = vadd.f32 %v1431, %v1457
  %v1487 = vadd.f32 %v1432, %v1457
  %v1488 = vadd.f32 %v1433, %v1457
  %v1489 = vadd.f32 %v1434, %v1457
  %v1490 = vadd.f32 %v1435, %v1457
  %v1491 = vadd.f32 %v1436, %v1457
  %v1492 = vadd.f32 %v1437, %v1457
  %v1493 = vadd.f32 %v1438, %v1457
  %v1494 = vadd.f32 %v1439, %v1457
  %v1495 = vadd.f32 %v1440, %v1457
  %v1496 = vadd.f32 %v1441, %v1457
  %v1497 = vadd.f32 %v1442, %v1457
  %v1498 = vadd.f32 %v1443, %v1457
  %v1499 = vadd.f32 %v1444, %v1457
  %v1500 = vadd.f32 %v1445, %v1457
  %v1501 = vadd.f32 %v1446, %v1457
  %v1502 = vadd.f32 %v1447, %v1457
  %v1503 = vadd.f32 %v1448, %v1457
  %v1504 = vadd.f32 %v1449, %v1457
  %v1505 = vadd.f32 %v1450, %v1457
  %v1506 = vadd.f32 %v1451, %v1457
  %vm1507 = vcmp.ge.f32.partialorder %v1459, 0.0
  %vm1508 = vcmp.ge.f32.partialorder %v1460, 0.0
  %vm1509 = vcmp.ge.f32.partialorder %v1461, 0.0
  %vm1510 = vcmp.ge.f32.partialorder %v1462, 0.0
  %vm1511 = vcmp.ge.f32.partialorder %v1463, 0.0
  %vm1512 = vcmp.ge.f32.partialorder %v1464, 0.0
  %vm1513 = vcmp.ge.f32.partialorder %v1465, 0.0
  %vm1514 = vcmp.ge.f32.partialorder %v1466, 0.0
  %vm1515 = vcmp.ge.f32.partialorder %v1467, 0.0
  %vm1516 = vcmp.ge.f32.partialorder %v1468, 0.0
  %vm1517 = vcmp.ge.f32.partialorder %v1469, 0.0
  %vm1518 = vcmp.ge.f32.partialorder %v1470, 0.0
  %vm1519 = vcmp.ge.f32.partialorder %v1471, 0.0
  %vm1520 = vcmp.ge.f32.partialorder %v1472, 0.0
  %vm1521 = vcmp.ge.f32.partialorder %v1473, 0.0
  %vm1522 = vcmp.ge.f32.partialorder %v1474, 0.0
  %vm1523 = vcmp.ge.f32.partialorder %v1475, 0.0
  %vm1524 = vcmp.ge.f32.partialorder %v1476, 0.0
  %vm1525 = vcmp.ge.f32.partialorder %v1477, 0.0
  %vm1526 = vcmp.ge.f32.partialorder %v1478, 0.0
  %vm1527 = vcmp.ge.f32.partialorder %v1479, 0.0
  %vm1528 = vcmp.ge.f32.partialorder %v1480, 0.0
  %vm1529 = vcmp.ge.f32.partialorder %v1481, 0.0
  %vm1530 = vcmp.ge.f32.partialorder %v1482, 0.0
  %vm1531 = vcmp.ge.f32.partialorder %v1483, 0.0
  %vm1532 = vcmp.ge.f32.partialorder %v1484, 0.0
  %vm1533 = vcmp.ge.f32.partialorder %v1485, 0.0
  %vm1534 = vcmp.ge.f32.partialorder %v1486, 0.0
  %vm1535 = vcmp.ge.f32.partialorder %v1487, 0.0
  %vm1536 = vcmp.ge.f32.partialorder %v1488, 0.0
  %vm1537 = vcmp.ge.f32.partialorder %v1489, 0.0
  %vm1538 = vcmp.ge.f32.partialorder %v1490, 0.0
  %vm1539 = vcmp.ge.f32.partialorder %v1491, 0.0
  %vm1540 = vcmp.ge.f32.partialorder %v1492, 0.0
  %vm1541 = vcmp.ge.f32.partialorder %v1493, 0.0
  %vm1542 = vcmp.ge.f32.partialorder %v1494, 0.0
  %vm1543 = vcmp.ge.f32.partialorder %v1495, 0.0
  %vm1544 = vcmp.ge.f32.partialorder %v1496, 0.0
  %vm1545 = vcmp.ge.f32.partialorder %v1497, 0.0
  %vm1546 = vcmp.ge.f32.partialorder %v1498, 0.0
  %vm1547 = vcmp.ge.f32.partialorder %v1499, 0.0
  %vm1548 = vcmp.ge.f32.partialorder %v1500, 0.0
  %vm1549 = vcmp.ge.f32.partialorder %v1501, 0.0
  %vm1550 = vcmp.ge.f32.partialorder %v1502, 0.0
  %vm1551 = vcmp.ge.f32.partialorder %v1503, 0.0
  %vm1552 = vcmp.ge.f32.partialorder %v1504, 0.0
  %vm1553 = vcmp.ge.f32.partialorder %v1505, 0.0
  %vm1554 = vcmp.ge.f32.partialorder %v1506, 0.0
  %v1555 = vmul.f32 %v1459, 0.01
  %v1556 = vmul.f32 %v1460, 0.01
  %v1557 = vmul.f32 %v1461, 0.01
  %v1558 = vmul.f32 %v1462, 0.01
  %v1559 = vmul.f32 %v1463, 0.01
  %v1560 = vmul.f32 %v1464, 0.01
  %v1561 = vmul.f32 %v1465, 0.01
  %v1562 = vmul.f32 %v1466, 0.01
  %v1563 = vmul.f32 %v1467, 0.01
  %v1564 = vmul.f32 %v1468, 0.01
  %v1565 = vmul.f32 %v1469, 0.01
  %v1566 = vmul.f32 %v1470, 0.01
  %v1567 = vmul.f32 %v1471, 0.01
  %v1568 = vmul.f32 %v1472, 0.01
  %v1569 = vmul.f32 %v1473, 0.01
  %v1570 = vmul.f32 %v1474, 0.01
  %v1571 = vmul.f32 %v1475, 0.01
  %v1572 = vmul.f32 %v1476, 0.01
  %v1573 = vmul.f32 %v1477, 0.01
  %v1574 = vmul.f32 %v1478, 0.01
  %v1575 = vmul.f32 %v1479, 0.01
  %v1576 = vmul.f32 %v1480, 0.01
  %v1577 = vmul.f32 %v1481, 0.01
  %v1578 = vmul.f32 %v1482, 0.01
  %v1579 = vmul.f32 %v1483, 0.01
  %v1580 = vmul.f32 %v1484, 0.01
  %v1581 = vmul.f32 %v1485, 0.01
  %v1582 = vmul.f32 %v1486, 0.01
  %v1583 = vmul.f32 %v1487, 0.01
  %v1584 = vmul.f32 %v1488, 0.01
  %v1585 = vmul.f32 %v1489, 0.01
  %v1586 = vmul.f32 %v1490, 0.01
  %v1587 = vmul.f32 %v1491, 0.01
  %v1588 = vmul.f32 %v1492, 0.01
  %v1589 = vmul.f32 %v1493, 0.01
  %v1590 = vmul.f32 %v1494, 0.01
  %v1591 = vmul.f32 %v1495, 0.01
  %v1592 = vmul.f32 %v1496, 0.01
  %v1593 = vmul.f32 %v1497, 0.01
  %v1594 = vmul.f32 %v1498, 0.01
  %v1595 = vmul.f32 %v1499, 0.01
  %v1596 = vmul.f32 %v1500, 0.01
  %v1597 = vmul.f32 %v1501, 0.01
  %v1598 = vmul.f32 %v1502, 0.01
  %v1599 = vmul.f32 %v1503, 0.01
  %v1600 = vmul.f32 %v1504, 0.01
  %v1601 = vmul.f32 %v1505, 0.01
  %v1602 = vmul.f32 %v1506, 0.01
  %v1603 = vsel %vm1507, %v1459, %v1555
  %v1604 = vsel %vm1508, %v1460, %v1556
  %v1605 = vsel %vm1509, %v1461, %v1557
  %v1606 = vsel %vm1510, %v1462, %v1558
  %v1607 = vsel %vm1511, %v1463, %v1559
  %v1608 = vsel %vm1512, %v1464, %v1560
  %v1609 = vsel %vm1513, %v1465, %v1561
  %v1610 = vsel %vm1514, %v1466, %v1562
  %v1611 = vsel %vm1515, %v1467, %v1563
  %v1612 = vsel %vm1516, %v1468, %v1564
  %v1613 = vsel %vm1517, %v1469, %v1565
  %v1614 = vsel %vm1518, %v1470, %v1566
  %v1615 = vsel %vm1519, %v1471, %v1567
  %v1616 = vsel %vm1520, %v1472, %v1568
  %v1617 = vsel %vm1521, %v1473, %v1569
  %v1618 = vsel %vm1522, %v1474, %v1570
  %v1619 = vsel %vm1523, %v1475, %v1571
  %v1620 = vsel %vm1524, %v1476, %v1572
  %v1621 = vsel %vm1525, %v1477, %v1573
  %v1622 = vsel %vm1526, %v1478, %v1574
  %v1623 = vsel %vm1527, %v1479, %v1575
  %v1624 = vsel %vm1528, %v1480, %v1576
  %v1625 = vsel %vm1529, %v1481, %v1577
  %v1626 = vsel %vm1530, %v1482, %v1578
  %v1627 = vsel %vm1531, %v1483, %v1579
  %v1628 = vsel %vm1532, %v1484, %v1580
  %v1629 = vsel %vm1533, %v1485, %v1581
  %v1630 = vsel %vm1534, %v1486, %v1582
  %v1631 = vsel %vm1535, %v1487, %v1583
  %v1632 = vsel %vm1536, %v1488, %v1584
  %v1633 = vsel %vm1537, %v1489, %v1585
  %v1634 = vsel %vm1538, %v1490, %v1586
  %v1635 = vsel %vm1539, %v1491, %v1587
  %v1636 = vsel %vm1540, %v1492, %v1588
  %v1637 = vsel %vm1541, %v1493, %v1589
  %v1638 = vsel %vm1542, %v1494, %v1590
  %v1639 = vsel %vm1543, %v1495, %v1591
  %v1640 = vsel %vm1544, %v1496, %v1592
  %v1641 = vsel %vm1545, %v1497, %v1593
  %v1642 = vsel %vm1546, %v1498, %v1594
  %v1643 = vsel %vm1547, %v1499, %v1595
  %v1644 = vsel %vm1548, %v1500, %v1596
  %v1645 = vsel %vm1549, %v1501, %v1597
  %v1646 = vsel %vm1550, %v1502, %v1598
  %v1647 = vsel %vm1551, %v1503, %v1599
  %v1648 = vsel %vm1552, %v1504, %v1600
  %v1649 = vsel %vm1553, %v1505, %v1601
  %v1650 = vsel %vm1554, %v1506, %v1602
  %v1651 = vld [vmem:[%s5] sm:$0xff]
  %v1652 = vld [vmem:[%s5 + $0x8] sm:$0xff]
  %v1653 = vld [vmem:[%s5 + $0x10] sm:$0xff]
  %v1654 = vld [vmem:[%s5 + $0x18] sm:$0xff]
  %v1656 = vsel %vm221, %v1603, 0
  %v1659 = vsel %vm221, %v1604, 0
  %v1662 = vsel %vm221, %v1605, 0
  %v1665 = vsel %vm221, %v1606, 0
  %v1668 = vsel %vm221, %v1607, 0
  %v1671 = vsel %vm221, %v1608, 0
  %v1674 = vsel %vm221, %v1609, 0
  %v1677 = vsel %vm221, %v1610, 0
  %v1680 = vsel %vm221, %v1611, 0
  %v1683 = vsel %vm221, %v1612, 0
  %v1686 = vsel %vm221, %v1613, 0
  %v1689 = vsel %vm221, %v1614, 0
  %v1692 = vsel %vm221, %v1615, 0
  %v1695 = vsel %vm221, %v1616, 0
  %v1698 = vsel %vm221, %v1617, 0
  %v1701 = vsel %vm221, %v1618, 0
  %v1704 = vsel %vm221, %v1619, 0
  %v1707 = vsel %vm221, %v1620, 0
  %v1710 = vsel %vm221, %v1621, 0
  %v1713 = vsel %vm221, %v1622, 0
  %v1716 = vsel %vm221, %v1623, 0
  %v1719 = vsel %vm221, %v1624, 0
  %v1722 = vsel %vm221, %v1625, 0
  %v1725 = vsel %vm221, %v1626, 0
  %v1728 = vsel %vm221, %v1627, 0
  %v1731 = vsel %vm221, %v1628, 0
  %v1734 = vsel %vm221, %v1629, 0
  %v1737 = vsel %vm221, %v1630, 0
  %v1740 = vsel %vm221, %v1631, 0
  %v1743 = vsel %vm221, %v1632, 0
  %v1746 = vsel %vm221, %v1633, 0
  %v1749 = vsel %vm221, %v1634, 0
  %v1752 = vsel %vm221, %v1635, 0
  %v1755 = vsel %vm221, %v1636, 0
  %v1758 = vsel %vm221, %v1637, 0
  %v1761 = vsel %vm221, %v1638, 0
  %v1764 = vsel %vm221, %v1639, 0
  %v1767 = vsel %vm221, %v1640, 0
  %v1770 = vsel %vm221, %v1641, 0
  %v1773 = vsel %vm221, %v1642, 0
  %v1776 = vsel %vm221, %v1643, 0
  %v1779 = vsel %vm221, %v1644, 0
  %v1782 = vsel %vm221, %v1645, 0
  %v1785 = vsel %vm221, %v1646, 0
  %v1788 = vsel %vm221, %v1647, 0
  %v1791 = vsel %vm221, %v1648, 0
  %v1794 = vsel %vm221, %v1649, 0
  %v1797 = vsel %vm221, %v1650, 0
  %1799 = vmatprep.subr.mxu0 0.0
  %1800 = vmatpush1.msra.mxu0 0.0
  %1801 = vmatprep.subr.mxu0 0.0
  %1802 = vmatpush1.msra.mxu0 0.0
  %1803 = vmatprep.subr.mxu0 0.0
  %1804 = vmatpush1.msra.mxu0 0.0
  %1805 = vmatprep.subr.mxu0 0.0
  %1806 = vmatpush1.msra.mxu0 0.0
  %1807 = vmatprep.subr.mxu0 0.0
  %1808 = vmatpush1.msra.mxu0 0.0
  %1809 = vmatprep.subr.mxu0 0.0
  %1810 = vmatpush1.msra.mxu0 0.0
  %1811 = vmatprep.subr.mxu0 0.0
  %1812 = vmatpush1.msra.mxu0 0.0
  %1813 = vmatprep.subr.mxu0 0.0
  %1814 = vmatpush1.msra.mxu0 0.0
  %1815 = vmatprep.subr.mxu0 0.0
  %1816 = vmatpush1.msra.mxu0 0.0
  %1817 = vmatprep.subr.mxu0 0.0
  %1818 = vmatpush1.msra.mxu0 0.0
  %1819 = vmatprep.subr.mxu0 0.0
  %1820 = vmatpush1.msra.mxu0 0.0
  %1821 = vmatprep.subr.mxu0 0.0
  %1822 = vmatpush1.msra.mxu0 0.0
  %1823 = vmatprep.subr.mxu0 0.0
  %1824 = vmatpush1.msra.mxu0 %v1654
  %1825 = vmatprep.subr.mxu0 0.0
  %1826 = vmatpush1.msra.mxu0 %v1653
  %1827 = vmatprep.subr.mxu0 0.0
  %1828 = vmatpush1.msra.mxu0 %v1652
  %1829 = vmatprep.subr.mxu0 0.0
  %1830 = vmatpush1.msra.mxu0 %v1651
  %1831 = vmatprep.subr.mxu0 0.0
  %1832 = vmatpush2.msra.mxu0 0.0
  %1833 = vmatprep.subr.mxu0 0.0
  %1834 = vmatpush2.msra.mxu0 0.0
  %1835 = vmatprep.subr.mxu0 0.0
  %1836 = vmatpush2.msra.mxu0 0.0
  %1837 = vmatprep.subr.mxu0 0.0
  %1838 = vmatpush2.msra.mxu0 0.0
  %1839 = vmatprep.subr.mxu0 0.0
  %1840 = vmatpush2.msra.mxu0 0.0
  %1841 = vmatprep.subr.mxu0 0.0
  %1842 = vmatpush2.msra.mxu0 0.0
  %1843 = vmatprep.subr.mxu0 0.0
  %1844 = vmatpush2.msra.mxu0 0.0
  %1845 = vmatprep.subr.mxu0 0.0
  %1846 = vmatpush2.msra.mxu0 0.0
  %1847 = vmatprep.subr.mxu0 0.0
  %1848 = vmatpush2.msra.mxu0 0.0
  %1849 = vmatprep.subr.mxu0 0.0
  %1850 = vmatpush2.msra.mxu0 0.0
  %1851 = vmatprep.subr.mxu0 0.0
  %1852 = vmatpush2.msra.mxu0 0.0
  %1853 = vmatprep.subr.mxu0 0.0
  %1854 = vmatpush2.msra.mxu0 0.0
  %1855 = vmatprep.subr.mxu0 0.0
  %1856 = vmatpush2.msra.mxu0 0.0
  %1857 = vmatprep.subr.mxu0 0.0
  %1858 = vmatpush2.msra.mxu0 0.0
  %1859 = vmatprep.subr.mxu0 0.0
  %1860 = vmatpush2.msra.mxu0 0.0
  %1861 = vmatprep.subr.mxu0 0.0
  %1862 = vmatpush2.msra.mxu0 0.0
  %1863 = vmatprep.mubr.f32.mxu0 0.0
  %1864 = vmatmul.mubr.f32.gmra.mxu0 %v1656
  %v1865 = vpop.f32.mrf.mxu0
  %v1866 = vadd.f32 0.0, %v1865
  %v1867 = vpop.f32.mrf.mxu0
  %1868 = vmatprep.mubr.f32.mxu0 0.0
  %1869 = vmatmul.mubr.f32.gmra.mxu0 %v1659
  %v1870 = vpop.f32.mrf.mxu0
  %v1871 = vadd.f32 0.0, %v1870
  %v1872 = vpop.f32.mrf.mxu0
  %1873 = vmatprep.mubr.f32.mxu0 0.0
  %1874 = vmatmul.mubr.f32.gmra.mxu0 %v1662
  %v1875 = vpop.f32.mrf.mxu0
  %v1876 = vadd.f32 0.0, %v1875
  %v1877 = vpop.f32.mrf.mxu0
  %1878 = vmatprep.mubr.f32.mxu0 0.0
  %1879 = vmatmul.mubr.f32.gmra.mxu0 %v1665
  %v1880 = vpop.f32.mrf.mxu0
  %v1881 = vadd.f32 0.0, %v1880
  %v1882 = vpop.f32.mrf.mxu0
  %1883 = vmatprep.mubr.f32.mxu0 0.0
  %1884 = vmatmul.mubr.f32.gmra.mxu0 %v1668
  %v1885 = vpop.f32.mrf.mxu0
  %v1886 = vadd.f32 0.0, %v1885
  %v1887 = vpop.f32.mrf.mxu0
  %1888 = vmatprep.mubr.f32.mxu0 0.0
  %1889 = vmatmul.mubr.f32.gmra.mxu0 %v1671
  %v1890 = vpop.f32.mrf.mxu0
  %v1891 = vadd.f32 0.0, %v1890
  %v1892 = vpop.f32.mrf.mxu0
  %1893 = vmatprep.mubr.f32.mxu0 0.0
  %1894 = vmatmul.mubr.f32.gmra.mxu0 %v1674
  %v1895 = vpop.f32.mrf.mxu0
  %v1896 = vadd.f32 0.0, %v1895
  %v1897 = vpop.f32.mrf.mxu0
  %1898 = vmatprep.mubr.f32.mxu0 0.0
  %1899 = vmatmul.mubr.f32.gmra.mxu0 %v1677
  %v1900 = vpop.f32.mrf.mxu0
  %v1901 = vadd.f32 0.0, %v1900
  %v1902 = vpop.f32.mrf.mxu0
  %1903 = vmatprep.mubr.f32.mxu0 0.0
  %1904 = vmatmul.mubr.f32.gmra.mxu0 %v1680
  %v1905 = vpop.f32.mrf.mxu0
  %v1906 = vadd.f32 0.0, %v1905
  %v1907 = vpop.f32.mrf.mxu0
  %1908 = vmatprep.mubr.f32.mxu0 0.0
  %1909 = vmatmul.mubr.f32.gmra.mxu0 %v1683
  %v1910 = vpop.f32.mrf.mxu0
  %v1911 = vadd.f32 0.0, %v1910
  %v1912 = vpop.f32.mrf.mxu0
  %1913 = vmatprep.mubr.f32.mxu0 0.0
  %1914 = vmatmul.mubr.f32.gmra.mxu0 %v1686
  %v1915 = vpop.f32.mrf.mxu0
  %v1916 = vadd.f32 0.0, %v1915
  %v1917 = vpop.f32.mrf.mxu0
  %1918 = vmatprep.mubr.f32.mxu0 0.0
  %1919 = vmatmul.mubr.f32.gmra.mxu0 %v1689
  %v1920 = vpop.f32.mrf.mxu0
  %v1921 = vadd.f32 0.0, %v1920
  %v1922 = vpop.f32.mrf.mxu0
  %1923 = vmatprep.mubr.f32.mxu0 0.0
  %1924 = vmatmul.mubr.f32.gmra.mxu0 %v1692
  %v1925 = vpop.f32.mrf.mxu0
  %v1926 = vadd.f32 0.0, %v1925
  %v1927 = vpop.f32.mrf.mxu0
  %1928 = vmatprep.mubr.f32.mxu0 0.0
  %1929 = vmatmul.mubr.f32.gmra.mxu0 %v1695
  %v1930 = vpop.f32.mrf.mxu0
  %v1931 = vadd.f32 0.0, %v1930
  %v1932 = vpop.f32.mrf.mxu0
  %1933 = vmatprep.mubr.f32.mxu0 0.0
  %1934 = vmatmul.mubr.f32.gmra.mxu0 %v1698
  %v1935 = vpop.f32.mrf.mxu0
  %v1936 = vadd.f32 0.0, %v1935
  %v1937 = vpop.f32.mrf.mxu0
  %1938 = vmatprep.mubr.f32.mxu0 0.0
  %1939 = vmatmul.mubr.f32.gmra.mxu0 %v1701
  %v1940 = vpop.f32.mrf.mxu0
  %v1941 = vadd.f32 0.0, %v1940
  %v1942 = vpop.f32.mrf.mxu0
  %1943 = vmatprep.mubr.f32.mxu0 0.0
  %1944 = vmatmul.mubr.f32.gmra.mxu0 %v1704
  %v1945 = vpop.f32.mrf.mxu0
  %v1946 = vadd.f32 0.0, %v1945
  %v1947 = vpop.f32.mrf.mxu0
  %1948 = vmatprep.mubr.f32.mxu0 0.0
  %1949 = vmatmul.mubr.f32.gmra.mxu0 %v1707
  %v1950 = vpop.f32.mrf.mxu0
  %v1951 = vadd.f32 0.0, %v1950
  %v1952 = vpop.f32.mrf.mxu0
  %1953 = vmatprep.mubr.f32.mxu0 0.0
  %1954 = vmatmul.mubr.f32.gmra.mxu0 %v1710
  %v1955 = vpop.f32.mrf.mxu0
  %v1956 = vadd.f32 0.0, %v1955
  %v1957 = vpop.f32.mrf.mxu0
  %1958 = vmatprep.mubr.f32.mxu0 0.0
  %1959 = vmatmul.mubr.f32.gmra.mxu0 %v1713
  %v1960 = vpop.f32.mrf.mxu0
  %v1961 = vadd.f32 0.0, %v1960
  %v1962 = vpop.f32.mrf.mxu0
  %1963 = vmatprep.mubr.f32.mxu0 0.0
  %1964 = vmatmul.mubr.f32.gmra.mxu0 %v1716
  %v1965 = vpop.f32.mrf.mxu0
  %v1966 = vadd.f32 0.0, %v1965
  %v1967 = vpop.f32.mrf.mxu0
  %1968 = vmatprep.mubr.f32.mxu0 0.0
  %1969 = vmatmul.mubr.f32.gmra.mxu0 %v1719
  %v1970 = vpop.f32.mrf.mxu0
  %v1971 = vadd.f32 0.0, %v1970
  %v1972 = vpop.f32.mrf.mxu0
  %1973 = vmatprep.mubr.f32.mxu0 0.0
  %1974 = vmatmul.mubr.f32.gmra.mxu0 %v1722
  %v1975 = vpop.f32.mrf.mxu0
  %v1976 = vadd.f32 0.0, %v1975
  %v1977 = vpop.f32.mrf.mxu0
  %1978 = vmatprep.mubr.f32.mxu0 0.0
  %1979 = vmatmul.mubr.f32.gmra.mxu0 %v1725
  %v1980 = vpop.f32.mrf.mxu0
  %v1981 = vadd.f32 0.0, %v1980
  %v1982 = vpop.f32.mrf.mxu0
  %1983 = vmatprep.mubr.f32.mxu0 0.0
  %1984 = vmatmul.mubr.f32.gmra.mxu0 %v1728
  %v1985 = vpop.f32.mrf.mxu0
  %v1986 = vadd.f32 0.0, %v1985
  %v1987 = vpop.f32.mrf.mxu0
  %1988 = vmatprep.mubr.f32.mxu0 0.0
  %1989 = vmatmul.mubr.f32.gmra.mxu0 %v1731
  %v1990 = vpop.f32.mrf.mxu0
  %v1991 = vadd.f32 0.0, %v1990
  %v1992 = vpop.f32.mrf.mxu0
  %1993 = vmatprep.mubr.f32.mxu0 0.0
  %1994 = vmatmul.mubr.f32.gmra.mxu0 %v1734
  %v1995 = vpop.f32.mrf.mxu0
  %v1996 = vadd.f32 0.0, %v1995
  %v1997 = vpop.f32.mrf.mxu0
  %1998 = vmatprep.mubr.f32.mxu0 0.0
  %1999 = vmatmul.mubr.f32.gmra.mxu0 %v1737
  %v2000 = vpop.f32.mrf.mxu0
  %v2001 = vadd.f32 0.0, %v2000
  %v2002 = vpop.f32.mrf.mxu0
  %2003 = vmatprep.mubr.f32.mxu0 0.0
  %2004 = vmatmul.mubr.f32.gmra.mxu0 %v1740
  %v2005 = vpop.f32.mrf.mxu0
  %v2006 = vadd.f32 0.0, %v2005
  %v2007 = vpop.f32.mrf.mxu0
  %2008 = vmatprep.mubr.f32.mxu0 0.0
  %2009 = vmatmul.mubr.f32.gmra.mxu0 %v1743
  %v2010 = vpop.f32.mrf.mxu0
  %v2011 = vadd.f32 0.0, %v2010
  %v2012 = vpop.f32.mrf.mxu0
  %2013 = vmatprep.mubr.f32.mxu0 0.0
  %2014 = vmatmul.mubr.f32.gmra.mxu0 %v1746
  %v2015 = vpop.f32.mrf.mxu0
  %v2016 = vadd.f32 0.0, %v2015
  %v2017 = vpop.f32.mrf.mxu0
  %2018 = vmatprep.mubr.f32.mxu0 0.0
  %2019 = vmatmul.mubr.f32.gmra.mxu0 %v1749
  %v2020 = vpop.f32.mrf.mxu0
  %v2021 = vadd.f32 0.0, %v2020
  %v2022 = vpop.f32.mrf.mxu0
  %2023 = vmatprep.mubr.f32.mxu0 0.0
  %2024 = vmatmul.mubr.f32.gmra.mxu0 %v1752
  %v2025 = vpop.f32.mrf.mxu0
  %v2026 = vadd.f32 0.0, %v2025
  %v2027 = vpop.f32.mrf.mxu0
  %2028 = vmatprep.mubr.f32.mxu0 0.0
  %2029 = vmatmul.mubr.f32.gmra.mxu0 %v1755
  %v2030 = vpop.f32.mrf.mxu0
  %v2031 = vadd.f32 0.0, %v2030
  %v2032 = vpop.f32.mrf.mxu0
  %2033 = vmatprep.mubr.f32.mxu0 0.0
  %2034 = vmatmul.mubr.f32.gmra.mxu0 %v1758
  %v2035 = vpop.f32.mrf.mxu0
  %v2036 = vadd.f32 0.0, %v2035
  %v2037 = vpop.f32.mrf.mxu0
  %2038 = vmatprep.mubr.f32.mxu0 0.0
  %2039 = vmatmul.mubr.f32.gmra.mxu0 %v1761
  %v2040 = vpop.f32.mrf.mxu0
  %v2041 = vadd.f32 0.0, %v2040
  %v2042 = vpop.f32.mrf.mxu0
  %2043 = vmatprep.mubr.f32.mxu0 0.0
  %2044 = vmatmul.mubr.f32.gmra.mxu0 %v1764
  %v2045 = vpop.f32.mrf.mxu0
  %v2046 = vadd.f32 0.0, %v2045
  %v2047 = vpop.f32.mrf.mxu0
  %2048 = vmatprep.mubr.f32.mxu0 0.0
  %2049 = vmatmul.mubr.f32.gmra.mxu0 %v1767
  %v2050 = vpop.f32.mrf.mxu0
  %v2051 = vadd.f32 0.0, %v2050
  %v2052 = vpop.f32.mrf.mxu0
  %2053 = vmatprep.mubr.f32.mxu0 0.0
  %2054 = vmatmul.mubr.f32.gmra.mxu0 %v1770
  %v2055 = vpop.f32.mrf.mxu0
  %v2056 = vadd.f32 0.0, %v2055
  %v2057 = vpop.f32.mrf.mxu0
  %2058 = vmatprep.mubr.f32.mxu0 0.0
  %2059 = vmatmul.mubr.f32.gmra.mxu0 %v1773
  %v2060 = vpop.f32.mrf.mxu0
  %v2061 = vadd.f32 0.0, %v2060
  %v2062 = vpop.f32.mrf.mxu0
  %2063 = vmatprep.mubr.f32.mxu0 0.0
  %2064 = vmatmul.mubr.f32.gmra.mxu0 %v1776
  %v2065 = vpop.f32.mrf.mxu0
  %v2066 = vadd.f32 0.0, %v2065
  %v2067 = vpop.f32.mrf.mxu0
  %2068 = vmatprep.mubr.f32.mxu0 0.0
  %2069 = vmatmul.mubr.f32.gmra.mxu0 %v1779
  %v2070 = vpop.f32.mrf.mxu0
  %v2071 = vadd.f32 0.0, %v2070
  %v2072 = vpop.f32.mrf.mxu0
  %2073 = vmatprep.mubr.f32.mxu0 0.0
  %2074 = vmatmul.mubr.f32.gmra.mxu0 %v1782
  %v2075 = vpop.f32.mrf.mxu0
  %v2076 = vadd.f32 0.0, %v2075
  %v2077 = vpop.f32.mrf.mxu0
  %2078 = vmatprep.mubr.f32.mxu0 0.0
  %2079 = vmatmul.mubr.f32.gmra.mxu0 %v1785
  %v2080 = vpop.f32.mrf.mxu0
  %v2081 = vadd.f32 0.0, %v2080
  %v2082 = vpop.f32.mrf.mxu0
  %2083 = vmatprep.mubr.f32.mxu0 0.0
  %2084 = vmatmul.mubr.f32.gmra.mxu0 %v1788
  %v2085 = vpop.f32.mrf.mxu0
  %v2086 = vadd.f32 0.0, %v2085
  %v2087 = vpop.f32.mrf.mxu0
  %2088 = vmatprep.mubr.f32.mxu0 0.0
  %2089 = vmatmul.mubr.f32.gmra.mxu0 %v1791
  %v2090 = vpop.f32.mrf.mxu0
  %v2091 = vadd.f32 0.0, %v2090
  %v2092 = vpop.f32.mrf.mxu0
  %2093 = vmatprep.mubr.f32.mxu0 0.0
  %2094 = vmatmul.mubr.f32.gmra.mxu0 %v1794
  %v2095 = vpop.f32.mrf.mxu0
  %v2096 = vadd.f32 0.0, %v2095
  %v2097 = vpop.f32.mrf.mxu0
  %2098 = vmatprep.mubr.f32.mxu0 0.0
  %2099 = vmatmul.mubr.f32.gmra.mxu0 %v1797
  %v2100 = vpop.f32.mrf.mxu0
  %v2101 = vadd.f32 0.0, %v2100
  %v2102 = vpop.f32.mrf.mxu0
  %2103 = vdwg.mxu0
  %v2104 = vld [vmem:[%s4] sm:$0xff]
  %v2105 = vld [vmem:[%s4 + $0x8] sm:$0xff]
  %s2106 = scalar_lea.vmem %s5, 32
  %v2107 = vld [vmem:[%s2106] sm:$0xff]
  %v2108 = vld [vmem:[%s2106 + $0x8] sm:$0xff]
  %v2109 = vld [vmem:[%s2106 + $0x10] sm:$0xff]
  %v2110 = vld [vmem:[%s2106 + $0x18] sm:$0xff]
  %2111 = vmatprep.subr.mxu0 0.0
  %2112 = vmatpush1.msra.mxu0 0.0
  %2113 = vmatprep.subr.mxu0 0.0
  %2114 = vmatpush1.msra.mxu0 0.0
  %2115 = vmatprep.subr.mxu0 0.0
  %2116 = vmatpush1.msra.mxu0 0.0
  %2117 = vmatprep.subr.mxu0 0.0
  %2118 = vmatpush1.msra.mxu0 0.0
  %2119 = vmatprep.subr.mxu0 0.0
  %2120 = vmatpush1.msra.mxu0 0.0
  %2121 = vmatprep.subr.mxu0 0.0
  %2122 = vmatpush1.msra.mxu0 0.0
  %2123 = vmatprep.subr.mxu0 0.0
  %2124 = vmatpush1.msra.mxu0 0.0
  %2125 = vmatprep.subr.mxu0 0.0
  %2126 = vmatpush1.msra.mxu0 0.0
  %2127 = vmatprep.subr.mxu0 0.0
  %2128 = vmatpush1.msra.mxu0 0.0
  %2129 = vmatprep.subr.mxu0 0.0
  %2130 = vmatpush1.msra.mxu0 0.0
  %2131 = vmatprep.subr.mxu0 0.0
  %2132 = vmatpush1.msra.mxu0 0.0
  %2133 = vmatprep.subr.mxu0 0.0
  %2134 = vmatpush1.msra.mxu0 0.0
  %2135 = vmatprep.subr.mxu0 0.0
  %2136 = vmatpush1.msra.mxu0 %v2110
  %2137 = vmatprep.subr.mxu0 0.0
  %2138 = vmatpush1.msra.mxu0 %v2109
  %2139 = vmatprep.subr.mxu0 0.0
  %2140 = vmatpush1.msra.mxu0 %v2108
  %2141 = vmatprep.subr.mxu0 0.0
  %2142 = vmatpush1.msra.mxu0 %v2107
  %2143 = vmatprep.subr.mxu0 0.0
  %2144 = vmatpush2.msra.mxu0 0.0
  %2145 = vmatprep.subr.mxu0 0.0
  %2146 = vmatpush2.msra.mxu0 0.0
  %2147 = vmatprep.subr.mxu0 0.0
  %2148 = vmatpush2.msra.mxu0 0.0
  %2149 = vmatprep.subr.mxu0 0.0
  %2150 = vmatpush2.msra.mxu0 0.0
  %2151 = vmatprep.subr.mxu0 0.0
  %2152 = vmatpush2.msra.mxu0 0.0
  %2153 = vmatprep.subr.mxu0 0.0
  %2154 = vmatpush2.msra.mxu0 0.0
  %2155 = vmatprep.subr.mxu0 0.0
  %2156 = vmatpush2.msra.mxu0 0.0
  %2157 = vmatprep.subr.mxu0 0.0
  %2158 = vmatpush2.msra.mxu0 0.0
  %2159 = vmatprep.subr.mxu0 0.0
  %2160 = vmatpush2.msra.mxu0 0.0
  %2161 = vmatprep.subr.mxu0 0.0
  %2162 = vmatpush2.msra.mxu0 0.0
  %2163 = vmatprep.subr.mxu0 0.0
  %2164 = vmatpush2.msra.mxu0 0.0
  %2165 = vmatprep.subr.mxu0 0.0
  %2166 = vmatpush2.msra.mxu0 0.0
  %2167 = vmatprep.subr.mxu0 0.0
  %2168 = vmatpush2.msra.mxu0 0.0
  %2169 = vmatprep.subr.mxu0 0.0
  %2170 = vmatpush2.msra.mxu0 0.0
  %2171 = vmatprep.subr.mxu0 0.0
  %2172 = vmatpush2.msra.mxu0 0.0
  %2173 = vmatprep.subr.mxu0 0.0
  %2174 = vmatpush2.msra.mxu0 0.0
  %2175 = vmatprep.mubr.f32.mxu0 0.0
  %2176 = vmatmul.mubr.f32.gmra.mxu0 %v1656
  %v2177 = vpop.f32.mrf.mxu0
  %v2178 = vadd.f32 0.0, %v2177
  %v2179 = vpop.f32.mrf.mxu0
  %2180 = vmatprep.mubr.f32.mxu0 0.0
  %2181 = vmatmul.mubr.f32.gmra.mxu0 %v1659
  %v2182 = vpop.f32.mrf.mxu0
  %v2183 = vadd.f32 0.0, %v2182
  %v2184 = vpop.f32.mrf.mxu0
  %2185 = vmatprep.mubr.f32.mxu0 0.0
  %2186 = vmatmul.mubr.f32.gmra.mxu0 %v1662
  %v2187 = vpop.f32.mrf.mxu0
  %v2188 = vadd.f32 0.0, %v2187
  %v2189 = vpop.f32.mrf.mxu0
  %2190 = vmatprep.mubr.f32.mxu0 0.0
  %2191 = vmatmul.mubr.f32.gmra.mxu0 %v1665
  %v2192 = vpop.f32.mrf.mxu0
  %v2193 = vadd.f32 0.0, %v2192
  %v2194 = vpop.f32.mrf.mxu0
  %2195 = vmatprep.mubr.f32.mxu0 0.0
  %2196 = vmatmul.mubr.f32.gmra.mxu0 %v1668
  %v2197 = vpop.f32.mrf.mxu0
  %v2198 = vadd.f32 0.0, %v2197
  %v2199 = vpop.f32.mrf.mxu0
  %2200 = vmatprep.mubr.f32.mxu0 0.0
  %2201 = vmatmul.mubr.f32.gmra.mxu0 %v1671
  %v2202 = vpop.f32.mrf.mxu0
  %v2203 = vadd.f32 0.0, %v2202
  %v2204 = vpop.f32.mrf.mxu0
  %2205 = vmatprep.mubr.f32.mxu0 0.0
  %2206 = vmatmul.mubr.f32.gmra.mxu0 %v1674
  %v2207 = vpop.f32.mrf.mxu0
  %v2208 = vadd.f32 0.0, %v2207
  %v2209 = vpop.f32.mrf.mxu0
  %2210 = vmatprep.mubr.f32.mxu0 0.0
  %2211 = vmatmul.mubr.f32.gmra.mxu0 %v1677
  %v2212 = vpop.f32.mrf.mxu0
  %v2213 = vadd.f32 0.0, %v2212
  %v2214 = vpop.f32.mrf.mxu0
  %2215 = vmatprep.mubr.f32.mxu0 0.0
  %2216 = vmatmul.mubr.f32.gmra.mxu0 %v1680
  %v2217 = vpop.f32.mrf.mxu0
  %v2218 = vadd.f32 0.0, %v2217
  %v2219 = vpop.f32.mrf.mxu0
  %2220 = vmatprep.mubr.f32.mxu0 0.0
  %2221 = vmatmul.mubr.f32.gmra.mxu0 %v1683
  %v2222 = vpop.f32.mrf.mxu0
  %v2223 = vadd.f32 0.0, %v2222
  %v2224 = vpop.f32.mrf.mxu0
  %2225 = vmatprep.mubr.f32.mxu0 0.0
  %2226 = vmatmul.mubr.f32.gmra.mxu0 %v1686
  %v2227 = vpop.f32.mrf.mxu0
  %v2228 = vadd.f32 0.0, %v2227
  %v2229 = vpop.f32.mrf.mxu0
  %2230 = vmatprep.mubr.f32.mxu0 0.0
  %2231 = vmatmul.mubr.f32.gmra.mxu0 %v1689
  %v2232 = vpop.f32.mrf.mxu0
  %v2233 = vadd.f32 0.0, %v2232
  %v2234 = vpop.f32.mrf.mxu0
  %2235 = vmatprep.mubr.f32.mxu0 0.0
  %2236 = vmatmul.mubr.f32.gmra.mxu0 %v1692
  %v2237 = vpop.f32.mrf.mxu0
  %v2238 = vadd.f32 0.0, %v2237
  %v2239 = vpop.f32.mrf.mxu0
  %2240 = vmatprep.mubr.f32.mxu0 0.0
  %2241 = vmatmul.mubr.f32.gmra.mxu0 %v1695
  %v2242 = vpop.f32.mrf.mxu0
  %v2243 = vadd.f32 0.0, %v2242
  %v2244 = vpop.f32.mrf.mxu0
  %2245 = vmatprep.mubr.f32.mxu0 0.0
  %2246 = vmatmul.mubr.f32.gmra.mxu0 %v1698
  %v2247 = vpop.f32.mrf.mxu0
  %v2248 = vadd.f32 0.0, %v2247
  %v2249 = vpop.f32.mrf.mxu0
  %2250 = vmatprep.mubr.f32.mxu0 0.0
  %2251 = vmatmul.mubr.f32.gmra.mxu0 %v1701
  %v2252 = vpop.f32.mrf.mxu0
  %v2253 = vadd.f32 0.0, %v2252
  %v2254 = vpop.f32.mrf.mxu0
  %2255 = vmatprep.mubr.f32.mxu0 0.0
  %2256 = vmatmul.mubr.f32.gmra.mxu0 %v1704
  %v2257 = vpop.f32.mrf.mxu0
  %v2258 = vadd.f32 0.0, %v2257
  %v2259 = vpop.f32.mrf.mxu0
  %2260 = vmatprep.mubr.f32.mxu0 0.0
  %2261 = vmatmul.mubr.f32.gmra.mxu0 %v1707
  %v2262 = vpop.f32.mrf.mxu0
  %v2263 = vadd.f32 0.0, %v2262
  %v2264 = vpop.f32.mrf.mxu0
  %2265 = vmatprep.mubr.f32.mxu0 0.0
  %2266 = vmatmul.mubr.f32.gmra.mxu0 %v1710
  %v2267 = vpop.f32.mrf.mxu0
  %v2268 = vadd.f32 0.0, %v2267
  %v2269 = vpop.f32.mrf.mxu0
  %2270 = vmatprep.mubr.f32.mxu0 0.0
  %2271 = vmatmul.mubr.f32.gmra.mxu0 %v1713
  %v2272 = vpop.f32.mrf.mxu0
  %v2273 = vadd.f32 0.0, %v2272
  %v2274 = vpop.f32.mrf.mxu0
  %2275 = vmatprep.mubr.f32.mxu0 0.0
  %2276 = vmatmul.mubr.f32.gmra.mxu0 %v1716
  %v2277 = vpop.f32.mrf.mxu0
  %v2278 = vadd.f32 0.0, %v2277
  %v2279 = vpop.f32.mrf.mxu0
  %2280 = vmatprep.mubr.f32.mxu0 0.0
  %2281 = vmatmul.mubr.f32.gmra.mxu0 %v1719
  %v2282 = vpop.f32.mrf.mxu0
  %v2283 = vadd.f32 0.0, %v2282
  %v2284 = vpop.f32.mrf.mxu0
  %2285 = vmatprep.mubr.f32.mxu0 0.0
  %2286 = vmatmul.mubr.f32.gmra.mxu0 %v1722
  %v2287 = vpop.f32.mrf.mxu0
  %v2288 = vadd.f32 0.0, %v2287
  %v2289 = vpop.f32.mrf.mxu0
  %2290 = vmatprep.mubr.f32.mxu0 0.0
  %2291 = vmatmul.mubr.f32.gmra.mxu0 %v1725
  %v2292 = vpop.f32.mrf.mxu0
  %v2293 = vadd.f32 0.0, %v2292
  %v2294 = vpop.f32.mrf.mxu0
  %2295 = vmatprep.mubr.f32.mxu0 0.0
  %2296 = vmatmul.mubr.f32.gmra.mxu0 %v1728
  %v2297 = vpop.f32.mrf.mxu0
  %v2298 = vadd.f32 0.0, %v2297
  %v2299 = vpop.f32.mrf.mxu0
  %2300 = vmatprep.mubr.f32.mxu0 0.0
  %2301 = vmatmul.mubr.f32.gmra.mxu0 %v1731
  %v2302 = vpop.f32.mrf.mxu0
  %v2303 = vadd.f32 0.0, %v2302
  %v2304 = vpop.f32.mrf.mxu0
  %2305 = vmatprep.mubr.f32.mxu0 0.0
  %2306 = vmatmul.mubr.f32.gmra.mxu0 %v1734
  %v2307 = vpop.f32.mrf.mxu0
  %v2308 = vadd.f32 0.0, %v2307
  %v2309 = vpop.f32.mrf.mxu0
  %2310 = vmatprep.mubr.f32.mxu0 0.0
  %2311 = vmatmul.mubr.f32.gmra.mxu0 %v1737
  %v2312 = vpop.f32.mrf.mxu0
  %v2313 = vadd.f32 0.0, %v2312
  %v2314 = vpop.f32.mrf.mxu0
  %2315 = vmatprep.mubr.f32.mxu0 0.0
  %2316 = vmatmul.mubr.f32.gmra.mxu0 %v1740
  %v2317 = vpop.f32.mrf.mxu0
  %v2318 = vadd.f32 0.0, %v2317
  %v2319 = vpop.f32.mrf.mxu0
  %2320 = vmatprep.mubr.f32.mxu0 0.0
  %2321 = vmatmul.mubr.f32.gmra.mxu0 %v1743
  %v2322 = vpop.f32.mrf.mxu0
  %v2323 = vadd.f32 0.0, %v2322
  %v2324 = vpop.f32.mrf.mxu0
  %2325 = vmatprep.mubr.f32.mxu0 0.0
  %2326 = vmatmul.mubr.f32.gmra.mxu0 %v1746
  %v2327 = vpop.f32.mrf.mxu0
  %v2328 = vadd.f32 0.0, %v2327
  %v2329 = vpop.f32.mrf.mxu0
  %2330 = vmatprep.mubr.f32.mxu0 0.0
  %2331 = vmatmul.mubr.f32.gmra.mxu0 %v1749
  %v2332 = vpop.f32.mrf.mxu0
  %v2333 = vadd.f32 0.0, %v2332
  %v2334 = vpop.f32.mrf.mxu0
  %2335 = vmatprep.mubr.f32.mxu0 0.0
  %2336 = vmatmul.mubr.f32.gmra.mxu0 %v1752
  %v2337 = vpop.f32.mrf.mxu0
  %v2338 = vadd.f32 0.0, %v2337
  %v2339 = vpop.f32.mrf.mxu0
  %2340 = vmatprep.mubr.f32.mxu0 0.0
  %2341 = vmatmul.mubr.f32.gmra.mxu0 %v1755
  %v2342 = vpop.f32.mrf.mxu0
  %v2343 = vadd.f32 0.0, %v2342
  %v2344 = vpop.f32.mrf.mxu0
  %2345 = vmatprep.mubr.f32.mxu0 0.0
  %2346 = vmatmul.mubr.f32.gmra.mxu0 %v1758
  %v2347 = vpop.f32.mrf.mxu0
  %v2348 = vadd.f32 0.0, %v2347
  %v2349 = vpop.f32.mrf.mxu0
  %2350 = vmatprep.mubr.f32.mxu0 0.0
  %2351 = vmatmul.mubr.f32.gmra.mxu0 %v1761
  %v2352 = vpop.f32.mrf.mxu0
  %v2353 = vadd.f32 0.0, %v2352
  %v2354 = vpop.f32.mrf.mxu0
  %2355 = vmatprep.mubr.f32.mxu0 0.0
  %2356 = vmatmul.mubr.f32.gmra.mxu0 %v1764
  %v2357 = vpop.f32.mrf.mxu0
  %v2358 = vadd.f32 0.0, %v2357
  %v2359 = vpop.f32.mrf.mxu0
  %2360 = vmatprep.mubr.f32.mxu0 0.0
  %2361 = vmatmul.mubr.f32.gmra.mxu0 %v1767
  %v2362 = vpop.f32.mrf.mxu0
  %v2363 = vadd.f32 0.0, %v2362
  %v2364 = vpop.f32.mrf.mxu0
  %2365 = vmatprep.mubr.f32.mxu0 0.0
  %2366 = vmatmul.mubr.f32.gmra.mxu0 %v1770
  %v2367 = vpop.f32.mrf.mxu0
  %v2368 = vadd.f32 0.0, %v2367
  %v2369 = vpop.f32.mrf.mxu0
  %2370 = vmatprep.mubr.f32.mxu0 0.0
  %2371 = vmatmul.mubr.f32.gmra.mxu0 %v1773
  %v2372 = vpop.f32.mrf.mxu0
  %v2373 = vadd.f32 0.0, %v2372
  %v2374 = vpop.f32.mrf.mxu0
  %2375 = vmatprep.mubr.f32.mxu0 0.0
  %2376 = vmatmul.mubr.f32.gmra.mxu0 %v1776
  %v2377 = vpop.f32.mrf.mxu0
  %v2378 = vadd.f32 0.0, %v2377
  %v2379 = vpop.f32.mrf.mxu0
  %2380 = vmatprep.mubr.f32.mxu0 0.0
  %2381 = vmatmul.mubr.f32.gmra.mxu0 %v1779
  %v2382 = vpop.f32.mrf.mxu0
  %v2383 = vadd.f32 0.0, %v2382
  %v2384 = vpop.f32.mrf.mxu0
  %2385 = vmatprep.mubr.f32.mxu0 0.0
  %2386 = vmatmul.mubr.f32.gmra.mxu0 %v1782
  %v2387 = vpop.f32.mrf.mxu0
  %v2388 = vadd.f32 0.0, %v2387
  %v2389 = vpop.f32.mrf.mxu0
  %2390 = vmatprep.mubr.f32.mxu0 0.0
  %2391 = vmatmul.mubr.f32.gmra.mxu0 %v1785
  %v2392 = vpop.f32.mrf.mxu0
  %v2393 = vadd.f32 0.0, %v2392
  %v2394 = vpop.f32.mrf.mxu0
  %2395 = vmatprep.mubr.f32.mxu0 0.0
  %2396 = vmatmul.mubr.f32.gmra.mxu0 %v1788
  %v2397 = vpop.f32.mrf.mxu0
  %v2398 = vadd.f32 0.0, %v2397
  %v2399 = vpop.f32.mrf.mxu0
  %2400 = vmatprep.mubr.f32.mxu0 0.0
  %2401 = vmatmul.mubr.f32.gmra.mxu0 %v1791
  %v2402 = vpop.f32.mrf.mxu0
  %v2403 = vadd.f32 0.0, %v2402
  %v2404 = vpop.f32.mrf.mxu0
  %2405 = vmatprep.mubr.f32.mxu0 0.0
  %2406 = vmatmul.mubr.f32.gmra.mxu0 %v1794
  %v2407 = vpop.f32.mrf.mxu0
  %v2408 = vadd.f32 0.0, %v2407
  %v2409 = vpop.f32.mrf.mxu0
  %2410 = vmatprep.mubr.f32.mxu0 0.0
  %2411 = vmatmul.mubr.f32.gmra.mxu0 %v1797
  %v2412 = vpop.f32.mrf.mxu0
  %v2413 = vadd.f32 0.0, %v2412
  %v2414 = vpop.f32.mrf.mxu0
  %2415 = vdwg.mxu0
  %s2416 = scalar_lea.vmem %s4, 16
  %v2417 = vld [vmem:[%s2416] sm:$0xff]
  %v2418 = vld [vmem:[%s2416 + $0x8] sm:$0xff]
  %vm2419 = vcmask 523264
  %v2421 = vsel %vm2419, %v2417, 0
  %v2424 = vsel %vm2419, %v2418, 0
  %2426 = vmatprep.subr.mxu0 0.0
  %2427 = vmatpush1.msra.mxu0 0.0
  %2428 = vmatprep.subr.mxu0 0.0
  %2429 = vmatpush1.msra.mxu0 0.0
  %2430 = vmatprep.subr.mxu0 0.0
  %2431 = vmatpush1.msra.mxu0 0.0
  %2432 = vmatprep.subr.mxu0 0.0
  %2433 = vmatpush1.msra.mxu0 0.0
  %2434 = vmatprep.subr.mxu0 0.0
  %2435 = vmatpush1.msra.mxu0 0.0
  %2436 = vmatprep.subr.mxu0 0.0
  %2437 = vmatpush1.msra.mxu0 0.0
  %2438 = vmatprep.subr.mxu0 0.0
  %2439 = vmatpush1.msra.mxu0 0.0
  %2440 = vmatprep.subr.mxu0 0.0
  %2441 = vmatpush1.msra.mxu0 0.0
  %2442 = vmatprep.subr.mxu0 0.0
  %2443 = vmatpush1.msra.mxu0 %v2213
  %2444 = vmatprep.subr.mxu0 0.0
  %2445 = vmatpush1.msra.mxu0 %v2208
  %2446 = vmatprep.subr.mxu0 0.0
  %2447 = vmatpush1.msra.mxu0 %v2203
  %2448 = vmatprep.subr.mxu0 0.0
  %2449 = vmatpush1.msra.mxu0 %v2198
  %2450 = vmatprep.subr.mxu0 0.0
  %2451 = vmatpush1.msra.mxu0 %v2193
  %2452 = vmatprep.subr.mxu0 0.0
  %2453 = vmatpush1.msra.mxu0 %v2188
  %2454 = vmatprep.subr.mxu0 0.0
  %2455 = vmatpush1.msra.mxu0 %v2183
  %2456 = vmatprep.subr.mxu0 0.0
  %2457 = vmatpush1.msra.mxu0 %v2178
  %2458 = vmatprep.subr.mxu0 0.0
  %2459 = vmatpush2.msra.mxu0 0.0
  %2460 = vmatprep.subr.mxu0 0.0
  %2461 = vmatpush2.msra.mxu0 0.0
  %2462 = vmatprep.subr.mxu0 0.0
  %2463 = vmatpush2.msra.mxu0 0.0
  %2464 = vmatprep.subr.mxu0 0.0
  %2465 = vmatpush2.msra.mxu0 0.0
  %2466 = vmatprep.subr.mxu0 0.0
  %2467 = vmatpush2.msra.mxu0 0.0
  %2468 = vmatprep.subr.mxu0 0.0
  %2469 = vmatpush2.msra.mxu0 0.0
  %2470 = vmatprep.subr.mxu0 0.0
  %2471 = vmatpush2.msra.mxu0 0.0
  %2472 = vmatprep.subr.mxu0 0.0
  %2473 = vmatpush2.msra.mxu0 0.0
  %2474 = vmatprep.subr.mxu0 0.0
  %2475 = vmatpush2.msra.mxu0 0.0
  %2476 = vmatprep.subr.mxu0 0.0
  %2477 = vmatpush2.msra.mxu0 0.0
  %2478 = vmatprep.subr.mxu0 0.0
  %2479 = vmatpush2.msra.mxu0 0.0
  %2480 = vmatprep.subr.mxu0 0.0
  %2481 = vmatpush2.msra.mxu0 0.0
  %2482 = vmatprep.subr.mxu0 0.0
  %2483 = vmatpush2.msra.mxu0 0.0
  %2484 = vmatprep.subr.mxu0 0.0
  %2485 = vmatpush2.msra.mxu0 0.0
  %2486 = vmatprep.subr.mxu0 0.0
  %2487 = vmatpush2.msra.mxu0 0.0
  %2488 = vmatprep.subr.mxu0 0.0
  %2489 = vmatpush2.msra.mxu0 0.0
  %2490 = vmatprep.mubr.f32.mxu0 0.0
  %2491 = vmatmul.mubr.f32.gmra.mxu0 %v2421
  %v2492 = vpop.f32.mrf.mxu0
  %v2493 = vadd.f32 0.0, %v2492
  %v2494 = vpop.f32.mrf.mxu0
  %2495 = vmatprep.mubr.f32.mxu0 0.0
  %2496 = vmatmul.mubr.f32.gmra.mxu0 %v2424
  %v2497 = vpop.f32.mrf.mxu0
  %v2498 = vadd.f32 0.0, %v2497
  %v2499 = vpop.f32.mrf.mxu0
  %2500 = vdwg.mxu0
  %2501 = vmatprep.subr.mxu0 0.0
  %2502 = vmatpush1.msra.mxu0 0.0
  %2503 = vmatprep.subr.mxu0 0.0
  %2504 = vmatpush1.msra.mxu0 0.0
  %2505 = vmatprep.subr.mxu0 0.0
  %2506 = vmatpush1.msra.mxu0 0.0
  %2507 = vmatprep.subr.mxu0 0.0
  %2508 = vmatpush1.msra.mxu0 0.0
  %2509 = vmatprep.subr.mxu0 0.0
  %2510 = vmatpush1.msra.mxu0 0.0
  %2511 = vmatprep.subr.mxu0 0.0
  %2512 = vmatpush1.msra.mxu0 0.0
  %2513 = vmatprep.subr.mxu0 0.0
  %2514 = vmatpush1.msra.mxu0 0.0
  %2515 = vmatprep.subr.mxu0 0.0
  %2516 = vmatpush1.msra.mxu0 0.0
  %2517 = vmatprep.subr.mxu0 0.0
  %2518 = vmatpush1.msra.mxu0 %v2253
  %2519 = vmatprep.subr.mxu0 0.0
  %2520 = vmatpush1.msra.mxu0 %v2248
  %2521 = vmatprep.subr.mxu0 0.0
  %2522 = vmatpush1.msra.mxu0 %v2243
  %2523 = vmatprep.subr.mxu0 0.0
  %2524 = vmatpush1.msra.mxu0 %v2238
  %2525 = vmatprep.subr.mxu0 0.0
  %2526 = vmatpush1.msra.mxu0 %v2233
  %2527 = vmatprep.subr.mxu0 0.0
  %2528 = vmatpush1.msra.mxu0 %v2228
  %2529 = vmatprep.subr.mxu0 0.0
  %2530 = vmatpush1.msra.mxu0 %v2223
  %2531 = vmatprep.subr.mxu0 0.0
  %2532 = vmatpush1.msra.mxu0 %v2218
  %2533 = vmatprep.subr.mxu0 0.0
  %2534 = vmatpush2.msra.mxu0 0.0
  %2535 = vmatprep.subr.mxu0 0.0
  %2536 = vmatpush2.msra.mxu0 0.0
  %2537 = vmatprep.subr.mxu0 0.0
  %2538 = vmatpush2.msra.mxu0 0.0
  %2539 = vmatprep.subr.mxu0 0.0
  %2540 = vmatpush2.msra.mxu0 0.0
  %2541 = vmatprep.subr.mxu0 0.0
  %2542 = vmatpush2.msra.mxu0 0.0
  %2543 = vmatprep.subr.mxu0 0.0
  %2544 = vmatpush2.msra.mxu0 0.0
  %2545 = vmatprep.subr.mxu0 0.0
  %2546 = vmatpush2.msra.mxu0 0.0
  %2547 = vmatprep.subr.mxu0 0.0
  %2548 = vmatpush2.msra.mxu0 0.0
  %2549 = vmatprep.subr.mxu0 0.0
  %2550 = vmatpush2.msra.mxu0 0.0
  %2551 = vmatprep.subr.mxu0 0.0
  %2552 = vmatpush2.msra.mxu0 0.0
  %2553 = vmatprep.subr.mxu0 0.0
  %2554 = vmatpush2.msra.mxu0 0.0
  %2555 = vmatprep.subr.mxu0 0.0
  %2556 = vmatpush2.msra.mxu0 0.0
  %2557 = vmatprep.subr.mxu0 0.0
  %2558 = vmatpush2.msra.mxu0 0.0
  %2559 = vmatprep.subr.mxu0 0.0
  %2560 = vmatpush2.msra.mxu0 0.0
  %2561 = vmatprep.subr.mxu0 0.0
  %2562 = vmatpush2.msra.mxu0 0.0
  %2563 = vmatprep.subr.mxu0 0.0
  %2564 = vmatpush2.msra.mxu0 0.0
  %2565 = vmatprep.mubr.f32.mxu0 0.0
  %2566 = vmatmul.mubr.f32.gmra.mxu0 %v2421
  %v2567 = vpop.f32.mrf.mxu0
  %v2568 = vadd.f32 0.0, %v2567
  %v2569 = vpop.f32.mrf.mxu0
  %2570 = vmatprep.mubr.f32.mxu0 0.0
  %2571 = vmatmul.mubr.f32.gmra.mxu0 %v2424
  %v2572 = vpop.f32.mrf.mxu0
  %v2573 = vadd.f32 0.0, %v2572
  %v2574 = vpop.f32.mrf.mxu0
  %2575 = vdwg.mxu0
  %2576 = vmatprep.subr.mxu0 0.0
  %2577 = vmatpush1.msra.mxu0 0.0
  %2578 = vmatprep.subr.mxu0 0.0
  %2579 = vmatpush1.msra.mxu0 0.0
  %2580 = vmatprep.subr.mxu0 0.0
  %2581 = vmatpush1.msra.mxu0 0.0
  %2582 = vmatprep.subr.mxu0 0.0
  %2583 = vmatpush1.msra.mxu0 0.0
  %2584 = vmatprep.subr.mxu0 0.0
  %2585 = vmatpush1.msra.mxu0 0.0
  %2586 = vmatprep.subr.mxu0 0.0
  %2587 = vmatpush1.msra.mxu0 0.0
  %2588 = vmatprep.subr.mxu0 0.0
  %2589 = vmatpush1.msra.mxu0 0.0
  %2590 = vmatprep.subr.mxu0 0.0
  %2591 = vmatpush1.msra.mxu0 0.0
  %2592 = vmatprep.subr.mxu0 0.0
  %2593 = vmatpush1.msra.mxu0 %v2293
  %2594 = vmatprep.subr.mxu0 0.0
  %2595 = vmatpush1.msra.mxu0 %v2288
  %2596 = vmatprep.subr.mxu0 0.0
  %2597 = vmatpush1.msra.mxu0 %v2283
  %2598 = vmatprep.subr.mxu0 0.0
  %2599 = vmatpush1.msra.mxu0 %v2278
  %2600 = vmatprep.subr.mxu0 0.0
  %2601 = vmatpush1.msra.mxu0 %v2273
  %2602 = vmatprep.subr.mxu0 0.0
  %2603 = vmatpush1.msra.mxu0 %v2268
  %2604 = vmatprep.subr.mxu0 0.0
  %2605 = vmatpush1.msra.mxu0 %v2263
  %2606 = vmatprep.subr.mxu0 0.0
  %2607 = vmatpush1.msra.mxu0 %v2258
  %2608 = vmatprep.subr.mxu0 0.0
  %2609 = vmatpush2.msra.mxu0 0.0
  %2610 = vmatprep.subr.mxu0 0.0
  %2611 = vmatpush2.msra.mxu0 0.0
  %2612 = vmatprep.subr.mxu0 0.0
  %2613 = vmatpush2.msra.mxu0 0.0
  %2614 = vmatprep.subr.mxu0 0.0
  %2615 = vmatpush2.msra.mxu0 0.0
  %2616 = vmatprep.subr.mxu0 0.0
  %2617 = vmatpush2.msra.mxu0 0.0
  %2618 = vmatprep.subr.mxu0 0.0
  %2619 = vmatpush2.msra.mxu0 0.0
  %2620 = vmatprep.subr.mxu0 0.0
  %2621 = vmatpush2.msra.mxu0 0.0
  %2622 = vmatprep.subr.mxu0 0.0
  %2623 = vmatpush2.msra.mxu0 0.0
  %2624 = vmatprep.subr.mxu0 0.0
  %2625 = vmatpush2.msra.mxu0 0.0
  %2626 = vmatprep.subr.mxu0 0.0
  %2627 = vmatpush2.msra.mxu0 0.0
  %2628 = vmatprep.subr.mxu0 0.0
  %2629 = vmatpush2.msra.mxu0 0.0
  %2630 = vmatprep.subr.mxu0 0.0
  %2631 = vmatpush2.msra.mxu0 0.0
  %2632 = vmatprep.subr.mxu0 0.0
  %2633 = vmatpush2.msra.mxu0 0.0
  %2634 = vmatprep.subr.mxu0 0.0
  %2635 = vmatpush2.msra.mxu0 0.0
  %2636 = vmatprep.subr.mxu0 0.0
  %2637 = vmatpush2.msra.mxu0 0.0
  %2638 = vmatprep.subr.mxu0 0.0
  %2639 = vmatpush2.msra.mxu0 0.0
  %2640 = vmatprep.mubr.f32.mxu0 0.0
  %2641 = vmatmul.mubr.f32.gmra.mxu0 %v2421
  %v2642 = vpop.f32.mrf.mxu0
  %v2643 = vadd.f32 0.0, %v2642
  %v2644 = vpop.f32.mrf.mxu0
  %2645 = vmatprep.mubr.f32.mxu0 0.0
  %2646 = vmatmul.mubr.f32.gmra.mxu0 %v2424
  %v2647 = vpop.f32.mrf.mxu0
  %v2648 = vadd.f32 0.0, %v2647
  %v2649 = vpop.f32.mrf.mxu0
  %2650 = vdwg.mxu0
  %2651 = vmatprep.subr.mxu0 0.0
  %2652 = vmatpush1.msra.mxu0 0.0
  %2653 = vmatprep.subr.mxu0 0.0
  %2654 = vmatpush1.msra.mxu0 0.0
  %2655 = vmatprep.subr.mxu0 0.0
  %2656 = vmatpush1.msra.mxu0 0.0
  %2657 = vmatprep.subr.mxu0 0.0
  %2658 = vmatpush1.msra.mxu0 0.0
  %2659 = vmatprep.subr.mxu0 0.0
  %2660 = vmatpush1.msra.mxu0 0.0
  %2661 = vmatprep.subr.mxu0 0.0
  %2662 = vmatpush1.msra.mxu0 0.0
  %2663 = vmatprep.subr.mxu0 0.0
  %2664 = vmatpush1.msra.mxu0 0.0
  %2665 = vmatprep.subr.mxu0 0.0
  %2666 = vmatpush1.msra.mxu0 0.0
  %2667 = vmatprep.subr.mxu0 0.0
  %2668 = vmatpush1.msra.mxu0 %v2333
  %2669 = vmatprep.subr.mxu0 0.0
  %2670 = vmatpush1.msra.mxu0 %v2328
  %2671 = vmatprep.subr.mxu0 0.0
  %2672 = vmatpush1.msra.mxu0 %v2323
  %2673 = vmatprep.subr.mxu0 0.0
  %2674 = vmatpush1.msra.mxu0 %v2318
  %2675 = vmatprep.subr.mxu0 0.0
  %2676 = vmatpush1.msra.mxu0 %v2313
  %2677 = vmatprep.subr.mxu0 0.0
  %2678 = vmatpush1.msra.mxu0 %v2308
  %2679 = vmatprep.subr.mxu0 0.0
  %2680 = vmatpush1.msra.mxu0 %v2303
  %2681 = vmatprep.subr.mxu0 0.0
  %2682 = vmatpush1.msra.mxu0 %v2298
  %2683 = vmatprep.subr.mxu0 0.0
  %2684 = vmatpush2.msra.mxu0 0.0
  %2685 = vmatprep.subr.mxu0 0.0
  %2686 = vmatpush2.msra.mxu0 0.0
  %2687 = vmatprep.subr.mxu0 0.0
  %2688 = vmatpush2.msra.mxu0 0.0
  %2689 = vmatprep.subr.mxu0 0.0
  %2690 = vmatpush2.msra.mxu0 0.0
  %2691 = vmatprep.subr.mxu0 0.0
  %2692 = vmatpush2.msra.mxu0 0.0
  %2693 = vmatprep.subr.mxu0 0.0
  %2694 = vmatpush2.msra.mxu0 0.0
  %2695 = vmatprep.subr.mxu0 0.0
  %2696 = vmatpush2.msra.mxu0 0.0
  %2697 = vmatprep.subr.mxu0 0.0
  %2698 = vmatpush2.msra.mxu0 0.0
  %2699 = vmatprep.subr.mxu0 0.0
  %2700 = vmatpush2.msra.mxu0 0.0
  %2701 = vmatprep.subr.mxu0 0.0
  %2702 = vmatpush2.msra.mxu0 0.0
  %2703 = vmatprep.subr.mxu0 0.0
  %2704 = vmatpush2.msra.mxu0 0.0
  %2705 = vmatprep.subr.mxu0 0.0
  %2706 = vmatpush2.msra.mxu0 0.0
  %2707 = vmatprep.subr.mxu0 0.0
  %2708 = vmatpush2.msra.mxu0 0.0
  %2709 = vmatprep.subr.mxu0 0.0
  %2710 = vmatpush2.msra.mxu0 0.0
  %2711 = vmatprep.subr.mxu0 0.0
  %2712 = vmatpush2.msra.mxu0 0.0
  %2713 = vmatprep.subr.mxu0 0.0
  %2714 = vmatpush2.msra.mxu0 0.0
  %2715 = vmatprep.mubr.f32.mxu0 0.0
  %2716 = vmatmul.mubr.f32.gmra.mxu0 %v2421
  %v2717 = vpop.f32.mrf.mxu0
  %v2718 = vadd.f32 0.0, %v2717
  %v2719 = vpop.f32.mrf.mxu0
  %2720 = vmatprep.mubr.f32.mxu0 0.0
  %2721 = vmatmul.mubr.f32.gmra.mxu0 %v2424
  %v2722 = vpop.f32.mrf.mxu0
  %v2723 = vadd.f32 0.0, %v2722
  %v2724 = vpop.f32.mrf.mxu0
  %2725 = vdwg.mxu0
  %2726 = vmatprep.subr.mxu0 0.0
  %2727 = vmatpush1.msra.mxu0 0.0
  %2728 = vmatprep.subr.mxu0 0.0
  %2729 = vmatpush1.msra.mxu0 0.0
  %2730 = vmatprep.subr.mxu0 0.0
  %2731 = vmatpush1.msra.mxu0 0.0
  %2732 = vmatprep.subr.mxu0 0.0
  %2733 = vmatpush1.msra.mxu0 0.0
  %2734 = vmatprep.subr.mxu0 0.0
  %2735 = vmatpush1.msra.mxu0 0.0
  %2736 = vmatprep.subr.mxu0 0.0
  %2737 = vmatpush1.msra.mxu0 0.0
  %2738 = vmatprep.subr.mxu0 0.0
  %2739 = vmatpush1.msra.mxu0 0.0
  %2740 = vmatprep.subr.mxu0 0.0
  %2741 = vmatpush1.msra.mxu0 0.0
  %2742 = vmatprep.subr.mxu0 0.0
  %2743 = vmatpush1.msra.mxu0 %v2373
  %2744 = vmatprep.subr.mxu0 0.0
  %2745 = vmatpush1.msra.mxu0 %v2368
  %2746 = vmatprep.subr.mxu0 0.0
  %2747 = vmatpush1.msra.mxu0 %v2363
  %2748 = vmatprep.subr.mxu0 0.0
  %2749 = vmatpush1.msra.mxu0 %v2358
  %2750 = vmatprep.subr.mxu0 0.0
  %2751 = vmatpush1.msra.mxu0 %v2353
  %2752 = vmatprep.subr.mxu0 0.0
  %2753 = vmatpush1.msra.mxu0 %v2348
  %2754 = vmatprep.subr.mxu0 0.0
  %2755 = vmatpush1.msra.mxu0 %v2343
  %2756 = vmatprep.subr.mxu0 0.0
  %2757 = vmatpush1.msra.mxu0 %v2338
  %2758 = vmatprep.subr.mxu0 0.0
  %2759 = vmatpush2.msra.mxu0 0.0
  %2760 = vmatprep.subr.mxu0 0.0
  %2761 = vmatpush2.msra.mxu0 0.0
  %2762 = vmatprep.subr.mxu0 0.0
  %2763 = vmatpush2.msra.mxu0 0.0
  %2764 = vmatprep.subr.mxu0 0.0
  %2765 = vmatpush2.msra.mxu0 0.0
  %2766 = vmatprep.subr.mxu0 0.0
  %2767 = vmatpush2.msra.mxu0 0.0
  %2768 = vmatprep.subr.mxu0 0.0
  %2769 = vmatpush2.msra.mxu0 0.0
  %2770 = vmatprep.subr.mxu0 0.0
  %2771 = vmatpush2.msra.mxu0 0.0
  %2772 = vmatprep.subr.mxu0 0.0
  %2773 = vmatpush2.msra.mxu0 0.0
  %2774 = vmatprep.subr.mxu0 0.0
  %2775 = vmatpush2.msra.mxu0 0.0
  %2776 = vmatprep.subr.mxu0 0.0
  %2777 = vmatpush2.msra.mxu0 0.0
  %2778 = vmatprep.subr.mxu0 0.0
  %2779 = vmatpush2.msra.mxu0 0.0
  %2780 = vmatprep.subr.mxu0 0.0
  %2781 = vmatpush2.msra.mxu0 0.0
  %2782 = vmatprep.subr.mxu0 0.0
  %2783 = vmatpush2.msra.mxu0 0.0
  %2784 = vmatprep.subr.mxu0 0.0
  %2785 = vmatpush2.msra.mxu0 0.0
  %2786 = vmatprep.subr.mxu0 0.0
  %2787 = vmatpush2.msra.mxu0 0.0
  %2788 = vmatprep.subr.mxu0 0.0
  %2789 = vmatpush2.msra.mxu0 0.0
  %2790 = vmatprep.mubr.f32.mxu0 0.0
  %2791 = vmatmul.mubr.f32.gmra.mxu0 %v2421
  %v2792 = vpop.f32.mrf.mxu0
  %v2793 = vadd.f32 0.0, %v2792
  %v2794 = vpop.f32.mrf.mxu0
  %2795 = vmatprep.mubr.f32.mxu0 0.0
  %2796 = vmatmul.mubr.f32.gmra.mxu0 %v2424
  %v2797 = vpop.f32.mrf.mxu0
  %v2798 = vadd.f32 0.0, %v2797
  %v2799 = vpop.f32.mrf.mxu0
  %2800 = vdwg.mxu0
  %2801 = vmatprep.subr.mxu0 0.0
  %2802 = vmatpush1.msra.mxu0 0.0
  %2803 = vmatprep.subr.mxu0 0.0
  %2804 = vmatpush1.msra.mxu0 0.0
  %2805 = vmatprep.subr.mxu0 0.0
  %2806 = vmatpush1.msra.mxu0 0.0
  %2807 = vmatprep.subr.mxu0 0.0
  %2808 = vmatpush1.msra.mxu0 0.0
  %2809 = vmatprep.subr.mxu0 0.0
  %2810 = vmatpush1.msra.mxu0 0.0
  %2811 = vmatprep.subr.mxu0 0.0
  %2812 = vmatpush1.msra.mxu0 0.0
  %2813 = vmatprep.subr.mxu0 0.0
  %2814 = vmatpush1.msra.mxu0 0.0
  %2815 = vmatprep.subr.mxu0 0.0
  %2816 = vmatpush1.msra.mxu0 0.0
  %2817 = vmatprep.subr.mxu0 0.0
  %2818 = vmatpush1.msra.mxu0 %v2413
  %2819 = vmatprep.subr.mxu0 0.0
  %2820 = vmatpush1.msra.mxu0 %v2408
  %2821 = vmatprep.subr.mxu0 0.0
  %2822 = vmatpush1.msra.mxu0 %v2403
  %2823 = vmatprep.subr.mxu0 0.0
  %2824 = vmatpush1.msra.mxu0 %v2398
  %2825 = vmatprep.subr.mxu0 0.0
  %2826 = vmatpush1.msra.mxu0 %v2393
  %2827 = vmatprep.subr.mxu0 0.0
  %2828 = vmatpush1.msra.mxu0 %v2388
  %2829 = vmatprep.subr.mxu0 0.0
  %2830 = vmatpush1.msra.mxu0 %v2383
  %2831 = vmatprep.subr.mxu0 0.0
  %2832 = vmatpush1.msra.mxu0 %v2378
  %2833 = vmatprep.subr.mxu0 0.0
  %2834 = vmatpush2.msra.mxu0 0.0
  %2835 = vmatprep.subr.mxu0 0.0
  %2836 = vmatpush2.msra.mxu0 0.0
  %2837 = vmatprep.subr.mxu0 0.0
  %2838 = vmatpush2.msra.mxu0 0.0
  %2839 = vmatprep.subr.mxu0 0.0
  %2840 = vmatpush2.msra.mxu0 0.0
  %2841 = vmatprep.subr.mxu0 0.0
  %2842 = vmatpush2.msra.mxu0 0.0
  %2843 = vmatprep.subr.mxu0 0.0
  %2844 = vmatpush2.msra.mxu0 0.0
  %2845 = vmatprep.subr.mxu0 0.0
  %2846 = vmatpush2.msra.mxu0 0.0
  %2847 = vmatprep.subr.mxu0 0.0
  %2848 = vmatpush2.msra.mxu0 0.0
  %2849 = vmatprep.subr.mxu0 0.0
  %2850 = vmatpush2.msra.mxu0 0.0
  %2851 = vmatprep.subr.mxu0 0.0
  %2852 = vmatpush2.msra.mxu0 0.0
  %2853 = vmatprep.subr.mxu0 0.0
  %2854 = vmatpush2.msra.mxu0 0.0
  %2855 = vmatprep.subr.mxu0 0.0
  %2856 = vmatpush2.msra.mxu0 0.0
  %2857 = vmatprep.subr.mxu0 0.0
  %2858 = vmatpush2.msra.mxu0 0.0
  %2859 = vmatprep.subr.mxu0 0.0
  %2860 = vmatpush2.msra.mxu0 0.0
  %2861 = vmatprep.subr.mxu0 0.0
  %2862 = vmatpush2.msra.mxu0 0.0
  %2863 = vmatprep.subr.mxu0 0.0
  %2864 = vmatpush2.msra.mxu0 0.0
  %2865 = vmatprep.mubr.f32.mxu0 0.0
  %2866 = vmatmul.mubr.f32.gmra.mxu0 %v2421
  %v2867 = vpop.f32.mrf.mxu0
  %v2868 = vadd.f32 0.0, %v2867
  %v2869 = vpop.f32.mrf.mxu0
  %2870 = vmatprep.mubr.f32.mxu0 0.0
  %2871 = vmatmul.mubr.f32.gmra.mxu0 %v2424
  %v2872 = vpop.f32.mrf.mxu0
  %v2873 = vadd.f32 0.0, %v2872
  %v2874 = vpop.f32.mrf.mxu0
  %2875 = vdwg.mxu0
  %v2877 = vsel %vm2419, %v2104, 0
  %v2880 = vsel %vm2419, %v2105, 0
  %2882 = vmatprep.subr.mxu0 0.0
  %2883 = vmatpush1.msra.mxu0 0.0
  %2884 = vmatprep.subr.mxu0 0.0
  %2885 = vmatpush1.msra.mxu0 0.0
  %2886 = vmatprep.subr.mxu0 0.0
  %2887 = vmatpush1.msra.mxu0 0.0
  %2888 = vmatprep.subr.mxu0 0.0
  %2889 = vmatpush1.msra.mxu0 0.0
  %2890 = vmatprep.subr.mxu0 0.0
  %2891 = vmatpush1.msra.mxu0 0.0
  %2892 = vmatprep.subr.mxu0 0.0
  %2893 = vmatpush1.msra.mxu0 0.0
  %2894 = vmatprep.subr.mxu0 0.0
  %2895 = vmatpush1.msra.mxu0 0.0
  %2896 = vmatprep.subr.mxu0 0.0
  %2897 = vmatpush1.msra.mxu0 0.0
  %2898 = vmatprep.subr.mxu0 0.0
  %2899 = vmatpush1.msra.mxu0 %v1901
  %2900 = vmatprep.subr.mxu0 0.0
  %2901 = vmatpush1.msra.mxu0 %v1896
  %2902 = vmatprep.subr.mxu0 0.0
  %2903 = vmatpush1.msra.mxu0 %v1891
  %2904 = vmatprep.subr.mxu0 0.0
  %2905 = vmatpush1.msra.mxu0 %v1886
  %2906 = vmatprep.subr.mxu0 0.0
  %2907 = vmatpush1.msra.mxu0 %v1881
  %2908 = vmatprep.subr.mxu0 0.0
  %2909 = vmatpush1.msra.mxu0 %v1876
  %2910 = vmatprep.subr.mxu0 0.0
  %2911 = vmatpush1.msra.mxu0 %v1871
  %2912 = vmatprep.subr.mxu0 0.0
  %2913 = vmatpush1.msra.mxu0 %v1866
  %2914 = vmatprep.subr.mxu0 0.0
  %2915 = vmatpush2.msra.mxu0 0.0
  %2916 = vmatprep.subr.mxu0 0.0
  %2917 = vmatpush2.msra.mxu0 0.0
  %2918 = vmatprep.subr.mxu0 0.0
  %2919 = vmatpush2.msra.mxu0 0.0
  %2920 = vmatprep.subr.mxu0 0.0
  %2921 = vmatpush2.msra.mxu0 0.0
  %2922 = vmatprep.subr.mxu0 0.0
  %2923 = vmatpush2.msra.mxu0 0.0
  %2924 = vmatprep.subr.mxu0 0.0
  %2925 = vmatpush2.msra.mxu0 0.0
  %2926 = vmatprep.subr.mxu0 0.0
  %2927 = vmatpush2.msra.mxu0 0.0
  %2928 = vmatprep.subr.mxu0 0.0
  %2929 = vmatpush2.msra.mxu0 0.0
  %2930 = vmatprep.subr.mxu0 0.0
  %2931 = vmatpush2.msra.mxu0 0.0
  %2932 = vmatprep.subr.mxu0 0.0
  %2933 = vmatpush2.msra.mxu0 0.0
  %2934 = vmatprep.subr.mxu0 0.0
  %2935 = vmatpush2.msra.mxu0 0.0
  %2936 = vmatprep.subr.mxu0 0.0
  %2937 = vmatpush2.msra.mxu0 0.0
  %2938 = vmatprep.subr.mxu0 0.0
  %2939 = vmatpush2.msra.mxu0 0.0
  %2940 = vmatprep.subr.mxu0 0.0
  %2941 = vmatpush2.msra.mxu0 0.0
  %2942 = vmatprep.subr.mxu0 0.0
  %2943 = vmatpush2.msra.mxu0 0.0
  %2944 = vmatprep.subr.mxu0 0.0
  %2945 = vmatpush2.msra.mxu0 0.0
  %2946 = vmatprep.mubr.f32.mxu0 0.0
  %2947 = vmatmul.mubr.f32.gmra.mxu0 %v2877
  %v2948 = vpop.f32.mrf.mxu0
  %v2949 = vadd.f32 %v2493, %v2948
  %v2950 = vpop.f32.mrf.mxu0
  %2951 = vmatprep.mubr.f32.mxu0 0.0
  %2952 = vmatmul.mubr.f32.gmra.mxu0 %v2880
  %v2953 = vpop.f32.mrf.mxu0
  %v2954 = vadd.f32 %v2498, %v2953
  %v2955 = vpop.f32.mrf.mxu0
  %2956 = vdwg.mxu0
  %2957 = vmatprep.subr.mxu0 0.0
  %2958 = vmatpush1.msra.mxu0 0.0
  %2959 = vmatprep.subr.mxu0 0.0
  %2960 = vmatpush1.msra.mxu0 0.0
  %2961 = vmatprep.subr.mxu0 0.0
  %2962 = vmatpush1.msra.mxu0 0.0
  %2963 = vmatprep.subr.mxu0 0.0
  %2964 = vmatpush1.msra.mxu0 0.0
  %2965 = vmatprep.subr.mxu0 0.0
  %2966 = vmatpush1.msra.mxu0 0.0
  %2967 = vmatprep.subr.mxu0 0.0
  %2968 = vmatpush1.msra.mxu0 0.0
  %2969 = vmatprep.subr.mxu0 0.0
  %2970 = vmatpush1.msra.mxu0 0.0
  %2971 = vmatprep.subr.mxu0 0.0
  %2972 = vmatpush1.msra.mxu0 0.0
  %2973 = vmatprep.subr.mxu0 0.0
  %2974 = vmatpush1.msra.mxu0 %v1941
  %2975 = vmatprep.subr.mxu0 0.0
  %2976 = vmatpush1.msra.mxu0 %v1936
  %2977 = vmatprep.subr.mxu0 0.0
  %2978 = vmatpush1.msra.mxu0 %v1931
  %2979 = vmatprep.subr.mxu0 0.0
  %2980 = vmatpush1.msra.mxu0 %v1926
  %2981 = vmatprep.subr.mxu0 0.0
  %2982 = vmatpush1.msra.mxu0 %v1921
  %2983 = vmatprep.subr.mxu0 0.0
  %2984 = vmatpush1.msra.mxu0 %v1916
  %2985 = vmatprep.subr.mxu0 0.0
  %2986 = vmatpush1.msra.mxu0 %v1911
  %2987 = vmatprep.subr.mxu0 0.0
  %2988 = vmatpush1.msra.mxu0 %v1906
  %2989 = vmatprep.subr.mxu0 0.0
  %2990 = vmatpush2.msra.mxu0 0.0
  %2991 = vmatprep.subr.mxu0 0.0
  %2992 = vmatpush2.msra.mxu0 0.0
  %2993 = vmatprep.subr.mxu0 0.0
  %2994 = vmatpush2.msra.mxu0 0.0
  %2995 = vmatprep.subr.mxu0 0.0
  %2996 = vmatpush2.msra.mxu0 0.0
  %2997 = vmatprep.subr.mxu0 0.0
  %2998 = vmatpush2.msra.mxu0 0.0
  %2999 = vmatprep.subr.mxu0 0.0
  %3000 = vmatpush2.msra.mxu0 0.0
  %3001 = vmatprep.subr.mxu0 0.0
  %3002 = vmatpush2.msra.mxu0 0.0
  %3003 = vmatprep.subr.mxu0 0.0
  %3004 = vmatpush2.msra.mxu0 0.0
  %3005 = vmatprep.subr.mxu0 0.0
  %3006 = vmatpush2.msra.mxu0 0.0
  %3007 = vmatprep.subr.mxu0 0.0
  %3008 = vmatpush2.msra.mxu0 0.0
  %3009 = vmatprep.subr.mxu0 0.0
  %3010 = vmatpush2.msra.mxu0 0.0
  %3011 = vmatprep.subr.mxu0 0.0
  %3012 = vmatpush2.msra.mxu0 0.0
  %3013 = vmatprep.subr.mxu0 0.0
  %3014 = vmatpush2.msra.mxu0 0.0
  %3015 = vmatprep.subr.mxu0 0.0
  %3016 = vmatpush2.msra.mxu0 0.0
  %3017 = vmatprep.subr.mxu0 0.0
  %3018 = vmatpush2.msra.mxu0 0.0
  %3019 = vmatprep.subr.mxu0 0.0
  %3020 = vmatpush2.msra.mxu0 0.0
  %3021 = vmatprep.mubr.f32.mxu0 0.0
  %3022 = vmatmul.mubr.f32.gmra.mxu0 %v2877
  %v3023 = vpop.f32.mrf.mxu0
  %v3024 = vadd.f32 %v2568, %v3023
  %v3025 = vpop.f32.mrf.mxu0
  %3026 = vmatprep.mubr.f32.mxu0 0.0
  %3027 = vmatmul.mubr.f32.gmra.mxu0 %v2880
  %v3028 = vpop.f32.mrf.mxu0
  %v3029 = vadd.f32 %v2573, %v3028
  %v3030 = vpop.f32.mrf.mxu0
  %3031 = vdwg.mxu0
  %3032 = vmatprep.subr.mxu0 0.0
  %3033 = vmatpush1.msra.mxu0 0.0
  %3034 = vmatprep.subr.mxu0 0.0
  %3035 = vmatpush1.msra.mxu0 0.0
  %3036 = vmatprep.subr.mxu0 0.0
  %3037 = vmatpush1.msra.mxu0 0.0
  %3038 = vmatprep.subr.mxu0 0.0
  %3039 = vmatpush1.msra.mxu0 0.0
  %3040 = vmatprep.subr.mxu0 0.0
  %3041 = vmatpush1.msra.mxu0 0.0
  %3042 = vmatprep.subr.mxu0 0.0
  %3043 = vmatpush1.msra.mxu0 0.0
  %3044 = vmatprep.subr.mxu0 0.0
  %3045 = vmatpush1.msra.mxu0 0.0
  %3046 = vmatprep.subr.mxu0 0.0
  %3047 = vmatpush1.msra.mxu0 0.0
  %3048 = vmatprep.subr.mxu0 0.0
  %3049 = vmatpush1.msra.mxu0 %v1981
  %3050 = vmatprep.subr.mxu0 0.0
  %3051 = vmatpush1.msra.mxu0 %v1976
  %3052 = vmatprep.subr.mxu0 0.0
  %3053 = vmatpush1.msra.mxu0 %v1971
  %3054 = vmatprep.subr.mxu0 0.0
  %3055 = vmatpush1.msra.mxu0 %v1966
  %3056 = vmatprep.subr.mxu0 0.0
  %3057 = vmatpush1.msra.mxu0 %v1961
  %3058 = vmatprep.subr.mxu0 0.0
  %3059 = vmatpush1.msra.mxu0 %v1956
  %3060 = vmatprep.subr.mxu0 0.0
  %3061 = vmatpush1.msra.mxu0 %v1951
  %3062 = vmatprep.subr.mxu0 0.0
  %3063 = vmatpush1.msra.mxu0 %v1946
  %3064 = vmatprep.subr.mxu0 0.0
  %3065 = vmatpush2.msra.mxu0 0.0
  %3066 = vmatprep.subr.mxu0 0.0
  %3067 = vmatpush2.msra.mxu0 0.0
  %3068 = vmatprep.subr.mxu0 0.0
  %3069 = vmatpush2.msra.mxu0 0.0
  %3070 = vmatprep.subr.mxu0 0.0
  %3071 = vmatpush2.msra.mxu0 0.0
  %3072 = vmatprep.subr.mxu0 0.0
  %3073 = vmatpush2.msra.mxu0 0.0
  %3074 = vmatprep.subr.mxu0 0.0
  %3075 = vmatpush2.msra.mxu0 0.0
  %3076 = vmatprep.subr.mxu0 0.0
  %3077 = vmatpush2.msra.mxu0 0.0
  %3078 = vmatprep.subr.mxu0 0.0
  %3079 = vmatpush2.msra.mxu0 0.0
  %3080 = vmatprep.subr.mxu0 0.0
  %3081 = vmatpush2.msra.mxu0 0.0
  %3082 = vmatprep.subr.mxu0 0.0
  %3083 = vmatpush2.msra.mxu0 0.0
  %3084 = vmatprep.subr.mxu0 0.0
  %3085 = vmatpush2.msra.mxu0 0.0
  %3086 = vmatprep.subr.mxu0 0.0
  %3087 = vmatpush2.msra.mxu0 0.0
  %3088 = vmatprep.subr.mxu0 0.0
  %3089 = vmatpush2.msra.mxu0 0.0
  %3090 = vmatprep.subr.mxu0 0.0
  %3091 = vmatpush2.msra.mxu0 0.0
  %3092 = vmatprep.subr.mxu0 0.0
  %3093 = vmatpush2.msra.mxu0 0.0
  %3094 = vmatprep.subr.mxu0 0.0
  %3095 = vmatpush2.msra.mxu0 0.0
  %3096 = vmatprep.mubr.f32.mxu0 0.0
  %3097 = vmatmul.mubr.f32.gmra.mxu0 %v2877
  %v3098 = vpop.f32.mrf.mxu0
  %v3099 = vadd.f32 %v2643, %v3098
  %v3100 = vpop.f32.mrf.mxu0
  %3101 = vmatprep.mubr.f32.mxu0 0.0
  %3102 = vmatmul.mubr.f32.gmra.mxu0 %v2880
  %v3103 = vpop.f32.mrf.mxu0
  %v3104 = vadd.f32 %v2648, %v3103
  %v3105 = vpop.f32.mrf.mxu0
  %3106 = vdwg.mxu0
  %3107 = vmatprep.subr.mxu0 0.0
  %3108 = vmatpush1.msra.mxu0 0.0
  %3109 = vmatprep.subr.mxu0 0.0
  %3110 = vmatpush1.msra.mxu0 0.0
  %3111 = vmatprep.subr.mxu0 0.0
  %3112 = vmatpush1.msra.mxu0 0.0
  %3113 = vmatprep.subr.mxu0 0.0
  %3114 = vmatpush1.msra.mxu0 0.0
  %3115 = vmatprep.subr.mxu0 0.0
  %3116 = vmatpush1.msra.mxu0 0.0
  %3117 = vmatprep.subr.mxu0 0.0
  %3118 = vmatpush1.msra.mxu0 0.0
  %3119 = vmatprep.subr.mxu0 0.0
  %3120 = vmatpush1.msra.mxu0 0.0
  %3121 = vmatprep.subr.mxu0 0.0
  %3122 = vmatpush1.msra.mxu0 0.0
  %3123 = vmatprep.subr.mxu0 0.0
  %3124 = vmatpush1.msra.mxu0 %v2021
  %3125 = vmatprep.subr.mxu0 0.0
  %3126 = vmatpush1.msra.mxu0 %v2016
  %3127 = vmatprep.subr.mxu0 0.0
  %3128 = vmatpush1.msra.mxu0 %v2011
  %3129 = vmatprep.subr.mxu0 0.0
  %3130 = vmatpush1.msra.mxu0 %v2006
  %3131 = vmatprep.subr.mxu0 0.0
  %3132 = vmatpush1.msra.mxu0 %v2001
  %3133 = vmatprep.subr.mxu0 0.0
  %3134 = vmatpush1.msra.mxu0 %v1996
  %3135 = vmatprep.subr.mxu0 0.0
  %3136 = vmatpush1.msra.mxu0 %v1991
  %3137 = vmatprep.subr.mxu0 0.0
  %3138 = vmatpush1.msra.mxu0 %v1986
  %3139 = vmatprep.subr.mxu0 0.0
  %3140 = vmatpush2.msra.mxu0 0.0
  %3141 = vmatprep.subr.mxu0 0.0
  %3142 = vmatpush2.msra.mxu0 0.0
  %3143 = vmatprep.subr.mxu0 0.0
  %3144 = vmatpush2.msra.mxu0 0.0
  %3145 = vmatprep.subr.mxu0 0.0
  %3146 = vmatpush2.msra.mxu0 0.0
  %3147 = vmatprep.subr.mxu0 0.0
  %3148 = vmatpush2.msra.mxu0 0.0
  %3149 = vmatprep.subr.mxu0 0.0
  %3150 = vmatpush2.msra.mxu0 0.0
  %3151 = vmatprep.subr.mxu0 0.0
  %3152 = vmatpush2.msra.mxu0 0.0
  %3153 = vmatprep.subr.mxu0 0.0
  %3154 = vmatpush2.msra.mxu0 0.0
  %3155 = vmatprep.subr.mxu0 0.0
  %3156 = vmatpush2.msra.mxu0 0.0
  %3157 = vmatprep.subr.mxu0 0.0
  %3158 = vmatpush2.msra.mxu0 0.0
  %3159 = vmatprep.subr.mxu0 0.0
  %3160 = vmatpush2.msra.mxu0 0.0
  %3161 = vmatprep.subr.mxu0 0.0
  %3162 = vmatpush2.msra.mxu0 0.0
  %3163 = vmatprep.subr.mxu0 0.0
  %3164 = vmatpush2.msra.mxu0 0.0
  %3165 = vmatprep.subr.mxu0 0.0
  %3166 = vmatpush2.msra.mxu0 0.0
  %3167 = vmatprep.subr.mxu0 0.0
  %3168 = vmatpush2.msra.mxu0 0.0
  %3169 = vmatprep.subr.mxu0 0.0
  %3170 = vmatpush2.msra.mxu0 0.0
  %3171 = vmatprep.mubr.f32.mxu0 0.0
  %3172 = vmatmul.mubr.f32.gmra.mxu0 %v2877
  %v3173 = vpop.f32.mrf.mxu0
  %v3174 = vadd.f32 %v2718, %v3173
  %v3175 = vpop.f32.mrf.mxu0
  %3176 = vmatprep.mubr.f32.mxu0 0.0
  %3177 = vmatmul.mubr.f32.gmra.mxu0 %v2880
  %v3178 = vpop.f32.mrf.mxu0
  %v3179 = vadd.f32 %v2723, %v3178
  %v3180 = vpop.f32.mrf.mxu0
  %3181 = vdwg.mxu0
  %3182 = vmatprep.subr.mxu0 0.0
  %3183 = vmatpush1.msra.mxu0 0.0
  %3184 = vmatprep.subr.mxu0 0.0
  %3185 = vmatpush1.msra.mxu0 0.0
  %3186 = vmatprep.subr.mxu0 0.0
  %3187 = vmatpush1.msra.mxu0 0.0
  %3188 = vmatprep.subr.mxu0 0.0
  %3189 = vmatpush1.msra.mxu0 0.0
  %3190 = vmatprep.subr.mxu0 0.0
  %3191 = vmatpush1.msra.mxu0 0.0
  %3192 = vmatprep.subr.mxu0 0.0
  %3193 = vmatpush1.msra.mxu0 0.0
  %3194 = vmatprep.subr.mxu0 0.0
  %3195 = vmatpush1.msra.mxu0 0.0
  %3196 = vmatprep.subr.mxu0 0.0
  %3197 = vmatpush1.msra.mxu0 0.0
  %3198 = vmatprep.subr.mxu0 0.0
  %3199 = vmatpush1.msra.mxu0 %v2061
  %3200 = vmatprep.subr.mxu0 0.0
  %3201 = vmatpush1.msra.mxu0 %v2056
  %3202 = vmatprep.subr.mxu0 0.0
  %3203 = vmatpush1.msra.mxu0 %v2051
  %3204 = vmatprep.subr.mxu0 0.0
  %3205 = vmatpush1.msra.mxu0 %v2046
  %3206 = vmatprep.subr.mxu0 0.0
  %3207 = vmatpush1.msra.mxu0 %v2041
  %3208 = vmatprep.subr.mxu0 0.0
  %3209 = vmatpush1.msra.mxu0 %v2036
  %3210 = vmatprep.subr.mxu0 0.0
  %3211 = vmatpush1.msra.mxu0 %v2031
  %3212 = vmatprep.subr.mxu0 0.0
  %3213 = vmatpush1.msra.mxu0 %v2026
  %3214 = vmatprep.subr.mxu0 0.0
  %3215 = vmatpush2.msra.mxu0 0.0
  %3216 = vmatprep.subr.mxu0 0.0
  %3217 = vmatpush2.msra.mxu0 0.0
  %3218 = vmatprep.subr.mxu0 0.0
  %3219 = vmatpush2.msra.mxu0 0.0
  %3220 = vmatprep.subr.mxu0 0.0
  %3221 = vmatpush2.msra.mxu0 0.0
  %3222 = vmatprep.subr.mxu0 0.0
  %3223 = vmatpush2.msra.mxu0 0.0
  %3224 = vmatprep.subr.mxu0 0.0
  %3225 = vmatpush2.msra.mxu0 0.0
  %3226 = vmatprep.subr.mxu0 0.0
  %3227 = vmatpush2.msra.mxu0 0.0
  %3228 = vmatprep.subr.mxu0 0.0
  %3229 = vmatpush2.msra.mxu0 0.0
  %3230 = vmatprep.subr.mxu0 0.0
  %3231 = vmatpush2.msra.mxu0 0.0
  %3232 = vmatprep.subr.mxu0 0.0
  %3233 = vmatpush2.msra.mxu0 0.0
  %3234 = vmatprep.subr.mxu0 0.0
  %3235 = vmatpush2.msra.mxu0 0.0
  %3236 = vmatprep.subr.mxu0 0.0
  %3237 = vmatpush2.msra.mxu0 0.0
  %3238 = vmatprep.subr.mxu0 0.0
  %3239 = vmatpush2.msra.mxu0 0.0
  %3240 = vmatprep.subr.mxu0 0.0
  %3241 = vmatpush2.msra.mxu0 0.0
  %3242 = vmatprep.subr.mxu0 0.0
  %3243 = vmatpush2.msra.mxu0 0.0
  %3244 = vmatprep.subr.mxu0 0.0
  %3245 = vmatpush2.msra.mxu0 0.0
  %3246 = vmatprep.mubr.f32.mxu0 0.0
  %3247 = vmatmul.mubr.f32.gmra.mxu0 %v2877
  %v3248 = vpop.f32.mrf.mxu0
  %v3249 = vadd.f32 %v2793, %v3248
  %v3250 = vpop.f32.mrf.mxu0
  %3251 = vmatprep.mubr.f32.mxu0 0.0
  %3252 = vmatmul.mubr.f32.gmra.mxu0 %v2880
  %v3253 = vpop.f32.mrf.mxu0
  %v3254 = vadd.f32 %v2798, %v3253
  %v3255 = vpop.f32.mrf.mxu0
  %3256 = vdwg.mxu0
  %3257 = vmatprep.subr.mxu0 0.0
  %3258 = vmatpush1.msra.mxu0 0.0
  %3259 = vmatprep.subr.mxu0 0.0
  %3260 = vmatpush1.msra.mxu0 0.0
  %3261 = vmatprep.subr.mxu0 0.0
  %3262 = vmatpush1.msra.mxu0 0.0
  %3263 = vmatprep.subr.mxu0 0.0
  %3264 = vmatpush1.msra.mxu0 0.0
  %3265 = vmatprep.subr.mxu0 0.0
  %3266 = vmatpush1.msra.mxu0 0.0
  %3267 = vmatprep.subr.mxu0 0.0
  %3268 = vmatpush1.msra.mxu0 0.0
  %3269 = vmatprep.subr.mxu0 0.0
  %3270 = vmatpush1.msra.mxu0 0.0
  %3271 = vmatprep.subr.mxu0 0.0
  %3272 = vmatpush1.msra.mxu0 0.0
  %3273 = vmatprep.subr.mxu0 0.0
  %3274 = vmatpush1.msra.mxu0 %v2101
  %3275 = vmatprep.subr.mxu0 0.0
  %3276 = vmatpush1.msra.mxu0 %v2096
  %3277 = vmatprep.subr.mxu0 0.0
  %3278 = vmatpush1.msra.mxu0 %v2091
  %3279 = vmatprep.subr.mxu0 0.0
  %3280 = vmatpush1.msra.mxu0 %v2086
  %3281 = vmatprep.subr.mxu0 0.0
  %3282 = vmatpush1.msra.mxu0 %v2081
  %3283 = vmatprep.subr.mxu0 0.0
  %3284 = vmatpush1.msra.mxu0 %v2076
  %3285 = vmatprep.subr.mxu0 0.0
  %3286 = vmatpush1.msra.mxu0 %v2071
  %3287 = vmatprep.subr.mxu0 0.0
  %3288 = vmatpush1.msra.mxu0 %v2066
  %3289 = vmatprep.subr.mxu0 0.0
  %3290 = vmatpush2.msra.mxu0 0.0
  %3291 = vmatprep.subr.mxu0 0.0
  %3292 = vmatpush2.msra.mxu0 0.0
  %3293 = vmatprep.subr.mxu0 0.0
  %3294 = vmatpush2.msra.mxu0 0.0
  %3295 = vmatprep.subr.mxu0 0.0
  %3296 = vmatpush2.msra.mxu0 0.0
  %3297 = vmatprep.subr.mxu0 0.0
  %3298 = vmatpush2.msra.mxu0 0.0
  %3299 = vmatprep.subr.mxu0 0.0
  %3300 = vmatpush2.msra.mxu0 0.0
  %3301 = vmatprep.subr.mxu0 0.0
  %3302 = vmatpush2.msra.mxu0 0.0
  %3303 = vmatprep.subr.mxu0 0.0
  %3304 = vmatpush2.msra.mxu0 0.0
  %3305 = vmatprep.subr.mxu0 0.0
  %3306 = vmatpush2.msra.mxu0 0.0
  %3307 = vmatprep.subr.mxu0 0.0
  %3308 = vmatpush2.msra.mxu0 0.0
  %3309 = vmatprep.subr.mxu0 0.0
  %3310 = vmatpush2.msra.mxu0 0.0
  %3311 = vmatprep.subr.mxu0 0.0
  %3312 = vmatpush2.msra.mxu0 0.0
  %3313 = vmatprep.subr.mxu0 0.0
  %3314 = vmatpush2.msra.mxu0 0.0
  %3315 = vmatprep.subr.mxu0 0.0
  %3316 = vmatpush2.msra.mxu0 0.0
  %3317 = vmatprep.subr.mxu0 0.0
  %3318 = vmatpush2.msra.mxu0 0.0
  %3319 = vmatprep.subr.mxu0 0.0
  %3320 = vmatpush2.msra.mxu0 0.0
  %3321 = vmatprep.mubr.f32.mxu0 0.0
  %3322 = vmatmul.mubr.f32.gmra.mxu0 %v2877
  %v3323 = vpop.f32.mrf.mxu0
  %v3324 = vadd.f32 %v2868, %v3323
  %v3325 = vpop.f32.mrf.mxu0
  %3326 = vmatprep.mubr.f32.mxu0 0.0
  %3327 = vmatmul.mubr.f32.gmra.mxu0 %v2880
  %v3328 = vpop.f32.mrf.mxu0
  %v3329 = vadd.f32 %v2873, %v3328
  %v3330 = vpop.f32.mrf.mxu0
  %3331 = vdwg.mxu0
  %s3332 = scalar_lea.vmem %s5, 64
  %v3333 = vld [vmem:[%s3332] sm:$0xff]
  %v3334 = vld [vmem:[%s3332 + $0x8] sm:$0xff]
  %v3335 = vld [vmem:[%s3332 + $0x10] sm:$0xff]
  %v3336 = vld [vmem:[%s3332 + $0x18] sm:$0xff]
  %3337 = vmatprep.subr.mxu0 0.0
  %3338 = vmatpush1.msra.mxu0 0.0
  %3339 = vmatprep.subr.mxu0 0.0
  %3340 = vmatpush1.msra.mxu0 0.0
  %3341 = vmatprep.subr.mxu0 0.0
  %3342 = vmatpush1.msra.mxu0 0.0
  %3343 = vmatprep.subr.mxu0 0.0
  %3344 = vmatpush1.msra.mxu0 0.0
  %3345 = vmatprep.subr.mxu0 0.0
  %3346 = vmatpush1.msra.mxu0 0.0
  %3347 = vmatprep.subr.mxu0 0.0
  %3348 = vmatpush1.msra.mxu0 0.0
  %3349 = vmatprep.subr.mxu0 0.0
  %3350 = vmatpush1.msra.mxu0 0.0
  %3351 = vmatprep.subr.mxu0 0.0
  %3352 = vmatpush1.msra.mxu0 0.0
  %3353 = vmatprep.subr.mxu0 0.0
  %3354 = vmatpush1.msra.mxu0 0.0
  %3355 = vmatprep.subr.mxu0 0.0
  %3356 = vmatpush1.msra.mxu0 0.0
  %3357 = vmatprep.subr.mxu0 0.0
  %3358 = vmatpush1.msra.mxu0 0.0
  %3359 = vmatprep.subr.mxu0 0.0
  %3360 = vmatpush1.msra.mxu0 0.0
  %3361 = vmatprep.subr.mxu0 0.0
  %3362 = vmatpush1.msra.mxu0 %v3336
  %3363 = vmatprep.subr.mxu0 0.0
  %3364 = vmatpush1.msra.mxu0 %v3335
  %3365 = vmatprep.subr.mxu0 0.0
  %3366 = vmatpush1.msra.mxu0 %v3334
  %3367 = vmatprep.subr.mxu0 0.0
  %3368 = vmatpush1.msra.mxu0 %v3333
  %3369 = vmatprep.subr.mxu0 0.0
  %3370 = vmatpush2.msra.mxu0 0.0
  %3371 = vmatprep.subr.mxu0 0.0
  %3372 = vmatpush2.msra.mxu0 0.0
  %3373 = vmatprep.subr.mxu0 0.0
  %3374 = vmatpush2.msra.mxu0 0.0
  %3375 = vmatprep.subr.mxu0 0.0
  %3376 = vmatpush2.msra.mxu0 0.0
  %3377 = vmatprep.subr.mxu0 0.0
  %3378 = vmatpush2.msra.mxu0 0.0
  %3379 = vmatprep.subr.mxu0 0.0
  %3380 = vmatpush2.msra.mxu0 0.0
  %3381 = vmatprep.subr.mxu0 0.0
  %3382 = vmatpush2.msra.mxu0 0.0
  %3383 = vmatprep.subr.mxu0 0.0
  %3384 = vmatpush2.msra.mxu0 0.0
  %3385 = vmatprep.subr.mxu0 0.0
  %3386 = vmatpush2.msra.mxu0 0.0
  %3387 = vmatprep.subr.mxu0 0.0
  %3388 = vmatpush2.msra.mxu0 0.0
  %3389 = vmatprep.subr.mxu0 0.0
  %3390 = vmatpush2.msra.mxu0 0.0
  %3391 = vmatprep.subr.mxu0 0.0
  %3392 = vmatpush2.msra.mxu0 0.0
  %3393 = vmatprep.subr.mxu0 0.0
  %3394 = vmatpush2.msra.mxu0 0.0
  %3395 = vmatprep.subr.mxu0 0.0
  %3396 = vmatpush2.msra.mxu0 0.0
  %3397 = vmatprep.subr.mxu0 0.0
  %3398 = vmatpush2.msra.mxu0 0.0
  %3399 = vmatprep.subr.mxu0 0.0
  %3400 = vmatpush2.msra.mxu0 0.0
  %3401 = vmatprep.mubr.f32.mxu0 0.0
  %3402 = vmatmul.mubr.f32.gmra.mxu0 %v1656
  %v3403 = vpop.f32.mrf.mxu0
  %v3404 = vadd.f32 0.0, %v3403
  %v3405 = vpop.f32.mrf.mxu0
  %3406 = vmatprep.mubr.f32.mxu0 0.0
  %3407 = vmatmul.mubr.f32.gmra.mxu0 %v1659
  %v3408 = vpop.f32.mrf.mxu0
  %v3409 = vadd.f32 0.0, %v3408
  %v3410 = vpop.f32.mrf.mxu0
  %3411 = vmatprep.mubr.f32.mxu0 0.0
  %3412 = vmatmul.mubr.f32.gmra.mxu0 %v1662
  %v3413 = vpop.f32.mrf.mxu0
  %v3414 = vadd.f32 0.0, %v3413
  %v3415 = vpop.f32.mrf.mxu0
  %3416 = vmatprep.mubr.f32.mxu0 0.0
  %3417 = vmatmul.mubr.f32.gmra.mxu0 %v1665
  %v3418 = vpop.f32.mrf.mxu0
  %v3419 = vadd.f32 0.0, %v3418
  %v3420 = vpop.f32.mrf.mxu0
  %3421 = vmatprep.mubr.f32.mxu0 0.0
  %3422 = vmatmul.mubr.f32.gmra.mxu0 %v1668
  %v3423 = vpop.f32.mrf.mxu0
  %v3424 = vadd.f32 0.0, %v3423
  %v3425 = vpop.f32.mrf.mxu0
  %3426 = vmatprep.mubr.f32.mxu0 0.0
  %3427 = vmatmul.mubr.f32.gmra.mxu0 %v1671
  %v3428 = vpop.f32.mrf.mxu0
  %v3429 = vadd.f32 0.0, %v3428
  %v3430 = vpop.f32.mrf.mxu0
  %3431 = vmatprep.mubr.f32.mxu0 0.0
  %3432 = vmatmul.mubr.f32.gmra.mxu0 %v1674
  %v3433 = vpop.f32.mrf.mxu0
  %v3434 = vadd.f32 0.0, %v3433
  %v3435 = vpop.f32.mrf.mxu0
  %3436 = vmatprep.mubr.f32.mxu0 0.0
  %3437 = vmatmul.mubr.f32.gmra.mxu0 %v1677
  %v3438 = vpop.f32.mrf.mxu0
  %v3439 = vadd.f32 0.0, %v3438
  %v3440 = vpop.f32.mrf.mxu0
  %3441 = vmatprep.mubr.f32.mxu0 0.0
  %3442 = vmatmul.mubr.f32.gmra.mxu0 %v1680
  %v3443 = vpop.f32.mrf.mxu0
  %v3444 = vadd.f32 0.0, %v3443
  %v3445 = vpop.f32.mrf.mxu0
  %3446 = vmatprep.mubr.f32.mxu0 0.0
  %3447 = vmatmul.mubr.f32.gmra.mxu0 %v1683
  %v3448 = vpop.f32.mrf.mxu0
  %v3449 = vadd.f32 0.0, %v3448
  %v3450 = vpop.f32.mrf.mxu0
  %3451 = vmatprep.mubr.f32.mxu0 0.0
  %3452 = vmatmul.mubr.f32.gmra.mxu0 %v1686
  %v3453 = vpop.f32.mrf.mxu0
  %v3454 = vadd.f32 0.0, %v3453
  %v3455 = vpop.f32.mrf.mxu0
  %3456 = vmatprep.mubr.f32.mxu0 0.0
  %3457 = vmatmul.mubr.f32.gmra.mxu0 %v1689
  %v3458 = vpop.f32.mrf.mxu0
  %v3459 = vadd.f32 0.0, %v3458
  %v3460 = vpop.f32.mrf.mxu0
  %3461 = vmatprep.mubr.f32.mxu0 0.0
  %3462 = vmatmul.mubr.f32.gmra.mxu0 %v1692
  %v3463 = vpop.f32.mrf.mxu0
  %v3464 = vadd.f32 0.0, %v3463
  %v3465 = vpop.f32.mrf.mxu0
  %3466 = vmatprep.mubr.f32.mxu0 0.0
  %3467 = vmatmul.mubr.f32.gmra.mxu0 %v1695
  %v3468 = vpop.f32.mrf.mxu0
  %v3469 = vadd.f32 0.0, %v3468
  %v3470 = vpop.f32.mrf.mxu0
  %3471 = vmatprep.mubr.f32.mxu0 0.0
  %3472 = vmatmul.mubr.f32.gmra.mxu0 %v1698
  %v3473 = vpop.f32.mrf.mxu0
  %v3474 = vadd.f32 0.0, %v3473
  %v3475 = vpop.f32.mrf.mxu0
  %3476 = vmatprep.mubr.f32.mxu0 0.0
  %3477 = vmatmul.mubr.f32.gmra.mxu0 %v1701
  %v3478 = vpop.f32.mrf.mxu0
  %v3479 = vadd.f32 0.0, %v3478
  %v3480 = vpop.f32.mrf.mxu0
  %3481 = vmatprep.mubr.f32.mxu0 0.0
  %3482 = vmatmul.mubr.f32.gmra.mxu0 %v1704
  %v3483 = vpop.f32.mrf.mxu0
  %v3484 = vadd.f32 0.0, %v3483
  %v3485 = vpop.f32.mrf.mxu0
  %3486 = vmatprep.mubr.f32.mxu0 0.0
  %3487 = vmatmul.mubr.f32.gmra.mxu0 %v1707
  %v3488 = vpop.f32.mrf.mxu0
  %v3489 = vadd.f32 0.0, %v3488
  %v3490 = vpop.f32.mrf.mxu0
  %3491 = vmatprep.mubr.f32.mxu0 0.0
  %3492 = vmatmul.mubr.f32.gmra.mxu0 %v1710
  %v3493 = vpop.f32.mrf.mxu0
  %v3494 = vadd.f32 0.0, %v3493
  %v3495 = vpop.f32.mrf.mxu0
  %3496 = vmatprep.mubr.f32.mxu0 0.0
  %3497 = vmatmul.mubr.f32.gmra.mxu0 %v1713
  %v3498 = vpop.f32.mrf.mxu0
  %v3499 = vadd.f32 0.0, %v3498
  %v3500 = vpop.f32.mrf.mxu0
  %3501 = vmatprep.mubr.f32.mxu0 0.0
  %3502 = vmatmul.mubr.f32.gmra.mxu0 %v1716
  %v3503 = vpop.f32.mrf.mxu0
  %v3504 = vadd.f32 0.0, %v3503
  %v3505 = vpop.f32.mrf.mxu0
  %3506 = vmatprep.mubr.f32.mxu0 0.0
  %3507 = vmatmul.mubr.f32.gmra.mxu0 %v1719
  %v3508 = vpop.f32.mrf.mxu0
  %v3509 = vadd.f32 0.0, %v3508
  %v3510 = vpop.f32.mrf.mxu0
  %3511 = vmatprep.mubr.f32.mxu0 0.0
  %3512 = vmatmul.mubr.f32.gmra.mxu0 %v1722
  %v3513 = vpop.f32.mrf.mxu0
  %v3514 = vadd.f32 0.0, %v3513
  %v3515 = vpop.f32.mrf.mxu0
  %3516 = vmatprep.mubr.f32.mxu0 0.0
  %3517 = vmatmul.mubr.f32.gmra.mxu0 %v1725
  %v3518 = vpop.f32.mrf.mxu0
  %v3519 = vadd.f32 0.0, %v3518
  %v3520 = vpop.f32.mrf.mxu0
  %3521 = vmatprep.mubr.f32.mxu0 0.0
  %3522 = vmatmul.mubr.f32.gmra.mxu0 %v1728
  %v3523 = vpop.f32.mrf.mxu0
  %v3524 = vadd.f32 0.0, %v3523
  %v3525 = vpop.f32.mrf.mxu0
  %3526 = vmatprep.mubr.f32.mxu0 0.0
  %3527 = vmatmul.mubr.f32.gmra.mxu0 %v1731
  %v3528 = vpop.f32.mrf.mxu0
  %v3529 = vadd.f32 0.0, %v3528
  %v3530 = vpop.f32.mrf.mxu0
  %3531 = vmatprep.mubr.f32.mxu0 0.0
  %3532 = vmatmul.mubr.f32.gmra.mxu0 %v1734
  %v3533 = vpop.f32.mrf.mxu0
  %v3534 = vadd.f32 0.0, %v3533
  %v3535 = vpop.f32.mrf.mxu0
  %3536 = vmatprep.mubr.f32.mxu0 0.0
  %3537 = vmatmul.mubr.f32.gmra.mxu0 %v1737
  %v3538 = vpop.f32.mrf.mxu0
  %v3539 = vadd.f32 0.0, %v3538
  %v3540 = vpop.f32.mrf.mxu0
  %3541 = vmatprep.mubr.f32.mxu0 0.0
  %3542 = vmatmul.mubr.f32.gmra.mxu0 %v1740
  %v3543 = vpop.f32.mrf.mxu0
  %v3544 = vadd.f32 0.0, %v3543
  %v3545 = vpop.f32.mrf.mxu0
  %3546 = vmatprep.mubr.f32.mxu0 0.0
  %3547 = vmatmul.mubr.f32.gmra.mxu0 %v1743
  %v3548 = vpop.f32.mrf.mxu0
  %v3549 = vadd.f32 0.0, %v3548
  %v3550 = vpop.f32.mrf.mxu0
  %3551 = vmatprep.mubr.f32.mxu0 0.0
  %3552 = vmatmul.mubr.f32.gmra.mxu0 %v1746
  %v3553 = vpop.f32.mrf.mxu0
  %v3554 = vadd.f32 0.0, %v3553
  %v3555 = vpop.f32.mrf.mxu0
  %3556 = vmatprep.mubr.f32.mxu0 0.0
  %3557 = vmatmul.mubr.f32.gmra.mxu0 %v1749
  %v3558 = vpop.f32.mrf.mxu0
  %v3559 = vadd.f32 0.0, %v3558
  %v3560 = vpop.f32.mrf.mxu0
  %3561 = vmatprep.mubr.f32.mxu0 0.0
  %3562 = vmatmul.mubr.f32.gmra.mxu0 %v1752
  %v3563 = vpop.f32.mrf.mxu0
  %v3564 = vadd.f32 0.0, %v3563
  %v3565 = vpop.f32.mrf.mxu0
  %3566 = vmatprep.mubr.f32.mxu0 0.0
  %3567 = vmatmul.mubr.f32.gmra.mxu0 %v1755
  %v3568 = vpop.f32.mrf.mxu0
  %v3569 = vadd.f32 0.0, %v3568
  %v3570 = vpop.f32.mrf.mxu0
  %3571 = vmatprep.mubr.f32.mxu0 0.0
  %3572 = vmatmul.mubr.f32.gmra.mxu0 %v1758
  %v3573 = vpop.f32.mrf.mxu0
  %v3574 = vadd.f32 0.0, %v3573
  %v3575 = vpop.f32.mrf.mxu0
  %3576 = vmatprep.mubr.f32.mxu0 0.0
  %3577 = vmatmul.mubr.f32.gmra.mxu0 %v1761
  %v3578 = vpop.f32.mrf.mxu0
  %v3579 = vadd.f32 0.0, %v3578
  %v3580 = vpop.f32.mrf.mxu0
  %3581 = vmatprep.mubr.f32.mxu0 0.0
  %3582 = vmatmul.mubr.f32.gmra.mxu0 %v1764
  %v3583 = vpop.f32.mrf.mxu0
  %v3584 = vadd.f32 0.0, %v3583
  %v3585 = vpop.f32.mrf.mxu0
  %3586 = vmatprep.mubr.f32.mxu0 0.0
  %3587 = vmatmul.mubr.f32.gmra.mxu0 %v1767
  %v3588 = vpop.f32.mrf.mxu0
  %v3589 = vadd.f32 0.0, %v3588
  %v3590 = vpop.f32.mrf.mxu0
  %3591 = vmatprep.mubr.f32.mxu0 0.0
  %3592 = vmatmul.mubr.f32.gmra.mxu0 %v1770
  %v3593 = vpop.f32.mrf.mxu0
  %v3594 = vadd.f32 0.0, %v3593
  %v3595 = vpop.f32.mrf.mxu0
  %3596 = vmatprep.mubr.f32.mxu0 0.0
  %3597 = vmatmul.mubr.f32.gmra.mxu0 %v1773
  %v3598 = vpop.f32.mrf.mxu0
  %v3599 = vadd.f32 0.0, %v3598
  %v3600 = vpop.f32.mrf.mxu0
  %3601 = vmatprep.mubr.f32.mxu0 0.0
  %3602 = vmatmul.mubr.f32.gmra.mxu0 %v1776
  %v3603 = vpop.f32.mrf.mxu0
  %v3604 = vadd.f32 0.0, %v3603
  %v3605 = vpop.f32.mrf.mxu0
  %3606 = vmatprep.mubr.f32.mxu0 0.0
  %3607 = vmatmul.mubr.f32.gmra.mxu0 %v1779
  %v3608 = vpop.f32.mrf.mxu0
  %v3609 = vadd.f32 0.0, %v3608
  %v3610 = vpop.f32.mrf.mxu0
  %3611 = vmatprep.mubr.f32.mxu0 0.0
  %3612 = vmatmul.mubr.f32.gmra.mxu0 %v1782
  %v3613 = vpop.f32.mrf.mxu0
  %v3614 = vadd.f32 0.0, %v3613
  %v3615 = vpop.f32.mrf.mxu0
  %3616 = vmatprep.mubr.f32.mxu0 0.0
  %3617 = vmatmul.mubr.f32.gmra.mxu0 %v1785
  %v3618 = vpop.f32.mrf.mxu0
  %v3619 = vadd.f32 0.0, %v3618
  %v3620 = vpop.f32.mrf.mxu0
  %3621 = vmatprep.mubr.f32.mxu0 0.0
  %3622 = vmatmul.mubr.f32.gmra.mxu0 %v1788
  %v3623 = vpop.f32.mrf.mxu0
  %v3624 = vadd.f32 0.0, %v3623
  %v3625 = vpop.f32.mrf.mxu0
  %3626 = vmatprep.mubr.f32.mxu0 0.0
  %3627 = vmatmul.mubr.f32.gmra.mxu0 %v1791
  %v3628 = vpop.f32.mrf.mxu0
  %v3629 = vadd.f32 0.0, %v3628
  %v3630 = vpop.f32.mrf.mxu0
  %3631 = vmatprep.mubr.f32.mxu0 0.0
  %3632 = vmatmul.mubr.f32.gmra.mxu0 %v1794
  %v3633 = vpop.f32.mrf.mxu0
  %v3634 = vadd.f32 0.0, %v3633
  %v3635 = vpop.f32.mrf.mxu0
  %3636 = vmatprep.mubr.f32.mxu0 0.0
  %3637 = vmatmul.mubr.f32.gmra.mxu0 %v1797
  %v3638 = vpop.f32.mrf.mxu0
  %v3639 = vadd.f32 0.0, %v3638
  %v3640 = vpop.f32.mrf.mxu0
  %3641 = vdwg.mxu0
  %s3642 = scalar_lea.vmem %s4, 32
  %v3643 = vld [vmem:[%s3642] sm:$0xff]
  %v3644 = vld [vmem:[%s3642 + $0x8] sm:$0xff]
  %v3646 = vsel %vm2419, %v3643, 0
  %v3649 = vsel %vm2419, %v3644, 0
  %3651 = vmatprep.subr.mxu0 0.0
  %3652 = vmatpush1.msra.mxu0 0.0
  %3653 = vmatprep.subr.mxu0 0.0
  %3654 = vmatpush1.msra.mxu0 0.0
  %3655 = vmatprep.subr.mxu0 0.0
  %3656 = vmatpush1.msra.mxu0 0.0
  %3657 = vmatprep.subr.mxu0 0.0
  %3658 = vmatpush1.msra.mxu0 0.0
  %3659 = vmatprep.subr.mxu0 0.0
  %3660 = vmatpush1.msra.mxu0 0.0
  %3661 = vmatprep.subr.mxu0 0.0
  %3662 = vmatpush1.msra.mxu0 0.0
  %3663 = vmatprep.subr.mxu0 0.0
  %3664 = vmatpush1.msra.mxu0 0.0
  %3665 = vmatprep.subr.mxu0 0.0
  %3666 = vmatpush1.msra.mxu0 0.0
  %3667 = vmatprep.subr.mxu0 0.0
  %3668 = vmatpush1.msra.mxu0 %v3439
  %3669 = vmatprep.subr.mxu0 0.0
  %3670 = vmatpush1.msra.mxu0 %v3434
  %3671 = vmatprep.subr.mxu0 0.0
  %3672 = vmatpush1.msra.mxu0 %v3429
  %3673 = vmatprep.subr.mxu0 0.0
  %3674 = vmatpush1.msra.mxu0 %v3424
  %3675 = vmatprep.subr.mxu0 0.0
  %3676 = vmatpush1.msra.mxu0 %v3419
  %3677 = vmatprep.subr.mxu0 0.0
  %3678 = vmatpush1.msra.mxu0 %v3414
  %3679 = vmatprep.subr.mxu0 0.0
  %3680 = vmatpush1.msra.mxu0 %v3409
  %3681 = vmatprep.subr.mxu0 0.0
  %3682 = vmatpush1.msra.mxu0 %v3404
  %3683 = vmatprep.subr.mxu0 0.0
  %3684 = vmatpush2.msra.mxu0 0.0
  %3685 = vmatprep.subr.mxu0 0.0
  %3686 = vmatpush2.msra.mxu0 0.0
  %3687 = vmatprep.subr.mxu0 0.0
  %3688 = vmatpush2.msra.mxu0 0.0
  %3689 = vmatprep.subr.mxu0 0.0
  %3690 = vmatpush2.msra.mxu0 0.0
  %3691 = vmatprep.subr.mxu0 0.0
  %3692 = vmatpush2.msra.mxu0 0.0
  %3693 = vmatprep.subr.mxu0 0.0
  %3694 = vmatpush2.msra.mxu0 0.0
  %3695 = vmatprep.subr.mxu0 0.0
  %3696 = vmatpush2.msra.mxu0 0.0
  %3697 = vmatprep.subr.mxu0 0.0
  %3698 = vmatpush2.msra.mxu0 0.0
  %3699 = vmatprep.subr.mxu0 0.0
  %3700 = vmatpush2.msra.mxu0 0.0
  %3701 = vmatprep.subr.mxu0 0.0
  %3702 = vmatpush2.msra.mxu0 0.0
  %3703 = vmatprep.subr.mxu0 0.0
  %3704 = vmatpush2.msra.mxu0 0.0
  %3705 = vmatprep.subr.mxu0 0.0
  %3706 = vmatpush2.msra.mxu0 0.0
  %3707 = vmatprep.subr.mxu0 0.0
  %3708 = vmatpush2.msra.mxu0 0.0
  %3709 = vmatprep.subr.mxu0 0.0
  %3710 = vmatpush2.msra.mxu0 0.0
  %3711 = vmatprep.subr.mxu0 0.0
  %3712 = vmatpush2.msra.mxu0 0.0
  %3713 = vmatprep.subr.mxu0 0.0
  %3714 = vmatpush2.msra.mxu0 0.0
  %3715 = vmatprep.mubr.f32.mxu0 0.0
  %3716 = vmatmul.mubr.f32.gmra.mxu0 %v3646
  %v3717 = vpop.f32.mrf.mxu0
  %v3718 = vadd.f32 0.0, %v3717
  %v3719 = vpop.f32.mrf.mxu0
  %3720 = vmatprep.mubr.f32.mxu0 0.0
  %3721 = vmatmul.mubr.f32.gmra.mxu0 %v3649
  %v3722 = vpop.f32.mrf.mxu0
  %v3723 = vadd.f32 0.0, %v3722
  %v3724 = vpop.f32.mrf.mxu0
  %3725 = vdwg.mxu0
  %3726 = vmatprep.subr.mxu0 0.0
  %3727 = vmatpush1.msra.mxu0 0.0
  %3728 = vmatprep.subr.mxu0 0.0
  %3729 = vmatpush1.msra.mxu0 0.0
  %3730 = vmatprep.subr.mxu0 0.0
  %3731 = vmatpush1.msra.mxu0 0.0
  %3732 = vmatprep.subr.mxu0 0.0
  %3733 = vmatpush1.msra.mxu0 0.0
  %3734 = vmatprep.subr.mxu0 0.0
  %3735 = vmatpush1.msra.mxu0 0.0
  %3736 = vmatprep.subr.mxu0 0.0
  %3737 = vmatpush1.msra.mxu0 0.0
  %3738 = vmatprep.subr.mxu0 0.0
  %3739 = vmatpush1.msra.mxu0 0.0
  %3740 = vmatprep.subr.mxu0 0.0
  %3741 = vmatpush1.msra.mxu0 0.0
  %3742 = vmatprep.subr.mxu0 0.0
  %3743 = vmatpush1.msra.mxu0 %v3479
  %3744 = vmatprep.subr.mxu0 0.0
  %3745 = vmatpush1.msra.mxu0 %v3474
  %3746 = vmatprep.subr.mxu0 0.0
  %3747 = vmatpush1.msra.mxu0 %v3469
  %3748 = vmatprep.subr.mxu0 0.0
  %3749 = vmatpush1.msra.mxu0 %v3464
  %3750 = vmatprep.subr.mxu0 0.0
  %3751 = vmatpush1.msra.mxu0 %v3459
  %3752 = vmatprep.subr.mxu0 0.0
  %3753 = vmatpush1.msra.mxu0 %v3454
  %3754 = vmatprep.subr.mxu0 0.0
  %3755 = vmatpush1.msra.mxu0 %v3449
  %3756 = vmatprep.subr.mxu0 0.0
  %3757 = vmatpush1.msra.mxu0 %v3444
  %3758 = vmatprep.subr.mxu0 0.0
  %3759 = vmatpush2.msra.mxu0 0.0
  %3760 = vmatprep.subr.mxu0 0.0
  %3761 = vmatpush2.msra.mxu0 0.0
  %3762 = vmatprep.subr.mxu0 0.0
  %3763 = vmatpush2.msra.mxu0 0.0
  %3764 = vmatprep.subr.mxu0 0.0
  %3765 = vmatpush2.msra.mxu0 0.0
  %3766 = vmatprep.subr.mxu0 0.0
  %3767 = vmatpush2.msra.mxu0 0.0
  %3768 = vmatprep.subr.mxu0 0.0
  %3769 = vmatpush2.msra.mxu0 0.0
  %3770 = vmatprep.subr.mxu0 0.0
  %3771 = vmatpush2.msra.mxu0 0.0
  %3772 = vmatprep.subr.mxu0 0.0
  %3773 = vmatpush2.msra.mxu0 0.0
  %3774 = vmatprep.subr.mxu0 0.0
  %3775 = vmatpush2.msra.mxu0 0.0
  %3776 = vmatprep.subr.mxu0 0.0
  %3777 = vmatpush2.msra.mxu0 0.0
  %3778 = vmatprep.subr.mxu0 0.0
  %3779 = vmatpush2.msra.mxu0 0.0
  %3780 = vmatprep.subr.mxu0 0.0
  %3781 = vmatpush2.msra.mxu0 0.0
  %3782 = vmatprep.subr.mxu0 0.0
  %3783 = vmatpush2.msra.mxu0 0.0
  %3784 = vmatprep.subr.mxu0 0.0
  %3785 = vmatpush2.msra.mxu0 0.0
  %3786 = vmatprep.subr.mxu0 0.0
  %3787 = vmatpush2.msra.mxu0 0.0
  %3788 = vmatprep.subr.mxu0 0.0
  %3789 = vmatpush2.msra.mxu0 0.0
  %3790 = vmatprep.mubr.f32.mxu0 0.0
  %3791 = vmatmul.mubr.f32.gmra.mxu0 %v3646
  %v3792 = vpop.f32.mrf.mxu0
  %v3793 = vadd.f32 0.0, %v3792
  %v3794 = vpop.f32.mrf.mxu0
  %3795 = vmatprep.mubr.f32.mxu0 0.0
  %3796 = vmatmul.mubr.f32.gmra.mxu0 %v3649
  %v3797 = vpop.f32.mrf.mxu0
  %v3798 = vadd.f32 0.0, %v3797
  %v3799 = vpop.f32.mrf.mxu0
  %3800 = vdwg.mxu0
  %3801 = vmatprep.subr.mxu0 0.0
  %3802 = vmatpush1.msra.mxu0 0.0
  %3803 = vmatprep.subr.mxu0 0.0
  %3804 = vmatpush1.msra.mxu0 0.0
  %3805 = vmatprep.subr.mxu0 0.0
  %3806 = vmatpush1.msra.mxu0 0.0
  %3807 = vmatprep.subr.mxu0 0.0
  %3808 = vmatpush1.msra.mxu0 0.0
  %3809 = vmatprep.subr.mxu0 0.0
  %3810 = vmatpush1.msra.mxu0 0.0
  %3811 = vmatprep.subr.mxu0 0.0
  %3812 = vmatpush1.msra.mxu0 0.0
  %3813 = vmatprep.subr.mxu0 0.0
  %3814 = vmatpush1.msra.mxu0 0.0
  %3815 = vmatprep.subr.mxu0 0.0
  %3816 = vmatpush1.msra.mxu0 0.0
  %3817 = vmatprep.subr.mxu0 0.0
  %3818 = vmatpush1.msra.mxu0 %v3519
  %3819 = vmatprep.subr.mxu0 0.0
  %3820 = vmatpush1.msra.mxu0 %v3514
  %3821 = vmatprep.subr.mxu0 0.0
  %3822 = vmatpush1.msra.mxu0 %v3509
  %3823 = vmatprep.subr.mxu0 0.0
  %3824 = vmatpush1.msra.mxu0 %v3504
  %3825 = vmatprep.subr.mxu0 0.0
  %3826 = vmatpush1.msra.mxu0 %v3499
  %3827 = vmatprep.subr.mxu0 0.0
  %3828 = vmatpush1.msra.mxu0 %v3494
  %3829 = vmatprep.subr.mxu0 0.0
  %3830 = vmatpush1.msra.mxu0 %v3489
  %3831 = vmatprep.subr.mxu0 0.0
  %3832 = vmatpush1.msra.mxu0 %v3484
  %3833 = vmatprep.subr.mxu0 0.0
  %3834 = vmatpush2.msra.mxu0 0.0
  %3835 = vmatprep.subr.mxu0 0.0
  %3836 = vmatpush2.msra.mxu0 0.0
  %3837 = vmatprep.subr.mxu0 0.0
  %3838 = vmatpush2.msra.mxu0 0.0
  %3839 = vmatprep.subr.mxu0 0.0
  %3840 = vmatpush2.msra.mxu0 0.0
  %3841 = vmatprep.subr.mxu0 0.0
  %3842 = vmatpush2.msra.mxu0 0.0
  %3843 = vmatprep.subr.mxu0 0.0
  %3844 = vmatpush2.msra.mxu0 0.0
  %3845 = vmatprep.subr.mxu0 0.0
  %3846 = vmatpush2.msra.mxu0 0.0
  %3847 = vmatprep.subr.mxu0 0.0
  %3848 = vmatpush2.msra.mxu0 0.0
  %3849 = vmatprep.subr.mxu0 0.0
  %3850 = vmatpush2.msra.mxu0 0.0
  %3851 = vmatprep.subr.mxu0 0.0
  %3852 = vmatpush2.msra.mxu0 0.0
  %3853 = vmatprep.subr.mxu0 0.0
  %3854 = vmatpush2.msra.mxu0 0.0
  %3855 = vmatprep.subr.mxu0 0.0
  %3856 = vmatpush2.msra.mxu0 0.0
  %3857 = vmatprep.subr.mxu0 0.0
  %3858 = vmatpush2.msra.mxu0 0.0
  %3859 = vmatprep.subr.mxu0 0.0
  %3860 = vmatpush2.msra.mxu0 0.0
  %3861 = vmatprep.subr.mxu0 0.0
  %3862 = vmatpush2.msra.mxu0 0.0
  %3863 = vmatprep.subr.mxu0 0.0
  %3864 = vmatpush2.msra.mxu0 0.0
  %3865 = vmatprep.mubr.f32.mxu0 0.0
  %3866 = vmatmul.mubr.f32.gmra.mxu0 %v3646
  %v3867 = vpop.f32.mrf.mxu0
  %v3868 = vadd.f32 0.0, %v3867
  %v3869 = vpop.f32.mrf.mxu0
  %3870 = vmatprep.mubr.f32.mxu0 0.0
  %3871 = vmatmul.mubr.f32.gmra.mxu0 %v3649
  %v3872 = vpop.f32.mrf.mxu0
  %v3873 = vadd.f32 0.0, %v3872
  %v3874 = vpop.f32.mrf.mxu0
  %3875 = vdwg.mxu0
  %3876 = vmatprep.subr.mxu0 0.0
  %3877 = vmatpush1.msra.mxu0 0.0
  %3878 = vmatprep.subr.mxu0 0.0
  %3879 = vmatpush1.msra.mxu0 0.0
  %3880 = vmatprep.subr.mxu0 0.0
  %3881 = vmatpush1.msra.mxu0 0.0
  %3882 = vmatprep.subr.mxu0 0.0
  %3883 = vmatpush1.msra.mxu0 0.0
  %3884 = vmatprep.subr.mxu0 0.0
  %3885 = vmatpush1.msra.mxu0 0.0
  %3886 = vmatprep.subr.mxu0 0.0
  %3887 = vmatpush1.msra.mxu0 0.0
  %3888 = vmatprep.subr.mxu0 0.0
  %3889 = vmatpush1.msra.mxu0 0.0
  %3890 = vmatprep.subr.mxu0 0.0
  %3891 = vmatpush1.msra.mxu0 0.0
  %3892 = vmatprep.subr.mxu0 0.0
  %3893 = vmatpush1.msra.mxu0 %v3559
  %3894 = vmatprep.subr.mxu0 0.0
  %3895 = vmatpush1.msra.mxu0 %v3554
  %3896 = vmatprep.subr.mxu0 0.0
  %3897 = vmatpush1.msra.mxu0 %v3549
  %3898 = vmatprep.subr.mxu0 0.0
  %3899 = vmatpush1.msra.mxu0 %v3544
  %3900 = vmatprep.subr.mxu0 0.0
  %3901 = vmatpush1.msra.mxu0 %v3539
  %3902 = vmatprep.subr.mxu0 0.0
  %3903 = vmatpush1.msra.mxu0 %v3534
  %3904 = vmatprep.subr.mxu0 0.0
  %3905 = vmatpush1.msra.mxu0 %v3529
  %3906 = vmatprep.subr.mxu0 0.0
  %3907 = vmatpush1.msra.mxu0 %v3524
  %3908 = vmatprep.subr.mxu0 0.0
  %3909 = vmatpush2.msra.mxu0 0.0
  %3910 = vmatprep.subr.mxu0 0.0
  %3911 = vmatpush2.msra.mxu0 0.0
  %3912 = vmatprep.subr.mxu0 0.0
  %3913 = vmatpush2.msra.mxu0 0.0
  %3914 = vmatprep.subr.mxu0 0.0
  %3915 = vmatpush2.msra.mxu0 0.0
  %3916 = vmatprep.subr.mxu0 0.0
  %3917 = vmatpush2.msra.mxu0 0.0
  %3918 = vmatprep.subr.mxu0 0.0
  %3919 = vmatpush2.msra.mxu0 0.0
  %3920 = vmatprep.subr.mxu0 0.0
  %3921 = vmatpush2.msra.mxu0 0.0
  %3922 = vmatprep.subr.mxu0 0.0
  %3923 = vmatpush2.msra.mxu0 0.0
  %3924 = vmatprep.subr.mxu0 0.0
  %3925 = vmatpush2.msra.mxu0 0.0
  %3926 = vmatprep.subr.mxu0 0.0
  %3927 = vmatpush2.msra.mxu0 0.0
  %3928 = vmatprep.subr.mxu0 0.0
  %3929 = vmatpush2.msra.mxu0 0.0
  %3930 = vmatprep.subr.mxu0 0.0
  %3931 = vmatpush2.msra.mxu0 0.0
  %3932 = vmatprep.subr.mxu0 0.0
  %3933 = vmatpush2.msra.mxu0 0.0
  %3934 = vmatprep.subr.mxu0 0.0
  %3935 = vmatpush2.msra.mxu0 0.0
  %3936 = vmatprep.subr.mxu0 0.0
  %3937 = vmatpush2.msra.mxu0 0.0
  %3938 = vmatprep.subr.mxu0 0.0
  %3939 = vmatpush2.msra.mxu0 0.0
  %3940 = vmatprep.mubr.f32.mxu0 0.0
  %3941 = vmatmul.mubr.f32.gmra.mxu0 %v3646
  %v3942 = vpop.f32.mrf.mxu0
  %v3943 = vadd.f32 0.0, %v3942
  %v3944 = vpop.f32.mrf.mxu0
  %3945 = vmatprep.mubr.f32.mxu0 0.0
  %3946 = vmatmul.mubr.f32.gmra.mxu0 %v3649
  %v3947 = vpop.f32.mrf.mxu0
  %v3948 = vadd.f32 0.0, %v3947
  %v3949 = vpop.f32.mrf.mxu0
  %3950 = vdwg.mxu0
  %3951 = vmatprep.subr.mxu0 0.0
  %3952 = vmatpush1.msra.mxu0 0.0
  %3953 = vmatprep.subr.mxu0 0.0
  %3954 = vmatpush1.msra.mxu0 0.0
  %3955 = vmatprep.subr.mxu0 0.0
  %3956 = vmatpush1.msra.mxu0 0.0
  %3957 = vmatprep.subr.mxu0 0.0
  %3958 = vmatpush1.msra.mxu0 0.0
  %3959 = vmatprep.subr.mxu0 0.0
  %3960 = vmatpush1.msra.mxu0 0.0
  %3961 = vmatprep.subr.mxu0 0.0
  %3962 = vmatpush1.msra.mxu0 0.0
  %3963 = vmatprep.subr.mxu0 0.0
  %3964 = vmatpush1.msra.mxu0 0.0
  %3965 = vmatprep.subr.mxu0 0.0
  %3966 = vmatpush1.msra.mxu0 0.0
  %3967 = vmatprep.subr.mxu0 0.0
  %3968 = vmatpush1.msra.mxu0 %v3599
  %3969 = vmatprep.subr.mxu0 0.0
  %3970 = vmatpush1.msra.mxu0 %v3594
  %3971 = vmatprep.subr.mxu0 0.0
  %3972 = vmatpush1.msra.mxu0 %v3589
  %3973 = vmatprep.subr.mxu0 0.0
  %3974 = vmatpush1.msra.mxu0 %v3584
  %3975 = vmatprep.subr.mxu0 0.0
  %3976 = vmatpush1.msra.mxu0 %v3579
  %3977 = vmatprep.subr.mxu0 0.0
  %3978 = vmatpush1.msra.mxu0 %v3574
  %3979 = vmatprep.subr.mxu0 0.0
  %3980 = vmatpush1.msra.mxu0 %v3569
  %3981 = vmatprep.subr.mxu0 0.0
  %3982 = vmatpush1.msra.mxu0 %v3564
  %3983 = vmatprep.subr.mxu0 0.0
  %3984 = vmatpush2.msra.mxu0 0.0
  %3985 = vmatprep.subr.mxu0 0.0
  %3986 = vmatpush2.msra.mxu0 0.0
  %3987 = vmatprep.subr.mxu0 0.0
  %3988 = vmatpush2.msra.mxu0 0.0
  %3989 = vmatprep.subr.mxu0 0.0
  %3990 = vmatpush2.msra.mxu0 0.0
  %3991 = vmatprep.subr.mxu0 0.0
  %3992 = vmatpush2.msra.mxu0 0.0
  %3993 = vmatprep.subr.mxu0 0.0
  %3994 = vmatpush2.msra.mxu0 0.0
  %3995 = vmatprep.subr.mxu0 0.0
  %3996 = vmatpush2.msra.mxu0 0.0
  %3997 = vmatprep.subr.mxu0 0.0
  %3998 = vmatpush2.msra.mxu0 0.0
  %3999 = vmatprep.subr.mxu0 0.0
  %4000 = vmatpush2.msra.mxu0 0.0
  %4001 = vmatprep.subr.mxu0 0.0
  %4002 = vmatpush2.msra.mxu0 0.0
  %4003 = vmatprep.subr.mxu0 0.0
  %4004 = vmatpush2.msra.mxu0 0.0
  %4005 = vmatprep.subr.mxu0 0.0
  %4006 = vmatpush2.msra.mxu0 0.0
  %4007 = vmatprep.subr.mxu0 0.0
  %4008 = vmatpush2.msra.mxu0 0.0
  %4009 = vmatprep.subr.mxu0 0.0
  %4010 = vmatpush2.msra.mxu0 0.0
  %4011 = vmatprep.subr.mxu0 0.0
  %4012 = vmatpush2.msra.mxu0 0.0
  %4013 = vmatprep.subr.mxu0 0.0
  %4014 = vmatpush2.msra.mxu0 0.0
  %4015 = vmatprep.mubr.f32.mxu0 0.0
  %4016 = vmatmul.mubr.f32.gmra.mxu0 %v3646
  %v4017 = vpop.f32.mrf.mxu0
  %v4018 = vadd.f32 0.0, %v4017
  %v4019 = vpop.f32.mrf.mxu0
  %4020 = vmatprep.mubr.f32.mxu0 0.0
  %4021 = vmatmul.mubr.f32.gmra.mxu0 %v3649
  %v4022 = vpop.f32.mrf.mxu0
  %v4023 = vadd.f32 0.0, %v4022
  %v4024 = vpop.f32.mrf.mxu0
  %4025 = vdwg.mxu0
  %4026 = vmatprep.subr.mxu0 0.0
  %4027 = vmatpush1.msra.mxu0 0.0
  %4028 = vmatprep.subr.mxu0 0.0
  %4029 = vmatpush1.msra.mxu0 0.0
  %4030 = vmatprep.subr.mxu0 0.0
  %4031 = vmatpush1.msra.mxu0 0.0
  %4032 = vmatprep.subr.mxu0 0.0
  %4033 = vmatpush1.msra.mxu0 0.0
  %4034 = vmatprep.subr.mxu0 0.0
  %4035 = vmatpush1.msra.mxu0 0.0
  %4036 = vmatprep.subr.mxu0 0.0
  %4037 = vmatpush1.msra.mxu0 0.0
  %4038 = vmatprep.subr.mxu0 0.0
  %4039 = vmatpush1.msra.mxu0 0.0
  %4040 = vmatprep.subr.mxu0 0.0
  %4041 = vmatpush1.msra.mxu0 0.0
  %4042 = vmatprep.subr.mxu0 0.0
  %4043 = vmatpush1.msra.mxu0 %v3639
  %4044 = vmatprep.subr.mxu0 0.0
  %4045 = vmatpush1.msra.mxu0 %v3634
  %4046 = vmatprep.subr.mxu0 0.0
  %4047 = vmatpush1.msra.mxu0 %v3629
  %4048 = vmatprep.subr.mxu0 0.0
  %4049 = vmatpush1.msra.mxu0 %v3624
  %4050 = vmatprep.subr.mxu0 0.0
  %4051 = vmatpush1.msra.mxu0 %v3619
  %4052 = vmatprep.subr.mxu0 0.0
  %4053 = vmatpush1.msra.mxu0 %v3614
  %4054 = vmatprep.subr.mxu0 0.0
  %4055 = vmatpush1.msra.mxu0 %v3609
  %4056 = vmatprep.subr.mxu0 0.0
  %4057 = vmatpush1.msra.mxu0 %v3604
  %4058 = vmatprep.subr.mxu0 0.0
  %4059 = vmatpush2.msra.mxu0 0.0
  %4060 = vmatprep.subr.mxu0 0.0
  %4061 = vmatpush2.msra.mxu0 0.0
  %4062 = vmatprep.subr.mxu0 0.0
  %4063 = vmatpush2.msra.mxu0 0.0
  %4064 = vmatprep.subr.mxu0 0.0
  %4065 = vmatpush2.msra.mxu0 0.0
  %4066 = vmatprep.subr.mxu0 0.0
  %4067 = vmatpush2.msra.mxu0 0.0
  %4068 = vmatprep.subr.mxu0 0.0
  %4069 = vmatpush2.msra.mxu0 0.0
  %4070 = vmatprep.subr.mxu0 0.0
  %4071 = vmatpush2.msra.mxu0 0.0
  %4072 = vmatprep.subr.mxu0 0.0
  %4073 = vmatpush2.msra.mxu0 0.0
  %4074 = vmatprep.subr.mxu0 0.0
  %4075 = vmatpush2.msra.mxu0 0.0
  %4076 = vmatprep.subr.mxu0 0.0
  %4077 = vmatpush2.msra.mxu0 0.0
  %4078 = vmatprep.subr.mxu0 0.0
  %4079 = vmatpush2.msra.mxu0 0.0
  %4080 = vmatprep.subr.mxu0 0.0
  %4081 = vmatpush2.msra.mxu0 0.0
  %4082 = vmatprep.subr.mxu0 0.0
  %4083 = vmatpush2.msra.mxu0 0.0
  %4084 = vmatprep.subr.mxu0 0.0
  %4085 = vmatpush2.msra.mxu0 0.0
  %4086 = vmatprep.subr.mxu0 0.0
  %4087 = vmatpush2.msra.mxu0 0.0
  %4088 = vmatprep.subr.mxu0 0.0
  %4089 = vmatpush2.msra.mxu0 0.0
  %4090 = vmatprep.mubr.f32.mxu0 0.0
  %4091 = vmatmul.mubr.f32.gmra.mxu0 %v3646
  %v4092 = vpop.f32.mrf.mxu0
  %v4093 = vadd.f32 0.0, %v4092
  %v4094 = vpop.f32.mrf.mxu0
  %4095 = vmatprep.mubr.f32.mxu0 0.0
  %4096 = vmatmul.mubr.f32.gmra.mxu0 %v3649
  %v4097 = vpop.f32.mrf.mxu0
  %v4098 = vadd.f32 0.0, %v4097
  %v4099 = vpop.f32.mrf.mxu0
  %4100 = vdwg.mxu0
  %v4101 = vadd.f32 %v2949, %v3718
  %v4102 = vadd.f32 %v2954, %v3723
  %v4103 = vadd.f32 %v3024, %v3793
  %v4104 = vadd.f32 %v3029, %v3798
  %v4105 = vadd.f32 %v3099, %v3868
  %v4106 = vadd.f32 %v3104, %v3873
  %v4107 = vadd.f32 %v3174, %v3943
  %v4108 = vadd.f32 %v3179, %v3948
  %v4109 = vadd.f32 %v3249, %v4018
  %v4110 = vadd.f32 %v3254, %v4023
  %v4111 = vadd.f32 %v3324, %v4093
  %v4112 = vadd.f32 %v3329, %v4098
  %s4113 = scalar_lea.vmem %s5, 96
  %v4114 = vld [vmem:[%s4113] sm:$0xff]
  %v4115 = vld [vmem:[%s4113 + $0x8] sm:$0xff]
  %v4116 = vld [vmem:[%s4113 + $0x10] sm:$0xff]
  %v4117 = vld [vmem:[%s4113 + $0x18] sm:$0xff]
  %4118 = vmatprep.subr.mxu0 0.0
  %4119 = vmatpush1.msra.mxu0 0.0
  %4120 = vmatprep.subr.mxu0 0.0
  %4121 = vmatpush1.msra.mxu0 0.0
  %4122 = vmatprep.subr.mxu0 0.0
  %4123 = vmatpush1.msra.mxu0 0.0
  %4124 = vmatprep.subr.mxu0 0.0
  %4125 = vmatpush1.msra.mxu0 0.0
  %4126 = vmatprep.subr.mxu0 0.0
  %4127 = vmatpush1.msra.mxu0 0.0
  %4128 = vmatprep.subr.mxu0 0.0
  %4129 = vmatpush1.msra.mxu0 0.0
  %4130 = vmatprep.subr.mxu0 0.0
  %4131 = vmatpush1.msra.mxu0 0.0
  %4132 = vmatprep.subr.mxu0 0.0
  %4133 = vmatpush1.msra.mxu0 0.0
  %4134 = vmatprep.subr.mxu0 0.0
  %4135 = vmatpush1.msra.mxu0 0.0
  %4136 = vmatprep.subr.mxu0 0.0
  %4137 = vmatpush1.msra.mxu0 0.0
  %4138 = vmatprep.subr.mxu0 0.0
  %4139 = vmatpush1.msra.mxu0 0.0
  %4140 = vmatprep.subr.mxu0 0.0
  %4141 = vmatpush1.msra.mxu0 0.0
  %4142 = vmatprep.subr.mxu0 0.0
  %4143 = vmatpush1.msra.mxu0 %v4117
  %4144 = vmatprep.subr.mxu0 0.0
  %4145 = vmatpush1.msra.mxu0 %v4116
  %4146 = vmatprep.subr.mxu0 0.0
  %4147 = vmatpush1.msra.mxu0 %v4115
  %4148 = vmatprep.subr.mxu0 0.0
  %4149 = vmatpush1.msra.mxu0 %v4114
  %4150 = vmatprep.subr.mxu0 0.0
  %4151 = vmatpush2.msra.mxu0 0.0
  %4152 = vmatprep.subr.mxu0 0.0
  %4153 = vmatpush2.msra.mxu0 0.0
  %4154 = vmatprep.subr.mxu0 0.0
  %4155 = vmatpush2.msra.mxu0 0.0
  %4156 = vmatprep.subr.mxu0 0.0
  %4157 = vmatpush2.msra.mxu0 0.0
  %4158 = vmatprep.subr.mxu0 0.0
  %4159 = vmatpush2.msra.mxu0 0.0
  %4160 = vmatprep.subr.mxu0 0.0
  %4161 = vmatpush2.msra.mxu0 0.0
  %4162 = vmatprep.subr.mxu0 0.0
  %4163 = vmatpush2.msra.mxu0 0.0
  %4164 = vmatprep.subr.mxu0 0.0
  %4165 = vmatpush2.msra.mxu0 0.0
  %4166 = vmatprep.subr.mxu0 0.0
  %4167 = vmatpush2.msra.mxu0 0.0
  %4168 = vmatprep.subr.mxu0 0.0
  %4169 = vmatpush2.msra.mxu0 0.0
  %4170 = vmatprep.subr.mxu0 0.0
  %4171 = vmatpush2.msra.mxu0 0.0
  %4172 = vmatprep.subr.mxu0 0.0
  %4173 = vmatpush2.msra.mxu0 0.0
  %4174 = vmatprep.subr.mxu0 0.0
  %4175 = vmatpush2.msra.mxu0 0.0
  %4176 = vmatprep.subr.mxu0 0.0
  %4177 = vmatpush2.msra.mxu0 0.0
  %4178 = vmatprep.subr.mxu0 0.0
  %4179 = vmatpush2.msra.mxu0 0.0
  %4180 = vmatprep.subr.mxu0 0.0
  %4181 = vmatpush2.msra.mxu0 0.0
  %4182 = vmatprep.mubr.f32.mxu0 0.0
  %4183 = vmatmul.mubr.f32.gmra.mxu0 %v1656
  %v4184 = vpop.f32.mrf.mxu0
  %v4185 = vadd.f32 0.0, %v4184
  %v4186 = vpop.f32.mrf.mxu0
  %4187 = vmatprep.mubr.f32.mxu0 0.0
  %4188 = vmatmul.mubr.f32.gmra.mxu0 %v1659
  %v4189 = vpop.f32.mrf.mxu0
  %v4190 = vadd.f32 0.0, %v4189
  %v4191 = vpop.f32.mrf.mxu0
  %4192 = vmatprep.mubr.f32.mxu0 0.0
  %4193 = vmatmul.mubr.f32.gmra.mxu0 %v1662
  %v4194 = vpop.f32.mrf.mxu0
  %v4195 = vadd.f32 0.0, %v4194
  %v4196 = vpop.f32.mrf.mxu0
  %4197 = vmatprep.mubr.f32.mxu0 0.0
  %4198 = vmatmul.mubr.f32.gmra.mxu0 %v1665
  %v4199 = vpop.f32.mrf.mxu0
  %v4200 = vadd.f32 0.0, %v4199
  %v4201 = vpop.f32.mrf.mxu0
  %4202 = vmatprep.mubr.f32.mxu0 0.0
  %4203 = vmatmul.mubr.f32.gmra.mxu0 %v1668
  %v4204 = vpop.f32.mrf.mxu0
  %v4205 = vadd.f32 0.0, %v4204
  %v4206 = vpop.f32.mrf.mxu0
  %4207 = vmatprep.mubr.f32.mxu0 0.0
  %4208 = vmatmul.mubr.f32.gmra.mxu0 %v1671
  %v4209 = vpop.f32.mrf.mxu0
  %v4210 = vadd.f32 0.0, %v4209
  %v4211 = vpop.f32.mrf.mxu0
  %4212 = vmatprep.mubr.f32.mxu0 0.0
  %4213 = vmatmul.mubr.f32.gmra.mxu0 %v1674
  %v4214 = vpop.f32.mrf.mxu0
  %v4215 = vadd.f32 0.0, %v4214
  %v4216 = vpop.f32.mrf.mxu0
  %4217 = vmatprep.mubr.f32.mxu0 0.0
  %4218 = vmatmul.mubr.f32.gmra.mxu0 %v1677
  %v4219 = vpop.f32.mrf.mxu0
  %v4220 = vadd.f32 0.0, %v4219
  %v4221 = vpop.f32.mrf.mxu0
  %4222 = vmatprep.mubr.f32.mxu0 0.0
  %4223 = vmatmul.mubr.f32.gmra.mxu0 %v1680
  %v4224 = vpop.f32.mrf.mxu0
  %v4225 = vadd.f32 0.0, %v4224
  %v4226 = vpop.f32.mrf.mxu0
  %4227 = vmatprep.mubr.f32.mxu0 0.0
  %4228 = vmatmul.mubr.f32.gmra.mxu0 %v1683
  %v4229 = vpop.f32.mrf.mxu0
  %v4230 = vadd.f32 0.0, %v4229
  %v4231 = vpop.f32.mrf.mxu0
  %4232 = vmatprep.mubr.f32.mxu0 0.0
  %4233 = vmatmul.mubr.f32.gmra.mxu0 %v1686
  %v4234 = vpop.f32.mrf.mxu0
  %v4235 = vadd.f32 0.0, %v4234
  %v4236 = vpop.f32.mrf.mxu0
  %4237 = vmatprep.mubr.f32.mxu0 0.0
  %4238 = vmatmul.mubr.f32.gmra.mxu0 %v1689
  %v4239 = vpop.f32.mrf.mxu0
  %v4240 = vadd.f32 0.0, %v4239
  %v4241 = vpop.f32.mrf.mxu0
  %4242 = vmatprep.mubr.f32.mxu0 0.0
  %4243 = vmatmul.mubr.f32.gmra.mxu0 %v1692
  %v4244 = vpop.f32.mrf.mxu0
  %v4245 = vadd.f32 0.0, %v4244
  %v4246 = vpop.f32.mrf.mxu0
  %4247 = vmatprep.mubr.f32.mxu0 0.0
  %4248 = vmatmul.mubr.f32.gmra.mxu0 %v1695
  %v4249 = vpop.f32.mrf.mxu0
  %v4250 = vadd.f32 0.0, %v4249
  %v4251 = vpop.f32.mrf.mxu0
  %4252 = vmatprep.mubr.f32.mxu0 0.0
  %4253 = vmatmul.mubr.f32.gmra.mxu0 %v1698
  %v4254 = vpop.f32.mrf.mxu0
  %v4255 = vadd.f32 0.0, %v4254
  %v4256 = vpop.f32.mrf.mxu0
  %4257 = vmatprep.mubr.f32.mxu0 0.0
  %4258 = vmatmul.mubr.f32.gmra.mxu0 %v1701
  %v4259 = vpop.f32.mrf.mxu0
  %v4260 = vadd.f32 0.0, %v4259
  %v4261 = vpop.f32.mrf.mxu0
  %4262 = vmatprep.mubr.f32.mxu0 0.0
  %4263 = vmatmul.mubr.f32.gmra.mxu0 %v1704
  %v4264 = vpop.f32.mrf.mxu0
  %v4265 = vadd.f32 0.0, %v4264
  %v4266 = vpop.f32.mrf.mxu0
  %4267 = vmatprep.mubr.f32.mxu0 0.0
  %4268 = vmatmul.mubr.f32.gmra.mxu0 %v1707
  %v4269 = vpop.f32.mrf.mxu0
  %v4270 = vadd.f32 0.0, %v4269
  %v4271 = vpop.f32.mrf.mxu0
  %4272 = vmatprep.mubr.f32.mxu0 0.0
  %4273 = vmatmul.mubr.f32.gmra.mxu0 %v1710
  %v4274 = vpop.f32.mrf.mxu0
  %v4275 = vadd.f32 0.0, %v4274
  %v4276 = vpop.f32.mrf.mxu0
  %4277 = vmatprep.mubr.f32.mxu0 0.0
  %4278 = vmatmul.mubr.f32.gmra.mxu0 %v1713
  %v4279 = vpop.f32.mrf.mxu0
  %v4280 = vadd.f32 0.0, %v4279
  %v4281 = vpop.f32.mrf.mxu0
  %4282 = vmatprep.mubr.f32.mxu0 0.0
  %4283 = vmatmul.mubr.f32.gmra.mxu0 %v1716
  %v4284 = vpop.f32.mrf.mxu0
  %v4285 = vadd.f32 0.0, %v4284
  %v4286 = vpop.f32.mrf.mxu0
  %4287 = vmatprep.mubr.f32.mxu0 0.0
  %4288 = vmatmul.mubr.f32.gmra.mxu0 %v1719
  %v4289 = vpop.f32.mrf.mxu0
  %v4290 = vadd.f32 0.0, %v4289
  %v4291 = vpop.f32.mrf.mxu0
  %4292 = vmatprep.mubr.f32.mxu0 0.0
  %4293 = vmatmul.mubr.f32.gmra.mxu0 %v1722
  %v4294 = vpop.f32.mrf.mxu0
  %v4295 = vadd.f32 0.0, %v4294
  %v4296 = vpop.f32.mrf.mxu0
  %4297 = vmatprep.mubr.f32.mxu0 0.0
  %4298 = vmatmul.mubr.f32.gmra.mxu0 %v1725
  %v4299 = vpop.f32.mrf.mxu0
  %v4300 = vadd.f32 0.0, %v4299
  %v4301 = vpop.f32.mrf.mxu0
  %4302 = vmatprep.mubr.f32.mxu0 0.0
  %4303 = vmatmul.mubr.f32.gmra.mxu0 %v1728
  %v4304 = vpop.f32.mrf.mxu0
  %v4305 = vadd.f32 0.0, %v4304
  %v4306 = vpop.f32.mrf.mxu0
  %4307 = vmatprep.mubr.f32.mxu0 0.0
  %4308 = vmatmul.mubr.f32.gmra.mxu0 %v1731
  %v4309 = vpop.f32.mrf.mxu0
  %v4310 = vadd.f32 0.0, %v4309
  %v4311 = vpop.f32.mrf.mxu0
  %4312 = vmatprep.mubr.f32.mxu0 0.0
  %4313 = vmatmul.mubr.f32.gmra.mxu0 %v1734
  %v4314 = vpop.f32.mrf.mxu0
  %v4315 = vadd.f32 0.0, %v4314
  %v4316 = vpop.f32.mrf.mxu0
  %4317 = vmatprep.mubr.f32.mxu0 0.0
  %4318 = vmatmul.mubr.f32.gmra.mxu0 %v1737
  %v4319 = vpop.f32.mrf.mxu0
  %v4320 = vadd.f32 0.0, %v4319
  %v4321 = vpop.f32.mrf.mxu0
  %4322 = vmatprep.mubr.f32.mxu0 0.0
  %4323 = vmatmul.mubr.f32.gmra.mxu0 %v1740
  %v4324 = vpop.f32.mrf.mxu0
  %v4325 = vadd.f32 0.0, %v4324
  %v4326 = vpop.f32.mrf.mxu0
  %4327 = vmatprep.mubr.f32.mxu0 0.0
  %4328 = vmatmul.mubr.f32.gmra.mxu0 %v1743
  %v4329 = vpop.f32.mrf.mxu0
  %v4330 = vadd.f32 0.0, %v4329
  %v4331 = vpop.f32.mrf.mxu0
  %4332 = vmatprep.mubr.f32.mxu0 0.0
  %4333 = vmatmul.mubr.f32.gmra.mxu0 %v1746
  %v4334 = vpop.f32.mrf.mxu0
  %v4335 = vadd.f32 0.0, %v4334
  %v4336 = vpop.f32.mrf.mxu0
  %4337 = vmatprep.mubr.f32.mxu0 0.0
  %4338 = vmatmul.mubr.f32.gmra.mxu0 %v1749
  %v4339 = vpop.f32.mrf.mxu0
  %v4340 = vadd.f32 0.0, %v4339
  %v4341 = vpop.f32.mrf.mxu0
  %4342 = vmatprep.mubr.f32.mxu0 0.0
  %4343 = vmatmul.mubr.f32.gmra.mxu0 %v1752
  %v4344 = vpop.f32.mrf.mxu0
  %v4345 = vadd.f32 0.0, %v4344
  %v4346 = vpop.f32.mrf.mxu0
  %4347 = vmatprep.mubr.f32.mxu0 0.0
  %4348 = vmatmul.mubr.f32.gmra.mxu0 %v1755
  %v4349 = vpop.f32.mrf.mxu0
  %v4350 = vadd.f32 0.0, %v4349
  %v4351 = vpop.f32.mrf.mxu0
  %4352 = vmatprep.mubr.f32.mxu0 0.0
  %4353 = vmatmul.mubr.f32.gmra.mxu0 %v1758
  %v4354 = vpop.f32.mrf.mxu0
  %v4355 = vadd.f32 0.0, %v4354
  %v4356 = vpop.f32.mrf.mxu0
  %4357 = vmatprep.mubr.f32.mxu0 0.0
  %4358 = vmatmul.mubr.f32.gmra.mxu0 %v1761
  %v4359 = vpop.f32.mrf.mxu0
  %v4360 = vadd.f32 0.0, %v4359
  %v4361 = vpop.f32.mrf.mxu0
  %4362 = vmatprep.mubr.f32.mxu0 0.0
  %4363 = vmatmul.mubr.f32.gmra.mxu0 %v1764
  %v4364 = vpop.f32.mrf.mxu0
  %v4365 = vadd.f32 0.0, %v4364
  %v4366 = vpop.f32.mrf.mxu0
  %4367 = vmatprep.mubr.f32.mxu0 0.0
  %4368 = vmatmul.mubr.f32.gmra.mxu0 %v1767
  %v4369 = vpop.f32.mrf.mxu0
  %v4370 = vadd.f32 0.0, %v4369
  %v4371 = vpop.f32.mrf.mxu0
  %4372 = vmatprep.mubr.f32.mxu0 0.0
  %4373 = vmatmul.mubr.f32.gmra.mxu0 %v1770
  %v4374 = vpop.f32.mrf.mxu0
  %v4375 = vadd.f32 0.0, %v4374
  %v4376 = vpop.f32.mrf.mxu0
  %4377 = vmatprep.mubr.f32.mxu0 0.0
  %4378 = vmatmul.mubr.f32.gmra.mxu0 %v1773
  %v4379 = vpop.f32.mrf.mxu0
  %v4380 = vadd.f32 0.0, %v4379
  %v4381 = vpop.f32.mrf.mxu0
  %4382 = vmatprep.mubr.f32.mxu0 0.0
  %4383 = vmatmul.mubr.f32.gmra.mxu0 %v1776
  %v4384 = vpop.f32.mrf.mxu0
  %v4385 = vadd.f32 0.0, %v4384
  %v4386 = vpop.f32.mrf.mxu0
  %4387 = vmatprep.mubr.f32.mxu0 0.0
  %4388 = vmatmul.mubr.f32.gmra.mxu0 %v1779
  %v4389 = vpop.f32.mrf.mxu0
  %v4390 = vadd.f32 0.0, %v4389
  %v4391 = vpop.f32.mrf.mxu0
  %4392 = vmatprep.mubr.f32.mxu0 0.0
  %4393 = vmatmul.mubr.f32.gmra.mxu0 %v1782
  %v4394 = vpop.f32.mrf.mxu0
  %v4395 = vadd.f32 0.0, %v4394
  %v4396 = vpop.f32.mrf.mxu0
  %4397 = vmatprep.mubr.f32.mxu0 0.0
  %4398 = vmatmul.mubr.f32.gmra.mxu0 %v1785
  %v4399 = vpop.f32.mrf.mxu0
  %v4400 = vadd.f32 0.0, %v4399
  %v4401 = vpop.f32.mrf.mxu0
  %4402 = vmatprep.mubr.f32.mxu0 0.0
  %4403 = vmatmul.mubr.f32.gmra.mxu0 %v1788
  %v4404 = vpop.f32.mrf.mxu0
  %v4405 = vadd.f32 0.0, %v4404
  %v4406 = vpop.f32.mrf.mxu0
  %4407 = vmatprep.mubr.f32.mxu0 0.0
  %4408 = vmatmul.mubr.f32.gmra.mxu0 %v1791
  %v4409 = vpop.f32.mrf.mxu0
  %v4410 = vadd.f32 0.0, %v4409
  %v4411 = vpop.f32.mrf.mxu0
  %4412 = vmatprep.mubr.f32.mxu0 0.0
  %4413 = vmatmul.mubr.f32.gmra.mxu0 %v1794
  %v4414 = vpop.f32.mrf.mxu0
  %v4415 = vadd.f32 0.0, %v4414
  %v4416 = vpop.f32.mrf.mxu0
  %4417 = vmatprep.mubr.f32.mxu0 0.0
  %4418 = vmatmul.mubr.f32.gmra.mxu0 %v1797
  %v4419 = vpop.f32.mrf.mxu0
  %v4420 = vadd.f32 0.0, %v4419
  %v4421 = vpop.f32.mrf.mxu0
  %4422 = vdwg.mxu0
  %s4423 = scalar_lea.vmem %s4, 48
  %v4424 = vld [vmem:[%s4423] sm:$0xff]
  %v4425 = vld [vmem:[%s4423 + $0x8] sm:$0xff]
  %v4427 = vsel %vm2419, %v4424, 0
  %v4430 = vsel %vm2419, %v4425, 0
  %4432 = vmatprep.subr.mxu0 0.0
  %4433 = vmatpush1.msra.mxu0 0.0
  %4434 = vmatprep.subr.mxu0 0.0
  %4435 = vmatpush1.msra.mxu0 0.0
  %4436 = vmatprep.subr.mxu0 0.0
  %4437 = vmatpush1.msra.mxu0 0.0
  %4438 = vmatprep.subr.mxu0 0.0
  %4439 = vmatpush1.msra.mxu0 0.0
  %4440 = vmatprep.subr.mxu0 0.0
  %4441 = vmatpush1.msra.mxu0 0.0
  %4442 = vmatprep.subr.mxu0 0.0
  %4443 = vmatpush1.msra.mxu0 0.0
  %4444 = vmatprep.subr.mxu0 0.0
  %4445 = vmatpush1.msra.mxu0 0.0
  %4446 = vmatprep.subr.mxu0 0.0
  %4447 = vmatpush1.msra.mxu0 0.0
  %4448 = vmatprep.subr.mxu0 0.0
  %4449 = vmatpush1.msra.mxu0 %v4220
  %4450 = vmatprep.subr.mxu0 0.0
  %4451 = vmatpush1.msra.mxu0 %v4215
  %4452 = vmatprep.subr.mxu0 0.0
  %4453 = vmatpush1.msra.mxu0 %v4210
  %4454 = vmatprep.subr.mxu0 0.0
  %4455 = vmatpush1.msra.mxu0 %v4205
  %4456 = vmatprep.subr.mxu0 0.0
  %4457 = vmatpush1.msra.mxu0 %v4200
  %4458 = vmatprep.subr.mxu0 0.0
  %4459 = vmatpush1.msra.mxu0 %v4195
  %4460 = vmatprep.subr.mxu0 0.0
  %4461 = vmatpush1.msra.mxu0 %v4190
  %4462 = vmatprep.subr.mxu0 0.0
  %4463 = vmatpush1.msra.mxu0 %v4185
  %4464 = vmatprep.subr.mxu0 0.0
  %4465 = vmatpush2.msra.mxu0 0.0
  %4466 = vmatprep.subr.mxu0 0.0
  %4467 = vmatpush2.msra.mxu0 0.0
  %4468 = vmatprep.subr.mxu0 0.0
  %4469 = vmatpush2.msra.mxu0 0.0
  %4470 = vmatprep.subr.mxu0 0.0
  %4471 = vmatpush2.msra.mxu0 0.0
  %4472 = vmatprep.subr.mxu0 0.0
  %4473 = vmatpush2.msra.mxu0 0.0
  %4474 = vmatprep.subr.mxu0 0.0
  %4475 = vmatpush2.msra.mxu0 0.0
  %4476 = vmatprep.subr.mxu0 0.0
  %4477 = vmatpush2.msra.mxu0 0.0
  %4478 = vmatprep.subr.mxu0 0.0
  %4479 = vmatpush2.msra.mxu0 0.0
  %4480 = vmatprep.subr.mxu0 0.0
  %4481 = vmatpush2.msra.mxu0 0.0
  %4482 = vmatprep.subr.mxu0 0.0
  %4483 = vmatpush2.msra.mxu0 0.0
  %4484 = vmatprep.subr.mxu0 0.0
  %4485 = vmatpush2.msra.mxu0 0.0
  %4486 = vmatprep.subr.mxu0 0.0
  %4487 = vmatpush2.msra.mxu0 0.0
  %4488 = vmatprep.subr.mxu0 0.0
  %4489 = vmatpush2.msra.mxu0 0.0
  %4490 = vmatprep.subr.mxu0 0.0
  %4491 = vmatpush2.msra.mxu0 0.0
  %4492 = vmatprep.subr.mxu0 0.0
  %4493 = vmatpush2.msra.mxu0 0.0
  %4494 = vmatprep.subr.mxu0 0.0
  %4495 = vmatpush2.msra.mxu0 0.0
  %4496 = vmatprep.mubr.f32.mxu0 0.0
  %4497 = vmatmul.mubr.f32.gmra.mxu0 %v4427
  %v4498 = vpop.f32.mrf.mxu0
  %v4499 = vadd.f32 0.0, %v4498
  %v4500 = vpop.f32.mrf.mxu0
  %4501 = vmatprep.mubr.f32.mxu0 0.0
  %4502 = vmatmul.mubr.f32.gmra.mxu0 %v4430
  %v4503 = vpop.f32.mrf.mxu0
  %v4504 = vadd.f32 0.0, %v4503
  %v4505 = vpop.f32.mrf.mxu0
  %4506 = vdwg.mxu0
  %4507 = vmatprep.subr.mxu0 0.0
  %4508 = vmatpush1.msra.mxu0 0.0
  %4509 = vmatprep.subr.mxu0 0.0
  %4510 = vmatpush1.msra.mxu0 0.0
  %4511 = vmatprep.subr.mxu0 0.0
  %4512 = vmatpush1.msra.mxu0 0.0
  %4513 = vmatprep.subr.mxu0 0.0
  %4514 = vmatpush1.msra.mxu0 0.0
  %4515 = vmatprep.subr.mxu0 0.0
  %4516 = vmatpush1.msra.mxu0 0.0
  %4517 = vmatprep.subr.mxu0 0.0
  %4518 = vmatpush1.msra.mxu0 0.0
  %4519 = vmatprep.subr.mxu0 0.0
  %4520 = vmatpush1.msra.mxu0 0.0
  %4521 = vmatprep.subr.mxu0 0.0
  %4522 = vmatpush1.msra.mxu0 0.0
  %4523 = vmatprep.subr.mxu0 0.0
  %4524 = vmatpush1.msra.mxu0 %v4260
  %4525 = vmatprep.subr.mxu0 0.0
  %4526 = vmatpush1.msra.mxu0 %v4255
  %4527 = vmatprep.subr.mxu0 0.0
  %4528 = vmatpush1.msra.mxu0 %v4250
  %4529 = vmatprep.subr.mxu0 0.0
  %4530 = vmatpush1.msra.mxu0 %v4245
  %4531 = vmatprep.subr.mxu0 0.0
  %4532 = vmatpush1.msra.mxu0 %v4240
  %4533 = vmatprep.subr.mxu0 0.0
  %4534 = vmatpush1.msra.mxu0 %v4235
  %4535 = vmatprep.subr.mxu0 0.0
  %4536 = vmatpush1.msra.mxu0 %v4230
  %4537 = vmatprep.subr.mxu0 0.0
  %4538 = vmatpush1.msra.mxu0 %v4225
  %4539 = vmatprep.subr.mxu0 0.0
  %4540 = vmatpush2.msra.mxu0 0.0
  %4541 = vmatprep.subr.mxu0 0.0
  %4542 = vmatpush2.msra.mxu0 0.0
  %4543 = vmatprep.subr.mxu0 0.0
  %4544 = vmatpush2.msra.mxu0 0.0
  %4545 = vmatprep.subr.mxu0 0.0
  %4546 = vmatpush2.msra.mxu0 0.0
  %4547 = vmatprep.subr.mxu0 0.0
  %4548 = vmatpush2.msra.mxu0 0.0
  %4549 = vmatprep.subr.mxu0 0.0
  %4550 = vmatpush2.msra.mxu0 0.0
  %4551 = vmatprep.subr.mxu0 0.0
  %4552 = vmatpush2.msra.mxu0 0.0
  %4553 = vmatprep.subr.mxu0 0.0
  %4554 = vmatpush2.msra.mxu0 0.0
  %4555 = vmatprep.subr.mxu0 0.0
  %4556 = vmatpush2.msra.mxu0 0.0
  %4557 = vmatprep.subr.mxu0 0.0
  %4558 = vmatpush2.msra.mxu0 0.0
  %4559 = vmatprep.subr.mxu0 0.0
  %4560 = vmatpush2.msra.mxu0 0.0
  %4561 = vmatprep.subr.mxu0 0.0
  %4562 = vmatpush2.msra.mxu0 0.0
  %4563 = vmatprep.subr.mxu0 0.0
  %4564 = vmatpush2.msra.mxu0 0.0
  %4565 = vmatprep.subr.mxu0 0.0
  %4566 = vmatpush2.msra.mxu0 0.0
  %4567 = vmatprep.subr.mxu0 0.0
  %4568 = vmatpush2.msra.mxu0 0.0
  %4569 = vmatprep.subr.mxu0 0.0
  %4570 = vmatpush2.msra.mxu0 0.0
  %4571 = vmatprep.mubr.f32.mxu0 0.0
  %4572 = vmatmul.mubr.f32.gmra.mxu0 %v4427
  %v4573 = vpop.f32.mrf.mxu0
  %v4574 = vadd.f32 0.0, %v4573
  %v4575 = vpop.f32.mrf.mxu0
  %4576 = vmatprep.mubr.f32.mxu0 0.0
  %4577 = vmatmul.mubr.f32.gmra.mxu0 %v4430
  %v4578 = vpop.f32.mrf.mxu0
  %v4579 = vadd.f32 0.0, %v4578
  %v4580 = vpop.f32.mrf.mxu0
  %4581 = vdwg.mxu0
  %4582 = vmatprep.subr.mxu0 0.0
  %4583 = vmatpush1.msra.mxu0 0.0
  %4584 = vmatprep.subr.mxu0 0.0
  %4585 = vmatpush1.msra.mxu0 0.0
  %4586 = vmatprep.subr.mxu0 0.0
  %4587 = vmatpush1.msra.mxu0 0.0
  %4588 = vmatprep.subr.mxu0 0.0
  %4589 = vmatpush1.msra.mxu0 0.0
  %4590 = vmatprep.subr.mxu0 0.0
  %4591 = vmatpush1.msra.mxu0 0.0
  %4592 = vmatprep.subr.mxu0 0.0
  %4593 = vmatpush1.msra.mxu0 0.0
  %4594 = vmatprep.subr.mxu0 0.0
  %4595 = vmatpush1.msra.mxu0 0.0
  %4596 = vmatprep.subr.mxu0 0.0
  %4597 = vmatpush1.msra.mxu0 0.0
  %4598 = vmatprep.subr.mxu0 0.0
  %4599 = vmatpush1.msra.mxu0 %v4300
  %4600 = vmatprep.subr.mxu0 0.0
  %4601 = vmatpush1.msra.mxu0 %v4295
  %4602 = vmatprep.subr.mxu0 0.0
  %4603 = vmatpush1.msra.mxu0 %v4290
  %4604 = vmatprep.subr.mxu0 0.0
  %4605 = vmatpush1.msra.mxu0 %v4285
  %4606 = vmatprep.subr.mxu0 0.0
  %4607 = vmatpush1.msra.mxu0 %v4280
  %4608 = vmatprep.subr.mxu0 0.0
  %4609 = vmatpush1.msra.mxu0 %v4275
  %4610 = vmatprep.subr.mxu0 0.0
  %4611 = vmatpush1.msra.mxu0 %v4270
  %4612 = vmatprep.subr.mxu0 0.0
  %4613 = vmatpush1.msra.mxu0 %v4265
  %4614 = vmatprep.subr.mxu0 0.0
  %4615 = vmatpush2.msra.mxu0 0.0
  %4616 = vmatprep.subr.mxu0 0.0
  %4617 = vmatpush2.msra.mxu0 0.0
  %4618 = vmatprep.subr.mxu0 0.0
  %4619 = vmatpush2.msra.mxu0 0.0
  %4620 = vmatprep.subr.mxu0 0.0
  %4621 = vmatpush2.msra.mxu0 0.0
  %4622 = vmatprep.subr.mxu0 0.0
  %4623 = vmatpush2.msra.mxu0 0.0
  %4624 = vmatprep.subr.mxu0 0.0
  %4625 = vmatpush2.msra.mxu0 0.0
  %4626 = vmatprep.subr.mxu0 0.0
  %4627 = vmatpush2.msra.mxu0 0.0
  %4628 = vmatprep.subr.mxu0 0.0
  %4629 = vmatpush2.msra.mxu0 0.0
  %4630 = vmatprep.subr.mxu0 0.0
  %4631 = vmatpush2.msra.mxu0 0.0
  %4632 = vmatprep.subr.mxu0 0.0
  %4633 = vmatpush2.msra.mxu0 0.0
  %4634 = vmatprep.subr.mxu0 0.0
  %4635 = vmatpush2.msra.mxu0 0.0
  %4636 = vmatprep.subr.mxu0 0.0
  %4637 = vmatpush2.msra.mxu0 0.0
  %4638 = vmatprep.subr.mxu0 0.0
  %4639 = vmatpush2.msra.mxu0 0.0
  %4640 = vmatprep.subr.mxu0 0.0
  %4641 = vmatpush2.msra.mxu0 0.0
  %4642 = vmatprep.subr.mxu0 0.0
  %4643 = vmatpush2.msra.mxu0 0.0
  %4644 = vmatprep.subr.mxu0 0.0
  %4645 = vmatpush2.msra.mxu0 0.0
  %4646 = vmatprep.mubr.f32.mxu0 0.0
  %4647 = vmatmul.mubr.f32.gmra.mxu0 %v4427
  %v4648 = vpop.f32.mrf.mxu0
  %v4649 = vadd.f32 0.0, %v4648
  %v4650 = vpop.f32.mrf.mxu0
  %4651 = vmatprep.mubr.f32.mxu0 0.0
  %4652 = vmatmul.mubr.f32.gmra.mxu0 %v4430
  %v4653 = vpop.f32.mrf.mxu0
  %v4654 = vadd.f32 0.0, %v4653
  %v4655 = vpop.f32.mrf.mxu0
  %4656 = vdwg.mxu0
  %4657 = vmatprep.subr.mxu0 0.0
  %4658 = vmatpush1.msra.mxu0 0.0
  %4659 = vmatprep.subr.mxu0 0.0
  %4660 = vmatpush1.msra.mxu0 0.0
  %4661 = vmatprep.subr.mxu0 0.0
  %4662 = vmatpush1.msra.mxu0 0.0
  %4663 = vmatprep.subr.mxu0 0.0
  %4664 = vmatpush1.msra.mxu0 0.0
  %4665 = vmatprep.subr.mxu0 0.0
  %4666 = vmatpush1.msra.mxu0 0.0
  %4667 = vmatprep.subr.mxu0 0.0
  %4668 = vmatpush1.msra.mxu0 0.0
  %4669 = vmatprep.subr.mxu0 0.0
  %4670 = vmatpush1.msra.mxu0 0.0
  %4671 = vmatprep.subr.mxu0 0.0
  %4672 = vmatpush1.msra.mxu0 0.0
  %4673 = vmatprep.subr.mxu0 0.0
  %4674 = vmatpush1.msra.mxu0 %v4340
  %4675 = vmatprep.subr.mxu0 0.0
  %4676 = vmatpush1.msra.mxu0 %v4335
  %4677 = vmatprep.subr.mxu0 0.0
  %4678 = vmatpush1.msra.mxu0 %v4330
  %4679 = vmatprep.subr.mxu0 0.0
  %4680 = vmatpush1.msra.mxu0 %v4325
  %4681 = vmatprep.subr.mxu0 0.0
  %4682 = vmatpush1.msra.mxu0 %v4320
  %4683 = vmatprep.subr.mxu0 0.0
  %4684 = vmatpush1.msra.mxu0 %v4315
  %4685 = vmatprep.subr.mxu0 0.0
  %4686 = vmatpush1.msra.mxu0 %v4310
  %4687 = vmatprep.subr.mxu0 0.0
  %4688 = vmatpush1.msra.mxu0 %v4305
  %4689 = vmatprep.subr.mxu0 0.0
  %4690 = vmatpush2.msra.mxu0 0.0
  %4691 = vmatprep.subr.mxu0 0.0
  %4692 = vmatpush2.msra.mxu0 0.0
  %4693 = vmatprep.subr.mxu0 0.0
  %4694 = vmatpush2.msra.mxu0 0.0
  %4695 = vmatprep.subr.mxu0 0.0
  %4696 = vmatpush2.msra.mxu0 0.0
  %4697 = vmatprep.subr.mxu0 0.0
  %4698 = vmatpush2.msra.mxu0 0.0
  %4699 = vmatprep.subr.mxu0 0.0
  %4700 = vmatpush2.msra.mxu0 0.0
  %4701 = vmatprep.subr.mxu0 0.0
  %4702 = vmatpush2.msra.mxu0 0.0
  %4703 = vmatprep.subr.mxu0 0.0
  %4704 = vmatpush2.msra.mxu0 0.0
  %4705 = vmatprep.subr.mxu0 0.0
  %4706 = vmatpush2.msra.mxu0 0.0
  %4707 = vmatprep.subr.mxu0 0.0
  %4708 = vmatpush2.msra.mxu0 0.0
  %4709 = vmatprep.subr.mxu0 0.0
  %4710 = vmatpush2.msra.mxu0 0.0
  %4711 = vmatprep.subr.mxu0 0.0
  %4712 = vmatpush2.msra.mxu0 0.0
  %4713 = vmatprep.subr.mxu0 0.0
  %4714 = vmatpush2.msra.mxu0 0.0
  %4715 = vmatprep.subr.mxu0 0.0
  %4716 = vmatpush2.msra.mxu0 0.0
  %4717 = vmatprep.subr.mxu0 0.0
  %4718 = vmatpush2.msra.mxu0 0.0
  %4719 = vmatprep.subr.mxu0 0.0
  %4720 = vmatpush2.msra.mxu0 0.0
  %4721 = vmatprep.mubr.f32.mxu0 0.0
  %4722 = vmatmul.mubr.f32.gmra.mxu0 %v4427
  %v4723 = vpop.f32.mrf.mxu0
  %v4724 = vadd.f32 0.0, %v4723
  %v4725 = vpop.f32.mrf.mxu0
  %4726 = vmatprep.mubr.f32.mxu0 0.0
  %4727 = vmatmul.mubr.f32.gmra.mxu0 %v4430
  %v4728 = vpop.f32.mrf.mxu0
  %v4729 = vadd.f32 0.0, %v4728
  %v4730 = vpop.f32.mrf.mxu0
  %4731 = vdwg.mxu0
  %4732 = vmatprep.subr.mxu0 0.0
  %4733 = vmatpush1.msra.mxu0 0.0
  %4734 = vmatprep.subr.mxu0 0.0
  %4735 = vmatpush1.msra.mxu0 0.0
  %4736 = vmatprep.subr.mxu0 0.0
  %4737 = vmatpush1.msra.mxu0 0.0
  %4738 = vmatprep.subr.mxu0 0.0
  %4739 = vmatpush1.msra.mxu0 0.0
  %4740 = vmatprep.subr.mxu0 0.0
  %4741 = vmatpush1.msra.mxu0 0.0
  %4742 = vmatprep.subr.mxu0 0.0
  %4743 = vmatpush1.msra.mxu0 0.0
  %4744 = vmatprep.subr.mxu0 0.0
  %4745 = vmatpush1.msra.mxu0 0.0
  %4746 = vmatprep.subr.mxu0 0.0
  %4747 = vmatpush1.msra.mxu0 0.0
  %4748 = vmatprep.subr.mxu0 0.0
  %4749 = vmatpush1.msra.mxu0 %v4380
  %4750 = vmatprep.subr.mxu0 0.0
  %4751 = vmatpush1.msra.mxu0 %v4375
  %4752 = vmatprep.subr.mxu0 0.0
  %4753 = vmatpush1.msra.mxu0 %v4370
  %4754 = vmatprep.subr.mxu0 0.0
  %4755 = vmatpush1.msra.mxu0 %v4365
  %4756 = vmatprep.subr.mxu0 0.0
  %4757 = vmatpush1.msra.mxu0 %v4360
  %4758 = vmatprep.subr.mxu0 0.0
  %4759 = vmatpush1.msra.mxu0 %v4355
  %4760 = vmatprep.subr.mxu0 0.0
  %4761 = vmatpush1.msra.mxu0 %v4350
  %4762 = vmatprep.subr.mxu0 0.0
  %4763 = vmatpush1.msra.mxu0 %v4345
  %4764 = vmatprep.subr.mxu0 0.0
  %4765 = vmatpush2.msra.mxu0 0.0
  %4766 = vmatprep.subr.mxu0 0.0
  %4767 = vmatpush2.msra.mxu0 0.0
  %4768 = vmatprep.subr.mxu0 0.0
  %4769 = vmatpush2.msra.mxu0 0.0
  %4770 = vmatprep.subr.mxu0 0.0
  %4771 = vmatpush2.msra.mxu0 0.0
  %4772 = vmatprep.subr.mxu0 0.0
  %4773 = vmatpush2.msra.mxu0 0.0
  %4774 = vmatprep.subr.mxu0 0.0
  %4775 = vmatpush2.msra.mxu0 0.0
  %4776 = vmatprep.subr.mxu0 0.0
  %4777 = vmatpush2.msra.mxu0 0.0
  %4778 = vmatprep.subr.mxu0 0.0
  %4779 = vmatpush2.msra.mxu0 0.0
  %4780 = vmatprep.subr.mxu0 0.0
  %4781 = vmatpush2.msra.mxu0 0.0
  %4782 = vmatprep.subr.mxu0 0.0
  %4783 = vmatpush2.msra.mxu0 0.0
  %4784 = vmatprep.subr.mxu0 0.0
  %4785 = vmatpush2.msra.mxu0 0.0
  %4786 = vmatprep.subr.mxu0 0.0
  %4787 = vmatpush2.msra.mxu0 0.0
  %4788 = vmatprep.subr.mxu0 0.0
  %4789 = vmatpush2.msra.mxu0 0.0
  %4790 = vmatprep.subr.mxu0 0.0
  %4791 = vmatpush2.msra.mxu0 0.0
  %4792 = vmatprep.subr.mxu0 0.0
  %4793 = vmatpush2.msra.mxu0 0.0
  %4794 = vmatprep.subr.mxu0 0.0
  %4795 = vmatpush2.msra.mxu0 0.0
  %4796 = vmatprep.mubr.f32.mxu0 0.0
  %4797 = vmatmul.mubr.f32.gmra.mxu0 %v4427
  %v4798 = vpop.f32.mrf.mxu0
  %v4799 = vadd.f32 0.0, %v4798
  %v4800 = vpop.f32.mrf.mxu0
  %4801 = vmatprep.mubr.f32.mxu0 0.0
  %4802 = vmatmul.mubr.f32.gmra.mxu0 %v4430
  %v4803 = vpop.f32.mrf.mxu0
  %v4804 = vadd.f32 0.0, %v4803
  %v4805 = vpop.f32.mrf.mxu0
  %4806 = vdwg.mxu0
  %4807 = vmatprep.subr.mxu0 0.0
  %4808 = vmatpush1.msra.mxu0 0.0
  %4809 = vmatprep.subr.mxu0 0.0
  %4810 = vmatpush1.msra.mxu0 0.0
  %4811 = vmatprep.subr.mxu0 0.0
  %4812 = vmatpush1.msra.mxu0 0.0
  %4813 = vmatprep.subr.mxu0 0.0
  %4814 = vmatpush1.msra.mxu0 0.0
  %4815 = vmatprep.subr.mxu0 0.0
  %4816 = vmatpush1.msra.mxu0 0.0
  %4817 = vmatprep.subr.mxu0 0.0
  %4818 = vmatpush1.msra.mxu0 0.0
  %4819 = vmatprep.subr.mxu0 0.0
  %4820 = vmatpush1.msra.mxu0 0.0
  %4821 = vmatprep.subr.mxu0 0.0
  %4822 = vmatpush1.msra.mxu0 0.0
  %4823 = vmatprep.subr.mxu0 0.0
  %4824 = vmatpush1.msra.mxu0 %v4420
  %4825 = vmatprep.subr.mxu0 0.0
  %4826 = vmatpush1.msra.mxu0 %v4415
  %4827 = vmatprep.subr.mxu0 0.0
  %4828 = vmatpush1.msra.mxu0 %v4410
  %4829 = vmatprep.subr.mxu0 0.0
  %4830 = vmatpush1.msra.mxu0 %v4405
  %4831 = vmatprep.subr.mxu0 0.0
  %4832 = vmatpush1.msra.mxu0 %v4400
  %4833 = vmatprep.subr.mxu0 0.0
  %4834 = vmatpush1.msra.mxu0 %v4395
  %4835 = vmatprep.subr.mxu0 0.0
  %4836 = vmatpush1.msra.mxu0 %v4390
  %4837 = vmatprep.subr.mxu0 0.0
  %4838 = vmatpush1.msra.mxu0 %v4385
  %4839 = vmatprep.subr.mxu0 0.0
  %4840 = vmatpush2.msra.mxu0 0.0
  %4841 = vmatprep.subr.mxu0 0.0
  %4842 = vmatpush2.msra.mxu0 0.0
  %4843 = vmatprep.subr.mxu0 0.0
  %4844 = vmatpush2.msra.mxu0 0.0
  %4845 = vmatprep.subr.mxu0 0.0
  %4846 = vmatpush2.msra.mxu0 0.0
  %4847 = vmatprep.subr.mxu0 0.0
  %4848 = vmatpush2.msra.mxu0 0.0
  %4849 = vmatprep.subr.mxu0 0.0
  %4850 = vmatpush2.msra.mxu0 0.0
  %4851 = vmatprep.subr.mxu0 0.0
  %4852 = vmatpush2.msra.mxu0 0.0
  %4853 = vmatprep.subr.mxu0 0.0
  %4854 = vmatpush2.msra.mxu0 0.0
  %4855 = vmatprep.subr.mxu0 0.0
  %4856 = vmatpush2.msra.mxu0 0.0
  %4857 = vmatprep.subr.mxu0 0.0
  %4858 = vmatpush2.msra.mxu0 0.0
  %4859 = vmatprep.subr.mxu0 0.0
  %4860 = vmatpush2.msra.mxu0 0.0
  %4861 = vmatprep.subr.mxu0 0.0
  %4862 = vmatpush2.msra.mxu0 0.0
  %4863 = vmatprep.subr.mxu0 0.0
  %4864 = vmatpush2.msra.mxu0 0.0
  %4865 = vmatprep.subr.mxu0 0.0
  %4866 = vmatpush2.msra.mxu0 0.0
  %4867 = vmatprep.subr.mxu0 0.0
  %4868 = vmatpush2.msra.mxu0 0.0
  %4869 = vmatprep.subr.mxu0 0.0
  %4870 = vmatpush2.msra.mxu0 0.0
  %4871 = vmatprep.mubr.f32.mxu0 0.0
  %4872 = vmatmul.mubr.f32.gmra.mxu0 %v4427
  %v4873 = vpop.f32.mrf.mxu0
  %v4874 = vadd.f32 0.0, %v4873
  %v4875 = vpop.f32.mrf.mxu0
  %4876 = vmatprep.mubr.f32.mxu0 0.0
  %4877 = vmatmul.mubr.f32.gmra.mxu0 %v4430
  %v4878 = vpop.f32.mrf.mxu0
  %v4879 = vadd.f32 0.0, %v4878
  %v4880 = vpop.f32.mrf.mxu0
  %4881 = vdwg.mxu0
  %v4882 = vadd.f32 %v4101, %v4499
  %v4883 = vadd.f32 %v4102, %v4504
  %v4884 = vadd.f32 %v4103, %v4574
  %v4885 = vadd.f32 %v4104, %v4579
  %v4886 = vadd.f32 %v4105, %v4649
  %v4887 = vadd.f32 %v4106, %v4654
  %v4888 = vadd.f32 %v4107, %v4724
  %v4889 = vadd.f32 %v4108, %v4729
  %v4890 = vadd.f32 %v4109, %v4799
  %v4891 = vadd.f32 %v4110, %v4804
  %v4892 = vadd.f32 %v4111, %v4874
  %v4893 = vadd.f32 %v4112, %v4879
  %s4894 = scalar_lea.vmem %s5, 128
  %v4895 = vld [vmem:[%s4894] sm:$0xff]
  %v4896 = vld [vmem:[%s4894 + $0x8] sm:$0xff]
  %v4897 = vld [vmem:[%s4894 + $0x10] sm:$0xff]
  %v4898 = vld [vmem:[%s4894 + $0x18] sm:$0xff]
  %4899 = vmatprep.subr.mxu0 0.0
  %4900 = vmatpush1.msra.mxu0 0.0
  %4901 = vmatprep.subr.mxu0 0.0
  %4902 = vmatpush1.msra.mxu0 0.0
  %4903 = vmatprep.subr.mxu0 0.0
  %4904 = vmatpush1.msra.mxu0 0.0
  %4905 = vmatprep.subr.mxu0 0.0
  %4906 = vmatpush1.msra.mxu0 0.0
  %4907 = vmatprep.subr.mxu0 0.0
  %4908 = vmatpush1.msra.mxu0 0.0
  %4909 = vmatprep.subr.mxu0 0.0
  %4910 = vmatpush1.msra.mxu0 0.0
  %4911 = vmatprep.subr.mxu0 0.0
  %4912 = vmatpush1.msra.mxu0 0.0
  %4913 = vmatprep.subr.mxu0 0.0
  %4914 = vmatpush1.msra.mxu0 0.0
  %4915 = vmatprep.subr.mxu0 0.0
  %4916 = vmatpush1.msra.mxu0 0.0
  %4917 = vmatprep.subr.mxu0 0.0
  %4918 = vmatpush1.msra.mxu0 0.0
  %4919 = vmatprep.subr.mxu0 0.0
  %4920 = vmatpush1.msra.mxu0 0.0
  %4921 = vmatprep.subr.mxu0 0.0
  %4922 = vmatpush1.msra.mxu0 0.0
  %4923 = vmatprep.subr.mxu0 0.0
  %4924 = vmatpush1.msra.mxu0 %v4898
  %4925 = vmatprep.subr.mxu0 0.0
  %4926 = vmatpush1.msra.mxu0 %v4897
  %4927 = vmatprep.subr.mxu0 0.0
  %4928 = vmatpush1.msra.mxu0 %v4896
  %4929 = vmatprep.subr.mxu0 0.0
  %4930 = vmatpush1.msra.mxu0 %v4895
  %4931 = vmatprep.subr.mxu0 0.0
  %4932 = vmatpush2.msra.mxu0 0.0
  %4933 = vmatprep.subr.mxu0 0.0
  %4934 = vmatpush2.msra.mxu0 0.0
  %4935 = vmatprep.subr.mxu0 0.0
  %4936 = vmatpush2.msra.mxu0 0.0
  %4937 = vmatprep.subr.mxu0 0.0
  %4938 = vmatpush2.msra.mxu0 0.0
  %4939 = vmatprep.subr.mxu0 0.0
  %4940 = vmatpush2.msra.mxu0 0.0
  %4941 = vmatprep.subr.mxu0 0.0
  %4942 = vmatpush2.msra.mxu0 0.0
  %4943 = vmatprep.subr.mxu0 0.0
  %4944 = vmatpush2.msra.mxu0 0.0
  %4945 = vmatprep.subr.mxu0 0.0
  %4946 = vmatpush2.msra.mxu0 0.0
  %4947 = vmatprep.subr.mxu0 0.0
  %4948 = vmatpush2.msra.mxu0 0.0
  %4949 = vmatprep.subr.mxu0 0.0
  %4950 = vmatpush2.msra.mxu0 0.0
  %4951 = vmatprep.subr.mxu0 0.0
  %4952 = vmatpush2.msra.mxu0 0.0
  %4953 = vmatprep.subr.mxu0 0.0
  %4954 = vmatpush2.msra.mxu0 0.0
  %4955 = vmatprep.subr.mxu0 0.0
  %4956 = vmatpush2.msra.mxu0 0.0
  %4957 = vmatprep.subr.mxu0 0.0
  %4958 = vmatpush2.msra.mxu0 0.0
  %4959 = vmatprep.subr.mxu0 0.0
  %4960 = vmatpush2.msra.mxu0 0.0
  %4961 = vmatprep.subr.mxu0 0.0
  %4962 = vmatpush2.msra.mxu0 0.0
  %4963 = vmatprep.mubr.f32.mxu0 0.0
  %4964 = vmatmul.mubr.f32.gmra.mxu0 %v1656
  %v4965 = vpop.f32.mrf.mxu0
  %v4966 = vadd.f32 0.0, %v4965
  %v4967 = vpop.f32.mrf.mxu0
  %4968 = vmatprep.mubr.f32.mxu0 0.0
  %4969 = vmatmul.mubr.f32.gmra.mxu0 %v1659
  %v4970 = vpop.f32.mrf.mxu0
  %v4971 = vadd.f32 0.0, %v4970
  %v4972 = vpop.f32.mrf.mxu0
  %4973 = vmatprep.mubr.f32.mxu0 0.0
  %4974 = vmatmul.mubr.f32.gmra.mxu0 %v1662
  %v4975 = vpop.f32.mrf.mxu0
  %v4976 = vadd.f32 0.0, %v4975
  %v4977 = vpop.f32.mrf.mxu0
  %4978 = vmatprep.mubr.f32.mxu0 0.0
  %4979 = vmatmul.mubr.f32.gmra.mxu0 %v1665
  %v4980 = vpop.f32.mrf.mxu0
  %v4981 = vadd.f32 0.0, %v4980
  %v4982 = vpop.f32.mrf.mxu0
  %4983 = vmatprep.mubr.f32.mxu0 0.0
  %4984 = vmatmul.mubr.f32.gmra.mxu0 %v1668
  %v4985 = vpop.f32.mrf.mxu0
  %v4986 = vadd.f32 0.0, %v4985
  %v4987 = vpop.f32.mrf.mxu0
  %4988 = vmatprep.mubr.f32.mxu0 0.0
  %4989 = vmatmul.mubr.f32.gmra.mxu0 %v1671
  %v4990 = vpop.f32.mrf.mxu0
  %v4991 = vadd.f32 0.0, %v4990
  %v4992 = vpop.f32.mrf.mxu0
  %4993 = vmatprep.mubr.f32.mxu0 0.0
  %4994 = vmatmul.mubr.f32.gmra.mxu0 %v1674
  %v4995 = vpop.f32.mrf.mxu0
  %v4996 = vadd.f32 0.0, %v4995
  %v4997 = vpop.f32.mrf.mxu0
  %4998 = vmatprep.mubr.f32.mxu0 0.0
  %4999 = vmatmul.mubr.f32.gmra.mxu0 %v1677
  %v5000 = vpop.f32.mrf.mxu0
  %v5001 = vadd.f32 0.0, %v5000
  %v5002 = vpop.f32.mrf.mxu0
  %5003 = vmatprep.mubr.f32.mxu0 0.0
  %5004 = vmatmul.mubr.f32.gmra.mxu0 %v1680
  %v5005 = vpop.f32.mrf.mxu0
  %v5006 = vadd.f32 0.0, %v5005
  %v5007 = vpop.f32.mrf.mxu0
  %5008 = vmatprep.mubr.f32.mxu0 0.0
  %5009 = vmatmul.mubr.f32.gmra.mxu0 %v1683
  %v5010 = vpop.f32.mrf.mxu0
  %v5011 = vadd.f32 0.0, %v5010
  %v5012 = vpop.f32.mrf.mxu0
  %5013 = vmatprep.mubr.f32.mxu0 0.0
  %5014 = vmatmul.mubr.f32.gmra.mxu0 %v1686
  %v5015 = vpop.f32.mrf.mxu0
  %v5016 = vadd.f32 0.0, %v5015
  %v5017 = vpop.f32.mrf.mxu0
  %5018 = vmatprep.mubr.f32.mxu0 0.0
  %5019 = vmatmul.mubr.f32.gmra.mxu0 %v1689
  %v5020 = vpop.f32.mrf.mxu0
  %v5021 = vadd.f32 0.0, %v5020
  %v5022 = vpop.f32.mrf.mxu0
  %5023 = vmatprep.mubr.f32.mxu0 0.0
  %5024 = vmatmul.mubr.f32.gmra.mxu0 %v1692
  %v5025 = vpop.f32.mrf.mxu0
  %v5026 = vadd.f32 0.0, %v5025
  %v5027 = vpop.f32.mrf.mxu0
  %5028 = vmatprep.mubr.f32.mxu0 0.0
  %5029 = vmatmul.mubr.f32.gmra.mxu0 %v1695
  %v5030 = vpop.f32.mrf.mxu0
  %v5031 = vadd.f32 0.0, %v5030
  %v5032 = vpop.f32.mrf.mxu0
  %5033 = vmatprep.mubr.f32.mxu0 0.0
  %5034 = vmatmul.mubr.f32.gmra.mxu0 %v1698
  %v5035 = vpop.f32.mrf.mxu0
  %v5036 = vadd.f32 0.0, %v5035
  %v5037 = vpop.f32.mrf.mxu0
  %5038 = vmatprep.mubr.f32.mxu0 0.0
  %5039 = vmatmul.mubr.f32.gmra.mxu0 %v1701
  %v5040 = vpop.f32.mrf.mxu0
  %v5041 = vadd.f32 0.0, %v5040
  %v5042 = vpop.f32.mrf.mxu0
  %5043 = vmatprep.mubr.f32.mxu0 0.0
  %5044 = vmatmul.mubr.f32.gmra.mxu0 %v1704
  %v5045 = vpop.f32.mrf.mxu0
  %v5046 = vadd.f32 0.0, %v5045
  %v5047 = vpop.f32.mrf.mxu0
  %5048 = vmatprep.mubr.f32.mxu0 0.0
  %5049 = vmatmul.mubr.f32.gmra.mxu0 %v1707
  %v5050 = vpop.f32.mrf.mxu0
  %v5051 = vadd.f32 0.0, %v5050
  %v5052 = vpop.f32.mrf.mxu0
  %5053 = vmatprep.mubr.f32.mxu0 0.0
  %5054 = vmatmul.mubr.f32.gmra.mxu0 %v1710
  %v5055 = vpop.f32.mrf.mxu0
  %v5056 = vadd.f32 0.0, %v5055
  %v5057 = vpop.f32.mrf.mxu0
  %5058 = vmatprep.mubr.f32.mxu0 0.0
  %5059 = vmatmul.mubr.f32.gmra.mxu0 %v1713
  %v5060 = vpop.f32.mrf.mxu0
  %v5061 = vadd.f32 0.0, %v5060
  %v5062 = vpop.f32.mrf.mxu0
  %5063 = vmatprep.mubr.f32.mxu0 0.0
  %5064 = vmatmul.mubr.f32.gmra.mxu0 %v1716
  %v5065 = vpop.f32.mrf.mxu0
  %v5066 = vadd.f32 0.0, %v5065
  %v5067 = vpop.f32.mrf.mxu0
  %5068 = vmatprep.mubr.f32.mxu0 0.0
  %5069 = vmatmul.mubr.f32.gmra.mxu0 %v1719
  %v5070 = vpop.f32.mrf.mxu0
  %v5071 = vadd.f32 0.0, %v5070
  %v5072 = vpop.f32.mrf.mxu0
  %5073 = vmatprep.mubr.f32.mxu0 0.0
  %5074 = vmatmul.mubr.f32.gmra.mxu0 %v1722
  %v5075 = vpop.f32.mrf.mxu0
  %v5076 = vadd.f32 0.0, %v5075
  %v5077 = vpop.f32.mrf.mxu0
  %5078 = vmatprep.mubr.f32.mxu0 0.0
  %5079 = vmatmul.mubr.f32.gmra.mxu0 %v1725
  %v5080 = vpop.f32.mrf.mxu0
  %v5081 = vadd.f32 0.0, %v5080
  %v5082 = vpop.f32.mrf.mxu0
  %5083 = vmatprep.mubr.f32.mxu0 0.0
  %5084 = vmatmul.mubr.f32.gmra.mxu0 %v1728
  %v5085 = vpop.f32.mrf.mxu0
  %v5086 = vadd.f32 0.0, %v5085
  %v5087 = vpop.f32.mrf.mxu0
  %5088 = vmatprep.mubr.f32.mxu0 0.0
  %5089 = vmatmul.mubr.f32.gmra.mxu0 %v1731
  %v5090 = vpop.f32.mrf.mxu0
  %v5091 = vadd.f32 0.0, %v5090
  %v5092 = vpop.f32.mrf.mxu0
  %5093 = vmatprep.mubr.f32.mxu0 0.0
  %5094 = vmatmul.mubr.f32.gmra.mxu0 %v1734
  %v5095 = vpop.f32.mrf.mxu0
  %v5096 = vadd.f32 0.0, %v5095
  %v5097 = vpop.f32.mrf.mxu0
  %5098 = vmatprep.mubr.f32.mxu0 0.0
  %5099 = vmatmul.mubr.f32.gmra.mxu0 %v1737
  %v5100 = vpop.f32.mrf.mxu0
  %v5101 = vadd.f32 0.0, %v5100
  %v5102 = vpop.f32.mrf.mxu0
  %5103 = vmatprep.mubr.f32.mxu0 0.0
  %5104 = vmatmul.mubr.f32.gmra.mxu0 %v1740
  %v5105 = vpop.f32.mrf.mxu0
  %v5106 = vadd.f32 0.0, %v5105
  %v5107 = vpop.f32.mrf.mxu0
  %5108 = vmatprep.mubr.f32.mxu0 0.0
  %5109 = vmatmul.mubr.f32.gmra.mxu0 %v1743
  %v5110 = vpop.f32.mrf.mxu0
  %v5111 = vadd.f32 0.0, %v5110
  %v5112 = vpop.f32.mrf.mxu0
  %5113 = vmatprep.mubr.f32.mxu0 0.0
  %5114 = vmatmul.mubr.f32.gmra.mxu0 %v1746
  %v5115 = vpop.f32.mrf.mxu0
  %v5116 = vadd.f32 0.0, %v5115
  %v5117 = vpop.f32.mrf.mxu0
  %5118 = vmatprep.mubr.f32.mxu0 0.0
  %5119 = vmatmul.mubr.f32.gmra.mxu0 %v1749
  %v5120 = vpop.f32.mrf.mxu0
  %v5121 = vadd.f32 0.0, %v5120
  %v5122 = vpop.f32.mrf.mxu0
  %5123 = vmatprep.mubr.f32.mxu0 0.0
  %5124 = vmatmul.mubr.f32.gmra.mxu0 %v1752
  %v5125 = vpop.f32.mrf.mxu0
  %v5126 = vadd.f32 0.0, %v5125
  %v5127 = vpop.f32.mrf.mxu0
  %5128 = vmatprep.mubr.f32.mxu0 0.0
  %5129 = vmatmul.mubr.f32.gmra.mxu0 %v1755
  %v5130 = vpop.f32.mrf.mxu0
  %v5131 = vadd.f32 0.0, %v5130
  %v5132 = vpop.f32.mrf.mxu0
  %5133 = vmatprep.mubr.f32.mxu0 0.0
  %5134 = vmatmul.mubr.f32.gmra.mxu0 %v1758
  %v5135 = vpop.f32.mrf.mxu0
  %v5136 = vadd.f32 0.0, %v5135
  %v5137 = vpop.f32.mrf.mxu0
  %5138 = vmatprep.mubr.f32.mxu0 0.0
  %5139 = vmatmul.mubr.f32.gmra.mxu0 %v1761
  %v5140 = vpop.f32.mrf.mxu0
  %v5141 = vadd.f32 0.0, %v5140
  %v5142 = vpop.f32.mrf.mxu0
  %5143 = vmatprep.mubr.f32.mxu0 0.0
  %5144 = vmatmul.mubr.f32.gmra.mxu0 %v1764
  %v5145 = vpop.f32.mrf.mxu0
  %v5146 = vadd.f32 0.0, %v5145
  %v5147 = vpop.f32.mrf.mxu0
  %5148 = vmatprep.mubr.f32.mxu0 0.0
  %5149 = vmatmul.mubr.f32.gmra.mxu0 %v1767
  %v5150 = vpop.f32.mrf.mxu0
  %v5151 = vadd.f32 0.0, %v5150
  %v5152 = vpop.f32.mrf.mxu0
  %5153 = vmatprep.mubr.f32.mxu0 0.0
  %5154 = vmatmul.mubr.f32.gmra.mxu0 %v1770
  %v5155 = vpop.f32.mrf.mxu0
  %v5156 = vadd.f32 0.0, %v5155
  %v5157 = vpop.f32.mrf.mxu0
  %5158 = vmatprep.mubr.f32.mxu0 0.0
  %5159 = vmatmul.mubr.f32.gmra.mxu0 %v1773
  %v5160 = vpop.f32.mrf.mxu0
  %v5161 = vadd.f32 0.0, %v5160
  %v5162 = vpop.f32.mrf.mxu0
  %5163 = vmatprep.mubr.f32.mxu0 0.0
  %5164 = vmatmul.mubr.f32.gmra.mxu0 %v1776
  %v5165 = vpop.f32.mrf.mxu0
  %v5166 = vadd.f32 0.0, %v5165
  %v5167 = vpop.f32.mrf.mxu0
  %5168 = vmatprep.mubr.f32.mxu0 0.0
  %5169 = vmatmul.mubr.f32.gmra.mxu0 %v1779
  %v5170 = vpop.f32.mrf.mxu0
  %v5171 = vadd.f32 0.0, %v5170
  %v5172 = vpop.f32.mrf.mxu0
  %5173 = vmatprep.mubr.f32.mxu0 0.0
  %5174 = vmatmul.mubr.f32.gmra.mxu0 %v1782
  %v5175 = vpop.f32.mrf.mxu0
  %v5176 = vadd.f32 0.0, %v5175
  %v5177 = vpop.f32.mrf.mxu0
  %5178 = vmatprep.mubr.f32.mxu0 0.0
  %5179 = vmatmul.mubr.f32.gmra.mxu0 %v1785
  %v5180 = vpop.f32.mrf.mxu0
  %v5181 = vadd.f32 0.0, %v5180
  %v5182 = vpop.f32.mrf.mxu0
  %5183 = vmatprep.mubr.f32.mxu0 0.0
  %5184 = vmatmul.mubr.f32.gmra.mxu0 %v1788
  %v5185 = vpop.f32.mrf.mxu0
  %v5186 = vadd.f32 0.0, %v5185
  %v5187 = vpop.f32.mrf.mxu0
  %5188 = vmatprep.mubr.f32.mxu0 0.0
  %5189 = vmatmul.mubr.f32.gmra.mxu0 %v1791
  %v5190 = vpop.f32.mrf.mxu0
  %v5191 = vadd.f32 0.0, %v5190
  %v5192 = vpop.f32.mrf.mxu0
  %5193 = vmatprep.mubr.f32.mxu0 0.0
  %5194 = vmatmul.mubr.f32.gmra.mxu0 %v1794
  %v5195 = vpop.f32.mrf.mxu0
  %v5196 = vadd.f32 0.0, %v5195
  %v5197 = vpop.f32.mrf.mxu0
  %5198 = vmatprep.mubr.f32.mxu0 0.0
  %5199 = vmatmul.mubr.f32.gmra.mxu0 %v1797
  %v5200 = vpop.f32.mrf.mxu0
  %v5201 = vadd.f32 0.0, %v5200
  %v5202 = vpop.f32.mrf.mxu0
  %5203 = vdwg.mxu0
  %s5204 = scalar_lea.vmem %s4, 64
  %v5205 = vld [vmem:[%s5204] sm:$0xff]
  %v5206 = vld [vmem:[%s5204 + $0x8] sm:$0xff]
  %v5208 = vsel %vm2419, %v5205, 0
  %v5211 = vsel %vm2419, %v5206, 0
  %5213 = vmatprep.subr.mxu0 0.0
  %5214 = vmatpush1.msra.mxu0 0.0
  %5215 = vmatprep.subr.mxu0 0.0
  %5216 = vmatpush1.msra.mxu0 0.0
  %5217 = vmatprep.subr.mxu0 0.0
  %5218 = vmatpush1.msra.mxu0 0.0
  %5219 = vmatprep.subr.mxu0 0.0
  %5220 = vmatpush1.msra.mxu0 0.0
  %5221 = vmatprep.subr.mxu0 0.0
  %5222 = vmatpush1.msra.mxu0 0.0
  %5223 = vmatprep.subr.mxu0 0.0
  %5224 = vmatpush1.msra.mxu0 0.0
  %5225 = vmatprep.subr.mxu0 0.0
  %5226 = vmatpush1.msra.mxu0 0.0
  %5227 = vmatprep.subr.mxu0 0.0
  %5228 = vmatpush1.msra.mxu0 0.0
  %5229 = vmatprep.subr.mxu0 0.0
  %5230 = vmatpush1.msra.mxu0 %v5001
  %5231 = vmatprep.subr.mxu0 0.0
  %5232 = vmatpush1.msra.mxu0 %v4996
  %5233 = vmatprep.subr.mxu0 0.0
  %5234 = vmatpush1.msra.mxu0 %v4991
  %5235 = vmatprep.subr.mxu0 0.0
  %5236 = vmatpush1.msra.mxu0 %v4986
  %5237 = vmatprep.subr.mxu0 0.0
  %5238 = vmatpush1.msra.mxu0 %v4981
  %5239 = vmatprep.subr.mxu0 0.0
  %5240 = vmatpush1.msra.mxu0 %v4976
  %5241 = vmatprep.subr.mxu0 0.0
  %5242 = vmatpush1.msra.mxu0 %v4971
  %5243 = vmatprep.subr.mxu0 0.0
  %5244 = vmatpush1.msra.mxu0 %v4966
  %5245 = vmatprep.subr.mxu0 0.0
  %5246 = vmatpush2.msra.mxu0 0.0
  %5247 = vmatprep.subr.mxu0 0.0
  %5248 = vmatpush2.msra.mxu0 0.0
  %5249 = vmatprep.subr.mxu0 0.0
  %5250 = vmatpush2.msra.mxu0 0.0
  %5251 = vmatprep.subr.mxu0 0.0
  %5252 = vmatpush2.msra.mxu0 0.0
  %5253 = vmatprep.subr.mxu0 0.0
  %5254 = vmatpush2.msra.mxu0 0.0
  %5255 = vmatprep.subr.mxu0 0.0
  %5256 = vmatpush2.msra.mxu0 0.0
  %5257 = vmatprep.subr.mxu0 0.0
  %5258 = vmatpush2.msra.mxu0 0.0
  %5259 = vmatprep.subr.mxu0 0.0
  %5260 = vmatpush2.msra.mxu0 0.0
  %5261 = vmatprep.subr.mxu0 0.0
  %5262 = vmatpush2.msra.mxu0 0.0
  %5263 = vmatprep.subr.mxu0 0.0
  %5264 = vmatpush2.msra.mxu0 0.0
  %5265 = vmatprep.subr.mxu0 0.0
  %5266 = vmatpush2.msra.mxu0 0.0
  %5267 = vmatprep.subr.mxu0 0.0
  %5268 = vmatpush2.msra.mxu0 0.0
  %5269 = vmatprep.subr.mxu0 0.0
  %5270 = vmatpush2.msra.mxu0 0.0
  %5271 = vmatprep.subr.mxu0 0.0
  %5272 = vmatpush2.msra.mxu0 0.0
  %5273 = vmatprep.subr.mxu0 0.0
  %5274 = vmatpush2.msra.mxu0 0.0
  %5275 = vmatprep.subr.mxu0 0.0
  %5276 = vmatpush2.msra.mxu0 0.0
  %5277 = vmatprep.mubr.f32.mxu0 0.0
  %5278 = vmatmul.mubr.f32.gmra.mxu0 %v5208
  %v5279 = vpop.f32.mrf.mxu0
  %v5280 = vadd.f32 0.0, %v5279
  %v5281 = vpop.f32.mrf.mxu0
  %5282 = vmatprep.mubr.f32.mxu0 0.0
  %5283 = vmatmul.mubr.f32.gmra.mxu0 %v5211
  %v5284 = vpop.f32.mrf.mxu0
  %v5285 = vadd.f32 0.0, %v5284
  %v5286 = vpop.f32.mrf.mxu0
  %5287 = vdwg.mxu0
  %5288 = vmatprep.subr.mxu0 0.0
  %5289 = vmatpush1.msra.mxu0 0.0
  %5290 = vmatprep.subr.mxu0 0.0
  %5291 = vmatpush1.msra.mxu0 0.0
  %5292 = vmatprep.subr.mxu0 0.0
  %5293 = vmatpush1.msra.mxu0 0.0
  %5294 = vmatprep.subr.mxu0 0.0
  %5295 = vmatpush1.msra.mxu0 0.0
  %5296 = vmatprep.subr.mxu0 0.0
  %5297 = vmatpush1.msra.mxu0 0.0
  %5298 = vmatprep.subr.mxu0 0.0
  %5299 = vmatpush1.msra.mxu0 0.0
  %5300 = vmatprep.subr.mxu0 0.0
  %5301 = vmatpush1.msra.mxu0 0.0
  %5302 = vmatprep.subr.mxu0 0.0
  %5303 = vmatpush1.msra.mxu0 0.0
  %5304 = vmatprep.subr.mxu0 0.0
  %5305 = vmatpush1.msra.mxu0 %v5041
  %5306 = vmatprep.subr.mxu0 0.0
  %5307 = vmatpush1.msra.mxu0 %v5036
  %5308 = vmatprep.subr.mxu0 0.0
  %5309 = vmatpush1.msra.mxu0 %v5031
  %5310 = vmatprep.subr.mxu0 0.0
  %5311 = vmatpush1.msra.mxu0 %v5026
  %5312 = vmatprep.subr.mxu0 0.0
  %5313 = vmatpush1.msra.mxu0 %v5021
  %5314 = vmatprep.subr.mxu0 0.0
  %5315 = vmatpush1.msra.mxu0 %v5016
  %5316 = vmatprep.subr.mxu0 0.0
  %5317 = vmatpush1.msra.mxu0 %v5011
  %5318 = vmatprep.subr.mxu0 0.0
  %5319 = vmatpush1.msra.mxu0 %v5006
  %5320 = vmatprep.subr.mxu0 0.0
  %5321 = vmatpush2.msra.mxu0 0.0
  %5322 = vmatprep.subr.mxu0 0.0
  %5323 = vmatpush2.msra.mxu0 0.0
  %5324 = vmatprep.subr.mxu0 0.0
  %5325 = vmatpush2.msra.mxu0 0.0
  %5326 = vmatprep.subr.mxu0 0.0
  %5327 = vmatpush2.msra.mxu0 0.0
  %5328 = vmatprep.subr.mxu0 0.0
  %5329 = vmatpush2.msra.mxu0 0.0
  %5330 = vmatprep.subr.mxu0 0.0
  %5331 = vmatpush2.msra.mxu0 0.0
  %5332 = vmatprep.subr.mxu0 0.0
  %5333 = vmatpush2.msra.mxu0 0.0
  %5334 = vmatprep.subr.mxu0 0.0
  %5335 = vmatpush2.msra.mxu0 0.0
  %5336 = vmatprep.subr.mxu0 0.0
  %5337 = vmatpush2.msra.mxu0 0.0
  %5338 = vmatprep.subr.mxu0 0.0
  %5339 = vmatpush2.msra.mxu0 0.0
  %5340 = vmatprep.subr.mxu0 0.0
  %5341 = vmatpush2.msra.mxu0 0.0
  %5342 = vmatprep.subr.mxu0 0.0
  %5343 = vmatpush2.msra.mxu0 0.0
  %5344 = vmatprep.subr.mxu0 0.0
  %5345 = vmatpush2.msra.mxu0 0.0
  %5346 = vmatprep.subr.mxu0 0.0
  %5347 = vmatpush2.msra.mxu0 0.0
  %5348 = vmatprep.subr.mxu0 0.0
  %5349 = vmatpush2.msra.mxu0 0.0
  %5350 = vmatprep.subr.mxu0 0.0
  %5351 = vmatpush2.msra.mxu0 0.0
  %5352 = vmatprep.mubr.f32.mxu0 0.0
  %5353 = vmatmul.mubr.f32.gmra.mxu0 %v5208
  %v5354 = vpop.f32.mrf.mxu0
  %v5355 = vadd.f32 0.0, %v5354
  %v5356 = vpop.f32.mrf.mxu0
  %5357 = vmatprep.mubr.f32.mxu0 0.0
  %5358 = vmatmul.mubr.f32.gmra.mxu0 %v5211
  %v5359 = vpop.f32.mrf.mxu0
  %v5360 = vadd.f32 0.0, %v5359
  %v5361 = vpop.f32.mrf.mxu0
  %5362 = vdwg.mxu0
  %5363 = vmatprep.subr.mxu0 0.0
  %5364 = vmatpush1.msra.mxu0 0.0
  %5365 = vmatprep.subr.mxu0 0.0
  %5366 = vmatpush1.msra.mxu0 0.0
  %5367 = vmatprep.subr.mxu0 0.0
  %5368 = vmatpush1.msra.mxu0 0.0
  %5369 = vmatprep.subr.mxu0 0.0
  %5370 = vmatpush1.msra.mxu0 0.0
  %5371 = vmatprep.subr.mxu0 0.0
  %5372 = vmatpush1.msra.mxu0 0.0
  %5373 = vmatprep.subr.mxu0 0.0
  %5374 = vmatpush1.msra.mxu0 0.0
  %5375 = vmatprep.subr.mxu0 0.0
  %5376 = vmatpush1.msra.mxu0 0.0
  %5377 = vmatprep.subr.mxu0 0.0
  %5378 = vmatpush1.msra.mxu0 0.0
  %5379 = vmatprep.subr.mxu0 0.0
  %5380 = vmatpush1.msra.mxu0 %v5081
  %5381 = vmatprep.subr.mxu0 0.0
  %5382 = vmatpush1.msra.mxu0 %v5076
  %5383 = vmatprep.subr.mxu0 0.0
  %5384 = vmatpush1.msra.mxu0 %v5071
  %5385 = vmatprep.subr.mxu0 0.0
  %5386 = vmatpush1.msra.mxu0 %v5066
  %5387 = vmatprep.subr.mxu0 0.0
  %5388 = vmatpush1.msra.mxu0 %v5061
  %5389 = vmatprep.subr.mxu0 0.0
  %5390 = vmatpush1.msra.mxu0 %v5056
  %5391 = vmatprep.subr.mxu0 0.0
  %5392 = vmatpush1.msra.mxu0 %v5051
  %5393 = vmatprep.subr.mxu0 0.0
  %5394 = vmatpush1.msra.mxu0 %v5046
  %5395 = vmatprep.subr.mxu0 0.0
  %5396 = vmatpush2.msra.mxu0 0.0
  %5397 = vmatprep.subr.mxu0 0.0
  %5398 = vmatpush2.msra.mxu0 0.0
  %5399 = vmatprep.subr.mxu0 0.0
  %5400 = vmatpush2.msra.mxu0 0.0
  %5401 = vmatprep.subr.mxu0 0.0
  %5402 = vmatpush2.msra.mxu0 0.0
  %5403 = vmatprep.subr.mxu0 0.0
  %5404 = vmatpush2.msra.mxu0 0.0
  %5405 = vmatprep.subr.mxu0 0.0
  %5406 = vmatpush2.msra.mxu0 0.0
  %5407 = vmatprep.subr.mxu0 0.0
  %5408 = vmatpush2.msra.mxu0 0.0
  %5409 = vmatprep.subr.mxu0 0.0
  %5410 = vmatpush2.msra.mxu0 0.0
  %5411 = vmatprep.subr.mxu0 0.0
  %5412 = vmatpush2.msra.mxu0 0.0
  %5413 = vmatprep.subr.mxu0 0.0
  %5414 = vmatpush2.msra.mxu0 0.0
  %5415 = vmatprep.subr.mxu0 0.0
  %5416 = vmatpush2.msra.mxu0 0.0
  %5417 = vmatprep.subr.mxu0 0.0
  %5418 = vmatpush2.msra.mxu0 0.0
  %5419 = vmatprep.subr.mxu0 0.0
  %5420 = vmatpush2.msra.mxu0 0.0
  %5421 = vmatprep.subr.mxu0 0.0
  %5422 = vmatpush2.msra.mxu0 0.0
  %5423 = vmatprep.subr.mxu0 0.0
  %5424 = vmatpush2.msra.mxu0 0.0
  %5425 = vmatprep.subr.mxu0 0.0
  %5426 = vmatpush2.msra.mxu0 0.0
  %5427 = vmatprep.mubr.f32.mxu0 0.0
  %5428 = vmatmul.mubr.f32.gmra.mxu0 %v5208
  %v5429 = vpop.f32.mrf.mxu0
  %v5430 = vadd.f32 0.0, %v5429
  %v5431 = vpop.f32.mrf.mxu0
  %5432 = vmatprep.mubr.f32.mxu0 0.0
  %5433 = vmatmul.mubr.f32.gmra.mxu0 %v5211
  %v5434 = vpop.f32.mrf.mxu0
  %v5435 = vadd.f32 0.0, %v5434
  %v5436 = vpop.f32.mrf.mxu0
  %5437 = vdwg.mxu0
  %5438 = vmatprep.subr.mxu0 0.0
  %5439 = vmatpush1.msra.mxu0 0.0
  %5440 = vmatprep.subr.mxu0 0.0
  %5441 = vmatpush1.msra.mxu0 0.0
  %5442 = vmatprep.subr.mxu0 0.0
  %5443 = vmatpush1.msra.mxu0 0.0
  %5444 = vmatprep.subr.mxu0 0.0
  %5445 = vmatpush1.msra.mxu0 0.0
  %5446 = vmatprep.subr.mxu0 0.0
  %5447 = vmatpush1.msra.mxu0 0.0
  %5448 = vmatprep.subr.mxu0 0.0
  %5449 = vmatpush1.msra.mxu0 0.0
  %5450 = vmatprep.subr.mxu0 0.0
  %5451 = vmatpush1.msra.mxu0 0.0
  %5452 = vmatprep.subr.mxu0 0.0
  %5453 = vmatpush1.msra.mxu0 0.0
  %5454 = vmatprep.subr.mxu0 0.0
  %5455 = vmatpush1.msra.mxu0 %v5121
  %5456 = vmatprep.subr.mxu0 0.0
  %5457 = vmatpush1.msra.mxu0 %v5116
  %5458 = vmatprep.subr.mxu0 0.0
  %5459 = vmatpush1.msra.mxu0 %v5111
  %5460 = vmatprep.subr.mxu0 0.0
  %5461 = vmatpush1.msra.mxu0 %v5106
  %5462 = vmatprep.subr.mxu0 0.0
  %5463 = vmatpush1.msra.mxu0 %v5101
  %5464 = vmatprep.subr.mxu0 0.0
  %5465 = vmatpush1.msra.mxu0 %v5096
  %5466 = vmatprep.subr.mxu0 0.0
  %5467 = vmatpush1.msra.mxu0 %v5091
  %5468 = vmatprep.subr.mxu0 0.0
  %5469 = vmatpush1.msra.mxu0 %v5086
  %5470 = vmatprep.subr.mxu0 0.0
  %5471 = vmatpush2.msra.mxu0 0.0
  %5472 = vmatprep.subr.mxu0 0.0
  %5473 = vmatpush2.msra.mxu0 0.0
  %5474 = vmatprep.subr.mxu0 0.0
  %5475 = vmatpush2.msra.mxu0 0.0
  %5476 = vmatprep.subr.mxu0 0.0
  %5477 = vmatpush2.msra.mxu0 0.0
  %5478 = vmatprep.subr.mxu0 0.0
  %5479 = vmatpush2.msra.mxu0 0.0
  %5480 = vmatprep.subr.mxu0 0.0
  %5481 = vmatpush2.msra.mxu0 0.0
  %5482 = vmatprep.subr.mxu0 0.0
  %5483 = vmatpush2.msra.mxu0 0.0
  %5484 = vmatprep.subr.mxu0 0.0
  %5485 = vmatpush2.msra.mxu0 0.0
  %5486 = vmatprep.subr.mxu0 0.0
  %5487 = vmatpush2.msra.mxu0 0.0
  %5488 = vmatprep.subr.mxu0 0.0
  %5489 = vmatpush2.msra.mxu0 0.0
  %5490 = vmatprep.subr.mxu0 0.0
  %5491 = vmatpush2.msra.mxu0 0.0
  %5492 = vmatprep.subr.mxu0 0.0
  %5493 = vmatpush2.msra.mxu0 0.0
  %5494 = vmatprep.subr.mxu0 0.0
  %5495 = vmatpush2.msra.mxu0 0.0
  %5496 = vmatprep.subr.mxu0 0.0
  %5497 = vmatpush2.msra.mxu0 0.0
  %5498 = vmatprep.subr.mxu0 0.0
  %5499 = vmatpush2.msra.mxu0 0.0
  %5500 = vmatprep.subr.mxu0 0.0
  %5501 = vmatpush2.msra.mxu0 0.0
  %5502 = vmatprep.mubr.f32.mxu0 0.0
  %5503 = vmatmul.mubr.f32.gmra.mxu0 %v5208
  %v5504 = vpop.f32.mrf.mxu0
  %v5505 = vadd.f32 0.0, %v5504
  %v5506 = vpop.f32.mrf.mxu0
  %5507 = vmatprep.mubr.f32.mxu0 0.0
  %5508 = vmatmul.mubr.f32.gmra.mxu0 %v5211
  %v5509 = vpop.f32.mrf.mxu0
  %v5510 = vadd.f32 0.0, %v5509
  %v5511 = vpop.f32.mrf.mxu0
  %5512 = vdwg.mxu0
  %5513 = vmatprep.subr.mxu0 0.0
  %5514 = vmatpush1.msra.mxu0 0.0
  %5515 = vmatprep.subr.mxu0 0.0
  %5516 = vmatpush1.msra.mxu0 0.0
  %5517 = vmatprep.subr.mxu0 0.0
  %5518 = vmatpush1.msra.mxu0 0.0
  %5519 = vmatprep.subr.mxu0 0.0
  %5520 = vmatpush1.msra.mxu0 0.0
  %5521 = vmatprep.subr.mxu0 0.0
  %5522 = vmatpush1.msra.mxu0 0.0
  %5523 = vmatprep.subr.mxu0 0.0
  %5524 = vmatpush1.msra.mxu0 0.0
  %5525 = vmatprep.subr.mxu0 0.0
  %5526 = vmatpush1.msra.mxu0 0.0
  %5527 = vmatprep.subr.mxu0 0.0
  %5528 = vmatpush1.msra.mxu0 0.0
  %5529 = vmatprep.subr.mxu0 0.0
  %5530 = vmatpush1.msra.mxu0 %v5161
  %5531 = vmatprep.subr.mxu0 0.0
  %5532 = vmatpush1.msra.mxu0 %v5156
  %5533 = vmatprep.subr.mxu0 0.0
  %5534 = vmatpush1.msra.mxu0 %v5151
  %5535 = vmatprep.subr.mxu0 0.0
  %5536 = vmatpush1.msra.mxu0 %v5146
  %5537 = vmatprep.subr.mxu0 0.0
  %5538 = vmatpush1.msra.mxu0 %v5141
  %5539 = vmatprep.subr.mxu0 0.0
  %5540 = vmatpush1.msra.mxu0 %v5136
  %5541 = vmatprep.subr.mxu0 0.0
  %5542 = vmatpush1.msra.mxu0 %v5131
  %5543 = vmatprep.subr.mxu0 0.0
  %5544 = vmatpush1.msra.mxu0 %v5126
  %5545 = vmatprep.subr.mxu0 0.0
  %5546 = vmatpush2.msra.mxu0 0.0
  %5547 = vmatprep.subr.mxu0 0.0
  %5548 = vmatpush2.msra.mxu0 0.0
  %5549 = vmatprep.subr.mxu0 0.0
  %5550 = vmatpush2.msra.mxu0 0.0
  %5551 = vmatprep.subr.mxu0 0.0
  %5552 = vmatpush2.msra.mxu0 0.0
  %5553 = vmatprep.subr.mxu0 0.0
  %5554 = vmatpush2.msra.mxu0 0.0
  %5555 = vmatprep.subr.mxu0 0.0
  %5556 = vmatpush2.msra.mxu0 0.0
  %5557 = vmatprep.subr.mxu0 0.0
  %5558 = vmatpush2.msra.mxu0 0.0
  %5559 = vmatprep.subr.mxu0 0.0
  %5560 = vmatpush2.msra.mxu0 0.0
  %5561 = vmatprep.subr.mxu0 0.0
  %5562 = vmatpush2.msra.mxu0 0.0
  %5563 = vmatprep.subr.mxu0 0.0
  %5564 = vmatpush2.msra.mxu0 0.0
  %5565 = vmatprep.subr.mxu0 0.0
  %5566 = vmatpush2.msra.mxu0 0.0
  %5567 = vmatprep.subr.mxu0 0.0
  %5568 = vmatpush2.msra.mxu0 0.0
  %5569 = vmatprep.subr.mxu0 0.0
  %5570 = vmatpush2.msra.mxu0 0.0
  %5571 = vmatprep.subr.mxu0 0.0
  %5572 = vmatpush2.msra.mxu0 0.0
  %5573 = vmatprep.subr.mxu0 0.0
  %5574 = vmatpush2.msra.mxu0 0.0
  %5575 = vmatprep.subr.mxu0 0.0
  %5576 = vmatpush2.msra.mxu0 0.0
  %5577 = vmatprep.mubr.f32.mxu0 0.0
  %5578 = vmatmul.mubr.f32.gmra.mxu0 %v5208
  %v5579 = vpop.f32.mrf.mxu0
  %v5580 = vadd.f32 0.0, %v5579
  %v5581 = vpop.f32.mrf.mxu0
  %5582 = vmatprep.mubr.f32.mxu0 0.0
  %5583 = vmatmul.mubr.f32.gmra.mxu0 %v5211
  %v5584 = vpop.f32.mrf.mxu0
  %v5585 = vadd.f32 0.0, %v5584
  %v5586 = vpop.f32.mrf.mxu0
  %5587 = vdwg.mxu0
  %5588 = vmatprep.subr.mxu0 0.0
  %5589 = vmatpush1.msra.mxu0 0.0
  %5590 = vmatprep.subr.mxu0 0.0
  %5591 = vmatpush1.msra.mxu0 0.0
  %5592 = vmatprep.subr.mxu0 0.0
  %5593 = vmatpush1.msra.mxu0 0.0
  %5594 = vmatprep.subr.mxu0 0.0
  %5595 = vmatpush1.msra.mxu0 0.0
  %5596 = vmatprep.subr.mxu0 0.0
  %5597 = vmatpush1.msra.mxu0 0.0
  %5598 = vmatprep.subr.mxu0 0.0
  %5599 = vmatpush1.msra.mxu0 0.0
  %5600 = vmatprep.subr.mxu0 0.0
  %5601 = vmatpush1.msra.mxu0 0.0
  %5602 = vmatprep.subr.mxu0 0.0
  %5603 = vmatpush1.msra.mxu0 0.0
  %5604 = vmatprep.subr.mxu0 0.0
  %5605 = vmatpush1.msra.mxu0 %v5201
  %5606 = vmatprep.subr.mxu0 0.0
  %5607 = vmatpush1.msra.mxu0 %v5196
  %5608 = vmatprep.subr.mxu0 0.0
  %5609 = vmatpush1.msra.mxu0 %v5191
  %5610 = vmatprep.subr.mxu0 0.0
  %5611 = vmatpush1.msra.mxu0 %v5186
  %5612 = vmatprep.subr.mxu0 0.0
  %5613 = vmatpush1.msra.mxu0 %v5181
  %5614 = vmatprep.subr.mxu0 0.0
  %5615 = vmatpush1.msra.mxu0 %v5176
  %5616 = vmatprep.subr.mxu0 0.0
  %5617 = vmatpush1.msra.mxu0 %v5171
  %5618 = vmatprep.subr.mxu0 0.0
  %5619 = vmatpush1.msra.mxu0 %v5166
  %5620 = vmatprep.subr.mxu0 0.0
  %5621 = vmatpush2.msra.mxu0 0.0
  %5622 = vmatprep.subr.mxu0 0.0
  %5623 = vmatpush2.msra.mxu0 0.0
  %5624 = vmatprep.subr.mxu0 0.0
  %5625 = vmatpush2.msra.mxu0 0.0
  %5626 = vmatprep.subr.mxu0 0.0
  %5627 = vmatpush2.msra.mxu0 0.0
  %5628 = vmatprep.subr.mxu0 0.0
  %5629 = vmatpush2.msra.mxu0 0.0
  %5630 = vmatprep.subr.mxu0 0.0
  %5631 = vmatpush2.msra.mxu0 0.0
  %5632 = vmatprep.subr.mxu0 0.0
  %5633 = vmatpush2.msra.mxu0 0.0
  %5634 = vmatprep.subr.mxu0 0.0
  %5635 = vmatpush2.msra.mxu0 0.0
  %5636 = vmatprep.subr.mxu0 0.0
  %5637 = vmatpush2.msra.mxu0 0.0
  %5638 = vmatprep.subr.mxu0 0.0
  %5639 = vmatpush2.msra.mxu0 0.0
  %5640 = vmatprep.subr.mxu0 0.0
  %5641 = vmatpush2.msra.mxu0 0.0
  %5642 = vmatprep.subr.mxu0 0.0
  %5643 = vmatpush2.msra.mxu0 0.0
  %5644 = vmatprep.subr.mxu0 0.0
  %5645 = vmatpush2.msra.mxu0 0.0
  %5646 = vmatprep.subr.mxu0 0.0
  %5647 = vmatpush2.msra.mxu0 0.0
  %5648 = vmatprep.subr.mxu0 0.0
  %5649 = vmatpush2.msra.mxu0 0.0
  %5650 = vmatprep.subr.mxu0 0.0
  %5651 = vmatpush2.msra.mxu0 0.0
  %5652 = vmatprep.mubr.f32.mxu0 0.0
  %5653 = vmatmul.mubr.f32.gmra.mxu0 %v5208
  %v5654 = vpop.f32.mrf.mxu0
  %v5655 = vadd.f32 0.0, %v5654
  %v5656 = vpop.f32.mrf.mxu0
  %5657 = vmatprep.mubr.f32.mxu0 0.0
  %5658 = vmatmul.mubr.f32.gmra.mxu0 %v5211
  %v5659 = vpop.f32.mrf.mxu0
  %v5660 = vadd.f32 0.0, %v5659
  %v5661 = vpop.f32.mrf.mxu0
  %5662 = vdwg.mxu0
  %v5663 = vadd.f32 %v4882, %v5280
  %v5664 = vadd.f32 %v4883, %v5285
  %v5665 = vadd.f32 %v4884, %v5355
  %v5666 = vadd.f32 %v4885, %v5360
  %v5667 = vadd.f32 %v4886, %v5430
  %v5668 = vadd.f32 %v4887, %v5435
  %v5669 = vadd.f32 %v4888, %v5505
  %v5670 = vadd.f32 %v4889, %v5510
  %v5671 = vadd.f32 %v4890, %v5580
  %v5672 = vadd.f32 %v4891, %v5585
  %v5673 = vadd.f32 %v4892, %v5655
  %v5674 = vadd.f32 %v4893, %v5660
  %s5675 = scalar_lea.vmem %s5, 160
  %v5676 = vld [vmem:[%s5675] sm:$0xff]
  %v5677 = vld [vmem:[%s5675 + $0x8] sm:$0xff]
  %v5678 = vld [vmem:[%s5675 + $0x10] sm:$0xff]
  %v5679 = vld [vmem:[%s5675 + $0x18] sm:$0xff]
  %5680 = vmatprep.subr.mxu0 0.0
  %5681 = vmatpush1.msra.mxu0 0.0
  %5682 = vmatprep.subr.mxu0 0.0
  %5683 = vmatpush1.msra.mxu0 0.0
  %5684 = vmatprep.subr.mxu0 0.0
  %5685 = vmatpush1.msra.mxu0 0.0
  %5686 = vmatprep.subr.mxu0 0.0
  %5687 = vmatpush1.msra.mxu0 0.0
  %5688 = vmatprep.subr.mxu0 0.0
  %5689 = vmatpush1.msra.mxu0 0.0
  %5690 = vmatprep.subr.mxu0 0.0
  %5691 = vmatpush1.msra.mxu0 0.0
  %5692 = vmatprep.subr.mxu0 0.0
  %5693 = vmatpush1.msra.mxu0 0.0
  %5694 = vmatprep.subr.mxu0 0.0
  %5695 = vmatpush1.msra.mxu0 0.0
  %5696 = vmatprep.subr.mxu0 0.0
  %5697 = vmatpush1.msra.mxu0 0.0
  %5698 = vmatprep.subr.mxu0 0.0
  %5699 = vmatpush1.msra.mxu0 0.0
  %5700 = vmatprep.subr.mxu0 0.0
  %5701 = vmatpush1.msra.mxu0 0.0
  %5702 = vmatprep.subr.mxu0 0.0
  %5703 = vmatpush1.msra.mxu0 0.0
  %5704 = vmatprep.subr.mxu0 0.0
  %5705 = vmatpush1.msra.mxu0 %v5679
  %5706 = vmatprep.subr.mxu0 0.0
  %5707 = vmatpush1.msra.mxu0 %v5678
  %5708 = vmatprep.subr.mxu0 0.0
  %5709 = vmatpush1.msra.mxu0 %v5677
  %5710 = vmatprep.subr.mxu0 0.0
  %5711 = vmatpush1.msra.mxu0 %v5676
  %5712 = vmatprep.subr.mxu0 0.0
  %5713 = vmatpush2.msra.mxu0 0.0
  %5714 = vmatprep.subr.mxu0 0.0
  %5715 = vmatpush2.msra.mxu0 0.0
  %5716 = vmatprep.subr.mxu0 0.0
  %5717 = vmatpush2.msra.mxu0 0.0
  %5718 = vmatprep.subr.mxu0 0.0
  %5719 = vmatpush2.msra.mxu0 0.0
  %5720 = vmatprep.subr.mxu0 0.0
  %5721 = vmatpush2.msra.mxu0 0.0
  %5722 = vmatprep.subr.mxu0 0.0
  %5723 = vmatpush2.msra.mxu0 0.0
  %5724 = vmatprep.subr.mxu0 0.0
  %5725 = vmatpush2.msra.mxu0 0.0
  %5726 = vmatprep.subr.mxu0 0.0
  %5727 = vmatpush2.msra.mxu0 0.0
  %5728 = vmatprep.subr.mxu0 0.0
  %5729 = vmatpush2.msra.mxu0 0.0
  %5730 = vmatprep.subr.mxu0 0.0
  %5731 = vmatpush2.msra.mxu0 0.0
  %5732 = vmatprep.subr.mxu0 0.0
  %5733 = vmatpush2.msra.mxu0 0.0
  %5734 = vmatprep.subr.mxu0 0.0
  %5735 = vmatpush2.msra.mxu0 0.0
  %5736 = vmatprep.subr.mxu0 0.0
  %5737 = vmatpush2.msra.mxu0 0.0
  %5738 = vmatprep.subr.mxu0 0.0
  %5739 = vmatpush2.msra.mxu0 0.0
  %5740 = vmatprep.subr.mxu0 0.0
  %5741 = vmatpush2.msra.mxu0 0.0
  %5742 = vmatprep.subr.mxu0 0.0
  %5743 = vmatpush2.msra.mxu0 0.0
  %5744 = vmatprep.mubr.f32.mxu0 0.0
  %5745 = vmatmul.mubr.f32.gmra.mxu0 %v1656
  %v5746 = vpop.f32.mrf.mxu0
  %v5747 = vadd.f32 0.0, %v5746
  %v5748 = vpop.f32.mrf.mxu0
  %5749 = vmatprep.mubr.f32.mxu0 0.0
  %5750 = vmatmul.mubr.f32.gmra.mxu0 %v1659
  %v5751 = vpop.f32.mrf.mxu0
  %v5752 = vadd.f32 0.0, %v5751
  %v5753 = vpop.f32.mrf.mxu0
  %5754 = vmatprep.mubr.f32.mxu0 0.0
  %5755 = vmatmul.mubr.f32.gmra.mxu0 %v1662
  %v5756 = vpop.f32.mrf.mxu0
  %v5757 = vadd.f32 0.0, %v5756
  %v5758 = vpop.f32.mrf.mxu0
  %5759 = vmatprep.mubr.f32.mxu0 0.0
  %5760 = vmatmul.mubr.f32.gmra.mxu0 %v1665
  %v5761 = vpop.f32.mrf.mxu0
  %v5762 = vadd.f32 0.0, %v5761
  %v5763 = vpop.f32.mrf.mxu0
  %5764 = vmatprep.mubr.f32.mxu0 0.0
  %5765 = vmatmul.mubr.f32.gmra.mxu0 %v1668
  %v5766 = vpop.f32.mrf.mxu0
  %v5767 = vadd.f32 0.0, %v5766
  %v5768 = vpop.f32.mrf.mxu0
  %5769 = vmatprep.mubr.f32.mxu0 0.0
  %5770 = vmatmul.mubr.f32.gmra.mxu0 %v1671
  %v5771 = vpop.f32.mrf.mxu0
  %v5772 = vadd.f32 0.0, %v5771
  %v5773 = vpop.f32.mrf.mxu0
  %5774 = vmatprep.mubr.f32.mxu0 0.0
  %5775 = vmatmul.mubr.f32.gmra.mxu0 %v1674
  %v5776 = vpop.f32.mrf.mxu0
  %v5777 = vadd.f32 0.0, %v5776
  %v5778 = vpop.f32.mrf.mxu0
  %5779 = vmatprep.mubr.f32.mxu0 0.0
  %5780 = vmatmul.mubr.f32.gmra.mxu0 %v1677
  %v5781 = vpop.f32.mrf.mxu0
  %v5782 = vadd.f32 0.0, %v5781
  %v5783 = vpop.f32.mrf.mxu0
  %5784 = vmatprep.mubr.f32.mxu0 0.0
  %5785 = vmatmul.mubr.f32.gmra.mxu0 %v1680
  %v5786 = vpop.f32.mrf.mxu0
  %v5787 = vadd.f32 0.0, %v5786
  %v5788 = vpop.f32.mrf.mxu0
  %5789 = vmatprep.mubr.f32.mxu0 0.0
  %5790 = vmatmul.mubr.f32.gmra.mxu0 %v1683
  %v5791 = vpop.f32.mrf.mxu0
  %v5792 = vadd.f32 0.0, %v5791
  %v5793 = vpop.f32.mrf.mxu0
  %5794 = vmatprep.mubr.f32.mxu0 0.0
  %5795 = vmatmul.mubr.f32.gmra.mxu0 %v1686
  %v5796 = vpop.f32.mrf.mxu0
  %v5797 = vadd.f32 0.0, %v5796
  %v5798 = vpop.f32.mrf.mxu0
  %5799 = vmatprep.mubr.f32.mxu0 0.0
  %5800 = vmatmul.mubr.f32.gmra.mxu0 %v1689
  %v5801 = vpop.f32.mrf.mxu0
  %v5802 = vadd.f32 0.0, %v5801
  %v5803 = vpop.f32.mrf.mxu0
  %5804 = vmatprep.mubr.f32.mxu0 0.0
  %5805 = vmatmul.mubr.f32.gmra.mxu0 %v1692
  %v5806 = vpop.f32.mrf.mxu0
  %v5807 = vadd.f32 0.0, %v5806
  %v5808 = vpop.f32.mrf.mxu0
  %5809 = vmatprep.mubr.f32.mxu0 0.0
  %5810 = vmatmul.mubr.f32.gmra.mxu0 %v1695
  %v5811 = vpop.f32.mrf.mxu0
  %v5812 = vadd.f32 0.0, %v5811
  %v5813 = vpop.f32.mrf.mxu0
  %5814 = vmatprep.mubr.f32.mxu0 0.0
  %5815 = vmatmul.mubr.f32.gmra.mxu0 %v1698
  %v5816 = vpop.f32.mrf.mxu0
  %v5817 = vadd.f32 0.0, %v5816
  %v5818 = vpop.f32.mrf.mxu0
  %5819 = vmatprep.mubr.f32.mxu0 0.0
  %5820 = vmatmul.mubr.f32.gmra.mxu0 %v1701
  %v5821 = vpop.f32.mrf.mxu0
  %v5822 = vadd.f32 0.0, %v5821
  %v5823 = vpop.f32.mrf.mxu0
  %5824 = vmatprep.mubr.f32.mxu0 0.0
  %5825 = vmatmul.mubr.f32.gmra.mxu0 %v1704
  %v5826 = vpop.f32.mrf.mxu0
  %v5827 = vadd.f32 0.0, %v5826
  %v5828 = vpop.f32.mrf.mxu0
  %5829 = vmatprep.mubr.f32.mxu0 0.0
  %5830 = vmatmul.mubr.f32.gmra.mxu0 %v1707
  %v5831 = vpop.f32.mrf.mxu0
  %v5832 = vadd.f32 0.0, %v5831
  %v5833 = vpop.f32.mrf.mxu0
  %5834 = vmatprep.mubr.f32.mxu0 0.0
  %5835 = vmatmul.mubr.f32.gmra.mxu0 %v1710
  %v5836 = vpop.f32.mrf.mxu0
  %v5837 = vadd.f32 0.0, %v5836
  %v5838 = vpop.f32.mrf.mxu0
  %5839 = vmatprep.mubr.f32.mxu0 0.0
  %5840 = vmatmul.mubr.f32.gmra.mxu0 %v1713
  %v5841 = vpop.f32.mrf.mxu0
  %v5842 = vadd.f32 0.0, %v5841
  %v5843 = vpop.f32.mrf.mxu0
  %5844 = vmatprep.mubr.f32.mxu0 0.0
  %5845 = vmatmul.mubr.f32.gmra.mxu0 %v1716
  %v5846 = vpop.f32.mrf.mxu0
  %v5847 = vadd.f32 0.0, %v5846
  %v5848 = vpop.f32.mrf.mxu0
  %5849 = vmatprep.mubr.f32.mxu0 0.0
  %5850 = vmatmul.mubr.f32.gmra.mxu0 %v1719
  %v5851 = vpop.f32.mrf.mxu0
  %v5852 = vadd.f32 0.0, %v5851
  %v5853 = vpop.f32.mrf.mxu0
  %5854 = vmatprep.mubr.f32.mxu0 0.0
  %5855 = vmatmul.mubr.f32.gmra.mxu0 %v1722
  %v5856 = vpop.f32.mrf.mxu0
  %v5857 = vadd.f32 0.0, %v5856
  %v5858 = vpop.f32.mrf.mxu0
  %5859 = vmatprep.mubr.f32.mxu0 0.0
  %5860 = vmatmul.mubr.f32.gmra.mxu0 %v1725
  %v5861 = vpop.f32.mrf.mxu0
  %v5862 = vadd.f32 0.0, %v5861
  %v5863 = vpop.f32.mrf.mxu0
  %5864 = vmatprep.mubr.f32.mxu0 0.0
  %5865 = vmatmul.mubr.f32.gmra.mxu0 %v1728
  %v5866 = vpop.f32.mrf.mxu0
  %v5867 = vadd.f32 0.0, %v5866
  %v5868 = vpop.f32.mrf.mxu0
  %5869 = vmatprep.mubr.f32.mxu0 0.0
  %5870 = vmatmul.mubr.f32.gmra.mxu0 %v1731
  %v5871 = vpop.f32.mrf.mxu0
  %v5872 = vadd.f32 0.0, %v5871
  %v5873 = vpop.f32.mrf.mxu0
  %5874 = vmatprep.mubr.f32.mxu0 0.0
  %5875 = vmatmul.mubr.f32.gmra.mxu0 %v1734
  %v5876 = vpop.f32.mrf.mxu0
  %v5877 = vadd.f32 0.0, %v5876
  %v5878 = vpop.f32.mrf.mxu0
  %5879 = vmatprep.mubr.f32.mxu0 0.0
  %5880 = vmatmul.mubr.f32.gmra.mxu0 %v1737
  %v5881 = vpop.f32.mrf.mxu0
  %v5882 = vadd.f32 0.0, %v5881
  %v5883 = vpop.f32.mrf.mxu0
  %5884 = vmatprep.mubr.f32.mxu0 0.0
  %5885 = vmatmul.mubr.f32.gmra.mxu0 %v1740
  %v5886 = vpop.f32.mrf.mxu0
  %v5887 = vadd.f32 0.0, %v5886
  %v5888 = vpop.f32.mrf.mxu0
  %5889 = vmatprep.mubr.f32.mxu0 0.0
  %5890 = vmatmul.mubr.f32.gmra.mxu0 %v1743
  %v5891 = vpop.f32.mrf.mxu0
  %v5892 = vadd.f32 0.0, %v5891
  %v5893 = vpop.f32.mrf.mxu0
  %5894 = vmatprep.mubr.f32.mxu0 0.0
  %5895 = vmatmul.mubr.f32.gmra.mxu0 %v1746
  %v5896 = vpop.f32.mrf.mxu0
  %v5897 = vadd.f32 0.0, %v5896
  %v5898 = vpop.f32.mrf.mxu0
  %5899 = vmatprep.mubr.f32.mxu0 0.0
  %5900 = vmatmul.mubr.f32.gmra.mxu0 %v1749
  %v5901 = vpop.f32.mrf.mxu0
  %v5902 = vadd.f32 0.0, %v5901
  %v5903 = vpop.f32.mrf.mxu0
  %5904 = vmatprep.mubr.f32.mxu0 0.0
  %5905 = vmatmul.mubr.f32.gmra.mxu0 %v1752
  %v5906 = vpop.f32.mrf.mxu0
  %v5907 = vadd.f32 0.0, %v5906
  %v5908 = vpop.f32.mrf.mxu0
  %5909 = vmatprep.mubr.f32.mxu0 0.0
  %5910 = vmatmul.mubr.f32.gmra.mxu0 %v1755
  %v5911 = vpop.f32.mrf.mxu0
  %v5912 = vadd.f32 0.0, %v5911
  %v5913 = vpop.f32.mrf.mxu0
  %5914 = vmatprep.mubr.f32.mxu0 0.0
  %5915 = vmatmul.mubr.f32.gmra.mxu0 %v1758
  %v5916 = vpop.f32.mrf.mxu0
  %v5917 = vadd.f32 0.0, %v5916
  %v5918 = vpop.f32.mrf.mxu0
  %5919 = vmatprep.mubr.f32.mxu0 0.0
  %5920 = vmatmul.mubr.f32.gmra.mxu0 %v1761
  %v5921 = vpop.f32.mrf.mxu0
  %v5922 = vadd.f32 0.0, %v5921
  %v5923 = vpop.f32.mrf.mxu0
  %5924 = vmatprep.mubr.f32.mxu0 0.0
  %5925 = vmatmul.mubr.f32.gmra.mxu0 %v1764
  %v5926 = vpop.f32.mrf.mxu0
  %v5927 = vadd.f32 0.0, %v5926
  %v5928 = vpop.f32.mrf.mxu0
  %5929 = vmatprep.mubr.f32.mxu0 0.0
  %5930 = vmatmul.mubr.f32.gmra.mxu0 %v1767
  %v5931 = vpop.f32.mrf.mxu0
  %v5932 = vadd.f32 0.0, %v5931
  %v5933 = vpop.f32.mrf.mxu0
  %5934 = vmatprep.mubr.f32.mxu0 0.0
  %5935 = vmatmul.mubr.f32.gmra.mxu0 %v1770
  %v5936 = vpop.f32.mrf.mxu0
  %v5937 = vadd.f32 0.0, %v5936
  %v5938 = vpop.f32.mrf.mxu0
  %5939 = vmatprep.mubr.f32.mxu0 0.0
  %5940 = vmatmul.mubr.f32.gmra.mxu0 %v1773
  %v5941 = vpop.f32.mrf.mxu0
  %v5942 = vadd.f32 0.0, %v5941
  %v5943 = vpop.f32.mrf.mxu0
  %5944 = vmatprep.mubr.f32.mxu0 0.0
  %5945 = vmatmul.mubr.f32.gmra.mxu0 %v1776
  %v5946 = vpop.f32.mrf.mxu0
  %v5947 = vadd.f32 0.0, %v5946
  %v5948 = vpop.f32.mrf.mxu0
  %5949 = vmatprep.mubr.f32.mxu0 0.0
  %5950 = vmatmul.mubr.f32.gmra.mxu0 %v1779
  %v5951 = vpop.f32.mrf.mxu0
  %v5952 = vadd.f32 0.0, %v5951
  %v5953 = vpop.f32.mrf.mxu0
  %5954 = vmatprep.mubr.f32.mxu0 0.0
  %5955 = vmatmul.mubr.f32.gmra.mxu0 %v1782
  %v5956 = vpop.f32.mrf.mxu0
  %v5957 = vadd.f32 0.0, %v5956
  %v5958 = vpop.f32.mrf.mxu0
  %5959 = vmatprep.mubr.f32.mxu0 0.0
  %5960 = vmatmul.mubr.f32.gmra.mxu0 %v1785
  %v5961 = vpop.f32.mrf.mxu0
  %v5962 = vadd.f32 0.0, %v5961
  %v5963 = vpop.f32.mrf.mxu0
  %5964 = vmatprep.mubr.f32.mxu0 0.0
  %5965 = vmatmul.mubr.f32.gmra.mxu0 %v1788
  %v5966 = vpop.f32.mrf.mxu0
  %v5967 = vadd.f32 0.0, %v5966
  %v5968 = vpop.f32.mrf.mxu0
  %5969 = vmatprep.mubr.f32.mxu0 0.0
  %5970 = vmatmul.mubr.f32.gmra.mxu0 %v1791
  %v5971 = vpop.f32.mrf.mxu0
  %v5972 = vadd.f32 0.0, %v5971
  %v5973 = vpop.f32.mrf.mxu0
  %5974 = vmatprep.mubr.f32.mxu0 0.0
  %5975 = vmatmul.mubr.f32.gmra.mxu0 %v1794
  %v5976 = vpop.f32.mrf.mxu0
  %v5977 = vadd.f32 0.0, %v5976
  %v5978 = vpop.f32.mrf.mxu0
  %5979 = vmatprep.mubr.f32.mxu0 0.0
  %5980 = vmatmul.mubr.f32.gmra.mxu0 %v1797
  %v5981 = vpop.f32.mrf.mxu0
  %v5982 = vadd.f32 0.0, %v5981
  %v5983 = vpop.f32.mrf.mxu0
  %5984 = vdwg.mxu0
  %s5985 = scalar_lea.vmem %s4, 80
  %v5986 = vld [vmem:[%s5985] sm:$0xff]
  %v5987 = vld [vmem:[%s5985 + $0x8] sm:$0xff]
  %v5989 = vsel %vm2419, %v5986, 0
  %v5992 = vsel %vm2419, %v5987, 0
  %5994 = vmatprep.subr.mxu0 0.0
  %5995 = vmatpush1.msra.mxu0 0.0
  %5996 = vmatprep.subr.mxu0 0.0
  %5997 = vmatpush1.msra.mxu0 0.0
  %5998 = vmatprep.subr.mxu0 0.0
  %5999 = vmatpush1.msra.mxu0 0.0
  %6000 = vmatprep.subr.mxu0 0.0
  %6001 = vmatpush1.msra.mxu0 0.0
  %6002 = vmatprep.subr.mxu0 0.0
  %6003 = vmatpush1.msra.mxu0 0.0
  %6004 = vmatprep.subr.mxu0 0.0
  %6005 = vmatpush1.msra.mxu0 0.0
  %6006 = vmatprep.subr.mxu0 0.0
  %6007 = vmatpush1.msra.mxu0 0.0
  %6008 = vmatprep.subr.mxu0 0.0
  %6009 = vmatpush1.msra.mxu0 0.0
  %6010 = vmatprep.subr.mxu0 0.0
  %6011 = vmatpush1.msra.mxu0 %v5782
  %6012 = vmatprep.subr.mxu0 0.0
  %6013 = vmatpush1.msra.mxu0 %v5777
  %6014 = vmatprep.subr.mxu0 0.0
  %6015 = vmatpush1.msra.mxu0 %v5772
  %6016 = vmatprep.subr.mxu0 0.0
  %6017 = vmatpush1.msra.mxu0 %v5767
  %6018 = vmatprep.subr.mxu0 0.0
  %6019 = vmatpush1.msra.mxu0 %v5762
  %6020 = vmatprep.subr.mxu0 0.0
  %6021 = vmatpush1.msra.mxu0 %v5757
  %6022 = vmatprep.subr.mxu0 0.0
  %6023 = vmatpush1.msra.mxu0 %v5752
  %6024 = vmatprep.subr.mxu0 0.0
  %6025 = vmatpush1.msra.mxu0 %v5747
  %6026 = vmatprep.subr.mxu0 0.0
  %6027 = vmatpush2.msra.mxu0 0.0
  %6028 = vmatprep.subr.mxu0 0.0
  %6029 = vmatpush2.msra.mxu0 0.0
  %6030 = vmatprep.subr.mxu0 0.0
  %6031 = vmatpush2.msra.mxu0 0.0
  %6032 = vmatprep.subr.mxu0 0.0
  %6033 = vmatpush2.msra.mxu0 0.0
  %6034 = vmatprep.subr.mxu0 0.0
  %6035 = vmatpush2.msra.mxu0 0.0
  %6036 = vmatprep.subr.mxu0 0.0
  %6037 = vmatpush2.msra.mxu0 0.0
  %6038 = vmatprep.subr.mxu0 0.0
  %6039 = vmatpush2.msra.mxu0 0.0
  %6040 = vmatprep.subr.mxu0 0.0
  %6041 = vmatpush2.msra.mxu0 0.0
  %6042 = vmatprep.subr.mxu0 0.0
  %6043 = vmatpush2.msra.mxu0 0.0
  %6044 = vmatprep.subr.mxu0 0.0
  %6045 = vmatpush2.msra.mxu0 0.0
  %6046 = vmatprep.subr.mxu0 0.0
  %6047 = vmatpush2.msra.mxu0 0.0
  %6048 = vmatprep.subr.mxu0 0.0
  %6049 = vmatpush2.msra.mxu0 0.0
  %6050 = vmatprep.subr.mxu0 0.0
  %6051 = vmatpush2.msra.mxu0 0.0
  %6052 = vmatprep.subr.mxu0 0.0
  %6053 = vmatpush2.msra.mxu0 0.0
  %6054 = vmatprep.subr.mxu0 0.0
  %6055 = vmatpush2.msra.mxu0 0.0
  %6056 = vmatprep.subr.mxu0 0.0
  %6057 = vmatpush2.msra.mxu0 0.0
  %6058 = vmatprep.mubr.f32.mxu0 0.0
  %6059 = vmatmul.mubr.f32.gmra.mxu0 %v5989
  %v6060 = vpop.f32.mrf.mxu0
  %v6061 = vadd.f32 0.0, %v6060
  %v6062 = vpop.f32.mrf.mxu0
  %6063 = vmatprep.mubr.f32.mxu0 0.0
  %6064 = vmatmul.mubr.f32.gmra.mxu0 %v5992
  %v6065 = vpop.f32.mrf.mxu0
  %v6066 = vadd.f32 0.0, %v6065
  %v6067 = vpop.f32.mrf.mxu0
  %6068 = vdwg.mxu0
  %6069 = vmatprep.subr.mxu0 0.0
  %6070 = vmatpush1.msra.mxu0 0.0
  %6071 = vmatprep.subr.mxu0 0.0
  %6072 = vmatpush1.msra.mxu0 0.0
  %6073 = vmatprep.subr.mxu0 0.0
  %6074 = vmatpush1.msra.mxu0 0.0
  %6075 = vmatprep.subr.mxu0 0.0
  %6076 = vmatpush1.msra.mxu0 0.0
  %6077 = vmatprep.subr.mxu0 0.0
  %6078 = vmatpush1.msra.mxu0 0.0
  %6079 = vmatprep.subr.mxu0 0.0
  %6080 = vmatpush1.msra.mxu0 0.0
  %6081 = vmatprep.subr.mxu0 0.0
  %6082 = vmatpush1.msra.mxu0 0.0
  %6083 = vmatprep.subr.mxu0 0.0
  %6084 = vmatpush1.msra.mxu0 0.0
  %6085 = vmatprep.subr.mxu0 0.0
  %6086 = vmatpush1.msra.mxu0 %v5822
  %6087 = vmatprep.subr.mxu0 0.0
  %6088 = vmatpush1.msra.mxu0 %v5817
  %6089 = vmatprep.subr.mxu0 0.0
  %6090 = vmatpush1.msra.mxu0 %v5812
  %6091 = vmatprep.subr.mxu0 0.0
  %6092 = vmatpush1.msra.mxu0 %v5807
  %6093 = vmatprep.subr.mxu0 0.0
  %6094 = vmatpush1.msra.mxu0 %v5802
  %6095 = vmatprep.subr.mxu0 0.0
  %6096 = vmatpush1.msra.mxu0 %v5797
  %6097 = vmatprep.subr.mxu0 0.0
  %6098 = vmatpush1.msra.mxu0 %v5792
  %6099 = vmatprep.subr.mxu0 0.0
  %6100 = vmatpush1.msra.mxu0 %v5787
  %6101 = vmatprep.subr.mxu0 0.0
  %6102 = vmatpush2.msra.mxu0 0.0
  %6103 = vmatprep.subr.mxu0 0.0
  %6104 = vmatpush2.msra.mxu0 0.0
  %6105 = vmatprep.subr.mxu0 0.0
  %6106 = vmatpush2.msra.mxu0 0.0
  %6107 = vmatprep.subr.mxu0 0.0
  %6108 = vmatpush2.msra.mxu0 0.0
  %6109 = vmatprep.subr.mxu0 0.0
  %6110 = vmatpush2.msra.mxu0 0.0
  %6111 = vmatprep.subr.mxu0 0.0
  %6112 = vmatpush2.msra.mxu0 0.0
  %6113 = vmatprep.subr.mxu0 0.0
  %6114 = vmatpush2.msra.mxu0 0.0
  %6115 = vmatprep.subr.mxu0 0.0
  %6116 = vmatpush2.msra.mxu0 0.0
  %6117 = vmatprep.subr.mxu0 0.0
  %6118 = vmatpush2.msra.mxu0 0.0
  %6119 = vmatprep.subr.mxu0 0.0
  %6120 = vmatpush2.msra.mxu0 0.0
  %6121 = vmatprep.subr.mxu0 0.0
  %6122 = vmatpush2.msra.mxu0 0.0
  %6123 = vmatprep.subr.mxu0 0.0
  %6124 = vmatpush2.msra.mxu0 0.0
  %6125 = vmatprep.subr.mxu0 0.0
  %6126 = vmatpush2.msra.mxu0 0.0
  %6127 = vmatprep.subr.mxu0 0.0
  %6128 = vmatpush2.msra.mxu0 0.0
  %6129 = vmatprep.subr.mxu0 0.0
  %6130 = vmatpush2.msra.mxu0 0.0
  %6131 = vmatprep.subr.mxu0 0.0
  %6132 = vmatpush2.msra.mxu0 0.0
  %6133 = vmatprep.mubr.f32.mxu0 0.0
  %6134 = vmatmul.mubr.f32.gmra.mxu0 %v5989
  %v6135 = vpop.f32.mrf.mxu0
  %v6136 = vadd.f32 0.0, %v6135
  %v6137 = vpop.f32.mrf.mxu0
  %6138 = vmatprep.mubr.f32.mxu0 0.0
  %6139 = vmatmul.mubr.f32.gmra.mxu0 %v5992
  %v6140 = vpop.f32.mrf.mxu0
  %v6141 = vadd.f32 0.0, %v6140
  %v6142 = vpop.f32.mrf.mxu0
  %6143 = vdwg.mxu0
  %6144 = vmatprep.subr.mxu0 0.0
  %6145 = vmatpush1.msra.mxu0 0.0
  %6146 = vmatprep.subr.mxu0 0.0
  %6147 = vmatpush1.msra.mxu0 0.0
  %6148 = vmatprep.subr.mxu0 0.0
  %6149 = vmatpush1.msra.mxu0 0.0
  %6150 = vmatprep.subr.mxu0 0.0
  %6151 = vmatpush1.msra.mxu0 0.0
  %6152 = vmatprep.subr.mxu0 0.0
  %6153 = vmatpush1.msra.mxu0 0.0
  %6154 = vmatprep.subr.mxu0 0.0
  %6155 = vmatpush1.msra.mxu0 0.0
  %6156 = vmatprep.subr.mxu0 0.0
  %6157 = vmatpush1.msra.mxu0 0.0
  %6158 = vmatprep.subr.mxu0 0.0
  %6159 = vmatpush1.msra.mxu0 0.0
  %6160 = vmatprep.subr.mxu0 0.0
  %6161 = vmatpush1.msra.mxu0 %v5862
  %6162 = vmatprep.subr.mxu0 0.0
  %6163 = vmatpush1.msra.mxu0 %v5857
  %6164 = vmatprep.subr.mxu0 0.0
  %6165 = vmatpush1.msra.mxu0 %v5852
  %6166 = vmatprep.subr.mxu0 0.0
  %6167 = vmatpush1.msra.mxu0 %v5847
  %6168 = vmatprep.subr.mxu0 0.0
  %6169 = vmatpush1.msra.mxu0 %v5842
  %6170 = vmatprep.subr.mxu0 0.0
  %6171 = vmatpush1.msra.mxu0 %v5837
  %6172 = vmatprep.subr.mxu0 0.0
  %6173 = vmatpush1.msra.mxu0 %v5832
  %6174 = vmatprep.subr.mxu0 0.0
  %6175 = vmatpush1.msra.mxu0 %v5827
  %6176 = vmatprep.subr.mxu0 0.0
  %6177 = vmatpush2.msra.mxu0 0.0
  %6178 = vmatprep.subr.mxu0 0.0
  %6179 = vmatpush2.msra.mxu0 0.0
  %6180 = vmatprep.subr.mxu0 0.0
  %6181 = vmatpush2.msra.mxu0 0.0
  %6182 = vmatprep.subr.mxu0 0.0
  %6183 = vmatpush2.msra.mxu0 0.0
  %6184 = vmatprep.subr.mxu0 0.0
  %6185 = vmatpush2.msra.mxu0 0.0
  %6186 = vmatprep.subr.mxu0 0.0
  %6187 = vmatpush2.msra.mxu0 0.0
  %6188 = vmatprep.subr.mxu0 0.0
  %6189 = vmatpush2.msra.mxu0 0.0
  %6190 = vmatprep.subr.mxu0 0.0
  %6191 = vmatpush2.msra.mxu0 0.0
  %6192 = vmatprep.subr.mxu0 0.0
  %6193 = vmatpush2.msra.mxu0 0.0
  %6194 = vmatprep.subr.mxu0 0.0
  %6195 = vmatpush2.msra.mxu0 0.0
  %6196 = vmatprep.subr.mxu0 0.0
  %6197 = vmatpush2.msra.mxu0 0.0
  %6198 = vmatprep.subr.mxu0 0.0
  %6199 = vmatpush2.msra.mxu0 0.0
  %6200 = vmatprep.subr.mxu0 0.0
  %6201 = vmatpush2.msra.mxu0 0.0
  %6202 = vmatprep.subr.mxu0 0.0
  %6203 = vmatpush2.msra.mxu0 0.0
  %6204 = vmatprep.subr.mxu0 0.0
  %6205 = vmatpush2.msra.mxu0 0.0
  %6206 = vmatprep.subr.mxu0 0.0
  %6207 = vmatpush2.msra.mxu0 0.0
  %6208 = vmatprep.mubr.f32.mxu0 0.0
  %6209 = vmatmul.mubr.f32.gmra.mxu0 %v5989
  %v6210 = vpop.f32.mrf.mxu0
  %v6211 = vadd.f32 0.0, %v6210
  %v6212 = vpop.f32.mrf.mxu0
  %6213 = vmatprep.mubr.f32.mxu0 0.0
  %6214 = vmatmul.mubr.f32.gmra.mxu0 %v5992
  %v6215 = vpop.f32.mrf.mxu0
  %v6216 = vadd.f32 0.0, %v6215
  %v6217 = vpop.f32.mrf.mxu0
  %6218 = vdwg.mxu0
  %6219 = vmatprep.subr.mxu0 0.0
  %6220 = vmatpush1.msra.mxu0 0.0
  %6221 = vmatprep.subr.mxu0 0.0
  %6222 = vmatpush1.msra.mxu0 0.0
  %6223 = vmatprep.subr.mxu0 0.0
  %6224 = vmatpush1.msra.mxu0 0.0
  %6225 = vmatprep.subr.mxu0 0.0
  %6226 = vmatpush1.msra.mxu0 0.0
  %6227 = vmatprep.subr.mxu0 0.0
  %6228 = vmatpush1.msra.mxu0 0.0
  %6229 = vmatprep.subr.mxu0 0.0
  %6230 = vmatpush1.msra.mxu0 0.0
  %6231 = vmatprep.subr.mxu0 0.0
  %6232 = vmatpush1.msra.mxu0 0.0
  %6233 = vmatprep.subr.mxu0 0.0
  %6234 = vmatpush1.msra.mxu0 0.0
  %6235 = vmatprep.subr.mxu0 0.0
  %6236 = vmatpush1.msra.mxu0 %v5902
  %6237 = vmatprep.subr.mxu0 0.0
  %6238 = vmatpush1.msra.mxu0 %v5897
  %6239 = vmatprep.subr.mxu0 0.0
  %6240 = vmatpush1.msra.mxu0 %v5892
  %6241 = vmatprep.subr.mxu0 0.0
  %6242 = vmatpush1.msra.mxu0 %v5887
  %6243 = vmatprep.subr.mxu0 0.0
  %6244 = vmatpush1.msra.mxu0 %v5882
  %6245 = vmatprep.subr.mxu0 0.0
  %6246 = vmatpush1.msra.mxu0 %v5877
  %6247 = vmatprep.subr.mxu0 0.0
  %6248 = vmatpush1.msra.mxu0 %v5872
  %6249 = vmatprep.subr.mxu0 0.0
  %6250 = vmatpush1.msra.mxu0 %v5867
  %6251 = vmatprep.subr.mxu0 0.0
  %6252 = vmatpush2.msra.mxu0 0.0
  %6253 = vmatprep.subr.mxu0 0.0
  %6254 = vmatpush2.msra.mxu0 0.0
  %6255 = vmatprep.subr.mxu0 0.0
  %6256 = vmatpush2.msra.mxu0 0.0
  %6257 = vmatprep.subr.mxu0 0.0
  %6258 = vmatpush2.msra.mxu0 0.0
  %6259 = vmatprep.subr.mxu0 0.0
  %6260 = vmatpush2.msra.mxu0 0.0
  %6261 = vmatprep.subr.mxu0 0.0
  %6262 = vmatpush2.msra.mxu0 0.0
  %6263 = vmatprep.subr.mxu0 0.0
  %6264 = vmatpush2.msra.mxu0 0.0
  %6265 = vmatprep.subr.mxu0 0.0
  %6266 = vmatpush2.msra.mxu0 0.0
  %6267 = vmatprep.subr.mxu0 0.0
  %6268 = vmatpush2.msra.mxu0 0.0
  %6269 = vmatprep.subr.mxu0 0.0
  %6270 = vmatpush2.msra.mxu0 0.0
  %6271 = vmatprep.subr.mxu0 0.0
  %6272 = vmatpush2.msra.mxu0 0.0
  %6273 = vmatprep.subr.mxu0 0.0
  %6274 = vmatpush2.msra.mxu0 0.0
  %6275 = vmatprep.subr.mxu0 0.0
  %6276 = vmatpush2.msra.mxu0 0.0
  %6277 = vmatprep.subr.mxu0 0.0
  %6278 = vmatpush2.msra.mxu0 0.0
  %6279 = vmatprep.subr.mxu0 0.0
  %6280 = vmatpush2.msra.mxu0 0.0
  %6281 = vmatprep.subr.mxu0 0.0
  %6282 = vmatpush2.msra.mxu0 0.0
  %6283 = vmatprep.mubr.f32.mxu0 0.0
  %6284 = vmatmul.mubr.f32.gmra.mxu0 %v5989
  %v6285 = vpop.f32.mrf.mxu0
  %v6286 = vadd.f32 0.0, %v6285
  %v6287 = vpop.f32.mrf.mxu0
  %6288 = vmatprep.mubr.f32.mxu0 0.0
  %6289 = vmatmul.mubr.f32.gmra.mxu0 %v5992
  %v6290 = vpop.f32.mrf.mxu0
  %v6291 = vadd.f32 0.0, %v6290
  %v6292 = vpop.f32.mrf.mxu0
  %6293 = vdwg.mxu0
  %6294 = vmatprep.subr.mxu0 0.0
  %6295 = vmatpush1.msra.mxu0 0.0
  %6296 = vmatprep.subr.mxu0 0.0
  %6297 = vmatpush1.msra.mxu0 0.0
  %6298 = vmatprep.subr.mxu0 0.0
  %6299 = vmatpush1.msra.mxu0 0.0
  %6300 = vmatprep.subr.mxu0 0.0
  %6301 = vmatpush1.msra.mxu0 0.0
  %6302 = vmatprep.subr.mxu0 0.0
  %6303 = vmatpush1.msra.mxu0 0.0
  %6304 = vmatprep.subr.mxu0 0.0
  %6305 = vmatpush1.msra.mxu0 0.0
  %6306 = vmatprep.subr.mxu0 0.0
  %6307 = vmatpush1.msra.mxu0 0.0
  %6308 = vmatprep.subr.mxu0 0.0
  %6309 = vmatpush1.msra.mxu0 0.0
  %6310 = vmatprep.subr.mxu0 0.0
  %6311 = vmatpush1.msra.mxu0 %v5942
  %6312 = vmatprep.subr.mxu0 0.0
  %6313 = vmatpush1.msra.mxu0 %v5937
  %6314 = vmatprep.subr.mxu0 0.0
  %6315 = vmatpush1.msra.mxu0 %v5932
  %6316 = vmatprep.subr.mxu0 0.0
  %6317 = vmatpush1.msra.mxu0 %v5927
  %6318 = vmatprep.subr.mxu0 0.0
  %6319 = vmatpush1.msra.mxu0 %v5922
  %6320 = vmatprep.subr.mxu0 0.0
  %6321 = vmatpush1.msra.mxu0 %v5917
  %6322 = vmatprep.subr.mxu0 0.0
  %6323 = vmatpush1.msra.mxu0 %v5912
  %6324 = vmatprep.subr.mxu0 0.0
  %6325 = vmatpush1.msra.mxu0 %v5907
  %6326 = vmatprep.subr.mxu0 0.0
  %6327 = vmatpush2.msra.mxu0 0.0
  %6328 = vmatprep.subr.mxu0 0.0
  %6329 = vmatpush2.msra.mxu0 0.0
  %6330 = vmatprep.subr.mxu0 0.0
  %6331 = vmatpush2.msra.mxu0 0.0
  %6332 = vmatprep.subr.mxu0 0.0
  %6333 = vmatpush2.msra.mxu0 0.0
  %6334 = vmatprep.subr.mxu0 0.0
  %6335 = vmatpush2.msra.mxu0 0.0
  %6336 = vmatprep.subr.mxu0 0.0
  %6337 = vmatpush2.msra.mxu0 0.0
  %6338 = vmatprep.subr.mxu0 0.0
  %6339 = vmatpush2.msra.mxu0 0.0
  %6340 = vmatprep.subr.mxu0 0.0
  %6341 = vmatpush2.msra.mxu0 0.0
  %6342 = vmatprep.subr.mxu0 0.0
  %6343 = vmatpush2.msra.mxu0 0.0
  %6344 = vmatprep.subr.mxu0 0.0
  %6345 = vmatpush2.msra.mxu0 0.0
  %6346 = vmatprep.subr.mxu0 0.0
  %6347 = vmatpush2.msra.mxu0 0.0
  %6348 = vmatprep.subr.mxu0 0.0
  %6349 = vmatpush2.msra.mxu0 0.0
  %6350 = vmatprep.subr.mxu0 0.0
  %6351 = vmatpush2.msra.mxu0 0.0
  %6352 = vmatprep.subr.mxu0 0.0
  %6353 = vmatpush2.msra.mxu0 0.0
  %6354 = vmatprep.subr.mxu0 0.0
  %6355 = vmatpush2.msra.mxu0 0.0
  %6356 = vmatprep.subr.mxu0 0.0
  %6357 = vmatpush2.msra.mxu0 0.0
  %6358 = vmatprep.mubr.f32.mxu0 0.0
  %6359 = vmatmul.mubr.f32.gmra.mxu0 %v5989
  %v6360 = vpop.f32.mrf.mxu0
  %v6361 = vadd.f32 0.0, %v6360
  %v6362 = vpop.f32.mrf.mxu0
  %6363 = vmatprep.mubr.f32.mxu0 0.0
  %6364 = vmatmul.mubr.f32.gmra.mxu0 %v5992
  %v6365 = vpop.f32.mrf.mxu0
  %v6366 = vadd.f32 0.0, %v6365
  %v6367 = vpop.f32.mrf.mxu0
  %6368 = vdwg.mxu0
  %6369 = vmatprep.subr.mxu0 0.0
  %6370 = vmatpush1.msra.mxu0 0.0
  %6371 = vmatprep.subr.mxu0 0.0
  %6372 = vmatpush1.msra.mxu0 0.0
  %6373 = vmatprep.subr.mxu0 0.0
  %6374 = vmatpush1.msra.mxu0 0.0
  %6375 = vmatprep.subr.mxu0 0.0
  %6376 = vmatpush1.msra.mxu0 0.0
  %6377 = vmatprep.subr.mxu0 0.0
  %6378 = vmatpush1.msra.mxu0 0.0
  %6379 = vmatprep.subr.mxu0 0.0
  %6380 = vmatpush1.msra.mxu0 0.0
  %6381 = vmatprep.subr.mxu0 0.0
  %6382 = vmatpush1.msra.mxu0 0.0
  %6383 = vmatprep.subr.mxu0 0.0
  %6384 = vmatpush1.msra.mxu0 0.0
  %6385 = vmatprep.subr.mxu0 0.0
  %6386 = vmatpush1.msra.mxu0 %v5982
  %6387 = vmatprep.subr.mxu0 0.0
  %6388 = vmatpush1.msra.mxu0 %v5977
  %6389 = vmatprep.subr.mxu0 0.0
  %6390 = vmatpush1.msra.mxu0 %v5972
  %6391 = vmatprep.subr.mxu0 0.0
  %6392 = vmatpush1.msra.mxu0 %v5967
  %6393 = vmatprep.subr.mxu0 0.0
  %6394 = vmatpush1.msra.mxu0 %v5962
  %6395 = vmatprep.subr.mxu0 0.0
  %6396 = vmatpush1.msra.mxu0 %v5957
  %6397 = vmatprep.subr.mxu0 0.0
  %6398 = vmatpush1.msra.mxu0 %v5952
  %6399 = vmatprep.subr.mxu0 0.0
  %6400 = vmatpush1.msra.mxu0 %v5947
  %6401 = vmatprep.subr.mxu0 0.0
  %6402 = vmatpush2.msra.mxu0 0.0
  %6403 = vmatprep.subr.mxu0 0.0
  %6404 = vmatpush2.msra.mxu0 0.0
  %6405 = vmatprep.subr.mxu0 0.0
  %6406 = vmatpush2.msra.mxu0 0.0
  %6407 = vmatprep.subr.mxu0 0.0
  %6408 = vmatpush2.msra.mxu0 0.0
  %6409 = vmatprep.subr.mxu0 0.0
  %6410 = vmatpush2.msra.mxu0 0.0
  %6411 = vmatprep.subr.mxu0 0.0
  %6412 = vmatpush2.msra.mxu0 0.0
  %6413 = vmatprep.subr.mxu0 0.0
  %6414 = vmatpush2.msra.mxu0 0.0
  %6415 = vmatprep.subr.mxu0 0.0
  %6416 = vmatpush2.msra.mxu0 0.0
  %6417 = vmatprep.subr.mxu0 0.0
  %6418 = vmatpush2.msra.mxu0 0.0
  %6419 = vmatprep.subr.mxu0 0.0
  %6420 = vmatpush2.msra.mxu0 0.0
  %6421 = vmatprep.subr.mxu0 0.0
  %6422 = vmatpush2.msra.mxu0 0.0
  %6423 = vmatprep.subr.mxu0 0.0
  %6424 = vmatpush2.msra.mxu0 0.0
  %6425 = vmatprep.subr.mxu0 0.0
  %6426 = vmatpush2.msra.mxu0 0.0
  %6427 = vmatprep.subr.mxu0 0.0
  %6428 = vmatpush2.msra.mxu0 0.0
  %6429 = vmatprep.subr.mxu0 0.0
  %6430 = vmatpush2.msra.mxu0 0.0
  %6431 = vmatprep.subr.mxu0 0.0
  %6432 = vmatpush2.msra.mxu0 0.0
  %6433 = vmatprep.mubr.f32.mxu0 0.0
  %6434 = vmatmul.mubr.f32.gmra.mxu0 %v5989
  %v6435 = vpop.f32.mrf.mxu0
  %v6436 = vadd.f32 0.0, %v6435
  %v6437 = vpop.f32.mrf.mxu0
  %6438 = vmatprep.mubr.f32.mxu0 0.0
  %6439 = vmatmul.mubr.f32.gmra.mxu0 %v5992
  %v6440 = vpop.f32.mrf.mxu0
  %v6441 = vadd.f32 0.0, %v6440
  %v6442 = vpop.f32.mrf.mxu0
  %6443 = vdwg.mxu0
  %v6444 = vadd.f32 %v5663, %v6061
  %v6445 = vadd.f32 %v5664, %v6066
  %v6446 = vadd.f32 %v5665, %v6136
  %v6447 = vadd.f32 %v5666, %v6141
  %v6448 = vadd.f32 %v5667, %v6211
  %v6449 = vadd.f32 %v5668, %v6216
  %v6450 = vadd.f32 %v5669, %v6286
  %v6451 = vadd.f32 %v5670, %v6291
  %v6452 = vadd.f32 %v5671, %v6361
  %v6453 = vadd.f32 %v5672, %v6366
  %v6454 = vadd.f32 %v5673, %v6436
  %v6455 = vadd.f32 %v5674, %v6441
  %s6456 = scalar_lea.vmem %s5, 192
  %v6457 = vld [vmem:[%s6456] sm:$0xff]
  %v6458 = vld [vmem:[%s6456 + $0x8] sm:$0xff]
  %v6459 = vld [vmem:[%s6456 + $0x10] sm:$0xff]
  %v6460 = vld [vmem:[%s6456 + $0x18] sm:$0xff]
  %6461 = vmatprep.subr.mxu0 0.0
  %6462 = vmatpush1.msra.mxu0 0.0
  %6463 = vmatprep.subr.mxu0 0.0
  %6464 = vmatpush1.msra.mxu0 0.0
  %6465 = vmatprep.subr.mxu0 0.0
  %6466 = vmatpush1.msra.mxu0 0.0
  %6467 = vmatprep.subr.mxu0 0.0
  %6468 = vmatpush1.msra.mxu0 0.0
  %6469 = vmatprep.subr.mxu0 0.0
  %6470 = vmatpush1.msra.mxu0 0.0
  %6471 = vmatprep.subr.mxu0 0.0
  %6472 = vmatpush1.msra.mxu0 0.0
  %6473 = vmatprep.subr.mxu0 0.0
  %6474 = vmatpush1.msra.mxu0 0.0
  %6475 = vmatprep.subr.mxu0 0.0
  %6476 = vmatpush1.msra.mxu0 0.0
  %6477 = vmatprep.subr.mxu0 0.0
  %6478 = vmatpush1.msra.mxu0 0.0
  %6479 = vmatprep.subr.mxu0 0.0
  %6480 = vmatpush1.msra.mxu0 0.0
  %6481 = vmatprep.subr.mxu0 0.0
  %6482 = vmatpush1.msra.mxu0 0.0
  %6483 = vmatprep.subr.mxu0 0.0
  %6484 = vmatpush1.msra.mxu0 0.0
  %6485 = vmatprep.subr.mxu0 0.0
  %6486 = vmatpush1.msra.mxu0 %v6460
  %6487 = vmatprep.subr.mxu0 0.0
  %6488 = vmatpush1.msra.mxu0 %v6459
  %6489 = vmatprep.subr.mxu0 0.0
  %6490 = vmatpush1.msra.mxu0 %v6458
  %6491 = vmatprep.subr.mxu0 0.0
  %6492 = vmatpush1.msra.mxu0 %v6457
  %6493 = vmatprep.subr.mxu0 0.0
  %6494 = vmatpush2.msra.mxu0 0.0
  %6495 = vmatprep.subr.mxu0 0.0
  %6496 = vmatpush2.msra.mxu0 0.0
  %6497 = vmatprep.subr.mxu0 0.0
  %6498 = vmatpush2.msra.mxu0 0.0
  %6499 = vmatprep.subr.mxu0 0.0
  %6500 = vmatpush2.msra.mxu0 0.0
  %6501 = vmatprep.subr.mxu0 0.0
  %6502 = vmatpush2.msra.mxu0 0.0
  %6503 = vmatprep.subr.mxu0 0.0
  %6504 = vmatpush2.msra.mxu0 0.0
  %6505 = vmatprep.subr.mxu0 0.0
  %6506 = vmatpush2.msra.mxu0 0.0
  %6507 = vmatprep.subr.mxu0 0.0
  %6508 = vmatpush2.msra.mxu0 0.0
  %6509 = vmatprep.subr.mxu0 0.0
  %6510 = vmatpush2.msra.mxu0 0.0
  %6511 = vmatprep.subr.mxu0 0.0
  %6512 = vmatpush2.msra.mxu0 0.0
  %6513 = vmatprep.subr.mxu0 0.0
  %6514 = vmatpush2.msra.mxu0 0.0
  %6515 = vmatprep.subr.mxu0 0.0
  %6516 = vmatpush2.msra.mxu0 0.0
  %6517 = vmatprep.subr.mxu0 0.0
  %6518 = vmatpush2.msra.mxu0 0.0
  %6519 = vmatprep.subr.mxu0 0.0
  %6520 = vmatpush2.msra.mxu0 0.0
  %6521 = vmatprep.subr.mxu0 0.0
  %6522 = vmatpush2.msra.mxu0 0.0
  %6523 = vmatprep.subr.mxu0 0.0
  %6524 = vmatpush2.msra.mxu0 0.0
  %6525 = vmatprep.mubr.f32.mxu0 0.0
  %6526 = vmatmul.mubr.f32.gmra.mxu0 %v1656
  %v6527 = vpop.f32.mrf.mxu0
  %v6528 = vadd.f32 0.0, %v6527
  %v6529 = vpop.f32.mrf.mxu0
  %6530 = vmatprep.mubr.f32.mxu0 0.0
  %6531 = vmatmul.mubr.f32.gmra.mxu0 %v1659
  %v6532 = vpop.f32.mrf.mxu0
  %v6533 = vadd.f32 0.0, %v6532
  %v6534 = vpop.f32.mrf.mxu0
  %6535 = vmatprep.mubr.f32.mxu0 0.0
  %6536 = vmatmul.mubr.f32.gmra.mxu0 %v1662
  %v6537 = vpop.f32.mrf.mxu0
  %v6538 = vadd.f32 0.0, %v6537
  %v6539 = vpop.f32.mrf.mxu0
  %6540 = vmatprep.mubr.f32.mxu0 0.0
  %6541 = vmatmul.mubr.f32.gmra.mxu0 %v1665
  %v6542 = vpop.f32.mrf.mxu0
  %v6543 = vadd.f32 0.0, %v6542
  %v6544 = vpop.f32.mrf.mxu0
  %6545 = vmatprep.mubr.f32.mxu0 0.0
  %6546 = vmatmul.mubr.f32.gmra.mxu0 %v1668
  %v6547 = vpop.f32.mrf.mxu0
  %v6548 = vadd.f32 0.0, %v6547
  %v6549 = vpop.f32.mrf.mxu0
  %6550 = vmatprep.mubr.f32.mxu0 0.0
  %6551 = vmatmul.mubr.f32.gmra.mxu0 %v1671
  %v6552 = vpop.f32.mrf.mxu0
  %v6553 = vadd.f32 0.0, %v6552
  %v6554 = vpop.f32.mrf.mxu0
  %6555 = vmatprep.mubr.f32.mxu0 0.0
  %6556 = vmatmul.mubr.f32.gmra.mxu0 %v1674
  %v6557 = vpop.f32.mrf.mxu0
  %v6558 = vadd.f32 0.0, %v6557
  %v6559 = vpop.f32.mrf.mxu0
  %6560 = vmatprep.mubr.f32.mxu0 0.0
  %6561 = vmatmul.mubr.f32.gmra.mxu0 %v1677
  %v6562 = vpop.f32.mrf.mxu0
  %v6563 = vadd.f32 0.0, %v6562
  %v6564 = vpop.f32.mrf.mxu0
  %6565 = vmatprep.mubr.f32.mxu0 0.0
  %6566 = vmatmul.mubr.f32.gmra.mxu0 %v1680
  %v6567 = vpop.f32.mrf.mxu0
  %v6568 = vadd.f32 0.0, %v6567
  %v6569 = vpop.f32.mrf.mxu0
  %6570 = vmatprep.mubr.f32.mxu0 0.0
  %6571 = vmatmul.mubr.f32.gmra.mxu0 %v1683
  %v6572 = vpop.f32.mrf.mxu0
  %v6573 = vadd.f32 0.0, %v6572
  %v6574 = vpop.f32.mrf.mxu0
  %6575 = vmatprep.mubr.f32.mxu0 0.0
  %6576 = vmatmul.mubr.f32.gmra.mxu0 %v1686
  %v6577 = vpop.f32.mrf.mxu0
  %v6578 = vadd.f32 0.0, %v6577
  %v6579 = vpop.f32.mrf.mxu0
  %6580 = vmatprep.mubr.f32.mxu0 0.0
  %6581 = vmatmul.mubr.f32.gmra.mxu0 %v1689
  %v6582 = vpop.f32.mrf.mxu0
  %v6583 = vadd.f32 0.0, %v6582
  %v6584 = vpop.f32.mrf.mxu0
  %6585 = vmatprep.mubr.f32.mxu0 0.0
  %6586 = vmatmul.mubr.f32.gmra.mxu0 %v1692
  %v6587 = vpop.f32.mrf.mxu0
  %v6588 = vadd.f32 0.0, %v6587
  %v6589 = vpop.f32.mrf.mxu0
  %6590 = vmatprep.mubr.f32.mxu0 0.0
  %6591 = vmatmul.mubr.f32.gmra.mxu0 %v1695
  %v6592 = vpop.f32.mrf.mxu0
  %v6593 = vadd.f32 0.0, %v6592
  %v6594 = vpop.f32.mrf.mxu0
  %6595 = vmatprep.mubr.f32.mxu0 0.0
  %6596 = vmatmul.mubr.f32.gmra.mxu0 %v1698
  %v6597 = vpop.f32.mrf.mxu0
  %v6598 = vadd.f32 0.0, %v6597
  %v6599 = vpop.f32.mrf.mxu0
  %6600 = vmatprep.mubr.f32.mxu0 0.0
  %6601 = vmatmul.mubr.f32.gmra.mxu0 %v1701
  %v6602 = vpop.f32.mrf.mxu0
  %v6603 = vadd.f32 0.0, %v6602
  %v6604 = vpop.f32.mrf.mxu0
  %6605 = vmatprep.mubr.f32.mxu0 0.0
  %6606 = vmatmul.mubr.f32.gmra.mxu0 %v1704
  %v6607 = vpop.f32.mrf.mxu0
  %v6608 = vadd.f32 0.0, %v6607
  %v6609 = vpop.f32.mrf.mxu0
  %6610 = vmatprep.mubr.f32.mxu0 0.0
  %6611 = vmatmul.mubr.f32.gmra.mxu0 %v1707
  %v6612 = vpop.f32.mrf.mxu0
  %v6613 = vadd.f32 0.0, %v6612
  %v6614 = vpop.f32.mrf.mxu0
  %6615 = vmatprep.mubr.f32.mxu0 0.0
  %6616 = vmatmul.mubr.f32.gmra.mxu0 %v1710
  %v6617 = vpop.f32.mrf.mxu0
  %v6618 = vadd.f32 0.0, %v6617
  %v6619 = vpop.f32.mrf.mxu0
  %6620 = vmatprep.mubr.f32.mxu0 0.0
  %6621 = vmatmul.mubr.f32.gmra.mxu0 %v1713
  %v6622 = vpop.f32.mrf.mxu0
  %v6623 = vadd.f32 0.0, %v6622
  %v6624 = vpop.f32.mrf.mxu0
  %6625 = vmatprep.mubr.f32.mxu0 0.0
  %6626 = vmatmul.mubr.f32.gmra.mxu0 %v1716
  %v6627 = vpop.f32.mrf.mxu0
  %v6628 = vadd.f32 0.0, %v6627
  %v6629 = vpop.f32.mrf.mxu0
  %6630 = vmatprep.mubr.f32.mxu0 0.0
  %6631 = vmatmul.mubr.f32.gmra.mxu0 %v1719
  %v6632 = vpop.f32.mrf.mxu0
  %v6633 = vadd.f32 0.0, %v6632
  %v6634 = vpop.f32.mrf.mxu0
  %6635 = vmatprep.mubr.f32.mxu0 0.0
  %6636 = vmatmul.mubr.f32.gmra.mxu0 %v1722
  %v6637 = vpop.f32.mrf.mxu0
  %v6638 = vadd.f32 0.0, %v6637
  %v6639 = vpop.f32.mrf.mxu0
  %6640 = vmatprep.mubr.f32.mxu0 0.0
  %6641 = vmatmul.mubr.f32.gmra.mxu0 %v1725
  %v6642 = vpop.f32.mrf.mxu0
  %v6643 = vadd.f32 0.0, %v6642
  %v6644 = vpop.f32.mrf.mxu0
  %6645 = vmatprep.mubr.f32.mxu0 0.0
  %6646 = vmatmul.mubr.f32.gmra.mxu0 %v1728
  %v6647 = vpop.f32.mrf.mxu0
  %v6648 = vadd.f32 0.0, %v6647
  %v6649 = vpop.f32.mrf.mxu0
  %6650 = vmatprep.mubr.f32.mxu0 0.0
  %6651 = vmatmul.mubr.f32.gmra.mxu0 %v1731
  %v6652 = vpop.f32.mrf.mxu0
  %v6653 = vadd.f32 0.0, %v6652
  %v6654 = vpop.f32.mrf.mxu0
  %6655 = vmatprep.mubr.f32.mxu0 0.0
  %6656 = vmatmul.mubr.f32.gmra.mxu0 %v1734
  %v6657 = vpop.f32.mrf.mxu0
  %v6658 = vadd.f32 0.0, %v6657
  %v6659 = vpop.f32.mrf.mxu0
  %6660 = vmatprep.mubr.f32.mxu0 0.0
  %6661 = vmatmul.mubr.f32.gmra.mxu0 %v1737
  %v6662 = vpop.f32.mrf.mxu0
  %v6663 = vadd.f32 0.0, %v6662
  %v6664 = vpop.f32.mrf.mxu0
  %6665 = vmatprep.mubr.f32.mxu0 0.0
  %6666 = vmatmul.mubr.f32.gmra.mxu0 %v1740
  %v6667 = vpop.f32.mrf.mxu0
  %v6668 = vadd.f32 0.0, %v6667
  %v6669 = vpop.f32.mrf.mxu0
  %6670 = vmatprep.mubr.f32.mxu0 0.0
  %6671 = vmatmul.mubr.f32.gmra.mxu0 %v1743
  %v6672 = vpop.f32.mrf.mxu0
  %v6673 = vadd.f32 0.0, %v6672
  %v6674 = vpop.f32.mrf.mxu0
  %6675 = vmatprep.mubr.f32.mxu0 0.0
  %6676 = vmatmul.mubr.f32.gmra.mxu0 %v1746
  %v6677 = vpop.f32.mrf.mxu0
  %v6678 = vadd.f32 0.0, %v6677
  %v6679 = vpop.f32.mrf.mxu0
  %6680 = vmatprep.mubr.f32.mxu0 0.0
  %6681 = vmatmul.mubr.f32.gmra.mxu0 %v1749
  %v6682 = vpop.f32.mrf.mxu0
  %v6683 = vadd.f32 0.0, %v6682
  %v6684 = vpop.f32.mrf.mxu0
  %6685 = vmatprep.mubr.f32.mxu0 0.0
  %6686 = vmatmul.mubr.f32.gmra.mxu0 %v1752
  %v6687 = vpop.f32.mrf.mxu0
  %v6688 = vadd.f32 0.0, %v6687
  %v6689 = vpop.f32.mrf.mxu0
  %6690 = vmatprep.mubr.f32.mxu0 0.0
  %6691 = vmatmul.mubr.f32.gmra.mxu0 %v1755
  %v6692 = vpop.f32.mrf.mxu0
  %v6693 = vadd.f32 0.0, %v6692
  %v6694 = vpop.f32.mrf.mxu0
  %6695 = vmatprep.mubr.f32.mxu0 0.0
  %6696 = vmatmul.mubr.f32.gmra.mxu0 %v1758
  %v6697 = vpop.f32.mrf.mxu0
  %v6698 = vadd.f32 0.0, %v6697
  %v6699 = vpop.f32.mrf.mxu0
  %6700 = vmatprep.mubr.f32.mxu0 0.0
  %6701 = vmatmul.mubr.f32.gmra.mxu0 %v1761
  %v6702 = vpop.f32.mrf.mxu0
  %v6703 = vadd.f32 0.0, %v6702
  %v6704 = vpop.f32.mrf.mxu0
  %6705 = vmatprep.mubr.f32.mxu0 0.0
  %6706 = vmatmul.mubr.f32.gmra.mxu0 %v1764
  %v6707 = vpop.f32.mrf.mxu0
  %v6708 = vadd.f32 0.0, %v6707
  %v6709 = vpop.f32.mrf.mxu0
  %6710 = vmatprep.mubr.f32.mxu0 0.0
  %6711 = vmatmul.mubr.f32.gmra.mxu0 %v1767
  %v6712 = vpop.f32.mrf.mxu0
  %v6713 = vadd.f32 0.0, %v6712
  %v6714 = vpop.f32.mrf.mxu0
  %6715 = vmatprep.mubr.f32.mxu0 0.0
  %6716 = vmatmul.mubr.f32.gmra.mxu0 %v1770
  %v6717 = vpop.f32.mrf.mxu0
  %v6718 = vadd.f32 0.0, %v6717
  %v6719 = vpop.f32.mrf.mxu0
  %6720 = vmatprep.mubr.f32.mxu0 0.0
  %6721 = vmatmul.mubr.f32.gmra.mxu0 %v1773
  %v6722 = vpop.f32.mrf.mxu0
  %v6723 = vadd.f32 0.0, %v6722
  %v6724 = vpop.f32.mrf.mxu0
  %6725 = vmatprep.mubr.f32.mxu0 0.0
  %6726 = vmatmul.mubr.f32.gmra.mxu0 %v1776
  %v6727 = vpop.f32.mrf.mxu0
  %v6728 = vadd.f32 0.0, %v6727
  %v6729 = vpop.f32.mrf.mxu0
  %6730 = vmatprep.mubr.f32.mxu0 0.0
  %6731 = vmatmul.mubr.f32.gmra.mxu0 %v1779
  %v6732 = vpop.f32.mrf.mxu0
  %v6733 = vadd.f32 0.0, %v6732
  %v6734 = vpop.f32.mrf.mxu0
  %6735 = vmatprep.mubr.f32.mxu0 0.0
  %6736 = vmatmul.mubr.f32.gmra.mxu0 %v1782
  %v6737 = vpop.f32.mrf.mxu0
  %v6738 = vadd.f32 0.0, %v6737
  %v6739 = vpop.f32.mrf.mxu0
  %6740 = vmatprep.mubr.f32.mxu0 0.0
  %6741 = vmatmul.mubr.f32.gmra.mxu0 %v1785
  %v6742 = vpop.f32.mrf.mxu0
  %v6743 = vadd.f32 0.0, %v6742
  %v6744 = vpop.f32.mrf.mxu0
  %6745 = vmatprep.mubr.f32.mxu0 0.0
  %6746 = vmatmul.mubr.f32.gmra.mxu0 %v1788
  %v6747 = vpop.f32.mrf.mxu0
  %v6748 = vadd.f32 0.0, %v6747
  %v6749 = vpop.f32.mrf.mxu0
  %6750 = vmatprep.mubr.f32.mxu0 0.0
  %6751 = vmatmul.mubr.f32.gmra.mxu0 %v1791
  %v6752 = vpop.f32.mrf.mxu0
  %v6753 = vadd.f32 0.0, %v6752
  %v6754 = vpop.f32.mrf.mxu0
  %6755 = vmatprep.mubr.f32.mxu0 0.0
  %6756 = vmatmul.mubr.f32.gmra.mxu0 %v1794
  %v6757 = vpop.f32.mrf.mxu0
  %v6758 = vadd.f32 0.0, %v6757
  %v6759 = vpop.f32.mrf.mxu0
  %6760 = vmatprep.mubr.f32.mxu0 0.0
  %6761 = vmatmul.mubr.f32.gmra.mxu0 %v1797
  %v6762 = vpop.f32.mrf.mxu0
  %v6763 = vadd.f32 0.0, %v6762
  %v6764 = vpop.f32.mrf.mxu0
  %6765 = vdwg.mxu0
  %s6766 = scalar_lea.vmem %s4, 96
  %v6767 = vld [vmem:[%s6766] sm:$0xff]
  %v6768 = vld [vmem:[%s6766 + $0x8] sm:$0xff]
  %v6770 = vsel %vm2419, %v6767, 0
  %v6773 = vsel %vm2419, %v6768, 0
  %6775 = vmatprep.subr.mxu0 0.0
  %6776 = vmatpush1.msra.mxu0 0.0
  %6777 = vmatprep.subr.mxu0 0.0
  %6778 = vmatpush1.msra.mxu0 0.0
  %6779 = vmatprep.subr.mxu0 0.0
  %6780 = vmatpush1.msra.mxu0 0.0
  %6781 = vmatprep.subr.mxu0 0.0
  %6782 = vmatpush1.msra.mxu0 0.0
  %6783 = vmatprep.subr.mxu0 0.0
  %6784 = vmatpush1.msra.mxu0 0.0
  %6785 = vmatprep.subr.mxu0 0.0
  %6786 = vmatpush1.msra.mxu0 0.0
  %6787 = vmatprep.subr.mxu0 0.0
  %6788 = vmatpush1.msra.mxu0 0.0
  %6789 = vmatprep.subr.mxu0 0.0
  %6790 = vmatpush1.msra.mxu0 0.0
  %6791 = vmatprep.subr.mxu0 0.0
  %6792 = vmatpush1.msra.mxu0 %v6563
  %6793 = vmatprep.subr.mxu0 0.0
  %6794 = vmatpush1.msra.mxu0 %v6558
  %6795 = vmatprep.subr.mxu0 0.0
  %6796 = vmatpush1.msra.mxu0 %v6553
  %6797 = vmatprep.subr.mxu0 0.0
  %6798 = vmatpush1.msra.mxu0 %v6548
  %6799 = vmatprep.subr.mxu0 0.0
  %6800 = vmatpush1.msra.mxu0 %v6543
  %6801 = vmatprep.subr.mxu0 0.0
  %6802 = vmatpush1.msra.mxu0 %v6538
  %6803 = vmatprep.subr.mxu0 0.0
  %6804 = vmatpush1.msra.mxu0 %v6533
  %6805 = vmatprep.subr.mxu0 0.0
  %6806 = vmatpush1.msra.mxu0 %v6528
  %6807 = vmatprep.subr.mxu0 0.0
  %6808 = vmatpush2.msra.mxu0 0.0
  %6809 = vmatprep.subr.mxu0 0.0
  %6810 = vmatpush2.msra.mxu0 0.0
  %6811 = vmatprep.subr.mxu0 0.0
  %6812 = vmatpush2.msra.mxu0 0.0
  %6813 = vmatprep.subr.mxu0 0.0
  %6814 = vmatpush2.msra.mxu0 0.0
  %6815 = vmatprep.subr.mxu0 0.0
  %6816 = vmatpush2.msra.mxu0 0.0
  %6817 = vmatprep.subr.mxu0 0.0
  %6818 = vmatpush2.msra.mxu0 0.0
  %6819 = vmatprep.subr.mxu0 0.0
  %6820 = vmatpush2.msra.mxu0 0.0
  %6821 = vmatprep.subr.mxu0 0.0
  %6822 = vmatpush2.msra.mxu0 0.0
  %6823 = vmatprep.subr.mxu0 0.0
  %6824 = vmatpush2.msra.mxu0 0.0
  %6825 = vmatprep.subr.mxu0 0.0
  %6826 = vmatpush2.msra.mxu0 0.0
  %6827 = vmatprep.subr.mxu0 0.0
  %6828 = vmatpush2.msra.mxu0 0.0
  %6829 = vmatprep.subr.mxu0 0.0
  %6830 = vmatpush2.msra.mxu0 0.0
  %6831 = vmatprep.subr.mxu0 0.0
  %6832 = vmatpush2.msra.mxu0 0.0
  %6833 = vmatprep.subr.mxu0 0.0
  %6834 = vmatpush2.msra.mxu0 0.0
  %6835 = vmatprep.subr.mxu0 0.0
  %6836 = vmatpush2.msra.mxu0 0.0
  %6837 = vmatprep.subr.mxu0 0.0
  %6838 = vmatpush2.msra.mxu0 0.0
  %6839 = vmatprep.mubr.f32.mxu0 0.0
  %6840 = vmatmul.mubr.f32.gmra.mxu0 %v6770
  %v6841 = vpop.f32.mrf.mxu0
  %v6842 = vadd.f32 0.0, %v6841
  %v6843 = vpop.f32.mrf.mxu0
  %6844 = vmatprep.mubr.f32.mxu0 0.0
  %6845 = vmatmul.mubr.f32.gmra.mxu0 %v6773
  %v6846 = vpop.f32.mrf.mxu0
  %v6847 = vadd.f32 0.0, %v6846
  %v6848 = vpop.f32.mrf.mxu0
  %6849 = vdwg.mxu0
  %6850 = vmatprep.subr.mxu0 0.0
  %6851 = vmatpush1.msra.mxu0 0.0
  %6852 = vmatprep.subr.mxu0 0.0
  %6853 = vmatpush1.msra.mxu0 0.0
  %6854 = vmatprep.subr.mxu0 0.0
  %6855 = vmatpush1.msra.mxu0 0.0
  %6856 = vmatprep.subr.mxu0 0.0
  %6857 = vmatpush1.msra.mxu0 0.0
  %6858 = vmatprep.subr.mxu0 0.0
  %6859 = vmatpush1.msra.mxu0 0.0
  %6860 = vmatprep.subr.mxu0 0.0
  %6861 = vmatpush1.msra.mxu0 0.0
  %6862 = vmatprep.subr.mxu0 0.0
  %6863 = vmatpush1.msra.mxu0 0.0
  %6864 = vmatprep.subr.mxu0 0.0
  %6865 = vmatpush1.msra.mxu0 0.0
  %6866 = vmatprep.subr.mxu0 0.0
  %6867 = vmatpush1.msra.mxu0 %v6603
  %6868 = vmatprep.subr.mxu0 0.0
  %6869 = vmatpush1.msra.mxu0 %v6598
  %6870 = vmatprep.subr.mxu0 0.0
  %6871 = vmatpush1.msra.mxu0 %v6593
  %6872 = vmatprep.subr.mxu0 0.0
  %6873 = vmatpush1.msra.mxu0 %v6588
  %6874 = vmatprep.subr.mxu0 0.0
  %6875 = vmatpush1.msra.mxu0 %v6583
  %6876 = vmatprep.subr.mxu0 0.0
  %6877 = vmatpush1.msra.mxu0 %v6578
  %6878 = vmatprep.subr.mxu0 0.0
  %6879 = vmatpush1.msra.mxu0 %v6573
  %6880 = vmatprep.subr.mxu0 0.0
  %6881 = vmatpush1.msra.mxu0 %v6568
  %6882 = vmatprep.subr.mxu0 0.0
  %6883 = vmatpush2.msra.mxu0 0.0
  %6884 = vmatprep.subr.mxu0 0.0
  %6885 = vmatpush2.msra.mxu0 0.0
  %6886 = vmatprep.subr.mxu0 0.0
  %6887 = vmatpush2.msra.mxu0 0.0
  %6888 = vmatprep.subr.mxu0 0.0
  %6889 = vmatpush2.msra.mxu0 0.0
  %6890 = vmatprep.subr.mxu0 0.0
  %6891 = vmatpush2.msra.mxu0 0.0
  %6892 = vmatprep.subr.mxu0 0.0
  %6893 = vmatpush2.msra.mxu0 0.0
  %6894 = vmatprep.subr.mxu0 0.0
  %6895 = vmatpush2.msra.mxu0 0.0
  %6896 = vmatprep.subr.mxu0 0.0
  %6897 = vmatpush2.msra.mxu0 0.0
  %6898 = vmatprep.subr.mxu0 0.0
  %6899 = vmatpush2.msra.mxu0 0.0
  %6900 = vmatprep.subr.mxu0 0.0
  %6901 = vmatpush2.msra.mxu0 0.0
  %6902 = vmatprep.subr.mxu0 0.0
  %6903 = vmatpush2.msra.mxu0 0.0
  %6904 = vmatprep.subr.mxu0 0.0
  %6905 = vmatpush2.msra.mxu0 0.0
  %6906 = vmatprep.subr.mxu0 0.0
  %6907 = vmatpush2.msra.mxu0 0.0
  %6908 = vmatprep.subr.mxu0 0.0
  %6909 = vmatpush2.msra.mxu0 0.0
  %6910 = vmatprep.subr.mxu0 0.0
  %6911 = vmatpush2.msra.mxu0 0.0
  %6912 = vmatprep.subr.mxu0 0.0
  %6913 = vmatpush2.msra.mxu0 0.0
  %6914 = vmatprep.mubr.f32.mxu0 0.0
  %6915 = vmatmul.mubr.f32.gmra.mxu0 %v6770
  %v6916 = vpop.f32.mrf.mxu0
  %v6917 = vadd.f32 0.0, %v6916
  %v6918 = vpop.f32.mrf.mxu0
  %6919 = vmatprep.mubr.f32.mxu0 0.0
  %6920 = vmatmul.mubr.f32.gmra.mxu0 %v6773
  %v6921 = vpop.f32.mrf.mxu0
  %v6922 = vadd.f32 0.0, %v6921
  %v6923 = vpop.f32.mrf.mxu0
  %6924 = vdwg.mxu0
  %6925 = vmatprep.subr.mxu0 0.0
  %6926 = vmatpush1.msra.mxu0 0.0
  %6927 = vmatprep.subr.mxu0 0.0
  %6928 = vmatpush1.msra.mxu0 0.0
  %6929 = vmatprep.subr.mxu0 0.0
  %6930 = vmatpush1.msra.mxu0 0.0
  %6931 = vmatprep.subr.mxu0 0.0
  %6932 = vmatpush1.msra.mxu0 0.0
  %6933 = vmatprep.subr.mxu0 0.0
  %6934 = vmatpush1.msra.mxu0 0.0
  %6935 = vmatprep.subr.mxu0 0.0
  %6936 = vmatpush1.msra.mxu0 0.0
  %6937 = vmatprep.subr.mxu0 0.0
  %6938 = vmatpush1.msra.mxu0 0.0
  %6939 = vmatprep.subr.mxu0 0.0
  %6940 = vmatpush1.msra.mxu0 0.0
  %6941 = vmatprep.subr.mxu0 0.0
  %6942 = vmatpush1.msra.mxu0 %v6643
  %6943 = vmatprep.subr.mxu0 0.0
  %6944 = vmatpush1.msra.mxu0 %v6638
  %6945 = vmatprep.subr.mxu0 0.0
  %6946 = vmatpush1.msra.mxu0 %v6633
  %6947 = vmatprep.subr.mxu0 0.0
  %6948 = vmatpush1.msra.mxu0 %v6628
  %6949 = vmatprep.subr.mxu0 0.0
  %6950 = vmatpush1.msra.mxu0 %v6623
  %6951 = vmatprep.subr.mxu0 0.0
  %6952 = vmatpush1.msra.mxu0 %v6618
  %6953 = vmatprep.subr.mxu0 0.0
  %6954 = vmatpush1.msra.mxu0 %v6613
  %6955 = vmatprep.subr.mxu0 0.0
  %6956 = vmatpush1.msra.mxu0 %v6608
  %6957 = vmatprep.subr.mxu0 0.0
  %6958 = vmatpush2.msra.mxu0 0.0
  %6959 = vmatprep.subr.mxu0 0.0
  %6960 = vmatpush2.msra.mxu0 0.0
  %6961 = vmatprep.subr.mxu0 0.0
  %6962 = vmatpush2.msra.mxu0 0.0
  %6963 = vmatprep.subr.mxu0 0.0
  %6964 = vmatpush2.msra.mxu0 0.0
  %6965 = vmatprep.subr.mxu0 0.0
  %6966 = vmatpush2.msra.mxu0 0.0
  %6967 = vmatprep.subr.mxu0 0.0
  %6968 = vmatpush2.msra.mxu0 0.0
  %6969 = vmatprep.subr.mxu0 0.0
  %6970 = vmatpush2.msra.mxu0 0.0
  %6971 = vmatprep.subr.mxu0 0.0
  %6972 = vmatpush2.msra.mxu0 0.0
  %6973 = vmatprep.subr.mxu0 0.0
  %6974 = vmatpush2.msra.mxu0 0.0
  %6975 = vmatprep.subr.mxu0 0.0
  %6976 = vmatpush2.msra.mxu0 0.0
  %6977 = vmatprep.subr.mxu0 0.0
  %6978 = vmatpush2.msra.mxu0 0.0
  %6979 = vmatprep.subr.mxu0 0.0
  %6980 = vmatpush2.msra.mxu0 0.0
  %6981 = vmatprep.subr.mxu0 0.0
  %6982 = vmatpush2.msra.mxu0 0.0
  %6983 = vmatprep.subr.mxu0 0.0
  %6984 = vmatpush2.msra.mxu0 0.0
  %6985 = vmatprep.subr.mxu0 0.0
  %6986 = vmatpush2.msra.mxu0 0.0
  %6987 = vmatprep.subr.mxu0 0.0
  %6988 = vmatpush2.msra.mxu0 0.0
  %6989 = vmatprep.mubr.f32.mxu0 0.0
  %6990 = vmatmul.mubr.f32.gmra.mxu0 %v6770
  %v6991 = vpop.f32.mrf.mxu0
  %v6992 = vadd.f32 0.0, %v6991
  %v6993 = vpop.f32.mrf.mxu0
  %6994 = vmatprep.mubr.f32.mxu0 0.0
  %6995 = vmatmul.mubr.f32.gmra.mxu0 %v6773
  %v6996 = vpop.f32.mrf.mxu0
  %v6997 = vadd.f32 0.0, %v6996
  %v6998 = vpop.f32.mrf.mxu0
  %6999 = vdwg.mxu0
  %7000 = vmatprep.subr.mxu0 0.0
  %7001 = vmatpush1.msra.mxu0 0.0
  %7002 = vmatprep.subr.mxu0 0.0
  %7003 = vmatpush1.msra.mxu0 0.0
  %7004 = vmatprep.subr.mxu0 0.0
  %7005 = vmatpush1.msra.mxu0 0.0
  %7006 = vmatprep.subr.mxu0 0.0
  %7007 = vmatpush1.msra.mxu0 0.0
  %7008 = vmatprep.subr.mxu0 0.0
  %7009 = vmatpush1.msra.mxu0 0.0
  %7010 = vmatprep.subr.mxu0 0.0
  %7011 = vmatpush1.msra.mxu0 0.0
  %7012 = vmatprep.subr.mxu0 0.0
  %7013 = vmatpush1.msra.mxu0 0.0
  %7014 = vmatprep.subr.mxu0 0.0
  %7015 = vmatpush1.msra.mxu0 0.0
  %7016 = vmatprep.subr.mxu0 0.0
  %7017 = vmatpush1.msra.mxu0 %v6683
  %7018 = vmatprep.subr.mxu0 0.0
  %7019 = vmatpush1.msra.mxu0 %v6678
  %7020 = vmatprep.subr.mxu0 0.0
  %7021 = vmatpush1.msra.mxu0 %v6673
  %7022 = vmatprep.subr.mxu0 0.0
  %7023 = vmatpush1.msra.mxu0 %v6668
  %7024 = vmatprep.subr.mxu0 0.0
  %7025 = vmatpush1.msra.mxu0 %v6663
  %7026 = vmatprep.subr.mxu0 0.0
  %7027 = vmatpush1.msra.mxu0 %v6658
  %7028 = vmatprep.subr.mxu0 0.0
  %7029 = vmatpush1.msra.mxu0 %v6653
  %7030 = vmatprep.subr.mxu0 0.0
  %7031 = vmatpush1.msra.mxu0 %v6648
  %7032 = vmatprep.subr.mxu0 0.0
  %7033 = vmatpush2.msra.mxu0 0.0
  %7034 = vmatprep.subr.mxu0 0.0
  %7035 = vmatpush2.msra.mxu0 0.0
  %7036 = vmatprep.subr.mxu0 0.0
  %7037 = vmatpush2.msra.mxu0 0.0
  %7038 = vmatprep.subr.mxu0 0.0
  %7039 = vmatpush2.msra.mxu0 0.0
  %7040 = vmatprep.subr.mxu0 0.0
  %7041 = vmatpush2.msra.mxu0 0.0
  %7042 = vmatprep.subr.mxu0 0.0
  %7043 = vmatpush2.msra.mxu0 0.0
  %7044 = vmatprep.subr.mxu0 0.0
  %7045 = vmatpush2.msra.mxu0 0.0
  %7046 = vmatprep.subr.mxu0 0.0
  %7047 = vmatpush2.msra.mxu0 0.0
  %7048 = vmatprep.subr.mxu0 0.0
  %7049 = vmatpush2.msra.mxu0 0.0
  %7050 = vmatprep.subr.mxu0 0.0
  %7051 = vmatpush2.msra.mxu0 0.0
  %7052 = vmatprep.subr.mxu0 0.0
  %7053 = vmatpush2.msra.mxu0 0.0
  %7054 = vmatprep.subr.mxu0 0.0
  %7055 = vmatpush2.msra.mxu0 0.0
  %7056 = vmatprep.subr.mxu0 0.0
  %7057 = vmatpush2.msra.mxu0 0.0
  %7058 = vmatprep.subr.mxu0 0.0
  %7059 = vmatpush2.msra.mxu0 0.0
  %7060 = vmatprep.subr.mxu0 0.0
  %7061 = vmatpush2.msra.mxu0 0.0
  %7062 = vmatprep.subr.mxu0 0.0
  %7063 = vmatpush2.msra.mxu0 0.0
  %7064 = vmatprep.mubr.f32.mxu0 0.0
  %7065 = vmatmul.mubr.f32.gmra.mxu0 %v6770
  %v7066 = vpop.f32.mrf.mxu0
  %v7067 = vadd.f32 0.0, %v7066
  %v7068 = vpop.f32.mrf.mxu0
  %7069 = vmatprep.mubr.f32.mxu0 0.0
  %7070 = vmatmul.mubr.f32.gmra.mxu0 %v6773
  %v7071 = vpop.f32.mrf.mxu0
  %v7072 = vadd.f32 0.0, %v7071
  %v7073 = vpop.f32.mrf.mxu0
  %7074 = vdwg.mxu0
  %7075 = vmatprep.subr.mxu0 0.0
  %7076 = vmatpush1.msra.mxu0 0.0
  %7077 = vmatprep.subr.mxu0 0.0
  %7078 = vmatpush1.msra.mxu0 0.0
  %7079 = vmatprep.subr.mxu0 0.0
  %7080 = vmatpush1.msra.mxu0 0.0
  %7081 = vmatprep.subr.mxu0 0.0
  %7082 = vmatpush1.msra.mxu0 0.0
  %7083 = vmatprep.subr.mxu0 0.0
  %7084 = vmatpush1.msra.mxu0 0.0
  %7085 = vmatprep.subr.mxu0 0.0
  %7086 = vmatpush1.msra.mxu0 0.0
  %7087 = vmatprep.subr.mxu0 0.0
  %7088 = vmatpush1.msra.mxu0 0.0
  %7089 = vmatprep.subr.mxu0 0.0
  %7090 = vmatpush1.msra.mxu0 0.0
  %7091 = vmatprep.subr.mxu0 0.0
  %7092 = vmatpush1.msra.mxu0 %v6723
  %7093 = vmatprep.subr.mxu0 0.0
  %7094 = vmatpush1.msra.mxu0 %v6718
  %7095 = vmatprep.subr.mxu0 0.0
  %7096 = vmatpush1.msra.mxu0 %v6713
  %7097 = vmatprep.subr.mxu0 0.0
  %7098 = vmatpush1.msra.mxu0 %v6708
  %7099 = vmatprep.subr.mxu0 0.0
  %7100 = vmatpush1.msra.mxu0 %v6703
  %7101 = vmatprep.subr.mxu0 0.0
  %7102 = vmatpush1.msra.mxu0 %v6698
  %7103 = vmatprep.subr.mxu0 0.0
  %7104 = vmatpush1.msra.mxu0 %v6693
  %7105 = vmatprep.subr.mxu0 0.0
  %7106 = vmatpush1.msra.mxu0 %v6688
  %7107 = vmatprep.subr.mxu0 0.0
  %7108 = vmatpush2.msra.mxu0 0.0
  %7109 = vmatprep.subr.mxu0 0.0
  %7110 = vmatpush2.msra.mxu0 0.0
  %7111 = vmatprep.subr.mxu0 0.0
  %7112 = vmatpush2.msra.mxu0 0.0
  %7113 = vmatprep.subr.mxu0 0.0
  %7114 = vmatpush2.msra.mxu0 0.0
  %7115 = vmatprep.subr.mxu0 0.0
  %7116 = vmatpush2.msra.mxu0 0.0
  %7117 = vmatprep.subr.mxu0 0.0
  %7118 = vmatpush2.msra.mxu0 0.0
  %7119 = vmatprep.subr.mxu0 0.0
  %7120 = vmatpush2.msra.mxu0 0.0
  %7121 = vmatprep.subr.mxu0 0.0
  %7122 = vmatpush2.msra.mxu0 0.0
  %7123 = vmatprep.subr.mxu0 0.0
  %7124 = vmatpush2.msra.mxu0 0.0
  %7125 = vmatprep.subr.mxu0 0.0
  %7126 = vmatpush2.msra.mxu0 0.0
  %7127 = vmatprep.subr.mxu0 0.0
  %7128 = vmatpush2.msra.mxu0 0.0
  %7129 = vmatprep.subr.mxu0 0.0
  %7130 = vmatpush2.msra.mxu0 0.0
  %7131 = vmatprep.subr.mxu0 0.0
  %7132 = vmatpush2.msra.mxu0 0.0
  %7133 = vmatprep.subr.mxu0 0.0
  %7134 = vmatpush2.msra.mxu0 0.0
  %7135 = vmatprep.subr.mxu0 0.0
  %7136 = vmatpush2.msra.mxu0 0.0
  %7137 = vmatprep.subr.mxu0 0.0
  %7138 = vmatpush2.msra.mxu0 0.0
  %7139 = vmatprep.mubr.f32.mxu0 0.0
  %7140 = vmatmul.mubr.f32.gmra.mxu0 %v6770
  %v7141 = vpop.f32.mrf.mxu0
  %v7142 = vadd.f32 0.0, %v7141
  %v7143 = vpop.f32.mrf.mxu0
  %7144 = vmatprep.mubr.f32.mxu0 0.0
  %7145 = vmatmul.mubr.f32.gmra.mxu0 %v6773
  %v7146 = vpop.f32.mrf.mxu0
  %v7147 = vadd.f32 0.0, %v7146
  %v7148 = vpop.f32.mrf.mxu0
  %7149 = vdwg.mxu0
  %7150 = vmatprep.subr.mxu0 0.0
  %7151 = vmatpush1.msra.mxu0 0.0
  %7152 = vmatprep.subr.mxu0 0.0
  %7153 = vmatpush1.msra.mxu0 0.0
  %7154 = vmatprep.subr.mxu0 0.0
  %7155 = vmatpush1.msra.mxu0 0.0
  %7156 = vmatprep.subr.mxu0 0.0
  %7157 = vmatpush1.msra.mxu0 0.0
  %7158 = vmatprep.subr.mxu0 0.0
  %7159 = vmatpush1.msra.mxu0 0.0
  %7160 = vmatprep.subr.mxu0 0.0
  %7161 = vmatpush1.msra.mxu0 0.0
  %7162 = vmatprep.subr.mxu0 0.0
  %7163 = vmatpush1.msra.mxu0 0.0
  %7164 = vmatprep.subr.mxu0 0.0
  %7165 = vmatpush1.msra.mxu0 0.0
  %7166 = vmatprep.subr.mxu0 0.0
  %7167 = vmatpush1.msra.mxu0 %v6763
  %7168 = vmatprep.subr.mxu0 0.0
  %7169 = vmatpush1.msra.mxu0 %v6758
  %7170 = vmatprep.subr.mxu0 0.0
  %7171 = vmatpush1.msra.mxu0 %v6753
  %7172 = vmatprep.subr.mxu0 0.0
  %7173 = vmatpush1.msra.mxu0 %v6748
  %7174 = vmatprep.subr.mxu0 0.0
  %7175 = vmatpush1.msra.mxu0 %v6743
  %7176 = vmatprep.subr.mxu0 0.0
  %7177 = vmatpush1.msra.mxu0 %v6738
  %7178 = vmatprep.subr.mxu0 0.0
  %7179 = vmatpush1.msra.mxu0 %v6733
  %7180 = vmatprep.subr.mxu0 0.0
  %7181 = vmatpush1.msra.mxu0 %v6728
  %7182 = vmatprep.subr.mxu0 0.0
  %7183 = vmatpush2.msra.mxu0 0.0
  %7184 = vmatprep.subr.mxu0 0.0
  %7185 = vmatpush2.msra.mxu0 0.0
  %7186 = vmatprep.subr.mxu0 0.0
  %7187 = vmatpush2.msra.mxu0 0.0
  %7188 = vmatprep.subr.mxu0 0.0
  %7189 = vmatpush2.msra.mxu0 0.0
  %7190 = vmatprep.subr.mxu0 0.0
  %7191 = vmatpush2.msra.mxu0 0.0
  %7192 = vmatprep.subr.mxu0 0.0
  %7193 = vmatpush2.msra.mxu0 0.0
  %7194 = vmatprep.subr.mxu0 0.0
  %7195 = vmatpush2.msra.mxu0 0.0
  %7196 = vmatprep.subr.mxu0 0.0
  %7197 = vmatpush2.msra.mxu0 0.0
  %7198 = vmatprep.subr.mxu0 0.0
  %7199 = vmatpush2.msra.mxu0 0.0
  %7200 = vmatprep.subr.mxu0 0.0
  %7201 = vmatpush2.msra.mxu0 0.0
  %7202 = vmatprep.subr.mxu0 0.0
  %7203 = vmatpush2.msra.mxu0 0.0
  %7204 = vmatprep.subr.mxu0 0.0
  %7205 = vmatpush2.msra.mxu0 0.0
  %7206 = vmatprep.subr.mxu0 0.0
  %7207 = vmatpush2.msra.mxu0 0.0
  %7208 = vmatprep.subr.mxu0 0.0
  %7209 = vmatpush2.msra.mxu0 0.0
  %7210 = vmatprep.subr.mxu0 0.0
  %7211 = vmatpush2.msra.mxu0 0.0
  %7212 = vmatprep.subr.mxu0 0.0
  %7213 = vmatpush2.msra.mxu0 0.0
  %7214 = vmatprep.mubr.f32.mxu0 0.0
  %7215 = vmatmul.mubr.f32.gmra.mxu0 %v6770
  %v7216 = vpop.f32.mrf.mxu0
  %v7217 = vadd.f32 0.0, %v7216
  %v7218 = vpop.f32.mrf.mxu0
  %7219 = vmatprep.mubr.f32.mxu0 0.0
  %7220 = vmatmul.mubr.f32.gmra.mxu0 %v6773
  %v7221 = vpop.f32.mrf.mxu0
  %v7222 = vadd.f32 0.0, %v7221
  %v7223 = vpop.f32.mrf.mxu0
  %7224 = vdwg.mxu0
  %v7225 = vadd.f32 %v6444, %v6842
  %v7226 = vadd.f32 %v6445, %v6847
  %v7227 = vadd.f32 %v6446, %v6917
  %v7228 = vadd.f32 %v6447, %v6922
  %v7229 = vadd.f32 %v6448, %v6992
  %v7230 = vadd.f32 %v6449, %v6997
  %v7231 = vadd.f32 %v6450, %v7067
  %v7232 = vadd.f32 %v6451, %v7072
  %v7233 = vadd.f32 %v6452, %v7142
  %v7234 = vadd.f32 %v6453, %v7147
  %v7235 = vadd.f32 %v6454, %v7217
  %v7236 = vadd.f32 %v6455, %v7222
  %s7237 = scalar_lea.vmem %s5, 224
  %v7238 = vld [vmem:[%s7237] sm:$0xff]
  %v7239 = vld [vmem:[%s7237 + $0x8] sm:$0xff]
  %v7240 = vld [vmem:[%s7237 + $0x10] sm:$0xff]
  %v7241 = vld [vmem:[%s7237 + $0x18] sm:$0xff]
  %7242 = vmatprep.subr.mxu0 0.0
  %7243 = vmatpush1.msra.mxu0 0.0
  %7244 = vmatprep.subr.mxu0 0.0
  %7245 = vmatpush1.msra.mxu0 0.0
  %7246 = vmatprep.subr.mxu0 0.0
  %7247 = vmatpush1.msra.mxu0 0.0
  %7248 = vmatprep.subr.mxu0 0.0
  %7249 = vmatpush1.msra.mxu0 0.0
  %7250 = vmatprep.subr.mxu0 0.0
  %7251 = vmatpush1.msra.mxu0 0.0
  %7252 = vmatprep.subr.mxu0 0.0
  %7253 = vmatpush1.msra.mxu0 0.0
  %7254 = vmatprep.subr.mxu0 0.0
  %7255 = vmatpush1.msra.mxu0 0.0
  %7256 = vmatprep.subr.mxu0 0.0
  %7257 = vmatpush1.msra.mxu0 0.0
  %7258 = vmatprep.subr.mxu0 0.0
  %7259 = vmatpush1.msra.mxu0 0.0
  %7260 = vmatprep.subr.mxu0 0.0
  %7261 = vmatpush1.msra.mxu0 0.0
  %7262 = vmatprep.subr.mxu0 0.0
  %7263 = vmatpush1.msra.mxu0 0.0
  %7264 = vmatprep.subr.mxu0 0.0
  %7265 = vmatpush1.msra.mxu0 0.0
  %7266 = vmatprep.subr.mxu0 0.0
  %7267 = vmatpush1.msra.mxu0 %v7241
  %7268 = vmatprep.subr.mxu0 0.0
  %7269 = vmatpush1.msra.mxu0 %v7240
  %7270 = vmatprep.subr.mxu0 0.0
  %7271 = vmatpush1.msra.mxu0 %v7239
  %7272 = vmatprep.subr.mxu0 0.0
  %7273 = vmatpush1.msra.mxu0 %v7238
  %7274 = vmatprep.subr.mxu0 0.0
  %7275 = vmatpush2.msra.mxu0 0.0
  %7276 = vmatprep.subr.mxu0 0.0
  %7277 = vmatpush2.msra.mxu0 0.0
  %7278 = vmatprep.subr.mxu0 0.0
  %7279 = vmatpush2.msra.mxu0 0.0
  %7280 = vmatprep.subr.mxu0 0.0
  %7281 = vmatpush2.msra.mxu0 0.0
  %7282 = vmatprep.subr.mxu0 0.0
  %7283 = vmatpush2.msra.mxu0 0.0
  %7284 = vmatprep.subr.mxu0 0.0
  %7285 = vmatpush2.msra.mxu0 0.0
  %7286 = vmatprep.subr.mxu0 0.0
  %7287 = vmatpush2.msra.mxu0 0.0
  %7288 = vmatprep.subr.mxu0 0.0
  %7289 = vmatpush2.msra.mxu0 0.0
  %7290 = vmatprep.subr.mxu0 0.0
  %7291 = vmatpush2.msra.mxu0 0.0
  %7292 = vmatprep.subr.mxu0 0.0
  %7293 = vmatpush2.msra.mxu0 0.0
  %7294 = vmatprep.subr.mxu0 0.0
  %7295 = vmatpush2.msra.mxu0 0.0
  %7296 = vmatprep.subr.mxu0 0.0
  %7297 = vmatpush2.msra.mxu0 0.0
  %7298 = vmatprep.subr.mxu0 0.0
  %7299 = vmatpush2.msra.mxu0 0.0
  %7300 = vmatprep.subr.mxu0 0.0
  %7301 = vmatpush2.msra.mxu0 0.0
  %7302 = vmatprep.subr.mxu0 0.0
  %7303 = vmatpush2.msra.mxu0 0.0
  %7304 = vmatprep.subr.mxu0 0.0
  %7305 = vmatpush2.msra.mxu0 0.0
  %7306 = vmatprep.mubr.f32.mxu0 0.0
  %7307 = vmatmul.mubr.f32.gmra.mxu0 %v1656
  %v7308 = vpop.f32.mrf.mxu0
  %v7309 = vadd.f32 0.0, %v7308
  %v7310 = vpop.f32.mrf.mxu0
  %7311 = vmatprep.mubr.f32.mxu0 0.0
  %7312 = vmatmul.mubr.f32.gmra.mxu0 %v1659
  %v7313 = vpop.f32.mrf.mxu0
  %v7314 = vadd.f32 0.0, %v7313
  %v7315 = vpop.f32.mrf.mxu0
  %7316 = vmatprep.mubr.f32.mxu0 0.0
  %7317 = vmatmul.mubr.f32.gmra.mxu0 %v1662
  %v7318 = vpop.f32.mrf.mxu0
  %v7319 = vadd.f32 0.0, %v7318
  %v7320 = vpop.f32.mrf.mxu0
  %7321 = vmatprep.mubr.f32.mxu0 0.0
  %7322 = vmatmul.mubr.f32.gmra.mxu0 %v1665
  %v7323 = vpop.f32.mrf.mxu0
  %v7324 = vadd.f32 0.0, %v7323
  %v7325 = vpop.f32.mrf.mxu0
  %7326 = vmatprep.mubr.f32.mxu0 0.0
  %7327 = vmatmul.mubr.f32.gmra.mxu0 %v1668
  %v7328 = vpop.f32.mrf.mxu0
  %v7329 = vadd.f32 0.0, %v7328
  %v7330 = vpop.f32.mrf.mxu0
  %7331 = vmatprep.mubr.f32.mxu0 0.0
  %7332 = vmatmul.mubr.f32.gmra.mxu0 %v1671
  %v7333 = vpop.f32.mrf.mxu0
  %v7334 = vadd.f32 0.0, %v7333
  %v7335 = vpop.f32.mrf.mxu0
  %7336 = vmatprep.mubr.f32.mxu0 0.0
  %7337 = vmatmul.mubr.f32.gmra.mxu0 %v1674
  %v7338 = vpop.f32.mrf.mxu0
  %v7339 = vadd.f32 0.0, %v7338
  %v7340 = vpop.f32.mrf.mxu0
  %7341 = vmatprep.mubr.f32.mxu0 0.0
  %7342 = vmatmul.mubr.f32.gmra.mxu0 %v1677
  %v7343 = vpop.f32.mrf.mxu0
  %v7344 = vadd.f32 0.0, %v7343
  %v7345 = vpop.f32.mrf.mxu0
  %7346 = vmatprep.mubr.f32.mxu0 0.0
  %7347 = vmatmul.mubr.f32.gmra.mxu0 %v1680
  %v7348 = vpop.f32.mrf.mxu0
  %v7349 = vadd.f32 0.0, %v7348
  %v7350 = vpop.f32.mrf.mxu0
  %7351 = vmatprep.mubr.f32.mxu0 0.0
  %7352 = vmatmul.mubr.f32.gmra.mxu0 %v1683
  %v7353 = vpop.f32.mrf.mxu0
  %v7354 = vadd.f32 0.0, %v7353
  %v7355 = vpop.f32.mrf.mxu0
  %7356 = vmatprep.mubr.f32.mxu0 0.0
  %7357 = vmatmul.mubr.f32.gmra.mxu0 %v1686
  %v7358 = vpop.f32.mrf.mxu0
  %v7359 = vadd.f32 0.0, %v7358
  %v7360 = vpop.f32.mrf.mxu0
  %7361 = vmatprep.mubr.f32.mxu0 0.0
  %7362 = vmatmul.mubr.f32.gmra.mxu0 %v1689
  %v7363 = vpop.f32.mrf.mxu0
  %v7364 = vadd.f32 0.0, %v7363
  %v7365 = vpop.f32.mrf.mxu0
  %7366 = vmatprep.mubr.f32.mxu0 0.0
  %7367 = vmatmul.mubr.f32.gmra.mxu0 %v1692
  %v7368 = vpop.f32.mrf.mxu0
  %v7369 = vadd.f32 0.0, %v7368
  %v7370 = vpop.f32.mrf.mxu0
  %7371 = vmatprep.mubr.f32.mxu0 0.0
  %7372 = vmatmul.mubr.f32.gmra.mxu0 %v1695
  %v7373 = vpop.f32.mrf.mxu0
  %v7374 = vadd.f32 0.0, %v7373
  %v7375 = vpop.f32.mrf.mxu0
  %7376 = vmatprep.mubr.f32.mxu0 0.0
  %7377 = vmatmul.mubr.f32.gmra.mxu0 %v1698
  %v7378 = vpop.f32.mrf.mxu0
  %v7379 = vadd.f32 0.0, %v7378
  %v7380 = vpop.f32.mrf.mxu0
  %7381 = vmatprep.mubr.f32.mxu0 0.0
  %7382 = vmatmul.mubr.f32.gmra.mxu0 %v1701
  %v7383 = vpop.f32.mrf.mxu0
  %v7384 = vadd.f32 0.0, %v7383
  %v7385 = vpop.f32.mrf.mxu0
  %7386 = vmatprep.mubr.f32.mxu0 0.0
  %7387 = vmatmul.mubr.f32.gmra.mxu0 %v1704
  %v7388 = vpop.f32.mrf.mxu0
  %v7389 = vadd.f32 0.0, %v7388
  %v7390 = vpop.f32.mrf.mxu0
  %7391 = vmatprep.mubr.f32.mxu0 0.0
  %7392 = vmatmul.mubr.f32.gmra.mxu0 %v1707
  %v7393 = vpop.f32.mrf.mxu0
  %v7394 = vadd.f32 0.0, %v7393
  %v7395 = vpop.f32.mrf.mxu0
  %7396 = vmatprep.mubr.f32.mxu0 0.0
  %7397 = vmatmul.mubr.f32.gmra.mxu0 %v1710
  %v7398 = vpop.f32.mrf.mxu0
  %v7399 = vadd.f32 0.0, %v7398
  %v7400 = vpop.f32.mrf.mxu0
  %7401 = vmatprep.mubr.f32.mxu0 0.0
  %7402 = vmatmul.mubr.f32.gmra.mxu0 %v1713
  %v7403 = vpop.f32.mrf.mxu0
  %v7404 = vadd.f32 0.0, %v7403
  %v7405 = vpop.f32.mrf.mxu0
  %7406 = vmatprep.mubr.f32.mxu0 0.0
  %7407 = vmatmul.mubr.f32.gmra.mxu0 %v1716
  %v7408 = vpop.f32.mrf.mxu0
  %v7409 = vadd.f32 0.0, %v7408
  %v7410 = vpop.f32.mrf.mxu0
  %7411 = vmatprep.mubr.f32.mxu0 0.0
  %7412 = vmatmul.mubr.f32.gmra.mxu0 %v1719
  %v7413 = vpop.f32.mrf.mxu0
  %v7414 = vadd.f32 0.0, %v7413
  %v7415 = vpop.f32.mrf.mxu0
  %7416 = vmatprep.mubr.f32.mxu0 0.0
  %7417 = vmatmul.mubr.f32.gmra.mxu0 %v1722
  %v7418 = vpop.f32.mrf.mxu0
  %v7419 = vadd.f32 0.0, %v7418
  %v7420 = vpop.f32.mrf.mxu0
  %7421 = vmatprep.mubr.f32.mxu0 0.0
  %7422 = vmatmul.mubr.f32.gmra.mxu0 %v1725
  %v7423 = vpop.f32.mrf.mxu0
  %v7424 = vadd.f32 0.0, %v7423
  %v7425 = vpop.f32.mrf.mxu0
  %7426 = vmatprep.mubr.f32.mxu0 0.0
  %7427 = vmatmul.mubr.f32.gmra.mxu0 %v1728
  %v7428 = vpop.f32.mrf.mxu0
  %v7429 = vadd.f32 0.0, %v7428
  %v7430 = vpop.f32.mrf.mxu0
  %7431 = vmatprep.mubr.f32.mxu0 0.0
  %7432 = vmatmul.mubr.f32.gmra.mxu0 %v1731
  %v7433 = vpop.f32.mrf.mxu0
  %v7434 = vadd.f32 0.0, %v7433
  %v7435 = vpop.f32.mrf.mxu0
  %7436 = vmatprep.mubr.f32.mxu0 0.0
  %7437 = vmatmul.mubr.f32.gmra.mxu0 %v1734
  %v7438 = vpop.f32.mrf.mxu0
  %v7439 = vadd.f32 0.0, %v7438
  %v7440 = vpop.f32.mrf.mxu0
  %7441 = vmatprep.mubr.f32.mxu0 0.0
  %7442 = vmatmul.mubr.f32.gmra.mxu0 %v1737
  %v7443 = vpop.f32.mrf.mxu0
  %v7444 = vadd.f32 0.0, %v7443
  %v7445 = vpop.f32.mrf.mxu0
  %7446 = vmatprep.mubr.f32.mxu0 0.0
  %7447 = vmatmul.mubr.f32.gmra.mxu0 %v1740
  %v7448 = vpop.f32.mrf.mxu0
  %v7449 = vadd.f32 0.0, %v7448
  %v7450 = vpop.f32.mrf.mxu0
  %7451 = vmatprep.mubr.f32.mxu0 0.0
  %7452 = vmatmul.mubr.f32.gmra.mxu0 %v1743
  %v7453 = vpop.f32.mrf.mxu0
  %v7454 = vadd.f32 0.0, %v7453
  %v7455 = vpop.f32.mrf.mxu0
  %7456 = vmatprep.mubr.f32.mxu0 0.0
  %7457 = vmatmul.mubr.f32.gmra.mxu0 %v1746
  %v7458 = vpop.f32.mrf.mxu0
  %v7459 = vadd.f32 0.0, %v7458
  %v7460 = vpop.f32.mrf.mxu0
  %7461 = vmatprep.mubr.f32.mxu0 0.0
  %7462 = vmatmul.mubr.f32.gmra.mxu0 %v1749
  %v7463 = vpop.f32.mrf.mxu0
  %v7464 = vadd.f32 0.0, %v7463
  %v7465 = vpop.f32.mrf.mxu0
  %7466 = vmatprep.mubr.f32.mxu0 0.0
  %7467 = vmatmul.mubr.f32.gmra.mxu0 %v1752
  %v7468 = vpop.f32.mrf.mxu0
  %v7469 = vadd.f32 0.0, %v7468
  %v7470 = vpop.f32.mrf.mxu0
  %7471 = vmatprep.mubr.f32.mxu0 0.0
  %7472 = vmatmul.mubr.f32.gmra.mxu0 %v1755
  %v7473 = vpop.f32.mrf.mxu0
  %v7474 = vadd.f32 0.0, %v7473
  %v7475 = vpop.f32.mrf.mxu0
  %7476 = vmatprep.mubr.f32.mxu0 0.0
  %7477 = vmatmul.mubr.f32.gmra.mxu0 %v1758
  %v7478 = vpop.f32.mrf.mxu0
  %v7479 = vadd.f32 0.0, %v7478
  %v7480 = vpop.f32.mrf.mxu0
  %7481 = vmatprep.mubr.f32.mxu0 0.0
  %7482 = vmatmul.mubr.f32.gmra.mxu0 %v1761
  %v7483 = vpop.f32.mrf.mxu0
  %v7484 = vadd.f32 0.0, %v7483
  %v7485 = vpop.f32.mrf.mxu0
  %7486 = vmatprep.mubr.f32.mxu0 0.0
  %7487 = vmatmul.mubr.f32.gmra.mxu0 %v1764
  %v7488 = vpop.f32.mrf.mxu0
  %v7489 = vadd.f32 0.0, %v7488
  %v7490 = vpop.f32.mrf.mxu0
  %7491 = vmatprep.mubr.f32.mxu0 0.0
  %7492 = vmatmul.mubr.f32.gmra.mxu0 %v1767
  %v7493 = vpop.f32.mrf.mxu0
  %v7494 = vadd.f32 0.0, %v7493
  %v7495 = vpop.f32.mrf.mxu0
  %7496 = vmatprep.mubr.f32.mxu0 0.0
  %7497 = vmatmul.mubr.f32.gmra.mxu0 %v1770
  %v7498 = vpop.f32.mrf.mxu0
  %v7499 = vadd.f32 0.0, %v7498
  %v7500 = vpop.f32.mrf.mxu0
  %7501 = vmatprep.mubr.f32.mxu0 0.0
  %7502 = vmatmul.mubr.f32.gmra.mxu0 %v1773
  %v7503 = vpop.f32.mrf.mxu0
  %v7504 = vadd.f32 0.0, %v7503
  %v7505 = vpop.f32.mrf.mxu0
  %7506 = vmatprep.mubr.f32.mxu0 0.0
  %7507 = vmatmul.mubr.f32.gmra.mxu0 %v1776
  %v7508 = vpop.f32.mrf.mxu0
  %v7509 = vadd.f32 0.0, %v7508
  %v7510 = vpop.f32.mrf.mxu0
  %7511 = vmatprep.mubr.f32.mxu0 0.0
  %7512 = vmatmul.mubr.f32.gmra.mxu0 %v1779
  %v7513 = vpop.f32.mrf.mxu0
  %v7514 = vadd.f32 0.0, %v7513
  %v7515 = vpop.f32.mrf.mxu0
  %7516 = vmatprep.mubr.f32.mxu0 0.0
  %7517 = vmatmul.mubr.f32.gmra.mxu0 %v1782
  %v7518 = vpop.f32.mrf.mxu0
  %v7519 = vadd.f32 0.0, %v7518
  %v7520 = vpop.f32.mrf.mxu0
  %7521 = vmatprep.mubr.f32.mxu0 0.0
  %7522 = vmatmul.mubr.f32.gmra.mxu0 %v1785
  %v7523 = vpop.f32.mrf.mxu0
  %v7524 = vadd.f32 0.0, %v7523
  %v7525 = vpop.f32.mrf.mxu0
  %7526 = vmatprep.mubr.f32.mxu0 0.0
  %7527 = vmatmul.mubr.f32.gmra.mxu0 %v1788
  %v7528 = vpop.f32.mrf.mxu0
  %v7529 = vadd.f32 0.0, %v7528
  %v7530 = vpop.f32.mrf.mxu0
  %7531 = vmatprep.mubr.f32.mxu0 0.0
  %7532 = vmatmul.mubr.f32.gmra.mxu0 %v1791
  %v7533 = vpop.f32.mrf.mxu0
  %v7534 = vadd.f32 0.0, %v7533
  %v7535 = vpop.f32.mrf.mxu0
  %7536 = vmatprep.mubr.f32.mxu0 0.0
  %7537 = vmatmul.mubr.f32.gmra.mxu0 %v1794
  %v7538 = vpop.f32.mrf.mxu0
  %v7539 = vadd.f32 0.0, %v7538
  %v7540 = vpop.f32.mrf.mxu0
  %7541 = vmatprep.mubr.f32.mxu0 0.0
  %7542 = vmatmul.mubr.f32.gmra.mxu0 %v1797
  %v7543 = vpop.f32.mrf.mxu0
  %v7544 = vadd.f32 0.0, %v7543
  %v7545 = vpop.f32.mrf.mxu0
  %7546 = vdwg.mxu0
  %s7547 = scalar_lea.vmem %s4, 112
  %v7548 = vld [vmem:[%s7547] sm:$0xff]
  %v7549 = vld [vmem:[%s7547 + $0x8] sm:$0xff]
  %v7551 = vsel %vm2419, %v7548, 0
  %v7554 = vsel %vm2419, %v7549, 0
  %7556 = vmatprep.subr.mxu0 0.0
  %7557 = vmatpush1.msra.mxu0 0.0
  %7558 = vmatprep.subr.mxu0 0.0
  %7559 = vmatpush1.msra.mxu0 0.0
  %7560 = vmatprep.subr.mxu0 0.0
  %7561 = vmatpush1.msra.mxu0 0.0
  %7562 = vmatprep.subr.mxu0 0.0
  %7563 = vmatpush1.msra.mxu0 0.0
  %7564 = vmatprep.subr.mxu0 0.0
  %7565 = vmatpush1.msra.mxu0 0.0
  %7566 = vmatprep.subr.mxu0 0.0
  %7567 = vmatpush1.msra.mxu0 0.0
  %7568 = vmatprep.subr.mxu0 0.0
  %7569 = vmatpush1.msra.mxu0 0.0
  %7570 = vmatprep.subr.mxu0 0.0
  %7571 = vmatpush1.msra.mxu0 0.0
  %7572 = vmatprep.subr.mxu0 0.0
  %7573 = vmatpush1.msra.mxu0 %v7344
  %7574 = vmatprep.subr.mxu0 0.0
  %7575 = vmatpush1.msra.mxu0 %v7339
  %7576 = vmatprep.subr.mxu0 0.0
  %7577 = vmatpush1.msra.mxu0 %v7334
  %7578 = vmatprep.subr.mxu0 0.0
  %7579 = vmatpush1.msra.mxu0 %v7329
  %7580 = vmatprep.subr.mxu0 0.0
  %7581 = vmatpush1.msra.mxu0 %v7324
  %7582 = vmatprep.subr.mxu0 0.0
  %7583 = vmatpush1.msra.mxu0 %v7319
  %7584 = vmatprep.subr.mxu0 0.0
  %7585 = vmatpush1.msra.mxu0 %v7314
  %7586 = vmatprep.subr.mxu0 0.0
  %7587 = vmatpush1.msra.mxu0 %v7309
  %7588 = vmatprep.subr.mxu0 0.0
  %7589 = vmatpush2.msra.mxu0 0.0
  %7590 = vmatprep.subr.mxu0 0.0
  %7591 = vmatpush2.msra.mxu0 0.0
  %7592 = vmatprep.subr.mxu0 0.0
  %7593 = vmatpush2.msra.mxu0 0.0
  %7594 = vmatprep.subr.mxu0 0.0
  %7595 = vmatpush2.msra.mxu0 0.0
  %7596 = vmatprep.subr.mxu0 0.0
  %7597 = vmatpush2.msra.mxu0 0.0
  %7598 = vmatprep.subr.mxu0 0.0
  %7599 = vmatpush2.msra.mxu0 0.0
  %7600 = vmatprep.subr.mxu0 0.0
  %7601 = vmatpush2.msra.mxu0 0.0
  %7602 = vmatprep.subr.mxu0 0.0
  %7603 = vmatpush2.msra.mxu0 0.0
  %7604 = vmatprep.subr.mxu0 0.0
  %7605 = vmatpush2.msra.mxu0 0.0
  %7606 = vmatprep.subr.mxu0 0.0
  %7607 = vmatpush2.msra.mxu0 0.0
  %7608 = vmatprep.subr.mxu0 0.0
  %7609 = vmatpush2.msra.mxu0 0.0
  %7610 = vmatprep.subr.mxu0 0.0
  %7611 = vmatpush2.msra.mxu0 0.0
  %7612 = vmatprep.subr.mxu0 0.0
  %7613 = vmatpush2.msra.mxu0 0.0
  %7614 = vmatprep.subr.mxu0 0.0
  %7615 = vmatpush2.msra.mxu0 0.0
  %7616 = vmatprep.subr.mxu0 0.0
  %7617 = vmatpush2.msra.mxu0 0.0
  %7618 = vmatprep.subr.mxu0 0.0
  %7619 = vmatpush2.msra.mxu0 0.0
  %7620 = vmatprep.mubr.f32.mxu0 0.0
  %7621 = vmatmul.mubr.f32.gmra.mxu0 %v7551
  %v7622 = vpop.f32.mrf.mxu0
  %v7623 = vadd.f32 0.0, %v7622
  %v7624 = vpop.f32.mrf.mxu0
  %7625 = vmatprep.mubr.f32.mxu0 0.0
  %7626 = vmatmul.mubr.f32.gmra.mxu0 %v7554
  %v7627 = vpop.f32.mrf.mxu0
  %v7628 = vadd.f32 0.0, %v7627
  %v7629 = vpop.f32.mrf.mxu0
  %7630 = vdwg.mxu0
  %7631 = vmatprep.subr.mxu0 0.0
  %7632 = vmatpush1.msra.mxu0 0.0
  %7633 = vmatprep.subr.mxu0 0.0
  %7634 = vmatpush1.msra.mxu0 0.0
  %7635 = vmatprep.subr.mxu0 0.0
  %7636 = vmatpush1.msra.mxu0 0.0
  %7637 = vmatprep.subr.mxu0 0.0
  %7638 = vmatpush1.msra.mxu0 0.0
  %7639 = vmatprep.subr.mxu0 0.0
  %7640 = vmatpush1.msra.mxu0 0.0
  %7641 = vmatprep.subr.mxu0 0.0
  %7642 = vmatpush1.msra.mxu0 0.0
  %7643 = vmatprep.subr.mxu0 0.0
  %7644 = vmatpush1.msra.mxu0 0.0
  %7645 = vmatprep.subr.mxu0 0.0
  %7646 = vmatpush1.msra.mxu0 0.0
  %7647 = vmatprep.subr.mxu0 0.0
  %7648 = vmatpush1.msra.mxu0 %v7384
  %7649 = vmatprep.subr.mxu0 0.0
  %7650 = vmatpush1.msra.mxu0 %v7379
  %7651 = vmatprep.subr.mxu0 0.0
  %7652 = vmatpush1.msra.mxu0 %v7374
  %7653 = vmatprep.subr.mxu0 0.0
  %7654 = vmatpush1.msra.mxu0 %v7369
  %7655 = vmatprep.subr.mxu0 0.0
  %7656 = vmatpush1.msra.mxu0 %v7364
  %7657 = vmatprep.subr.mxu0 0.0
  %7658 = vmatpush1.msra.mxu0 %v7359
  %7659 = vmatprep.subr.mxu0 0.0
  %7660 = vmatpush1.msra.mxu0 %v7354
  %7661 = vmatprep.subr.mxu0 0.0
  %7662 = vmatpush1.msra.mxu0 %v7349
  %7663 = vmatprep.subr.mxu0 0.0
  %7664 = vmatpush2.msra.mxu0 0.0
  %7665 = vmatprep.subr.mxu0 0.0
  %7666 = vmatpush2.msra.mxu0 0.0
  %7667 = vmatprep.subr.mxu0 0.0
  %7668 = vmatpush2.msra.mxu0 0.0
  %7669 = vmatprep.subr.mxu0 0.0
  %7670 = vmatpush2.msra.mxu0 0.0
  %7671 = vmatprep.subr.mxu0 0.0
  %7672 = vmatpush2.msra.mxu0 0.0
  %7673 = vmatprep.subr.mxu0 0.0
  %7674 = vmatpush2.msra.mxu0 0.0
  %7675 = vmatprep.subr.mxu0 0.0
  %7676 = vmatpush2.msra.mxu0 0.0
  %7677 = vmatprep.subr.mxu0 0.0
  %7678 = vmatpush2.msra.mxu0 0.0
  %7679 = vmatprep.subr.mxu0 0.0
  %7680 = vmatpush2.msra.mxu0 0.0
  %7681 = vmatprep.subr.mxu0 0.0
  %7682 = vmatpush2.msra.mxu0 0.0
  %7683 = vmatprep.subr.mxu0 0.0
  %7684 = vmatpush2.msra.mxu0 0.0
  %7685 = vmatprep.subr.mxu0 0.0
  %7686 = vmatpush2.msra.mxu0 0.0
  %7687 = vmatprep.subr.mxu0 0.0
  %7688 = vmatpush2.msra.mxu0 0.0
  %7689 = vmatprep.subr.mxu0 0.0
  %7690 = vmatpush2.msra.mxu0 0.0
  %7691 = vmatprep.subr.mxu0 0.0
  %7692 = vmatpush2.msra.mxu0 0.0
  %7693 = vmatprep.subr.mxu0 0.0
  %7694 = vmatpush2.msra.mxu0 0.0
  %7695 = vmatprep.mubr.f32.mxu0 0.0
  %7696 = vmatmul.mubr.f32.gmra.mxu0 %v7551
  %v7697 = vpop.f32.mrf.mxu0
  %v7698 = vadd.f32 0.0, %v7697
  %v7699 = vpop.f32.mrf.mxu0
  %7700 = vmatprep.mubr.f32.mxu0 0.0
  %7701 = vmatmul.mubr.f32.gmra.mxu0 %v7554
  %v7702 = vpop.f32.mrf.mxu0
  %v7703 = vadd.f32 0.0, %v7702
  %v7704 = vpop.f32.mrf.mxu0
  %7705 = vdwg.mxu0
  %7706 = vmatprep.subr.mxu0 0.0
  %7707 = vmatpush1.msra.mxu0 0.0
  %7708 = vmatprep.subr.mxu0 0.0
  %7709 = vmatpush1.msra.mxu0 0.0
  %7710 = vmatprep.subr.mxu0 0.0
  %7711 = vmatpush1.msra.mxu0 0.0
  %7712 = vmatprep.subr.mxu0 0.0
  %7713 = vmatpush1.msra.mxu0 0.0
  %7714 = vmatprep.subr.mxu0 0.0
  %7715 = vmatpush1.msra.mxu0 0.0
  %7716 = vmatprep.subr.mxu0 0.0
  %7717 = vmatpush1.msra.mxu0 0.0
  %7718 = vmatprep.subr.mxu0 0.0
  %7719 = vmatpush1.msra.mxu0 0.0
  %7720 = vmatprep.subr.mxu0 0.0
  %7721 = vmatpush1.msra.mxu0 0.0
  %7722 = vmatprep.subr.mxu0 0.0
  %7723 = vmatpush1.msra.mxu0 %v7424
  %7724 = vmatprep.subr.mxu0 0.0
  %7725 = vmatpush1.msra.mxu0 %v7419
  %7726 = vmatprep.subr.mxu0 0.0
  %7727 = vmatpush1.msra.mxu0 %v7414
  %7728 = vmatprep.subr.mxu0 0.0
  %7729 = vmatpush1.msra.mxu0 %v7409
  %7730 = vmatprep.subr.mxu0 0.0
  %7731 = vmatpush1.msra.mxu0 %v7404
  %7732 = vmatprep.subr.mxu0 0.0
  %7733 = vmatpush1.msra.mxu0 %v7399
  %7734 = vmatprep.subr.mxu0 0.0
  %7735 = vmatpush1.msra.mxu0 %v7394
  %7736 = vmatprep.subr.mxu0 0.0
  %7737 = vmatpush1.msra.mxu0 %v7389
  %7738 = vmatprep.subr.mxu0 0.0
  %7739 = vmatpush2.msra.mxu0 0.0
  %7740 = vmatprep.subr.mxu0 0.0
  %7741 = vmatpush2.msra.mxu0 0.0
  %7742 = vmatprep.subr.mxu0 0.0
  %7743 = vmatpush2.msra.mxu0 0.0
  %7744 = vmatprep.subr.mxu0 0.0
  %7745 = vmatpush2.msra.mxu0 0.0
  %7746 = vmatprep.subr.mxu0 0.0
  %7747 = vmatpush2.msra.mxu0 0.0
  %7748 = vmatprep.subr.mxu0 0.0
  %7749 = vmatpush2.msra.mxu0 0.0
  %7750 = vmatprep.subr.mxu0 0.0
  %7751 = vmatpush2.msra.mxu0 0.0
  %7752 = vmatprep.subr.mxu0 0.0
  %7753 = vmatpush2.msra.mxu0 0.0
  %7754 = vmatprep.subr.mxu0 0.0
  %7755 = vmatpush2.msra.mxu0 0.0
  %7756 = vmatprep.subr.mxu0 0.0
  %7757 = vmatpush2.msra.mxu0 0.0
  %7758 = vmatprep.subr.mxu0 0.0
  %7759 = vmatpush2.msra.mxu0 0.0
  %7760 = vmatprep.subr.mxu0 0.0
  %7761 = vmatpush2.msra.mxu0 0.0
  %7762 = vmatprep.subr.mxu0 0.0
  %7763 = vmatpush2.msra.mxu0 0.0
  %7764 = vmatprep.subr.mxu0 0.0
  %7765 = vmatpush2.msra.mxu0 0.0
  %7766 = vmatprep.subr.mxu0 0.0
  %7767 = vmatpush2.msra.mxu0 0.0
  %7768 = vmatprep.subr.mxu0 0.0
  %7769 = vmatpush2.msra.mxu0 0.0
  %7770 = vmatprep.mubr.f32.mxu0 0.0
  %7771 = vmatmul.mubr.f32.gmra.mxu0 %v7551
  %v7772 = vpop.f32.mrf.mxu0
  %v7773 = vadd.f32 0.0, %v7772
  %v7774 = vpop.f32.mrf.mxu0
  %7775 = vmatprep.mubr.f32.mxu0 0.0
  %7776 = vmatmul.mubr.f32.gmra.mxu0 %v7554
  %v7777 = vpop.f32.mrf.mxu0
  %v7778 = vadd.f32 0.0, %v7777
  %v7779 = vpop.f32.mrf.mxu0
  %7780 = vdwg.mxu0
  %7781 = vmatprep.subr.mxu0 0.0
  %7782 = vmatpush1.msra.mxu0 0.0
  %7783 = vmatprep.subr.mxu0 0.0
  %7784 = vmatpush1.msra.mxu0 0.0
  %7785 = vmatprep.subr.mxu0 0.0
  %7786 = vmatpush1.msra.mxu0 0.0
  %7787 = vmatprep.subr.mxu0 0.0
  %7788 = vmatpush1.msra.mxu0 0.0
  %7789 = vmatprep.subr.mxu0 0.0
  %7790 = vmatpush1.msra.mxu0 0.0
  %7791 = vmatprep.subr.mxu0 0.0
  %7792 = vmatpush1.msra.mxu0 0.0
  %7793 = vmatprep.subr.mxu0 0.0
  %7794 = vmatpush1.msra.mxu0 0.0
  %7795 = vmatprep.subr.mxu0 0.0
  %7796 = vmatpush1.msra.mxu0 0.0
  %7797 = vmatprep.subr.mxu0 0.0
  %7798 = vmatpush1.msra.mxu0 %v7464
  %7799 = vmatprep.subr.mxu0 0.0
  %7800 = vmatpush1.msra.mxu0 %v7459
  %7801 = vmatprep.subr.mxu0 0.0
  %7802 = vmatpush1.msra.mxu0 %v7454
  %7803 = vmatprep.subr.mxu0 0.0
  %7804 = vmatpush1.msra.mxu0 %v7449
  %7805 = vmatprep.subr.mxu0 0.0
  %7806 = vmatpush1.msra.mxu0 %v7444
  %7807 = vmatprep.subr.mxu0 0.0
  %7808 = vmatpush1.msra.mxu0 %v7439
  %7809 = vmatprep.subr.mxu0 0.0
  %7810 = vmatpush1.msra.mxu0 %v7434
  %7811 = vmatprep.subr.mxu0 0.0
  %7812 = vmatpush1.msra.mxu0 %v7429
  %7813 = vmatprep.subr.mxu0 0.0
  %7814 = vmatpush2.msra.mxu0 0.0
  %7815 = vmatprep.subr.mxu0 0.0
  %7816 = vmatpush2.msra.mxu0 0.0
  %7817 = vmatprep.subr.mxu0 0.0
  %7818 = vmatpush2.msra.mxu0 0.0
  %7819 = vmatprep.subr.mxu0 0.0
  %7820 = vmatpush2.msra.mxu0 0.0
  %7821 = vmatprep.subr.mxu0 0.0
  %7822 = vmatpush2.msra.mxu0 0.0
  %7823 = vmatprep.subr.mxu0 0.0
  %7824 = vmatpush2.msra.mxu0 0.0
  %7825 = vmatprep.subr.mxu0 0.0
  %7826 = vmatpush2.msra.mxu0 0.0
  %7827 = vmatprep.subr.mxu0 0.0
  %7828 = vmatpush2.msra.mxu0 0.0
  %7829 = vmatprep.subr.mxu0 0.0
  %7830 = vmatpush2.msra.mxu0 0.0
  %7831 = vmatprep.subr.mxu0 0.0
  %7832 = vmatpush2.msra.mxu0 0.0
  %7833 = vmatprep.subr.mxu0 0.0
  %7834 = vmatpush2.msra.mxu0 0.0
  %7835 = vmatprep.subr.mxu0 0.0
  %7836 = vmatpush2.msra.mxu0 0.0
  %7837 = vmatprep.subr.mxu0 0.0
  %7838 = vmatpush2.msra.mxu0 0.0
  %7839 = vmatprep.subr.mxu0 0.0
  %7840 = vmatpush2.msra.mxu0 0.0
  %7841 = vmatprep.subr.mxu0 0.0
  %7842 = vmatpush2.msra.mxu0 0.0
  %7843 = vmatprep.subr.mxu0 0.0
  %7844 = vmatpush2.msra.mxu0 0.0
  %7845 = vmatprep.mubr.f32.mxu0 0.0
  %7846 = vmatmul.mubr.f32.gmra.mxu0 %v7551
  %v7847 = vpop.f32.mrf.mxu0
  %v7848 = vadd.f32 0.0, %v7847
  %v7849 = vpop.f32.mrf.mxu0
  %7850 = vmatprep.mubr.f32.mxu0 0.0
  %7851 = vmatmul.mubr.f32.gmra.mxu0 %v7554
  %v7852 = vpop.f32.mrf.mxu0
  %v7853 = vadd.f32 0.0, %v7852
  %v7854 = vpop.f32.mrf.mxu0
  %7855 = vdwg.mxu0
  %7856 = vmatprep.subr.mxu0 0.0
  %7857 = vmatpush1.msra.mxu0 0.0
  %7858 = vmatprep.subr.mxu0 0.0
  %7859 = vmatpush1.msra.mxu0 0.0
  %7860 = vmatprep.subr.mxu0 0.0
  %7861 = vmatpush1.msra.mxu0 0.0
  %7862 = vmatprep.subr.mxu0 0.0
  %7863 = vmatpush1.msra.mxu0 0.0
  %7864 = vmatprep.subr.mxu0 0.0
  %7865 = vmatpush1.msra.mxu0 0.0
  %7866 = vmatprep.subr.mxu0 0.0
  %7867 = vmatpush1.msra.mxu0 0.0
  %7868 = vmatprep.subr.mxu0 0.0
  %7869 = vmatpush1.msra.mxu0 0.0
  %7870 = vmatprep.subr.mxu0 0.0
  %7871 = vmatpush1.msra.mxu0 0.0
  %7872 = vmatprep.subr.mxu0 0.0
  %7873 = vmatpush1.msra.mxu0 %v7504
  %7874 = vmatprep.subr.mxu0 0.0
  %7875 = vmatpush1.msra.mxu0 %v7499
  %7876 = vmatprep.subr.mxu0 0.0
  %7877 = vmatpush1.msra.mxu0 %v7494
  %7878 = vmatprep.subr.mxu0 0.0
  %7879 = vmatpush1.msra.mxu0 %v7489
  %7880 = vmatprep.subr.mxu0 0.0
  %7881 = vmatpush1.msra.mxu0 %v7484
  %7882 = vmatprep.subr.mxu0 0.0
  %7883 = vmatpush1.msra.mxu0 %v7479
  %7884 = vmatprep.subr.mxu0 0.0
  %7885 = vmatpush1.msra.mxu0 %v7474
  %7886 = vmatprep.subr.mxu0 0.0
  %7887 = vmatpush1.msra.mxu0 %v7469
  %7888 = vmatprep.subr.mxu0 0.0
  %7889 = vmatpush2.msra.mxu0 0.0
  %7890 = vmatprep.subr.mxu0 0.0
  %7891 = vmatpush2.msra.mxu0 0.0
  %7892 = vmatprep.subr.mxu0 0.0
  %7893 = vmatpush2.msra.mxu0 0.0
  %7894 = vmatprep.subr.mxu0 0.0
  %7895 = vmatpush2.msra.mxu0 0.0
  %7896 = vmatprep.subr.mxu0 0.0
  %7897 = vmatpush2.msra.mxu0 0.0
  %7898 = vmatprep.subr.mxu0 0.0
  %7899 = vmatpush2.msra.mxu0 0.0
  %7900 = vmatprep.subr.mxu0 0.0
  %7901 = vmatpush2.msra.mxu0 0.0
  %7902 = vmatprep.subr.mxu0 0.0
  %7903 = vmatpush2.msra.mxu0 0.0
  %7904 = vmatprep.subr.mxu0 0.0
  %7905 = vmatpush2.msra.mxu0 0.0
  %7906 = vmatprep.subr.mxu0 0.0
  %7907 = vmatpush2.msra.mxu0 0.0
  %7908 = vmatprep.subr.mxu0 0.0
  %7909 = vmatpush2.msra.mxu0 0.0
  %7910 = vmatprep.subr.mxu0 0.0
  %7911 = vmatpush2.msra.mxu0 0.0
  %7912 = vmatprep.subr.mxu0 0.0
  %7913 = vmatpush2.msra.mxu0 0.0
  %7914 = vmatprep.subr.mxu0 0.0
  %7915 = vmatpush2.msra.mxu0 0.0
  %7916 = vmatprep.subr.mxu0 0.0
  %7917 = vmatpush2.msra.mxu0 0.0
  %7918 = vmatprep.subr.mxu0 0.0
  %7919 = vmatpush2.msra.mxu0 0.0
  %7920 = vmatprep.mubr.f32.mxu0 0.0
  %7921 = vmatmul.mubr.f32.gmra.mxu0 %v7551
  %v7922 = vpop.f32.mrf.mxu0
  %v7923 = vadd.f32 0.0, %v7922
  %v7924 = vpop.f32.mrf.mxu0
  %7925 = vmatprep.mubr.f32.mxu0 0.0
  %7926 = vmatmul.mubr.f32.gmra.mxu0 %v7554
  %v7927 = vpop.f32.mrf.mxu0
  %v7928 = vadd.f32 0.0, %v7927
  %v7929 = vpop.f32.mrf.mxu0
  %7930 = vdwg.mxu0
  %7931 = vmatprep.subr.mxu0 0.0
  %7932 = vmatpush1.msra.mxu0 0.0
  %7933 = vmatprep.subr.mxu0 0.0
  %7934 = vmatpush1.msra.mxu0 0.0
  %7935 = vmatprep.subr.mxu0 0.0
  %7936 = vmatpush1.msra.mxu0 0.0
  %7937 = vmatprep.subr.mxu0 0.0
  %7938 = vmatpush1.msra.mxu0 0.0
  %7939 = vmatprep.subr.mxu0 0.0
  %7940 = vmatpush1.msra.mxu0 0.0
  %7941 = vmatprep.subr.mxu0 0.0
  %7942 = vmatpush1.msra.mxu0 0.0
  %7943 = vmatprep.subr.mxu0 0.0
  %7944 = vmatpush1.msra.mxu0 0.0
  %7945 = vmatprep.subr.mxu0 0.0
  %7946 = vmatpush1.msra.mxu0 0.0
  %7947 = vmatprep.subr.mxu0 0.0
  %7948 = vmatpush1.msra.mxu0 %v7544
  %7949 = vmatprep.subr.mxu0 0.0
  %7950 = vmatpush1.msra.mxu0 %v7539
  %7951 = vmatprep.subr.mxu0 0.0
  %7952 = vmatpush1.msra.mxu0 %v7534
  %7953 = vmatprep.subr.mxu0 0.0
  %7954 = vmatpush1.msra.mxu0 %v7529
  %7955 = vmatprep.subr.mxu0 0.0
  %7956 = vmatpush1.msra.mxu0 %v7524
  %7957 = vmatprep.subr.mxu0 0.0
  %7958 = vmatpush1.msra.mxu0 %v7519
  %7959 = vmatprep.subr.mxu0 0.0
  %7960 = vmatpush1.msra.mxu0 %v7514
  %7961 = vmatprep.subr.mxu0 0.0
  %7962 = vmatpush1.msra.mxu0 %v7509
  %7963 = vmatprep.subr.mxu0 0.0
  %7964 = vmatpush2.msra.mxu0 0.0
  %7965 = vmatprep.subr.mxu0 0.0
  %7966 = vmatpush2.msra.mxu0 0.0
  %7967 = vmatprep.subr.mxu0 0.0
  %7968 = vmatpush2.msra.mxu0 0.0
  %7969 = vmatprep.subr.mxu0 0.0
  %7970 = vmatpush2.msra.mxu0 0.0
  %7971 = vmatprep.subr.mxu0 0.0
  %7972 = vmatpush2.msra.mxu0 0.0
  %7973 = vmatprep.subr.mxu0 0.0
  %7974 = vmatpush2.msra.mxu0 0.0
  %7975 = vmatprep.subr.mxu0 0.0
  %7976 = vmatpush2.msra.mxu0 0.0
  %7977 = vmatprep.subr.mxu0 0.0
  %7978 = vmatpush2.msra.mxu0 0.0
  %7979 = vmatprep.subr.mxu0 0.0
  %7980 = vmatpush2.msra.mxu0 0.0
  %7981 = vmatprep.subr.mxu0 0.0
  %7982 = vmatpush2.msra.mxu0 0.0
  %7983 = vmatprep.subr.mxu0 0.0
  %7984 = vmatpush2.msra.mxu0 0.0
  %7985 = vmatprep.subr.mxu0 0.0
  %7986 = vmatpush2.msra.mxu0 0.0
  %7987 = vmatprep.subr.mxu0 0.0
  %7988 = vmatpush2.msra.mxu0 0.0
  %7989 = vmatprep.subr.mxu0 0.0
  %7990 = vmatpush2.msra.mxu0 0.0
  %7991 = vmatprep.subr.mxu0 0.0
  %7992 = vmatpush2.msra.mxu0 0.0
  %7993 = vmatprep.subr.mxu0 0.0
  %7994 = vmatpush2.msra.mxu0 0.0
  %7995 = vmatprep.mubr.f32.mxu0 0.0
  %7996 = vmatmul.mubr.f32.gmra.mxu0 %v7551
  %v7997 = vpop.f32.mrf.mxu0
  %v7998 = vadd.f32 0.0, %v7997
  %v7999 = vpop.f32.mrf.mxu0
  %8000 = vmatprep.mubr.f32.mxu0 0.0
  %8001 = vmatmul.mubr.f32.gmra.mxu0 %v7554
  %v8002 = vpop.f32.mrf.mxu0
  %v8003 = vadd.f32 0.0, %v8002
  %v8004 = vpop.f32.mrf.mxu0
  %8005 = vdwg.mxu0
  %v8006 = vadd.f32 %v7225, %v7623
  %v8007 = vadd.f32 %v7226, %v7628
  %v8008 = vadd.f32 %v7227, %v7698
  %v8009 = vadd.f32 %v7228, %v7703
  %v8010 = vadd.f32 %v7229, %v7773
  %v8011 = vadd.f32 %v7230, %v7778
  %v8012 = vadd.f32 %v7231, %v7848
  %v8013 = vadd.f32 %v7232, %v7853
  %v8014 = vadd.f32 %v7233, %v7923
  %v8015 = vadd.f32 %v7234, %v7928
  %v8016 = vadd.f32 %v7235, %v7998
  %v8017 = vadd.f32 %v7236, %v8003
  %s8018 = scalar_lea.vmem %s5, 256
  %v8019 = vld [vmem:[%s8018] sm:$0xff]
  %v8020 = vld [vmem:[%s8018 + $0x8] sm:$0xff]
  %v8021 = vld [vmem:[%s8018 + $0x10] sm:$0xff]
  %v8022 = vld [vmem:[%s8018 + $0x18] sm:$0xff]
  %8023 = vmatprep.subr.mxu0 0.0
  %8024 = vmatpush1.msra.mxu0 0.0
  %8025 = vmatprep.subr.mxu0 0.0
  %8026 = vmatpush1.msra.mxu0 0.0
  %8027 = vmatprep.subr.mxu0 0.0
  %8028 = vmatpush1.msra.mxu0 0.0
  %8029 = vmatprep.subr.mxu0 0.0
  %8030 = vmatpush1.msra.mxu0 0.0
  %8031 = vmatprep.subr.mxu0 0.0
  %8032 = vmatpush1.msra.mxu0 0.0
  %8033 = vmatprep.subr.mxu0 0.0
  %8034 = vmatpush1.msra.mxu0 0.0
  %8035 = vmatprep.subr.mxu0 0.0
  %8036 = vmatpush1.msra.mxu0 0.0
  %8037 = vmatprep.subr.mxu0 0.0
  %8038 = vmatpush1.msra.mxu0 0.0
  %8039 = vmatprep.subr.mxu0 0.0
  %8040 = vmatpush1.msra.mxu0 0.0
  %8041 = vmatprep.subr.mxu0 0.0
  %8042 = vmatpush1.msra.mxu0 0.0
  %8043 = vmatprep.subr.mxu0 0.0
  %8044 = vmatpush1.msra.mxu0 0.0
  %8045 = vmatprep.subr.mxu0 0.0
  %8046 = vmatpush1.msra.mxu0 0.0
  %8047 = vmatprep.subr.mxu0 0.0
  %8048 = vmatpush1.msra.mxu0 %v8022
  %8049 = vmatprep.subr.mxu0 0.0
  %8050 = vmatpush1.msra.mxu0 %v8021
  %8051 = vmatprep.subr.mxu0 0.0
  %8052 = vmatpush1.msra.mxu0 %v8020
  %8053 = vmatprep.subr.mxu0 0.0
  %8054 = vmatpush1.msra.mxu0 %v8019
  %8055 = vmatprep.subr.mxu0 0.0
  %8056 = vmatpush2.msra.mxu0 0.0
  %8057 = vmatprep.subr.mxu0 0.0
  %8058 = vmatpush2.msra.mxu0 0.0
  %8059 = vmatprep.subr.mxu0 0.0
  %8060 = vmatpush2.msra.mxu0 0.0
  %8061 = vmatprep.subr.mxu0 0.0
  %8062 = vmatpush2.msra.mxu0 0.0
  %8063 = vmatprep.subr.mxu0 0.0
  %8064 = vmatpush2.msra.mxu0 0.0
  %8065 = vmatprep.subr.mxu0 0.0
  %8066 = vmatpush2.msra.mxu0 0.0
  %8067 = vmatprep.subr.mxu0 0.0
  %8068 = vmatpush2.msra.mxu0 0.0
  %8069 = vmatprep.subr.mxu0 0.0
  %8070 = vmatpush2.msra.mxu0 0.0
  %8071 = vmatprep.subr.mxu0 0.0
  %8072 = vmatpush2.msra.mxu0 0.0
  %8073 = vmatprep.subr.mxu0 0.0
  %8074 = vmatpush2.msra.mxu0 0.0
  %8075 = vmatprep.subr.mxu0 0.0
  %8076 = vmatpush2.msra.mxu0 0.0
  %8077 = vmatprep.subr.mxu0 0.0
  %8078 = vmatpush2.msra.mxu0 0.0
  %8079 = vmatprep.subr.mxu0 0.0
  %8080 = vmatpush2.msra.mxu0 0.0
  %8081 = vmatprep.subr.mxu0 0.0
  %8082 = vmatpush2.msra.mxu0 0.0
  %8083 = vmatprep.subr.mxu0 0.0
  %8084 = vmatpush2.msra.mxu0 0.0
  %8085 = vmatprep.subr.mxu0 0.0
  %8086 = vmatpush2.msra.mxu0 0.0
  %8087 = vmatprep.mubr.f32.mxu0 0.0
  %8088 = vmatmul.mubr.f32.gmra.mxu0 %v1656
  %v8089 = vpop.f32.mrf.mxu0
  %v8090 = vadd.f32 0.0, %v8089
  %v8091 = vpop.f32.mrf.mxu0
  %8092 = vmatprep.mubr.f32.mxu0 0.0
  %8093 = vmatmul.mubr.f32.gmra.mxu0 %v1659
  %v8094 = vpop.f32.mrf.mxu0
  %v8095 = vadd.f32 0.0, %v8094
  %v8096 = vpop.f32.mrf.mxu0
  %8097 = vmatprep.mubr.f32.mxu0 0.0
  %8098 = vmatmul.mubr.f32.gmra.mxu0 %v1662
  %v8099 = vpop.f32.mrf.mxu0
  %v8100 = vadd.f32 0.0, %v8099
  %v8101 = vpop.f32.mrf.mxu0
  %8102 = vmatprep.mubr.f32.mxu0 0.0
  %8103 = vmatmul.mubr.f32.gmra.mxu0 %v1665
  %v8104 = vpop.f32.mrf.mxu0
  %v8105 = vadd.f32 0.0, %v8104
  %v8106 = vpop.f32.mrf.mxu0
  %8107 = vmatprep.mubr.f32.mxu0 0.0
  %8108 = vmatmul.mubr.f32.gmra.mxu0 %v1668
  %v8109 = vpop.f32.mrf.mxu0
  %v8110 = vadd.f32 0.0, %v8109
  %v8111 = vpop.f32.mrf.mxu0
  %8112 = vmatprep.mubr.f32.mxu0 0.0
  %8113 = vmatmul.mubr.f32.gmra.mxu0 %v1671
  %v8114 = vpop.f32.mrf.mxu0
  %v8115 = vadd.f32 0.0, %v8114
  %v8116 = vpop.f32.mrf.mxu0
  %8117 = vmatprep.mubr.f32.mxu0 0.0
  %8118 = vmatmul.mubr.f32.gmra.mxu0 %v1674
  %v8119 = vpop.f32.mrf.mxu0
  %v8120 = vadd.f32 0.0, %v8119
  %v8121 = vpop.f32.mrf.mxu0
  %8122 = vmatprep.mubr.f32.mxu0 0.0
  %8123 = vmatmul.mubr.f32.gmra.mxu0 %v1677
  %v8124 = vpop.f32.mrf.mxu0
  %v8125 = vadd.f32 0.0, %v8124
  %v8126 = vpop.f32.mrf.mxu0
  %8127 = vmatprep.mubr.f32.mxu0 0.0
  %8128 = vmatmul.mubr.f32.gmra.mxu0 %v1680
  %v8129 = vpop.f32.mrf.mxu0
  %v8130 = vadd.f32 0.0, %v8129
  %v8131 = vpop.f32.mrf.mxu0
  %8132 = vmatprep.mubr.f32.mxu0 0.0
  %8133 = vmatmul.mubr.f32.gmra.mxu0 %v1683
  %v8134 = vpop.f32.mrf.mxu0
  %v8135 = vadd.f32 0.0, %v8134
  %v8136 = vpop.f32.mrf.mxu0
  %8137 = vmatprep.mubr.f32.mxu0 0.0
  %8138 = vmatmul.mubr.f32.gmra.mxu0 %v1686
  %v8139 = vpop.f32.mrf.mxu0
  %v8140 = vadd.f32 0.0, %v8139
  %v8141 = vpop.f32.mrf.mxu0
  %8142 = vmatprep.mubr.f32.mxu0 0.0
  %8143 = vmatmul.mubr.f32.gmra.mxu0 %v1689
  %v8144 = vpop.f32.mrf.mxu0
  %v8145 = vadd.f32 0.0, %v8144
  %v8146 = vpop.f32.mrf.mxu0
  %8147 = vmatprep.mubr.f32.mxu0 0.0
  %8148 = vmatmul.mubr.f32.gmra.mxu0 %v1692
  %v8149 = vpop.f32.mrf.mxu0
  %v8150 = vadd.f32 0.0, %v8149
  %v8151 = vpop.f32.mrf.mxu0
  %8152 = vmatprep.mubr.f32.mxu0 0.0
  %8153 = vmatmul.mubr.f32.gmra.mxu0 %v1695
  %v8154 = vpop.f32.mrf.mxu0
  %v8155 = vadd.f32 0.0, %v8154
  %v8156 = vpop.f32.mrf.mxu0
  %8157 = vmatprep.mubr.f32.mxu0 0.0
  %8158 = vmatmul.mubr.f32.gmra.mxu0 %v1698
  %v8159 = vpop.f32.mrf.mxu0
  %v8160 = vadd.f32 0.0, %v8159
  %v8161 = vpop.f32.mrf.mxu0
  %8162 = vmatprep.mubr.f32.mxu0 0.0
  %8163 = vmatmul.mubr.f32.gmra.mxu0 %v1701
  %v8164 = vpop.f32.mrf.mxu0
  %v8165 = vadd.f32 0.0, %v8164
  %v8166 = vpop.f32.mrf.mxu0
  %8167 = vmatprep.mubr.f32.mxu0 0.0
  %8168 = vmatmul.mubr.f32.gmra.mxu0 %v1704
  %v8169 = vpop.f32.mrf.mxu0
  %v8170 = vadd.f32 0.0, %v8169
  %v8171 = vpop.f32.mrf.mxu0
  %8172 = vmatprep.mubr.f32.mxu0 0.0
  %8173 = vmatmul.mubr.f32.gmra.mxu0 %v1707
  %v8174 = vpop.f32.mrf.mxu0
  %v8175 = vadd.f32 0.0, %v8174
  %v8176 = vpop.f32.mrf.mxu0
  %8177 = vmatprep.mubr.f32.mxu0 0.0
  %8178 = vmatmul.mubr.f32.gmra.mxu0 %v1710
  %v8179 = vpop.f32.mrf.mxu0
  %v8180 = vadd.f32 0.0, %v8179
  %v8181 = vpop.f32.mrf.mxu0
  %8182 = vmatprep.mubr.f32.mxu0 0.0
  %8183 = vmatmul.mubr.f32.gmra.mxu0 %v1713
  %v8184 = vpop.f32.mrf.mxu0
  %v8185 = vadd.f32 0.0, %v8184
  %v8186 = vpop.f32.mrf.mxu0
  %8187 = vmatprep.mubr.f32.mxu0 0.0
  %8188 = vmatmul.mubr.f32.gmra.mxu0 %v1716
  %v8189 = vpop.f32.mrf.mxu0
  %v8190 = vadd.f32 0.0, %v8189
  %v8191 = vpop.f32.mrf.mxu0
  %8192 = vmatprep.mubr.f32.mxu0 0.0
  %8193 = vmatmul.mubr.f32.gmra.mxu0 %v1719
  %v8194 = vpop.f32.mrf.mxu0
  %v8195 = vadd.f32 0.0, %v8194
  %v8196 = vpop.f32.mrf.mxu0
  %8197 = vmatprep.mubr.f32.mxu0 0.0
  %8198 = vmatmul.mubr.f32.gmra.mxu0 %v1722
  %v8199 = vpop.f32.mrf.mxu0
  %v8200 = vadd.f32 0.0, %v8199
  %v8201 = vpop.f32.mrf.mxu0
  %8202 = vmatprep.mubr.f32.mxu0 0.0
  %8203 = vmatmul.mubr.f32.gmra.mxu0 %v1725
  %v8204 = vpop.f32.mrf.mxu0
  %v8205 = vadd.f32 0.0, %v8204
  %v8206 = vpop.f32.mrf.mxu0
  %8207 = vmatprep.mubr.f32.mxu0 0.0
  %8208 = vmatmul.mubr.f32.gmra.mxu0 %v1728
  %v8209 = vpop.f32.mrf.mxu0
  %v8210 = vadd.f32 0.0, %v8209
  %v8211 = vpop.f32.mrf.mxu0
  %8212 = vmatprep.mubr.f32.mxu0 0.0
  %8213 = vmatmul.mubr.f32.gmra.mxu0 %v1731
  %v8214 = vpop.f32.mrf.mxu0
  %v8215 = vadd.f32 0.0, %v8214
  %v8216 = vpop.f32.mrf.mxu0
  %8217 = vmatprep.mubr.f32.mxu0 0.0
  %8218 = vmatmul.mubr.f32.gmra.mxu0 %v1734
  %v8219 = vpop.f32.mrf.mxu0
  %v8220 = vadd.f32 0.0, %v8219
  %v8221 = vpop.f32.mrf.mxu0
  %8222 = vmatprep.mubr.f32.mxu0 0.0
  %8223 = vmatmul.mubr.f32.gmra.mxu0 %v1737
  %v8224 = vpop.f32.mrf.mxu0
  %v8225 = vadd.f32 0.0, %v8224
  %v8226 = vpop.f32.mrf.mxu0
  %8227 = vmatprep.mubr.f32.mxu0 0.0
  %8228 = vmatmul.mubr.f32.gmra.mxu0 %v1740
  %v8229 = vpop.f32.mrf.mxu0
  %v8230 = vadd.f32 0.0, %v8229
  %v8231 = vpop.f32.mrf.mxu0
  %8232 = vmatprep.mubr.f32.mxu0 0.0
  %8233 = vmatmul.mubr.f32.gmra.mxu0 %v1743
  %v8234 = vpop.f32.mrf.mxu0
  %v8235 = vadd.f32 0.0, %v8234
  %v8236 = vpop.f32.mrf.mxu0
  %8237 = vmatprep.mubr.f32.mxu0 0.0
  %8238 = vmatmul.mubr.f32.gmra.mxu0 %v1746
  %v8239 = vpop.f32.mrf.mxu0
  %v8240 = vadd.f32 0.0, %v8239
  %v8241 = vpop.f32.mrf.mxu0
  %8242 = vmatprep.mubr.f32.mxu0 0.0
  %8243 = vmatmul.mubr.f32.gmra.mxu0 %v1749
  %v8244 = vpop.f32.mrf.mxu0
  %v8245 = vadd.f32 0.0, %v8244
  %v8246 = vpop.f32.mrf.mxu0
  %8247 = vmatprep.mubr.f32.mxu0 0.0
  %8248 = vmatmul.mubr.f32.gmra.mxu0 %v1752
  %v8249 = vpop.f32.mrf.mxu0
  %v8250 = vadd.f32 0.0, %v8249
  %v8251 = vpop.f32.mrf.mxu0
  %8252 = vmatprep.mubr.f32.mxu0 0.0
  %8253 = vmatmul.mubr.f32.gmra.mxu0 %v1755
  %v8254 = vpop.f32.mrf.mxu0
  %v8255 = vadd.f32 0.0, %v8254
  %v8256 = vpop.f32.mrf.mxu0
  %8257 = vmatprep.mubr.f32.mxu0 0.0
  %8258 = vmatmul.mubr.f32.gmra.mxu0 %v1758
  %v8259 = vpop.f32.mrf.mxu0
  %v8260 = vadd.f32 0.0, %v8259
  %v8261 = vpop.f32.mrf.mxu0
  %8262 = vmatprep.mubr.f32.mxu0 0.0
  %8263 = vmatmul.mubr.f32.gmra.mxu0 %v1761
  %v8264 = vpop.f32.mrf.mxu0
  %v8265 = vadd.f32 0.0, %v8264
  %v8266 = vpop.f32.mrf.mxu0
  %8267 = vmatprep.mubr.f32.mxu0 0.0
  %8268 = vmatmul.mubr.f32.gmra.mxu0 %v1764
  %v8269 = vpop.f32.mrf.mxu0
  %v8270 = vadd.f32 0.0, %v8269
  %v8271 = vpop.f32.mrf.mxu0
  %8272 = vmatprep.mubr.f32.mxu0 0.0
  %8273 = vmatmul.mubr.f32.gmra.mxu0 %v1767
  %v8274 = vpop.f32.mrf.mxu0
  %v8275 = vadd.f32 0.0, %v8274
  %v8276 = vpop.f32.mrf.mxu0
  %8277 = vmatprep.mubr.f32.mxu0 0.0
  %8278 = vmatmul.mubr.f32.gmra.mxu0 %v1770
  %v8279 = vpop.f32.mrf.mxu0
  %v8280 = vadd.f32 0.0, %v8279
  %v8281 = vpop.f32.mrf.mxu0
  %8282 = vmatprep.mubr.f32.mxu0 0.0
  %8283 = vmatmul.mubr.f32.gmra.mxu0 %v1773
  %v8284 = vpop.f32.mrf.mxu0
  %v8285 = vadd.f32 0.0, %v8284
  %v8286 = vpop.f32.mrf.mxu0
  %8287 = vmatprep.mubr.f32.mxu0 0.0
  %8288 = vmatmul.mubr.f32.gmra.mxu0 %v1776
  %v8289 = vpop.f32.mrf.mxu0
  %v8290 = vadd.f32 0.0, %v8289
  %v8291 = vpop.f32.mrf.mxu0
  %8292 = vmatprep.mubr.f32.mxu0 0.0
  %8293 = vmatmul.mubr.f32.gmra.mxu0 %v1779
  %v8294 = vpop.f32.mrf.mxu0
  %v8295 = vadd.f32 0.0, %v8294
  %v8296 = vpop.f32.mrf.mxu0
  %8297 = vmatprep.mubr.f32.mxu0 0.0
  %8298 = vmatmul.mubr.f32.gmra.mxu0 %v1782
  %v8299 = vpop.f32.mrf.mxu0
  %v8300 = vadd.f32 0.0, %v8299
  %v8301 = vpop.f32.mrf.mxu0
  %8302 = vmatprep.mubr.f32.mxu0 0.0
  %8303 = vmatmul.mubr.f32.gmra.mxu0 %v1785
  %v8304 = vpop.f32.mrf.mxu0
  %v8305 = vadd.f32 0.0, %v8304
  %v8306 = vpop.f32.mrf.mxu0
  %8307 = vmatprep.mubr.f32.mxu0 0.0
  %8308 = vmatmul.mubr.f32.gmra.mxu0 %v1788
  %v8309 = vpop.f32.mrf.mxu0
  %v8310 = vadd.f32 0.0, %v8309
  %v8311 = vpop.f32.mrf.mxu0
  %8312 = vmatprep.mubr.f32.mxu0 0.0
  %8313 = vmatmul.mubr.f32.gmra.mxu0 %v1791
  %v8314 = vpop.f32.mrf.mxu0
  %v8315 = vadd.f32 0.0, %v8314
  %v8316 = vpop.f32.mrf.mxu0
  %8317 = vmatprep.mubr.f32.mxu0 0.0
  %8318 = vmatmul.mubr.f32.gmra.mxu0 %v1794
  %v8319 = vpop.f32.mrf.mxu0
  %v8320 = vadd.f32 0.0, %v8319
  %v8321 = vpop.f32.mrf.mxu0
  %8322 = vmatprep.mubr.f32.mxu0 0.0
  %8323 = vmatmul.mubr.f32.gmra.mxu0 %v1797
  %v8324 = vpop.f32.mrf.mxu0
  %v8325 = vadd.f32 0.0, %v8324
  %v8326 = vpop.f32.mrf.mxu0
  %8327 = vdwg.mxu0
  %s8328 = scalar_lea.vmem %s4, 128
  %v8329 = vld [vmem:[%s8328] sm:$0xff]
  %v8330 = vld [vmem:[%s8328 + $0x8] sm:$0xff]
  %v8332 = vsel %vm2419, %v8329, 0
  %v8335 = vsel %vm2419, %v8330, 0
  %8337 = vmatprep.subr.mxu0 0.0
  %8338 = vmatpush1.msra.mxu0 0.0
  %8339 = vmatprep.subr.mxu0 0.0
  %8340 = vmatpush1.msra.mxu0 0.0
  %8341 = vmatprep.subr.mxu0 0.0
  %8342 = vmatpush1.msra.mxu0 0.0
  %8343 = vmatprep.subr.mxu0 0.0
  %8344 = vmatpush1.msra.mxu0 0.0
  %8345 = vmatprep.subr.mxu0 0.0
  %8346 = vmatpush1.msra.mxu0 0.0
  %8347 = vmatprep.subr.mxu0 0.0
  %8348 = vmatpush1.msra.mxu0 0.0
  %8349 = vmatprep.subr.mxu0 0.0
  %8350 = vmatpush1.msra.mxu0 0.0
  %8351 = vmatprep.subr.mxu0 0.0
  %8352 = vmatpush1.msra.mxu0 0.0
  %8353 = vmatprep.subr.mxu0 0.0
  %8354 = vmatpush1.msra.mxu0 %v8125
  %8355 = vmatprep.subr.mxu0 0.0
  %8356 = vmatpush1.msra.mxu0 %v8120
  %8357 = vmatprep.subr.mxu0 0.0
  %8358 = vmatpush1.msra.mxu0 %v8115
  %8359 = vmatprep.subr.mxu0 0.0
  %8360 = vmatpush1.msra.mxu0 %v8110
  %8361 = vmatprep.subr.mxu0 0.0
  %8362 = vmatpush1.msra.mxu0 %v8105
  %8363 = vmatprep.subr.mxu0 0.0
  %8364 = vmatpush1.msra.mxu0 %v8100
  %8365 = vmatprep.subr.mxu0 0.0
  %8366 = vmatpush1.msra.mxu0 %v8095
  %8367 = vmatprep.subr.mxu0 0.0
  %8368 = vmatpush1.msra.mxu0 %v8090
  %8369 = vmatprep.subr.mxu0 0.0
  %8370 = vmatpush2.msra.mxu0 0.0
  %8371 = vmatprep.subr.mxu0 0.0
  %8372 = vmatpush2.msra.mxu0 0.0
  %8373 = vmatprep.subr.mxu0 0.0
  %8374 = vmatpush2.msra.mxu0 0.0
  %8375 = vmatprep.subr.mxu0 0.0
  %8376 = vmatpush2.msra.mxu0 0.0
  %8377 = vmatprep.subr.mxu0 0.0
  %8378 = vmatpush2.msra.mxu0 0.0
  %8379 = vmatprep.subr.mxu0 0.0
  %8380 = vmatpush2.msra.mxu0 0.0
  %8381 = vmatprep.subr.mxu0 0.0
  %8382 = vmatpush2.msra.mxu0 0.0
  %8383 = vmatprep.subr.mxu0 0.0
  %8384 = vmatpush2.msra.mxu0 0.0
  %8385 = vmatprep.subr.mxu0 0.0
  %8386 = vmatpush2.msra.mxu0 0.0
  %8387 = vmatprep.subr.mxu0 0.0
  %8388 = vmatpush2.msra.mxu0 0.0
  %8389 = vmatprep.subr.mxu0 0.0
  %8390 = vmatpush2.msra.mxu0 0.0
  %8391 = vmatprep.subr.mxu0 0.0
  %8392 = vmatpush2.msra.mxu0 0.0
  %8393 = vmatprep.subr.mxu0 0.0
  %8394 = vmatpush2.msra.mxu0 0.0
  %8395 = vmatprep.subr.mxu0 0.0
  %8396 = vmatpush2.msra.mxu0 0.0
  %8397 = vmatprep.subr.mxu0 0.0
  %8398 = vmatpush2.msra.mxu0 0.0
  %8399 = vmatprep.subr.mxu0 0.0
  %8400 = vmatpush2.msra.mxu0 0.0
  %8401 = vmatprep.mubr.f32.mxu0 0.0
  %8402 = vmatmul.mubr.f32.gmra.mxu0 %v8332
  %v8403 = vpop.f32.mrf.mxu0
  %v8404 = vadd.f32 0.0, %v8403
  %v8405 = vpop.f32.mrf.mxu0
  %8406 = vmatprep.mubr.f32.mxu0 0.0
  %8407 = vmatmul.mubr.f32.gmra.mxu0 %v8335
  %v8408 = vpop.f32.mrf.mxu0
  %v8409 = vadd.f32 0.0, %v8408
  %v8410 = vpop.f32.mrf.mxu0
  %8411 = vdwg.mxu0
  %8412 = vmatprep.subr.mxu0 0.0
  %8413 = vmatpush1.msra.mxu0 0.0
  %8414 = vmatprep.subr.mxu0 0.0
  %8415 = vmatpush1.msra.mxu0 0.0
  %8416 = vmatprep.subr.mxu0 0.0
  %8417 = vmatpush1.msra.mxu0 0.0
  %8418 = vmatprep.subr.mxu0 0.0
  %8419 = vmatpush1.msra.mxu0 0.0
  %8420 = vmatprep.subr.mxu0 0.0
  %8421 = vmatpush1.msra.mxu0 0.0
  %8422 = vmatprep.subr.mxu0 0.0
  %8423 = vmatpush1.msra.mxu0 0.0
  %8424 = vmatprep.subr.mxu0 0.0
  %8425 = vmatpush1.msra.mxu0 0.0
  %8426 = vmatprep.subr.mxu0 0.0
  %8427 = vmatpush1.msra.mxu0 0.0
  %8428 = vmatprep.subr.mxu0 0.0
  %8429 = vmatpush1.msra.mxu0 %v8165
  %8430 = vmatprep.subr.mxu0 0.0
  %8431 = vmatpush1.msra.mxu0 %v8160
  %8432 = vmatprep.subr.mxu0 0.0
  %8433 = vmatpush1.msra.mxu0 %v8155
  %8434 = vmatprep.subr.mxu0 0.0
  %8435 = vmatpush1.msra.mxu0 %v8150
  %8436 = vmatprep.subr.mxu0 0.0
  %8437 = vmatpush1.msra.mxu0 %v8145
  %8438 = vmatprep.subr.mxu0 0.0
  %8439 = vmatpush1.msra.mxu0 %v8140
  %8440 = vmatprep.subr.mxu0 0.0
  %8441 = vmatpush1.msra.mxu0 %v8135
  %8442 = vmatprep.subr.mxu0 0.0
  %8443 = vmatpush1.msra.mxu0 %v8130
  %8444 = vmatprep.subr.mxu0 0.0
  %8445 = vmatpush2.msra.mxu0 0.0
  %8446 = vmatprep.subr.mxu0 0.0
  %8447 = vmatpush2.msra.mxu0 0.0
  %8448 = vmatprep.subr.mxu0 0.0
  %8449 = vmatpush2.msra.mxu0 0.0
  %8450 = vmatprep.subr.mxu0 0.0
  %8451 = vmatpush2.msra.mxu0 0.0
  %8452 = vmatprep.subr.mxu0 0.0
  %8453 = vmatpush2.msra.mxu0 0.0
  %8454 = vmatprep.subr.mxu0 0.0
  %8455 = vmatpush2.msra.mxu0 0.0
  %8456 = vmatprep.subr.mxu0 0.0
  %8457 = vmatpush2.msra.mxu0 0.0
  %8458 = vmatprep.subr.mxu0 0.0
  %8459 = vmatpush2.msra.mxu0 0.0
  %8460 = vmatprep.subr.mxu0 0.0
  %8461 = vmatpush2.msra.mxu0 0.0
  %8462 = vmatprep.subr.mxu0 0.0
  %8463 = vmatpush2.msra.mxu0 0.0
  %8464 = vmatprep.subr.mxu0 0.0
  %8465 = vmatpush2.msra.mxu0 0.0
  %8466 = vmatprep.subr.mxu0 0.0
  %8467 = vmatpush2.msra.mxu0 0.0
  %8468 = vmatprep.subr.mxu0 0.0
  %8469 = vmatpush2.msra.mxu0 0.0
  %8470 = vmatprep.subr.mxu0 0.0
  %8471 = vmatpush2.msra.mxu0 0.0
  %8472 = vmatprep.subr.mxu0 0.0
  %8473 = vmatpush2.msra.mxu0 0.0
  %8474 = vmatprep.subr.mxu0 0.0
  %8475 = vmatpush2.msra.mxu0 0.0
  %8476 = vmatprep.mubr.f32.mxu0 0.0
  %8477 = vmatmul.mubr.f32.gmra.mxu0 %v8332
  %v8478 = vpop.f32.mrf.mxu0
  %v8479 = vadd.f32 0.0, %v8478
  %v8480 = vpop.f32.mrf.mxu0
  %8481 = vmatprep.mubr.f32.mxu0 0.0
  %8482 = vmatmul.mubr.f32.gmra.mxu0 %v8335
  %v8483 = vpop.f32.mrf.mxu0
  %v8484 = vadd.f32 0.0, %v8483
  %v8485 = vpop.f32.mrf.mxu0
  %8486 = vdwg.mxu0
  %8487 = vmatprep.subr.mxu0 0.0
  %8488 = vmatpush1.msra.mxu0 0.0
  %8489 = vmatprep.subr.mxu0 0.0
  %8490 = vmatpush1.msra.mxu0 0.0
  %8491 = vmatprep.subr.mxu0 0.0
  %8492 = vmatpush1.msra.mxu0 0.0
  %8493 = vmatprep.subr.mxu0 0.0
  %8494 = vmatpush1.msra.mxu0 0.0
  %8495 = vmatprep.subr.mxu0 0.0
  %8496 = vmatpush1.msra.mxu0 0.0
  %8497 = vmatprep.subr.mxu0 0.0
  %8498 = vmatpush1.msra.mxu0 0.0
  %8499 = vmatprep.subr.mxu0 0.0
  %8500 = vmatpush1.msra.mxu0 0.0
  %8501 = vmatprep.subr.mxu0 0.0
  %8502 = vmatpush1.msra.mxu0 0.0
  %8503 = vmatprep.subr.mxu0 0.0
  %8504 = vmatpush1.msra.mxu0 %v8205
  %8505 = vmatprep.subr.mxu0 0.0
  %8506 = vmatpush1.msra.mxu0 %v8200
  %8507 = vmatprep.subr.mxu0 0.0
  %8508 = vmatpush1.msra.mxu0 %v8195
  %8509 = vmatprep.subr.mxu0 0.0
  %8510 = vmatpush1.msra.mxu0 %v8190
  %8511 = vmatprep.subr.mxu0 0.0
  %8512 = vmatpush1.msra.mxu0 %v8185
  %8513 = vmatprep.subr.mxu0 0.0
  %8514 = vmatpush1.msra.mxu0 %v8180
  %8515 = vmatprep.subr.mxu0 0.0
  %8516 = vmatpush1.msra.mxu0 %v8175
  %8517 = vmatprep.subr.mxu0 0.0
  %8518 = vmatpush1.msra.mxu0 %v8170
  %8519 = vmatprep.subr.mxu0 0.0
  %8520 = vmatpush2.msra.mxu0 0.0
  %8521 = vmatprep.subr.mxu0 0.0
  %8522 = vmatpush2.msra.mxu0 0.0
  %8523 = vmatprep.subr.mxu0 0.0
  %8524 = vmatpush2.msra.mxu0 0.0
  %8525 = vmatprep.subr.mxu0 0.0
  %8526 = vmatpush2.msra.mxu0 0.0
  %8527 = vmatprep.subr.mxu0 0.0
  %8528 = vmatpush2.msra.mxu0 0.0
  %8529 = vmatprep.subr.mxu0 0.0
  %8530 = vmatpush2.msra.mxu0 0.0
  %8531 = vmatprep.subr.mxu0 0.0
  %8532 = vmatpush2.msra.mxu0 0.0
  %8533 = vmatprep.subr.mxu0 0.0
  %8534 = vmatpush2.msra.mxu0 0.0
  %8535 = vmatprep.subr.mxu0 0.0
  %8536 = vmatpush2.msra.mxu0 0.0
  %8537 = vmatprep.subr.mxu0 0.0
  %8538 = vmatpush2.msra.mxu0 0.0
  %8539 = vmatprep.subr.mxu0 0.0
  %8540 = vmatpush2.msra.mxu0 0.0
  %8541 = vmatprep.subr.mxu0 0.0
  %8542 = vmatpush2.msra.mxu0 0.0
  %8543 = vmatprep.subr.mxu0 0.0
  %8544 = vmatpush2.msra.mxu0 0.0
  %8545 = vmatprep.subr.mxu0 0.0
  %8546 = vmatpush2.msra.mxu0 0.0
  %8547 = vmatprep.subr.mxu0 0.0
  %8548 = vmatpush2.msra.mxu0 0.0
  %8549 = vmatprep.subr.mxu0 0.0
  %8550 = vmatpush2.msra.mxu0 0.0
  %8551 = vmatprep.mubr.f32.mxu0 0.0
  %8552 = vmatmul.mubr.f32.gmra.mxu0 %v8332
  %v8553 = vpop.f32.mrf.mxu0
  %v8554 = vadd.f32 0.0, %v8553
  %v8555 = vpop.f32.mrf.mxu0
  %8556 = vmatprep.mubr.f32.mxu0 0.0
  %8557 = vmatmul.mubr.f32.gmra.mxu0 %v8335
  %v8558 = vpop.f32.mrf.mxu0
  %v8559 = vadd.f32 0.0, %v8558
  %v8560 = vpop.f32.mrf.mxu0
  %8561 = vdwg.mxu0
  %8562 = vmatprep.subr.mxu0 0.0
  %8563 = vmatpush1.msra.mxu0 0.0
  %8564 = vmatprep.subr.mxu0 0.0
  %8565 = vmatpush1.msra.mxu0 0.0
  %8566 = vmatprep.subr.mxu0 0.0
  %8567 = vmatpush1.msra.mxu0 0.0
  %8568 = vmatprep.subr.mxu0 0.0
  %8569 = vmatpush1.msra.mxu0 0.0
  %8570 = vmatprep.subr.mxu0 0.0
  %8571 = vmatpush1.msra.mxu0 0.0
  %8572 = vmatprep.subr.mxu0 0.0
  %8573 = vmatpush1.msra.mxu0 0.0
  %8574 = vmatprep.subr.mxu0 0.0
  %8575 = vmatpush1.msra.mxu0 0.0
  %8576 = vmatprep.subr.mxu0 0.0
  %8577 = vmatpush1.msra.mxu0 0.0
  %8578 = vmatprep.subr.mxu0 0.0
  %8579 = vmatpush1.msra.mxu0 %v8245
  %8580 = vmatprep.subr.mxu0 0.0
  %8581 = vmatpush1.msra.mxu0 %v8240
  %8582 = vmatprep.subr.mxu0 0.0
  %8583 = vmatpush1.msra.mxu0 %v8235
  %8584 = vmatprep.subr.mxu0 0.0
  %8585 = vmatpush1.msra.mxu0 %v8230
  %8586 = vmatprep.subr.mxu0 0.0
  %8587 = vmatpush1.msra.mxu0 %v8225
  %8588 = vmatprep.subr.mxu0 0.0
  %8589 = vmatpush1.msra.mxu0 %v8220
  %8590 = vmatprep.subr.mxu0 0.0
  %8591 = vmatpush1.msra.mxu0 %v8215
  %8592 = vmatprep.subr.mxu0 0.0
  %8593 = vmatpush1.msra.mxu0 %v8210
  %8594 = vmatprep.subr.mxu0 0.0
  %8595 = vmatpush2.msra.mxu0 0.0
  %8596 = vmatprep.subr.mxu0 0.0
  %8597 = vmatpush2.msra.mxu0 0.0
  %8598 = vmatprep.subr.mxu0 0.0
  %8599 = vmatpush2.msra.mxu0 0.0
  %8600 = vmatprep.subr.mxu0 0.0
  %8601 = vmatpush2.msra.mxu0 0.0
  %8602 = vmatprep.subr.mxu0 0.0
  %8603 = vmatpush2.msra.mxu0 0.0
  %8604 = vmatprep.subr.mxu0 0.0
  %8605 = vmatpush2.msra.mxu0 0.0
  %8606 = vmatprep.subr.mxu0 0.0
  %8607 = vmatpush2.msra.mxu0 0.0
  %8608 = vmatprep.subr.mxu0 0.0
  %8609 = vmatpush2.msra.mxu0 0.0
  %8610 = vmatprep.subr.mxu0 0.0
  %8611 = vmatpush2.msra.mxu0 0.0
  %8612 = vmatprep.subr.mxu0 0.0
  %8613 = vmatpush2.msra.mxu0 0.0
  %8614 = vmatprep.subr.mxu0 0.0
  %8615 = vmatpush2.msra.mxu0 0.0
  %8616 = vmatprep.subr.mxu0 0.0
  %8617 = vmatpush2.msra.mxu0 0.0
  %8618 = vmatprep.subr.mxu0 0.0
  %8619 = vmatpush2.msra.mxu0 0.0
  %8620 = vmatprep.subr.mxu0 0.0
  %8621 = vmatpush2.msra.mxu0 0.0
  %8622 = vmatprep.subr.mxu0 0.0
  %8623 = vmatpush2.msra.mxu0 0.0
  %8624 = vmatprep.subr.mxu0 0.0
  %8625 = vmatpush2.msra.mxu0 0.0
  %8626 = vmatprep.mubr.f32.mxu0 0.0
  %8627 = vmatmul.mubr.f32.gmra.mxu0 %v8332
  %v8628 = vpop.f32.mrf.mxu0
  %v8629 = vadd.f32 0.0, %v8628
  %v8630 = vpop.f32.mrf.mxu0
  %8631 = vmatprep.mubr.f32.mxu0 0.0
  %8632 = vmatmul.mubr.f32.gmra.mxu0 %v8335
  %v8633 = vpop.f32.mrf.mxu0
  %v8634 = vadd.f32 0.0, %v8633
  %v8635 = vpop.f32.mrf.mxu0
  %8636 = vdwg.mxu0
  %8637 = vmatprep.subr.mxu0 0.0
  %8638 = vmatpush1.msra.mxu0 0.0
  %8639 = vmatprep.subr.mxu0 0.0
  %8640 = vmatpush1.msra.mxu0 0.0
  %8641 = vmatprep.subr.mxu0 0.0
  %8642 = vmatpush1.msra.mxu0 0.0
  %8643 = vmatprep.subr.mxu0 0.0
  %8644 = vmatpush1.msra.mxu0 0.0
  %8645 = vmatprep.subr.mxu0 0.0
  %8646 = vmatpush1.msra.mxu0 0.0
  %8647 = vmatprep.subr.mxu0 0.0
  %8648 = vmatpush1.msra.mxu0 0.0
  %8649 = vmatprep.subr.mxu0 0.0
  %8650 = vmatpush1.msra.mxu0 0.0
  %8651 = vmatprep.subr.mxu0 0.0
  %8652 = vmatpush1.msra.mxu0 0.0
  %8653 = vmatprep.subr.mxu0 0.0
  %8654 = vmatpush1.msra.mxu0 %v8285
  %8655 = vmatprep.subr.mxu0 0.0
  %8656 = vmatpush1.msra.mxu0 %v8280
  %8657 = vmatprep.subr.mxu0 0.0
  %8658 = vmatpush1.msra.mxu0 %v8275
  %8659 = vmatprep.subr.mxu0 0.0
  %8660 = vmatpush1.msra.mxu0 %v8270
  %8661 = vmatprep.subr.mxu0 0.0
  %8662 = vmatpush1.msra.mxu0 %v8265
  %8663 = vmatprep.subr.mxu0 0.0
  %8664 = vmatpush1.msra.mxu0 %v8260
  %8665 = vmatprep.subr.mxu0 0.0
  %8666 = vmatpush1.msra.mxu0 %v8255
  %8667 = vmatprep.subr.mxu0 0.0
  %8668 = vmatpush1.msra.mxu0 %v8250
  %8669 = vmatprep.subr.mxu0 0.0
  %8670 = vmatpush2.msra.mxu0 0.0
  %8671 = vmatprep.subr.mxu0 0.0
  %8672 = vmatpush2.msra.mxu0 0.0
  %8673 = vmatprep.subr.mxu0 0.0
  %8674 = vmatpush2.msra.mxu0 0.0
  %8675 = vmatprep.subr.mxu0 0.0
  %8676 = vmatpush2.msra.mxu0 0.0
  %8677 = vmatprep.subr.mxu0 0.0
  %8678 = vmatpush2.msra.mxu0 0.0
  %8679 = vmatprep.subr.mxu0 0.0
  %8680 = vmatpush2.msra.mxu0 0.0
  %8681 = vmatprep.subr.mxu0 0.0
  %8682 = vmatpush2.msra.mxu0 0.0
  %8683 = vmatprep.subr.mxu0 0.0
  %8684 = vmatpush2.msra.mxu0 0.0
  %8685 = vmatprep.subr.mxu0 0.0
  %8686 = vmatpush2.msra.mxu0 0.0
  %8687 = vmatprep.subr.mxu0 0.0
  %8688 = vmatpush2.msra.mxu0 0.0
  %8689 = vmatprep.subr.mxu0 0.0
  %8690 = vmatpush2.msra.mxu0 0.0
  %8691 = vmatprep.subr.mxu0 0.0
  %8692 = vmatpush2.msra.mxu0 0.0
  %8693 = vmatprep.subr.mxu0 0.0
  %8694 = vmatpush2.msra.mxu0 0.0
  %8695 = vmatprep.subr.mxu0 0.0
  %8696 = vmatpush2.msra.mxu0 0.0
  %8697 = vmatprep.subr.mxu0 0.0
  %8698 = vmatpush2.msra.mxu0 0.0
  %8699 = vmatprep.subr.mxu0 0.0
  %8700 = vmatpush2.msra.mxu0 0.0
  %8701 = vmatprep.mubr.f32.mxu0 0.0
  %8702 = vmatmul.mubr.f32.gmra.mxu0 %v8332
  %v8703 = vpop.f32.mrf.mxu0
  %v8704 = vadd.f32 0.0, %v8703
  %v8705 = vpop.f32.mrf.mxu0
  %8706 = vmatprep.mubr.f32.mxu0 0.0
  %8707 = vmatmul.mubr.f32.gmra.mxu0 %v8335
  %v8708 = vpop.f32.mrf.mxu0
  %v8709 = vadd.f32 0.0, %v8708
  %v8710 = vpop.f32.mrf.mxu0
  %8711 = vdwg.mxu0
  %8712 = vmatprep.subr.mxu0 0.0
  %8713 = vmatpush1.msra.mxu0 0.0
  %8714 = vmatprep.subr.mxu0 0.0
  %8715 = vmatpush1.msra.mxu0 0.0
  %8716 = vmatprep.subr.mxu0 0.0
  %8717 = vmatpush1.msra.mxu0 0.0
  %8718 = vmatprep.subr.mxu0 0.0
  %8719 = vmatpush1.msra.mxu0 0.0
  %8720 = vmatprep.subr.mxu0 0.0
  %8721 = vmatpush1.msra.mxu0 0.0
  %8722 = vmatprep.subr.mxu0 0.0
  %8723 = vmatpush1.msra.mxu0 0.0
  %8724 = vmatprep.subr.mxu0 0.0
  %8725 = vmatpush1.msra.mxu0 0.0
  %8726 = vmatprep.subr.mxu0 0.0
  %8727 = vmatpush1.msra.mxu0 0.0
  %8728 = vmatprep.subr.mxu0 0.0
  %8729 = vmatpush1.msra.mxu0 %v8325
  %8730 = vmatprep.subr.mxu0 0.0
  %8731 = vmatpush1.msra.mxu0 %v8320
  %8732 = vmatprep.subr.mxu0 0.0
  %8733 = vmatpush1.msra.mxu0 %v8315
  %8734 = vmatprep.subr.mxu0 0.0
  %8735 = vmatpush1.msra.mxu0 %v8310
  %8736 = vmatprep.subr.mxu0 0.0
  %8737 = vmatpush1.msra.mxu0 %v8305
  %8738 = vmatprep.subr.mxu0 0.0
  %8739 = vmatpush1.msra.mxu0 %v8300
  %8740 = vmatprep.subr.mxu0 0.0
  %8741 = vmatpush1.msra.mxu0 %v8295
  %8742 = vmatprep.subr.mxu0 0.0
  %8743 = vmatpush1.msra.mxu0 %v8290
  %8744 = vmatprep.subr.mxu0 0.0
  %8745 = vmatpush2.msra.mxu0 0.0
  %8746 = vmatprep.subr.mxu0 0.0
  %8747 = vmatpush2.msra.mxu0 0.0
  %8748 = vmatprep.subr.mxu0 0.0
  %8749 = vmatpush2.msra.mxu0 0.0
  %8750 = vmatprep.subr.mxu0 0.0
  %8751 = vmatpush2.msra.mxu0 0.0
  %8752 = vmatprep.subr.mxu0 0.0
  %8753 = vmatpush2.msra.mxu0 0.0
  %8754 = vmatprep.subr.mxu0 0.0
  %8755 = vmatpush2.msra.mxu0 0.0
  %8756 = vmatprep.subr.mxu0 0.0
  %8757 = vmatpush2.msra.mxu0 0.0
  %8758 = vmatprep.subr.mxu0 0.0
  %8759 = vmatpush2.msra.mxu0 0.0
  %8760 = vmatprep.subr.mxu0 0.0
  %8761 = vmatpush2.msra.mxu0 0.0
  %8762 = vmatprep.subr.mxu0 0.0
  %8763 = vmatpush2.msra.mxu0 0.0
  %8764 = vmatprep.subr.mxu0 0.0
  %8765 = vmatpush2.msra.mxu0 0.0
  %8766 = vmatprep.subr.mxu0 0.0
  %8767 = vmatpush2.msra.mxu0 0.0
  %8768 = vmatprep.subr.mxu0 0.0
  %8769 = vmatpush2.msra.mxu0 0.0
  %8770 = vmatprep.subr.mxu0 0.0
  %8771 = vmatpush2.msra.mxu0 0.0
  %8772 = vmatprep.subr.mxu0 0.0
  %8773 = vmatpush2.msra.mxu0 0.0
  %8774 = vmatprep.subr.mxu0 0.0
  %8775 = vmatpush2.msra.mxu0 0.0
  %8776 = vmatprep.mubr.f32.mxu0 0.0
  %8777 = vmatmul.mubr.f32.gmra.mxu0 %v8332
  %v8778 = vpop.f32.mrf.mxu0
  %v8779 = vadd.f32 0.0, %v8778
  %v8780 = vpop.f32.mrf.mxu0
  %8781 = vmatprep.mubr.f32.mxu0 0.0
  %8782 = vmatmul.mubr.f32.gmra.mxu0 %v8335
  %v8783 = vpop.f32.mrf.mxu0
  %v8784 = vadd.f32 0.0, %v8783
  %v8785 = vpop.f32.mrf.mxu0
  %8786 = vdwg.mxu0
  %v8787 = vadd.f32 %v8006, %v8404
  %v8788 = vadd.f32 %v8007, %v8409
  %v8789 = vadd.f32 %v8008, %v8479
  %v8790 = vadd.f32 %v8009, %v8484
  %v8791 = vadd.f32 %v8010, %v8554
  %v8792 = vadd.f32 %v8011, %v8559
  %v8793 = vadd.f32 %v8012, %v8629
  %v8794 = vadd.f32 %v8013, %v8634
  %v8795 = vadd.f32 %v8014, %v8704
  %v8796 = vadd.f32 %v8015, %v8709
  %v8797 = vadd.f32 %v8016, %v8779
  %v8798 = vadd.f32 %v8017, %v8784
  %v8799 = vsel %vm221, %v8787, 0.0
  %v8800 = vsel %vm221, %v8788, 0.0
  %v8801 = vadd.f32 %v8799, %v8800
  %v8802 = vrot.slane %v8801, 4
  %v8803 = vadd.f32 %v8801, %v8802
  %v8804 = vrot.slane %v8803, 2
  %v8805 = vadd.f32 %v8803, %v8804
  %v8806 = vrot.slane %v8805, 1
  %v8807 = vadd.f32 %v8805, %v8806
  %v8808 = vsel %vm221, %v8789, 0.0
  %v8809 = vsel %vm221, %v8790, 0.0
  %v8810 = vadd.f32 %v8808, %v8809
  %v8811 = vrot.slane %v8810, 4
  %v8812 = vadd.f32 %v8810, %v8811
  %v8813 = vrot.slane %v8812, 2
  %v8814 = vadd.f32 %v8812, %v8813
  %v8815 = vrot.slane %v8814, 1
  %v8816 = vadd.f32 %v8814, %v8815
  %v8817 = vsel %vm221, %v8791, 0.0
  %v8818 = vsel %vm221, %v8792, 0.0
  %v8819 = vadd.f32 %v8817, %v8818
  %v8820 = vrot.slane %v8819, 4
  %v8821 = vadd.f32 %v8819, %v8820
  %v8822 = vrot.slane %v8821, 2
  %v8823 = vadd.f32 %v8821, %v8822
  %v8824 = vrot.slane %v8823, 1
  %v8825 = vadd.f32 %v8823, %v8824
  %v8826 = vsel %vm221, %v8793, 0.0
  %v8827 = vsel %vm221, %v8794, 0.0
  %v8828 = vadd.f32 %v8826, %v8827
  %v8829 = vrot.slane %v8828, 4
  %v8830 = vadd.f32 %v8828, %v8829
  %v8831 = vrot.slane %v8830, 2
  %v8832 = vadd.f32 %v8830, %v8831
  %v8833 = vrot.slane %v8832, 1
  %v8834 = vadd.f32 %v8832, %v8833
  %v8835 = vsel %vm221, %v8795, 0.0
  %v8836 = vsel %vm221, %v8796, 0.0
  %v8837 = vadd.f32 %v8835, %v8836
  %v8838 = vrot.slane %v8837, 4
  %v8839 = vadd.f32 %v8837, %v8838
  %v8840 = vrot.slane %v8839, 2
  %v8841 = vadd.f32 %v8839, %v8840
  %v8842 = vrot.slane %v8841, 1
  %v8843 = vadd.f32 %v8841, %v8842
  %v8844 = vsel %vm221, %v8797, 0.0
  %v8845 = vsel %vm221, %v8798, 0.0
  %v8846 = vadd.f32 %v8844, %v8845
  %v8847 = vrot.slane %v8846, 4
  %v8848 = vadd.f32 %v8846, %v8847
  %v8849 = vrot.slane %v8848, 2
  %v8850 = vadd.f32 %v8848, %v8849
  %v8851 = vrot.slane %v8850, 1
  %v8852 = vadd.f32 %v8850, %v8851
  %v8853 = vrcp.pop 16.0
  %v8854 = vmul.f32 %v8807, %v8853
  %v8855 = vmul.f32 %v8816, %v8853
  %v8856 = vmul.f32 %v8825, %v8853
  %v8857 = vmul.f32 %v8834, %v8853
  %v8858 = vmul.f32 %v8843, %v8853
  %v8859 = vmul.f32 %v8852, %v8853
  %v8860 = vsub.f32 %v8787, %v8854
  %v8861 = vsub.f32 %v8788, %v8854
  %v8862 = vsub.f32 %v8789, %v8855
  %v8863 = vsub.f32 %v8790, %v8855
  %v8864 = vsub.f32 %v8791, %v8856
  %v8865 = vsub.f32 %v8792, %v8856
  %v8866 = vsub.f32 %v8793, %v8857
  %v8867 = vsub.f32 %v8794, %v8857
  %v8868 = vsub.f32 %v8795, %v8858
  %v8869 = vsub.f32 %v8796, %v8858
  %v8870 = vsub.f32 %v8797, %v8859
  %v8871 = vsub.f32 %v8798, %v8859
  %v8872 = vmul.f32 %v8860, %v8860
  %v8873 = vmul.f32 %v8861, %v8861
  %v8874 = vmul.f32 %v8862, %v8862
  %v8875 = vmul.f32 %v8863, %v8863
  %v8876 = vmul.f32 %v8864, %v8864
  %v8877 = vmul.f32 %v8865, %v8865
  %v8878 = vmul.f32 %v8866, %v8866
  %v8879 = vmul.f32 %v8867, %v8867
  %v8880 = vmul.f32 %v8868, %v8868
  %v8881 = vmul.f32 %v8869, %v8869
  %v8882 = vmul.f32 %v8870, %v8870
  %v8883 = vmul.f32 %v8871, %v8871
  %v8884 = vsel %vm221, %v8872, 0.0
  %v8885 = vsel %vm221, %v8873, 0.0
  %v8886 = vadd.f32 %v8884, %v8885
  %v8887 = vrot.slane %v8886, 4
  %v8888 = vadd.f32 %v8886, %v8887
  %v8889 = vrot.slane %v8888, 2
  %v8890 = vadd.f32 %v8888, %v8889
  %v8891 = vrot.slane %v8890, 1
  %v8892 = vadd.f32 %v8890, %v8891
  %v8893 = vsel %vm221, %v8874, 0.0
  %v8894 = vsel %vm221, %v8875, 0.0
  %v8895 = vadd.f32 %v8893, %v8894
  %v8896 = vrot.slane %v8895, 4
  %v8897 = vadd.f32 %v8895, %v8896
  %v8898 = vrot.slane %v8897, 2
  %v8899 = vadd.f32 %v8897, %v8898
  %v8900 = vrot.slane %v8899, 1
  %v8901 = vadd.f32 %v8899, %v8900
  %v8902 = vsel %vm221, %v8876, 0.0
  %v8903 = vsel %vm221, %v8877, 0.0
  %v8904 = vadd.f32 %v8902, %v8903
  %v8905 = vrot.slane %v8904, 4
  %v8906 = vadd.f32 %v8904, %v8905
  %v8907 = vrot.slane %v8906, 2
  %v8908 = vadd.f32 %v8906, %v8907
  %v8909 = vrot.slane %v8908, 1
  %v8910 = vadd.f32 %v8908, %v8909
  %v8911 = vsel %vm221, %v8878, 0.0
  %v8912 = vsel %vm221, %v8879, 0.0
  %v8913 = vadd.f32 %v8911, %v8912
  %v8914 = vrot.slane %v8913, 4
  %v8915 = vadd.f32 %v8913, %v8914
  %v8916 = vrot.slane %v8915, 2
  %v8917 = vadd.f32 %v8915, %v8916
  %v8918 = vrot.slane %v8917, 1
  %v8919 = vadd.f32 %v8917, %v8918
  %v8920 = vsel %vm221, %v8880, 0.0
  %v8921 = vsel %vm221, %v8881, 0.0
  %v8922 = vadd.f32 %v8920, %v8921
  %v8923 = vrot.slane %v8922, 4
  %v8924 = vadd.f32 %v8922, %v8923
  %v8925 = vrot.slane %v8924, 2
  %v8926 = vadd.f32 %v8924, %v8925
  %v8927 = vrot.slane %v8926, 1
  %v8928 = vadd.f32 %v8926, %v8927
  %v8929 = vsel %vm221, %v8882, 0.0
  %v8930 = vsel %vm221, %v8883, 0.0
  %v8931 = vadd.f32 %v8929, %v8930
  %v8932 = vrot.slane %v8931, 4
  %v8933 = vadd.f32 %v8931, %v8932
  %v8934 = vrot.slane %v8933, 2
  %v8935 = vadd.f32 %v8933, %v8934
  %v8936 = vrot.slane %v8935, 1
  %v8937 = vadd.f32 %v8935, %v8936
  %v8938 = vmul.f32 %v8892, %v8853
  %v8939 = vmul.f32 %v8901, %v8853
  %v8940 = vmul.f32 %v8910, %v8853
  %v8941 = vmul.f32 %v8919, %v8853
  %v8942 = vmul.f32 %v8928, %v8853
  %v8943 = vmul.f32 %v8937, %v8853
  %v8944 = vadd.f32 %v8938, 1e-05
  %v8945 = vadd.f32 %v8939, 1e-05
  %v8946 = vadd.f32 %v8940, 1e-05
  %v8947 = vadd.f32 %v8941, 1e-05
  %v8948 = vadd.f32 %v8942, 1e-05
  %v8949 = vadd.f32 %v8943, 1e-05
  %v8950 = vrsqrt.pop %v8944
  %v8951 = vrsqrt.pop %v8945
  %v8952 = vrsqrt.pop %v8946
  %v8953 = vrsqrt.pop %v8947
  %v8954 = vrsqrt.pop %v8948
  %v8955 = vrsqrt.pop %v8949
  %v8956 = vmul.f32 %v8860, %v8950
  %v8957 = vmul.f32 %v8861, %v8950
  %v8958 = vmul.f32 %v8862, %v8951
  %v8959 = vmul.f32 %v8863, %v8951
  %v8960 = vmul.f32 %v8864, %v8952
  %v8961 = vmul.f32 %v8865, %v8952
  %v8962 = vmul.f32 %v8866, %v8953
  %v8963 = vmul.f32 %v8867, %v8953
  %v8964 = vmul.f32 %v8868, %v8954
  %v8965 = vmul.f32 %v8869, %v8954
  %v8966 = vmul.f32 %v8870, %v8955
  %v8967 = vmul.f32 %v8871, %v8955
  %v8968 = vld [vmem:[%s6] sm:$0x1]
  %v8970 = vlaneseq
  %v8971 = vshrl.u32 %v8970, 7
  %v8972 = vsub.s32 0, %v8971
  %v8973 = vrot.slane %v8968, %v8972
  %v8975 = vmul.f32 %v8956, %v8973
  %v8976 = vmul.f32 %v8957, %v8973
  %v8977 = vmul.f32 %v8958, %v8973
  %v8978 = vmul.f32 %v8959, %v8973
  %v8979 = vmul.f32 %v8960, %v8973
  %v8980 = vmul.f32 %v8961, %v8973
  %v8981 = vmul.f32 %v8962, %v8973
  %v8982 = vmul.f32 %v8963, %v8973
  %v8983 = vmul.f32 %v8964, %v8973
  %v8984 = vmul.f32 %v8965, %v8973
  %v8985 = vmul.f32 %v8966, %v8973
  %v8986 = vmul.f32 %v8967, %v8973
  %v8987 = vld [vmem:[%s7] sm:$0x1]
  %v8989 = vlaneseq
  %v8990 = vshrl.u32 %v8989, 7
  %v8991 = vsub.s32 0, %v8990
  %v8992 = vrot.slane %v8987, %v8991
  %v8994 = vadd.f32 %v8975, %v8992
  %v8995 = vadd.f32 %v8976, %v8992
  %v8996 = vadd.f32 %v8977, %v8992
  %v8997 = vadd.f32 %v8978, %v8992
  %v8998 = vadd.f32 %v8979, %v8992
  %v8999 = vadd.f32 %v8980, %v8992
  %v9000 = vadd.f32 %v8981, %v8992
  %v9001 = vadd.f32 %v8982, %v8992
  %v9002 = vadd.f32 %v8983, %v8992
  %v9003 = vadd.f32 %v8984, %v8992
  %v9004 = vadd.f32 %v8985, %v8992
  %v9005 = vadd.f32 %v8986, %v8992
  %vm9006 = vcmp.ge.f32.partialorder %v8994, 0.0
  %vm9007 = vcmp.ge.f32.partialorder %v8995, 0.0
  %vm9008 = vcmp.ge.f32.partialorder %v8996, 0.0
  %vm9009 = vcmp.ge.f32.partialorder %v8997, 0.0
  %vm9010 = vcmp.ge.f32.partialorder %v8998, 0.0
  %vm9011 = vcmp.ge.f32.partialorder %v8999, 0.0
  %vm9012 = vcmp.ge.f32.partialorder %v9000, 0.0
  %vm9013 = vcmp.ge.f32.partialorder %v9001, 0.0
  %vm9014 = vcmp.ge.f32.partialorder %v9002, 0.0
  %vm9015 = vcmp.ge.f32.partialorder %v9003, 0.0
  %vm9016 = vcmp.ge.f32.partialorder %v9004, 0.0
  %vm9017 = vcmp.ge.f32.partialorder %v9005, 0.0
  %v9018 = vmul.f32 %v8994, 0.01
  %v9019 = vmul.f32 %v8995, 0.01
  %v9020 = vmul.f32 %v8996, 0.01
  %v9021 = vmul.f32 %v8997, 0.01
  %v9022 = vmul.f32 %v8998, 0.01
  %v9023 = vmul.f32 %v8999, 0.01
  %v9024 = vmul.f32 %v9000, 0.01
  %v9025 = vmul.f32 %v9001, 0.01
  %v9026 = vmul.f32 %v9002, 0.01
  %v9027 = vmul.f32 %v9003, 0.01
  %v9028 = vmul.f32 %v9004, 0.01
  %v9029 = vmul.f32 %v9005, 0.01
  %v9030 = vsel %vm9006, %v8994, %v9018
  %v9031 = vsel %vm9007, %v8995, %v9019
  %v9032 = vsel %vm9008, %v8996, %v9020
  %v9033 = vsel %vm9009, %v8997, %v9021
  %v9034 = vsel %vm9010, %v8998, %v9022
  %v9035 = vsel %vm9011, %v8999, %v9023
  %v9036 = vsel %vm9012, %v9000, %v9024
  %v9037 = vsel %vm9013, %v9001, %v9025
  %v9038 = vsel %vm9014, %v9002, %v9026
  %v9039 = vsel %vm9015, %v9003, %v9027
  %v9040 = vsel %vm9016, %v9004, %v9028
  %v9041 = vsel %vm9017, %v9005, %v9029
  %v9042 = vsel %vm221, %v9030, 0.0
  %v9043 = vsel %vm221, %v9031, 0.0
  %v9044 = vadd.f32 %v9042, %v9043
  %v9045 = vrot.slane %v9044, 4
  %v9046 = vadd.f32 %v9044, %v9045
  %v9047 = vrot.slane %v9046, 2
  %v9048 = vadd.f32 %v9046, %v9047
  %v9049 = vrot.slane %v9048, 1
  %v9050 = vadd.f32 %v9048, %v9049
  %v9051 = vsel %vm221, %v9032, 0.0
  %v9052 = vsel %vm221, %v9033, 0.0
  %v9053 = vadd.f32 %v9051, %v9052
  %v9054 = vrot.slane %v9053, 4
  %v9055 = vadd.f32 %v9053, %v9054
  %v9056 = vrot.slane %v9055, 2
  %v9057 = vadd.f32 %v9055, %v9056
  %v9058 = vrot.slane %v9057, 1
  %v9059 = vadd.f32 %v9057, %v9058
  %v9060 = vsel %vm221, %v9034, 0.0
  %v9061 = vsel %vm221, %v9035, 0.0
  %v9062 = vadd.f32 %v9060, %v9061
  %v9063 = vrot.slane %v9062, 4
  %v9064 = vadd.f32 %v9062, %v9063
  %v9065 = vrot.slane %v9064, 2
  %v9066 = vadd.f32 %v9064, %v9065
  %v9067 = vrot.slane %v9066, 1
  %v9068 = vadd.f32 %v9066, %v9067
  %v9069 = vsel %vm221, %v9036, 0.0
  %v9070 = vsel %vm221, %v9037, 0.0
  %v9071 = vadd.f32 %v9069, %v9070
  %v9072 = vrot.slane %v9071, 4
  %v9073 = vadd.f32 %v9071, %v9072
  %v9074 = vrot.slane %v9073, 2
  %v9075 = vadd.f32 %v9073, %v9074
  %v9076 = vrot.slane %v9075, 1
  %v9077 = vadd.f32 %v9075, %v9076
  %v9078 = vsel %vm221, %v9038, 0.0
  %v9079 = vsel %vm221, %v9039, 0.0
  %v9080 = vadd.f32 %v9078, %v9079
  %v9081 = vrot.slane %v9080, 4
  %v9082 = vadd.f32 %v9080, %v9081
  %v9083 = vrot.slane %v9082, 2
  %v9084 = vadd.f32 %v9082, %v9083
  %v9085 = vrot.slane %v9084, 1
  %v9086 = vadd.f32 %v9084, %v9085
  %v9087 = vsel %vm221, %v9040, 0.0
  %v9088 = vsel %vm221, %v9041, 0.0
  %v9089 = vadd.f32 %v9087, %v9088
  %v9090 = vrot.slane %v9089, 4
  %v9091 = vadd.f32 %v9089, %v9090
  %v9092 = vrot.slane %v9091, 2
  %v9093 = vadd.f32 %v9091, %v9092
  %v9094 = vrot.slane %v9093, 1
  %v9095 = vadd.f32 %v9093, %v9094
  %v9096 = vmul.f32 %v9050, %v8853
  %v9097 = vmul.f32 %v9059, %v8853
  %v9098 = vmul.f32 %v9068, %v8853
  %v9099 = vmul.f32 %v9077, %v8853
  %v9100 = vmul.f32 %v9086, %v8853
  %v9101 = vmul.f32 %v9095, %v8853
  %v9102 = vld [vmem:[%s8] sm:$0xff]
  %v9103 = vld [vmem:[%s8 + $0x8] sm:$0xff]
  %v9104 = vld [vmem:[%s8 + $0x10] sm:$0xff]
  %v9105 = vld [vmem:[%s8 + $0x18] sm:$0xff]
  %v9106 = vld [vmem:[%s9] sm:$0x1]
  %v9108 = vlaneseq
  %v9109 = vshrl.u32 %v9108, 7
  %v9110 = vsub.s32 0, %v9109
  %v9111 = vrot.slane %v9106, %v9110
  %vm9119 = vcmask 1041409
  %v9120 = vsel %vm9119, %v9097, %v9096
  %vm9121 = vcmask 1042434
  %v9122 = vsel %vm9121, %v9098, %v9120
  %vm9123 = vcmask 1043459
  %v9124 = vsel %vm9123, %v9099, %v9122
  %vm9125 = vcmask 1044484
  %v9126 = vsel %vm9125, %v9100, %v9124
  %vm9127 = vcmask 1045509
  %v9128 = vsel %vm9127, %v9101, %v9126
  %v9129 = vsel %vm221, %v9128, 0
  %9131 = vmatprep.subr.mxu0 0.0
  %9132 = vmatpush1.msra.mxu0 0.0
  %9133 = vmatprep.subr.mxu0 0.0
  %9134 = vmatpush1.msra.mxu0 0.0
  %9135 = vmatprep.subr.mxu0 0.0
  %9136 = vmatpush1.msra.mxu0 0.0
  %9137 = vmatprep.subr.mxu0 0.0
  %9138 = vmatpush1.msra.mxu0 0.0
  %9139 = vmatprep.subr.mxu0 0.0
  %9140 = vmatpush1.msra.mxu0 0.0
  %9141 = vmatprep.subr.mxu0 0.0
  %9142 = vmatpush1.msra.mxu0 0.0
  %9143 = vmatprep.subr.mxu0 0.0
  %9144 = vmatpush1.msra.mxu0 0.0
  %9145 = vmatprep.subr.mxu0 0.0
  %9146 = vmatpush1.msra.mxu0 0.0
  %9147 = vmatprep.subr.mxu0 0.0
  %9148 = vmatpush1.msra.mxu0 0.0
  %9149 = vmatprep.subr.mxu0 0.0
  %9150 = vmatpush1.msra.mxu0 0.0
  %9151 = vmatprep.subr.mxu0 0.0
  %9152 = vmatpush1.msra.mxu0 0.0
  %9153 = vmatprep.subr.mxu0 0.0
  %9154 = vmatpush1.msra.mxu0 0.0
  %9155 = vmatprep.subr.mxu0 0.0
  %9156 = vmatpush1.msra.mxu0 %v9105
  %9157 = vmatprep.subr.mxu0 0.0
  %9158 = vmatpush1.msra.mxu0 %v9104
  %9159 = vmatprep.subr.mxu0 0.0
  %9160 = vmatpush1.msra.mxu0 %v9103
  %9161 = vmatprep.subr.mxu0 0.0
  %9162 = vmatpush1.msra.mxu0 %v9102
  %9163 = vmatprep.subr.mxu0 0.0
  %9164 = vmatpush2.msra.mxu0 0.0
  %9165 = vmatprep.subr.mxu0 0.0
  %9166 = vmatpush2.msra.mxu0 0.0
  %9167 = vmatprep.subr.mxu0 0.0
  %9168 = vmatpush2.msra.mxu0 0.0
  %9169 = vmatprep.subr.mxu0 0.0
  %9170 = vmatpush2.msra.mxu0 0.0
  %9171 = vmatprep.subr.mxu0 0.0
  %9172 = vmatpush2.msra.mxu0 0.0
  %9173 = vmatprep.subr.mxu0 0.0
  %9174 = vmatpush2.msra.mxu0 0.0
  %9175 = vmatprep.subr.mxu0 0.0
  %9176 = vmatpush2.msra.mxu0 0.0
  %9177 = vmatprep.subr.mxu0 0.0
  %9178 = vmatpush2.msra.mxu0 0.0
  %9179 = vmatprep.subr.mxu0 0.0
  %9180 = vmatpush2.msra.mxu0 0.0
  %9181 = vmatprep.subr.mxu0 0.0
  %9182 = vmatpush2.msra.mxu0 0.0
  %9183 = vmatprep.subr.mxu0 0.0
  %9184 = vmatpush2.msra.mxu0 0.0
  %9185 = vmatprep.subr.mxu0 0.0
  %9186 = vmatpush2.msra.mxu0 0.0
  %9187 = vmatprep.subr.mxu0 0.0
  %9188 = vmatpush2.msra.mxu0 0.0
  %9189 = vmatprep.subr.mxu0 0.0
  %9190 = vmatpush2.msra.mxu0 0.0
  %9191 = vmatprep.subr.mxu0 0.0
  %9192 = vmatpush2.msra.mxu0 0.0
  %9193 = vmatprep.subr.mxu0 0.0
  %9194 = vmatpush2.msra.mxu0 0.0
  %9195 = vmatprep.mubr.f32.mxu0 0.0
  %9196 = vmatmul.mubr.f32.gmra.mxu0 %v9129
  %v9197 = vpop.f32.mrf.mxu0
  %v9198 = vadd.f32 %v9111, %v9197
  %v9199 = vpop.f32.mrf.mxu0
  %9200 = vdwg.mxu0
  %vm9201 = vcmp.ge.f32.partialorder %v9198, 0.0
  %v9202 = vmul.f32 %v9198, 0.01
  %v9203 = vsel %vm9201, %v9198, %v9202
  %v9204 = vld [vmem:[%s10] sm:$0x3f]
  %v9205 = vmul.f32 %v9203, %v9204
  %vm9206 = vcmask 259072
  %v9207 = vsel %vm9206, %v9205, 0.0
  %9208 = vadd.xlane.f32.xlu0 %v9207
  %v9209 = vpop.xlane.xlu0 %9208
  %v9210 = vld [vmem:[%s11] sm:$0x3f]
  %v9211 = vadd.f32 %v9209, %v9210
  %vm9212 = vcmask 5120
  %9213 = vst.msk [vmem:[%s12] sm:$0x3f] %vm9212, %v9211
  // Predicated region
  $region50: #{make_mtl_block_forward.1} parent=0 // pred_check
    _
  $region51: #{make_mtl_block_forward.1} parent=0 // pred_check_branch
    %9215 = sbr.rel (0) target = $region53
  $region52: #{make_mtl_block_forward.1} parent=0 // pred_region
    _
  $region53: #{make_mtl_block_forward.1} parent=0 // pred_fallthru
    _
  // Predicated region
  $region54: #{make_mtl_block_forward.1} parent=0 // pred_check
    _
  $region55: #{make_mtl_block_forward.1} parent=0 // pred_check_branch
    %9217 = sbr.rel (0) target = $region57
  $region56: #{make_mtl_block_forward.1} parent=0 // pred_region
    _
  $region57: #{make_mtl_block_forward.1} parent=0 // pred_fallthru
    _

</llo_original>
